<compile_context>
chip_gen: v5e
topology: v5e:2x2
jax: 0.10.0
libtpu: 0.0.40
codegen_flags: <defaults>
</compile_context>

<pallas_src>
import math

import numpy as np
import jax
import jax.numpy as jnp
from jax.experimental import pallas as pl
from jax.experimental.pallas import tpu as pltpu


# ----------------------------------------------------------------------------
# JAX-side glue (pure layout ops)
# ----------------------------------------------------------------------------
def pixel_shuffle(x, r):
    B, Crr, H, W = x.shape
    C = Crr // (r * r)
    return (x.reshape(B, C, r, r, H, W)
             .transpose(0, 1, 4, 2, 5, 3)
             .reshape(B, C, H * r, W * r))


def _dft_real_matrix(H, W):
    """Re(kron(F_H, F_W)) so that Re(fft2(X))_flat = X_flat @ M for real X,
    and Re(ifft2(R))_flat = (R_flat @ M) / (H*W) for real R."""
    FH = np.exp(-2j * np.pi * np.outer(np.arange(H), np.arange(H)) / H)
    FW = np.exp(-2j * np.pi * np.outer(np.arange(W), np.arange(W)) / W)
    return np.real(np.kron(FH, FW)).astype(np.float32)          # (HW, HW)


def _tap_masks(B, H, W, R):
    """(K*K, B*H*W) validity masks for tap offsets (dy, dx) in [-R, R]^2,
    row index = (dy+R)*(2R+1) + (dx+R). Zero where the source pixel would
    fall outside its own image (also kills roll wrap / cross-image leaks)."""
    idx = np.arange(H * W)
    r, c = idx // W, idx % W
    K = 2 * R + 1
    m = np.zeros((K * K, H * W), np.float32)
    for dy in range(-R, R + 1):
        for dx in range(-R, R + 1):
            t = (dy + R) * K + (dx + R)
            valid = (r + dy >= 0) & (r + dy < H) & (c + dx >= 0) & (c + dx < W)
            m[t] = valid.astype(np.float32)
    return np.tile(m, (1, B))


# ----------------------------------------------------------------------------
# Fused forward pass (one Pallas kernel)
# ----------------------------------------------------------------------------
def lirsrn_forward(params, x, *, scale_factor):
    B, in_ch, H, W = x.shape
    HW = H * W
    N = B * HW
    C = params["w_ca2"].shape[0]
    in_ch_pad = params["w_in"].shape[1] // 9
    cout = in_ch * scale_factor ** 2
    cout_pad = params["w_out"].shape[0]

    # Fold the batch into the lane axis: activations are (channels, B*H*W).
    x_f = jnp.transpose(x, (1, 0, 2, 3)).reshape(in_ch, N)
    if in_ch_pad > in_ch:
        x_f = jnp.concatenate(
            [x_f, jnp.zeros((in_ch_pad - in_ch, N), x.dtype)], axis=0)

    R = 3
    K7 = 2 * R + 1
    TAPS3 = [(dy, dx) for dy in (-1, 0, 1) for dx in (-1, 0, 1)]
    TAPS7 = [(dy, dx) for dy in range(-R, R + 1) for dx in range(-R, R + 1)]

    def mask_idx(dy, dx):
        return (dy + R) * K7 + (dx + R)

    def kernel(x_ref, mask_ref,
               w_in_ref, b_in_ref, w_bt_ref, b_bt_ref,
               w_ca1t_ref, b_ca1_ref, w_ca2_ref, b_ca2_ref,
               w_sp_ref, b_sp_ref,
               dsw_ref, dsb_ref, pww_ref, pwb_ref,
               dft_ref, cw12_ref, cb12_ref, w_sfb_ref, b_sfb_ref,
               w_out_ref, b_out_ref,
               o_ref):
        f32, bf16 = jnp.float32, jnp.bfloat16
        mask_cache = {}

        def tap(v, dy, dx):
            # y[:, p] = v[:, p + dy*W + dx] inside the image, 0 outside it.
            s = dy * W + dx
            y = v if s == 0 else pltpu.roll(v, (-s) % N, axis=1)
            if dy == 0 and dx == 0:
                return y
            if (dy, dx) not in mask_cache:
                i = mask_idx(dy, dx)
                mask_cache[(dy, dx)] = mask_ref[i:i + 1, :]
            return y * mask_cache[(dy, dx)]

        def mxu(w_b16, act):
            return jnp.dot(w_b16, act.astype(bf16), preferred_element_type=f32)

        def conv3x3(v, w_b16, bvec):
            # all 9 taps stacked along sublanes -> ONE MXU matmul
            stack = jnp.concatenate([tap(v, dy, dx) for dy, dx in TAPS3],
                                    axis=0)
            return mxu(w_b16, stack) + bvec

        def dsconv(v, k, out_relu):
            dw, db = dsw_ref[k], dsb_ref[k]          # (C, 9), (C, 1)  f32
            pw, pb = pww_ref[k], pwb_ref[k]          # (C, C) bf16, (C, 1) f32
            acc = dw[:, 0:1] * tap(v, *TAPS3[0])
            for t in range(1, 9):
                acc = acc + dw[:, t:t + 1] * tap(v, *TAPS3[t])
            acc = jnp.maximum(acc + db, 0.0)
            out = mxu(pw, acc) + pb
            return jnp.maximum(out, 0.0) if out_relu else out

        xin = x_ref[...]                                         # (in_ch_pad, N)

        # ---- conv_in (3x3 dense, stacked-tap matmul) -------------------------
        f = conv3x3(xin, w_in_ref[...], b_in_ref[...])           # (C, N)

        # ---- FusionModule ----------------------------------------------------
        bt = jax.nn.sigmoid(
            jnp.dot(w_bt_ref[...], f, preferred_element_type=f32)
            + b_bt_ref[...])                                     # (2, N)
        brtx = bt[0:1] * bt[1:2]

        # spatial attention: 7x7 conv on (avg, max) as 49 shifted-tap VPU FMAs
        avg = jnp.mean(f, axis=0, keepdims=True)                 # (1, N)
        mxc = jnp.max(f, axis=0, keepdims=True)                  # (1, N)
        spw = w_sp_ref[...]                                      # (2, 49) f32
        acc_sp = None
        for t, (dy, dx) in enumerate(TAPS7):
            term = (tap(avg, dy, dx) * spw[0:1, t:t + 1]
                    + tap(mxc, dy, dx) * spw[1:2, t:t + 1])
            acc_sp = term if acc_sp is None else acc_sp + term
        sp = jax.nn.sigmoid(acc_sp + b_sp_ref[...])              # (1, N)

        # channel attention: per-image global pool + tiny 2-layer MLP (VPU)
        ca_parts = []
        for b in range(B):
            pooled = jnp.mean(f[:, b * HW:(b + 1) * HW], axis=1,
                              keepdims=True)                     # (C, 1)
            hmid = jnp.maximum(
                jnp.sum(w_ca1t_ref[...] * pooled, axis=0, keepdims=True)
                + b_ca1_ref[...], 0.0)                           # (1, C//2)
            ca = jax.nn.sigmoid(
                jnp.sum(w_ca2_ref[...] * hmid, axis=1, keepdims=True)
                + b_ca2_ref[...])                                # (C, 1)
            ca_parts.append(jnp.broadcast_to(ca, (C, HW)))
        ca_full = jnp.concatenate(ca_parts, axis=1)              # (C, N)

        f = f * (brtx * sp) * ca_full

        # ---- conv_mid / conv_high (depthwise separable) ----------------------
        f = dsconv(f, 0, False)
        f = dsconv(f, 1, False)

        # ---- SpatialFrequencyBlock: Re(fft2) -> 1x1 convs -> Re(ifft2) -------
        dftm = dft_ref[...]                                      # (HW, HW) bf16

        def re_dft2(v):
            # per-image right-multiplication by the real 2-D DFT operator
            return jnp.concatenate(
                [jnp.dot(v[:, b * HW:(b + 1) * HW].astype(bf16), dftm,
                         preferred_element_type=f32) for b in range(B)],
                axis=1)

        fr = re_dft2(f)                                          # Re(fft2)
        fr = jnp.maximum(mxu(cw12_ref[0], fr) + cb12_ref[0], 0.0)
        fr = jnp.maximum(mxu(cw12_ref[1], fr) + cb12_ref[1], 0.0)
        fr = re_dft2(fr) * (1.0 / HW)                            # Re(ifft2)
        f = (mxu(w_sfb_ref[...], jnp.concatenate([f, fr], axis=0))
             + b_sfb_ref[...])

        # ---- ResidualBlock ---------------------------------------------------
        r = dsconv(f, 2, True)
        r = dsconv(r, 3, False)
        f = f + r

        # ---- conv_out (3x3 dense) + tanh (commutes with pixel shuffle) ------
        out = conv3x3(f, w_out_ref[...], b_out_ref[...])         # (cout_pad, N)
        o_ref[...] = jnp.tanh(out)

    weight_order = ["masks", "w_in", "b_in", "w_bt", "b_bt",
                    "w_ca1t", "b_ca1", "w_ca2", "b_ca2", "w_sp", "b_sp",
                    "dsw", "dsb", "pww", "pwb",
                    "dft", "cw12", "cb12", "w_sfb", "b_sfb",
                    "w_out", "b_out"]
    weights = [params[k] for k in weight_order]

    def const_spec(a):
        zeros = (0,) * a.ndim
        return pl.BlockSpec(a.shape, lambda i, _z=zeros: _z)

    out = pl.pallas_call(
        kernel,
        out_shape=jax.ShapeDtypeStruct((cout_pad, N), jnp.float32),
        grid=(1,),
        in_specs=[const_spec(a) for a in ([x_f] + weights)],
        out_specs=pl.BlockSpec((cout_pad, N), lambda i: (0, 0)),
        compiler_params=pltpu.CompilerParams(
            dimension_semantics=("arbitrary",),
            vmem_limit_bytes=32 * 1024 * 1024),
    )(x_f, *weights)

    out = out[:cout].reshape(cout, B, H, W).transpose(1, 0, 2, 3)
    return pixel_shuffle(out, scale_factor)


# ----------------------------------------------------------------------------
# Deterministic PyTorch-shaped parameter init + conversion to kernel layout
# ----------------------------------------------------------------------------
def init_raw_params(key, in_ch, C, sf):
    keys = iter(jax.random.split(key, 64))

    def conv(cout, cin, k, groups=1):
        fan_in = (cin // groups) * k * k
        bnd = 1.0 / math.sqrt(fan_in)
        w = jax.random.uniform(next(keys), (cout, cin // groups, k, k),
                               jnp.float32, -bnd, bnd)
        b = jax.random.uniform(next(keys), (cout,), jnp.float32, -bnd, bnd)
        return w, b

    def ds():
        dw_w, dw_b = conv(C, C, 3, groups=C)          # (C, 1, 3, 3)
        pw_w, pw_b = conv(C, C, 1)
        return (dw_w, dw_b, pw_w, pw_b)

    raw = {}
    raw["conv_in_w"], raw["conv_in_b"] = conv(C, in_ch, 3)
    raw["br_w"], raw["br_b"] = conv(1, C, 1)
    raw["tx_w"], raw["tx_b"] = conv(1, C, 1)
    raw["ca1_w"], raw["ca1_b"] = conv(C // 2, C, 1)
    raw["ca2_w"], raw["ca2_b"] = conv(C, C // 2, 1)
    raw["sp_w"], raw["sp_b"] = conv(1, 2, 7)
    # NOTE: fusion_weights (3,) exists in the torch module but is unused in forward.
    raw["mid"] = ds()
    raw["high"] = ds()
    raw["ffc1_w"], raw["ffc1_b"] = conv(C, C, 1)
    raw["ffc2_w"], raw["ffc2_b"] = conv(C, C, 1)
    raw["sfb_w"], raw["sfb_b"] = conv(C, 2 * C, 1)
    raw["res1"] = ds()
    raw["res2"] = ds()
    raw["conv_out_w"], raw["conv_out_b"] = conv(in_ch * sf * sf, C, 3)
    return raw


def to_pallas_params(raw, in_ch, C, sf, H, W, B):
    f32, bf16 = jnp.float32, jnp.bfloat16
    in_ch_pad = ((in_ch + 7) // 8) * 8
    cout = in_ch * sf * sf
    cout_pad = ((cout + 7) // 8) * 8

    def pack3(w, b, cin_pad, cout_pad_):
        w = np.asarray(w, np.float32)
        b = np.asarray(b, np.float32)
        co, ci = w.shape[0], w.shape[1]
        wp = np.zeros((cout_pad_, 9 * cin_pad), np.float32)
        for ky in range(3):
            for kx in range(3):
                t = ky * 3 + kx
                wp[:co, t * cin_pad:t * cin_pad + ci] = w[:, :, ky, kx]
        bp = np.zeros((cout_pad_, 1), np.float32)
        bp[:co, 0] = b
        return wp, bp

    p = {}
    w_in, b_in = pack3(raw["conv_in_w"], raw["conv_in_b"], in_ch_pad, C)
    p["w_in"], p["b_in"] = jnp.asarray(w_in, bf16), jnp.asarray(b_in, f32)

    p["w_bt"] = jnp.asarray(np.concatenate(
        [np.asarray(raw["br_w"]).reshape(1, C),
         np.asarray(raw["tx_w"]).reshape(1, C)], axis=0), f32)
    p["b_bt"] = jnp.asarray(np.concatenate(
        [np.asarray(raw["br_b"]), np.asarray(raw["tx_b"])]).reshape(2, 1), f32)
    p["w_ca1t"] = jnp.asarray(np.asarray(raw["ca1_w"]).reshape(C // 2, C).T, f32)
    p["b_ca1"] = jnp.asarray(np.asarray(raw["ca1_b"]).reshape(1, C // 2), f32)
    p["w_ca2"] = jnp.asarray(np.asarray(raw["ca2_w"]).reshape(C, C // 2), f32)
    p["b_ca2"] = jnp.asarray(np.asarray(raw["ca2_b"]).reshape(C, 1), f32)
    p["w_sp"] = jnp.asarray(np.asarray(raw["sp_w"]).reshape(2, 49), f32)
    p["b_sp"] = jnp.asarray(np.asarray(raw["sp_b"]).reshape(1, 1), f32)

    dsw, dsb, pww, pwb = [], [], [], []
    for name in ("mid", "high", "res1", "res2"):
        dw_w, dw_b, pw_w, pw_b = raw[name]
        dsw.append(np.asarray(dw_w).reshape(C, 9))
        dsb.append(np.asarray(dw_b).reshape(C, 1))
        pww.append(np.asarray(pw_w).reshape(C, C))
        pwb.append(np.asarray(pw_b).reshape(C, 1))
    p["dsw"] = jnp.asarray(np.stack(dsw), f32)
    p["dsb"] = jnp.asarray(np.stack(dsb), f32)
    p["pww"] = jnp.asarray(np.stack(pww), bf16)
    p["pwb"] = jnp.asarray(np.stack(pwb), f32)

    p["dft"] = jnp.asarray(_dft_real_matrix(H, W), bf16)
    p["cw12"] = jnp.asarray(np.stack(
        [np.asarray(raw["ffc1_w"]).reshape(C, C),
         np.asarray(raw["ffc2_w"]).reshape(C, C)]), bf16)
    p["cb12"] = jnp.asarray(np.stack(
        [np.asarray(raw["ffc1_b"]).reshape(C, 1),
         np.asarray(raw["ffc2_b"]).reshape(C, 1)]), f32)
    p["w_sfb"] = jnp.asarray(np.asarray(raw["sfb_w"]).reshape(C, 2 * C), bf16)
    p["b_sfb"] = jnp.asarray(np.asarray(raw["sfb_b"]).reshape(C, 1), f32)

    w_out, b_out = pack3(raw["conv_out_w"], raw["conv_out_b"], C, cout_pad)
    p["w_out"], p["b_out"] = jnp.asarray(w_out, bf16), jnp.asarray(b_out, f32)

    p["masks"] = jnp.asarray(_tap_masks(B, H, W, 3), f32)
    return p


# ----------------------------------------------------------------------------
# Pure-JAX (XLA) reference matching the PyTorch module semantics
# ----------------------------------------------------------------------------
def _conv_ref(x, w, b, pad, groups=1):
    out = jax.lax.conv_general_dilated(
        x, w, (1, 1), [(pad, pad), (pad, pad)],
        dimension_numbers=("NCHW", "OIHW", "NCHW"),
        feature_group_count=groups, precision=jax.lax.Precision.HIGHEST)
    return out + b.reshape(1, -1, 1, 1)


def reference_forward(raw, x, sf):
    C = raw["conv_in_w"].shape[0]

    def ds_ref(v, t):
        dw_w, dw_b, pw_w, pw_b = t
        y = jax.nn.relu(_conv_ref(v, dw_w, dw_b, 1, groups=C))
        return _conv_ref(y, pw_w, pw_b, 0)

    f = _conv_ref(x, raw["conv_in_w"], raw["conv_in_b"], 1)
    br = jax.nn.sigmoid(_conv_ref(f, raw["br_w"], raw["br_b"], 0))
    tx = jax.nn.sigmoid(_conv_ref(f, raw["tx_w"], raw["tx_b"], 0))
    pooled = jnp.mean(f, axis=(2, 3), keepdims=True)
    h = jax.nn.relu(_conv_ref(pooled, raw["ca1_w"], raw["ca1_b"], 0))
    ca = jax.nn.sigmoid(_conv_ref(h, raw["ca2_w"], raw["ca2_b"], 0))
    avg = jnp.mean(f, axis=1, keepdims=True)
    mx = jnp.max(f, axis=1, keepdims=True)
    sp = jax.nn.sigmoid(_conv_ref(jnp.concatenate([avg, mx], axis=1),
                                  raw["sp_w"], raw["sp_b"], 3))
    f = f * (br * tx * sp) * ca
    f = ds_ref(f, raw["mid"])
    f = ds_ref(f, raw["high"])
    fr = jnp.fft.fft2(f, axes=(-2, -1)).real.astype(jnp.float32)
    fr = jax.nn.relu(_conv_ref(fr, raw["ffc1_w"], raw["ffc1_b"], 0))
    fr = jax.nn.relu(_conv_ref(fr, raw["ffc2_w"], raw["ffc2_b"], 0))
    fr = jnp.fft.ifft2(fr.astype(jnp.complex64), axes=(-2, -1)).real.astype(jnp.float32)
    f = _conv_ref(jnp.concatenate([f, fr], axis=1), raw["sfb_w"], raw["sfb_b"], 0)
    r = jax.nn.relu(ds_ref(f, raw["res1"]))
    r = ds_ref(r, raw["res2"])
    f = f + r
    out = _conv_ref(f, raw["conv_out_w"], raw["conv_out_b"], 1)
    return jnp.tanh(pixel_shuffle(out, sf))


# ----------------------------------------------------------------------------
if __name__ == "__main__":
    IN_CH, C, SF = 3, 16, 2
    B, H, W = 2, 16, 16

    key = jax.random.PRNGKey(0)
    kparams, kx = jax.random.split(key)
    raw = init_raw_params(kparams, IN_CH, C, SF)
    params = to_pallas_params(raw, IN_CH, C, SF, H, W, B)
    x = jax.random.normal(kx, (B, IN_CH, H, W), jnp.float32)

    fwd = jax.jit(lambda p, v: lirsrn_forward(p, v, scale_factor=SF))
    out = jax.block_until_ready(fwd(params, x))

    assert out.shape == (B, IN_CH, H * SF, W * SF), out.shape
    assert bool(jnp.all(jnp.isfinite(out)))

    ref = reference_forward(raw, x, SF)
    err = float(jnp.max(jnp.abs(out - ref)))
    # bf16 MXU operands (f32 accumulate) -> slightly looser tolerance than f32.
    assert err < 5e-2, f"max abs error vs reference: {err}"

    print("KERNEL_OK")
</pallas_src>

<mosaic_0001>
module attributes {stable_mosaic.version = 11 : i64} {
  func.func @kernel(%arg0: i32, %arg1: memref<8x512xf32, #tpu.memory_space<vmem>>, %arg2: memref<49x512xf32, #tpu.memory_space<vmem>>, %arg3: memref<16x72xbf16, #tpu.memory_space<vmem>>, %arg4: memref<16x1xf32, #tpu.memory_space<vmem>>, %arg5: memref<2x16xf32, #tpu.memory_space<vmem>>, %arg6: memref<2x1xf32, #tpu.memory_space<vmem>>, %arg7: memref<16x8xf32, #tpu.memory_space<vmem>>, %arg8: memref<1x8xf32, #tpu.memory_space<vmem>>, %arg9: memref<16x8xf32, #tpu.memory_space<vmem>>, %arg10: memref<16x1xf32, #tpu.memory_space<vmem>>, %arg11: memref<2x49xf32, #tpu.memory_space<vmem>>, %arg12: memref<1x1xf32, #tpu.memory_space<vmem>>, %arg13: memref<4x16x9xf32, #tpu.memory_space<vmem>>, %arg14: memref<4x16x1xf32, #tpu.memory_space<vmem>>, %arg15: memref<4x16x16xbf16, #tpu.memory_space<vmem>>, %arg16: memref<4x16x1xf32, #tpu.memory_space<vmem>>, %arg17: memref<256x256xbf16, #tpu.memory_space<vmem>>, %arg18: memref<2x16x16xbf16, #tpu.memory_space<vmem>>, %arg19: memref<2x16x1xf32, #tpu.memory_space<vmem>>, %arg20: memref<16x32xbf16, #tpu.memory_space<vmem>>, %arg21: memref<16x1xf32, #tpu.memory_space<vmem>>, %arg22: memref<16x144xbf16, #tpu.memory_space<vmem>>, %arg23: memref<16x1xf32, #tpu.memory_space<vmem>>, %arg24: memref<16x512xf32, #tpu.memory_space<vmem>>) attributes {dimension_semantics = [#tpu.dimension_semantics<arbitrary>], iteration_bounds = array<i64: 1>, scalar_prefetch = 0 : i64, scratch_operands = 0 : i64, tpu.core_type = #tpu.core_type<tc>, window_params = [{pipeline_mode = #tpu.pipeline_mode<synchronous>, transform_indices = @transform_0, window_bounds = array<i64: 8, 512>}, {pipeline_mode = #tpu.pipeline_mode<synchronous>, transform_indices = @transform_1, window_bounds = array<i64: 49, 512>}, {pipeline_mode = #tpu.pipeline_mode<synchronous>, transform_indices = @transform_2, window_bounds = array<i64: 16, 72>}, {pipeline_mode = #tpu.pipeline_mode<synchronous>, transform_indices = @transform_3, window_bounds = array<i64: 16, 1>}, {pipeline_mode = #tpu.pipeline_mode<synchronous>, transform_indices = @transform_4, window_bounds = array<i64: 2, 16>}, {pipeline_mode = #tpu.pipeline_mode<synchronous>, transform_indices = @transform_5, window_bounds = array<i64: 2, 1>}, {pipeline_mode = #tpu.pipeline_mode<synchronous>, transform_indices = @transform_6, window_bounds = array<i64: 16, 8>}, {pipeline_mode = #tpu.pipeline_mode<synchronous>, transform_indices = @transform_7, window_bounds = array<i64: 1, 8>}, {pipeline_mode = #tpu.pipeline_mode<synchronous>, transform_indices = @transform_8, window_bounds = array<i64: 16, 8>}, {pipeline_mode = #tpu.pipeline_mode<synchronous>, transform_indices = @transform_9, window_bounds = array<i64: 16, 1>}, {pipeline_mode = #tpu.pipeline_mode<synchronous>, transform_indices = @transform_10, window_bounds = array<i64: 2, 49>}, {pipeline_mode = #tpu.pipeline_mode<synchronous>, transform_indices = @transform_11, window_bounds = array<i64: 1, 1>}, {pipeline_mode = #tpu.pipeline_mode<synchronous>, transform_indices = @transform_12, window_bounds = array<i64: 4, 16, 9>}, {pipeline_mode = #tpu.pipeline_mode<synchronous>, transform_indices = @transform_13, window_bounds = array<i64: 4, 16, 1>}, {pipeline_mode = #tpu.pipeline_mode<synchronous>, transform_indices = @transform_14, window_bounds = array<i64: 4, 16, 16>}, {pipeline_mode = #tpu.pipeline_mode<synchronous>, transform_indices = @transform_15, window_bounds = array<i64: 4, 16, 1>}, {pipeline_mode = #tpu.pipeline_mode<synchronous>, transform_indices = @transform_16, window_bounds = array<i64: 256, 256>}, {pipeline_mode = #tpu.pipeline_mode<synchronous>, transform_indices = @transform_17, window_bounds = array<i64: 2, 16, 16>}, {pipeline_mode = #tpu.pipeline_mode<synchronous>, transform_indices = @transform_18, window_bounds = array<i64: 2, 16, 1>}, {pipeline_mode = #tpu.pipeline_mode<synchronous>, transform_indices = @transform_19, window_bounds = array<i64: 16, 32>}, {pipeline_mode = #tpu.pipeline_mode<synchronous>, transform_indices = @transform_20, window_bounds = array<i64: 16, 1>}, {pipeline_mode = #tpu.pipeline_mode<synchronous>, transform_indices = @transform_21, window_bounds = array<i64: 16, 144>}, {pipeline_mode = #tpu.pipeline_mode<synchronous>, transform_indices = @transform_22, window_bounds = array<i64: 16, 1>}, {pipeline_mode = #tpu.pipeline_mode<synchronous>, transform_indices = @transform_23, window_bounds = array<i64: 16, 512>}]} {
    %c0 = arith.constant 0 : index
    %c0_0 = arith.constant 0 : index
    %0 = vector.load %arg1[%c0, %c0_0] : memref<8x512xf32, #tpu.memory_space<vmem>>, vector<8x512xf32>
    %c0_1 = arith.constant 0 : index
    %c0_2 = arith.constant 0 : index
    %1 = vector.load %arg3[%c0_1, %c0_2] : memref<16x72xbf16, #tpu.memory_space<vmem>>, vector<16x72xbf16>
    %c0_3 = arith.constant 0 : index
    %c0_4 = arith.constant 0 : index
    %2 = vector.load %arg4[%c0_3, %c0_4] : memref<16x1xf32, #tpu.memory_space<vmem>>, vector<16x1xf32>
    %c17_i32 = arith.constant 17 : i32
    %3 = tpu.dynamic_rotate %0 by %c17_i32 dim 1 : vector<8x512xf32>, i32 -> vector<8x512xf32>
    %c16 = arith.constant 16 : index
    %c0_5 = arith.constant 0 : index
    %4 = vector.load %arg2[%c16, %c0_5] : memref<49x512xf32, #tpu.memory_space<vmem>>, vector<1x512xf32>
    %5 = vector.broadcast %4 : vector<1x512xf32> to vector<8x512xf32>
    %6 = arith.mulf %3, %5 : vector<8x512xf32>
    %c16_i32 = arith.constant 16 : i32
    %7 = tpu.dynamic_rotate %0 by %c16_i32 dim 1 : vector<8x512xf32>, i32 -> vector<8x512xf32>
    %c17 = arith.constant 17 : index
    %c0_6 = arith.constant 0 : index
    %8 = vector.load %arg2[%c17, %c0_6] : memref<49x512xf32, #tpu.memory_space<vmem>>, vector<1x512xf32>
    %9 = vector.broadcast %8 : vector<1x512xf32> to vector<8x512xf32>
    %10 = arith.mulf %7, %9 : vector<8x512xf32>
    %c15_i32 = arith.constant 15 : i32
    %11 = tpu.dynamic_rotate %0 by %c15_i32 dim 1 : vector<8x512xf32>, i32 -> vector<8x512xf32>
    %c18 = arith.constant 18 : index
    %c0_7 = arith.constant 0 : index
    %12 = vector.load %arg2[%c18, %c0_7] : memref<49x512xf32, #tpu.memory_space<vmem>>, vector<1x512xf32>
    %13 = vector.broadcast %12 : vector<1x512xf32> to vector<8x512xf32>
    %14 = arith.mulf %11, %13 : vector<8x512xf32>
    %c1_i32 = arith.constant 1 : i32
    %15 = tpu.dynamic_rotate %0 by %c1_i32 dim 1 : vector<8x512xf32>, i32 -> vector<8x512xf32>
    %c23 = arith.constant 23 : index
    %c0_8 = arith.constant 0 : index
    %16 = vector.load %arg2[%c23, %c0_8] : memref<49x512xf32, #tpu.memory_space<vmem>>, vector<1x512xf32>
    %17 = vector.broadcast %16 : vector<1x512xf32> to vector<8x512xf32>
    %18 = arith.mulf %15, %17 : vector<8x512xf32>
    %c511_i32 = arith.constant 511 : i32
    %19 = tpu.dynamic_rotate %0 by %c511_i32 dim 1 : vector<8x512xf32>, i32 -> vector<8x512xf32>
    %c25 = arith.constant 25 : index
    %c0_9 = arith.constant 0 : index
    %20 = vector.load %arg2[%c25, %c0_9] : memref<49x512xf32, #tpu.memory_space<vmem>>, vector<1x512xf32>
    %21 = vector.broadcast %20 : vector<1x512xf32> to vector<8x512xf32>
    %22 = arith.mulf %19, %21 : vector<8x512xf32>
    %c497_i32 = arith.constant 497 : i32
    %23 = tpu.dynamic_rotate %0 by %c497_i32 dim 1 : vector<8x512xf32>, i32 -> vector<8x512xf32>
    %c30 = arith.constant 30 : index
    %c0_10 = arith.constant 0 : index
    %24 = vector.load %arg2[%c30, %c0_10] : memref<49x512xf32, #tpu.memory_space<vmem>>, vector<1x512xf32>
    %25 = vector.broadcast %24 : vector<1x512xf32> to vector<8x512xf32>
    %26 = arith.mulf %23, %25 : vector<8x512xf32>
    %c496_i32 = arith.constant 496 : i32
    %27 = tpu.dynamic_rotate %0 by %c496_i32 dim 1 : vector<8x512xf32>, i32 -> vector<8x512xf32>
    %c31 = arith.constant 31 : index
    %c0_11 = arith.constant 0 : index
    %28 = vector.load %arg2[%c31, %c0_11] : memref<49x512xf32, #tpu.memory_space<vmem>>, vector<1x512xf32>
    %29 = vector.broadcast %28 : vector<1x512xf32> to vector<8x512xf32>
    %30 = arith.mulf %27, %29 : vector<8x512xf32>
    %c495_i32 = arith.constant 495 : i32
    %31 = tpu.dynamic_rotate %0 by %c495_i32 dim 1 : vector<8x512xf32>, i32 -> vector<8x512xf32>
    %c32 = arith.constant 32 : index
    %c0_12 = arith.constant 0 : index
    %32 = vector.load %arg2[%c32, %c0_12] : memref<49x512xf32, #tpu.memory_space<vmem>>, vector<1x512xf32>
    %33 = vector.broadcast %32 : vector<1x512xf32> to vector<8x512xf32>
    %34 = arith.mulf %31, %33 : vector<8x512xf32>
    %35 = tpu.concatenate %6, %10, %14, %18, %0, %22, %26, %30, %34 in 0 : vector<8x512xf32>, vector<8x512xf32>, vector<8x512xf32>, vector<8x512xf32>, vector<8x512xf32>, vector<8x512xf32>, vector<8x512xf32>, vector<8x512xf32>, vector<8x512xf32> -> vector<72x512xf32>
    %36 = arith.truncf %35 : vector<72x512xf32> to vector<72x512xbf16>
    %cst = arith.constant dense<0.000000e+00> : vector<16x512xf32>
    %37 = tpu.matmul %1, %36, %cst {dimension_numbers = #tpu.dot_dimension_numbers<[1], [0], [0], [1], [0, 0, 1, 1], [], []>} : vector<16x72xbf16>, vector<72x512xbf16>, vector<16x512xf32> -> vector<16x512xf32>
    %38 = vector.broadcast %2 : vector<16x1xf32> to vector<16x512xf32>
    %39 = arith.addf %37, %38 : vector<16x512xf32>
    %c0_13 = arith.constant 0 : index
    %c0_14 = arith.constant 0 : index
    %40 = vector.load %arg5[%c0_13, %c0_14] : memref<2x16xf32, #tpu.memory_space<vmem>>, vector<2x16xf32>
    %cst_15 = arith.constant dense<0.000000e+00> : vector<2x512xf32>
    %41 = tpu.matmul %40, %39, %cst_15 {dimension_numbers = #tpu.dot_dimension_numbers<[1], [0], [0], [1], [0, 0, 1, 1], [], []>} : vector<2x16xf32>, vector<16x512xf32>, vector<2x512xf32> -> vector<2x512xf32>
    %c0_16 = arith.constant 0 : index
    %c0_17 = arith.constant 0 : index
    %42 = vector.load %arg6[%c0_16, %c0_17] : memref<2x1xf32, #tpu.memory_space<vmem>>, vector<2x1xf32>
    %43 = vector.broadcast %42 : vector<2x1xf32> to vector<2x512xf32>
    %44 = arith.addf %41, %43 : vector<2x512xf32>
    %45 = arith.negf %44 : vector<2x512xf32>
    %46 = math.exp %45 : vector<2x512xf32>
    %cst_18 = arith.constant 1.000000e+00 : f32
    %47 = vector.broadcast %cst_18 : f32 to vector<2x512xf32>
    %48 = arith.addf %47, %46 : vector<2x512xf32>
    %49 = arith.divf %47, %48 : vector<2x512xf32>
    %50 = vector.extract_strided_slice %49 {offsets = [0, 0], sizes = [1, 512], strides = [1, 1]} : vector<2x512xf32> to vector<1x512xf32>
    %51 = vector.extract_strided_slice %49 {offsets = [1, 0], sizes = [1, 512], strides = [1, 1]} : vector<2x512xf32> to vector<1x512xf32>
    %52 = arith.mulf %50, %51 : vector<1x512xf32>
    %cst_19 = arith.constant dense<0.000000e+00> : vector<512xf32>
    %53 = vector.multi_reduction <add>, %39, %cst_19 [0] : vector<16x512xf32> to vector<512xf32>
    %54 = vector.shape_cast %53 : vector<512xf32> to vector<1x512xf32>
    %cst_20 = arith.constant 1.600000e+01 : f32
    %55 = vector.broadcast %cst_20 : f32 to vector<1x512xf32>
    %56 = arith.divf %54, %55 : vector<1x512xf32>
    %cst_21 = arith.constant dense<0xFF800000> : vector<512xf32>
    %57 = vector.multi_reduction <maximumf>, %39, %cst_21 [0] : vector<16x512xf32> to vector<512xf32>
    %58 = vector.shape_cast %57 : vector<512xf32> to vector<1x512xf32>
    %c0_22 = arith.constant 0 : index
    %c0_23 = arith.constant 0 : index
    %59 = vector.load %arg11[%c0_22, %c0_23] : memref<2x49xf32, #tpu.memory_space<vmem>>, vector<2x49xf32>
    %c51_i32 = arith.constant 51 : i32
    %60 = tpu.dynamic_rotate %56 by %c51_i32 dim 1 : vector<1x512xf32>, i32 -> vector<1x512xf32>
    %c0_24 = arith.constant 0 : index
    %c0_25 = arith.constant 0 : index
    %61 = vector.load %arg2[%c0_24, %c0_25] : memref<49x512xf32, #tpu.memory_space<vmem>>, vector<1x512xf32>
    %62 = arith.mulf %60, %61 : vector<1x512xf32>
    %63 = vector.extract_strided_slice %59 {offsets = [0, 0], sizes = [1, 1], strides = [1, 1]} : vector<2x49xf32> to vector<1x1xf32>
    %64 = vector.broadcast %63 : vector<1x1xf32> to vector<1x512xf32>
    %65 = arith.mulf %62, %64 : vector<1x512xf32>
    %c51_i32_26 = arith.constant 51 : i32
    %66 = tpu.dynamic_rotate %58 by %c51_i32_26 dim 1 : vector<1x512xf32>, i32 -> vector<1x512xf32>
    %67 = arith.mulf %66, %61 : vector<1x512xf32>
    %68 = vector.extract_strided_slice %59 {offsets = [1, 0], sizes = [1, 1], strides = [1, 1]} : vector<2x49xf32> to vector<1x1xf32>
    %69 = vector.broadcast %68 : vector<1x1xf32> to vector<1x512xf32>
    %70 = arith.mulf %67, %69 : vector<1x512xf32>
    %71 = arith.addf %65, %70 : vector<1x512xf32>
    %c50_i32 = arith.constant 50 : i32
    %72 = tpu.dynamic_rotate %56 by %c50_i32 dim 1 : vector<1x512xf32>, i32 -> vector<1x512xf32>
    %c1 = arith.constant 1 : index
    %c0_27 = arith.constant 0 : index
    %73 = vector.load %arg2[%c1, %c0_27] : memref<49x512xf32, #tpu.memory_space<vmem>>, vector<1x512xf32>
    %74 = arith.mulf %72, %73 : vector<1x512xf32>
    %75 = vector.extract_strided_slice %59 {offsets = [0, 1], sizes = [1, 1], strides = [1, 1]} : vector<2x49xf32> to vector<1x1xf32>
    %76 = vector.broadcast %75 : vector<1x1xf32> to vector<1x512xf32>
    %77 = arith.mulf %74, %76 : vector<1x512xf32>
    %c50_i32_28 = arith.constant 50 : i32
    %78 = tpu.dynamic_rotate %58 by %c50_i32_28 dim 1 : vector<1x512xf32>, i32 -> vector<1x512xf32>
    %79 = arith.mulf %78, %73 : vector<1x512xf32>
    %80 = vector.extract_strided_slice %59 {offsets = [1, 1], sizes = [1, 1], strides = [1, 1]} : vector<2x49xf32> to vector<1x1xf32>
    %81 = vector.broadcast %80 : vector<1x1xf32> to vector<1x512xf32>
    %82 = arith.mulf %79, %81 : vector<1x512xf32>
    %83 = arith.addf %77, %82 : vector<1x512xf32>
    %84 = arith.addf %71, %83 : vector<1x512xf32>
    %c49_i32 = arith.constant 49 : i32
    %85 = tpu.dynamic_rotate %56 by %c49_i32 dim 1 : vector<1x512xf32>, i32 -> vector<1x512xf32>
    %c2 = arith.constant 2 : index
    %c0_29 = arith.constant 0 : index
    %86 = vector.load %arg2[%c2, %c0_29] : memref<49x512xf32, #tpu.memory_space<vmem>>, vector<1x512xf32>
    %87 = arith.mulf %85, %86 : vector<1x512xf32>
    %88 = vector.extract_strided_slice %59 {offsets = [0, 2], sizes = [1, 1], strides = [1, 1]} : vector<2x49xf32> to vector<1x1xf32>
    %89 = vector.broadcast %88 : vector<1x1xf32> to vector<1x512xf32>
    %90 = arith.mulf %87, %89 : vector<1x512xf32>
    %c49_i32_30 = arith.constant 49 : i32
    %91 = tpu.dynamic_rotate %58 by %c49_i32_30 dim 1 : vector<1x512xf32>, i32 -> vector<1x512xf32>
    %92 = arith.mulf %91, %86 : vector<1x512xf32>
    %93 = vector.extract_strided_slice %59 {offsets = [1, 2], sizes = [1, 1], strides = [1, 1]} : vector<2x49xf32> to vector<1x1xf32>
    %94 = vector.broadcast %93 : vector<1x1xf32> to vector<1x512xf32>
    %95 = arith.mulf %92, %94 : vector<1x512xf32>
    %96 = arith.addf %90, %95 : vector<1x512xf32>
    %97 = arith.addf %84, %96 : vector<1x512xf32>
    %c48_i32 = arith.constant 48 : i32
    %98 = tpu.dynamic_rotate %56 by %c48_i32 dim 1 : vector<1x512xf32>, i32 -> vector<1x512xf32>
    %c3 = arith.constant 3 : index
    %c0_31 = arith.constant 0 : index
    %99 = vector.load %arg2[%c3, %c0_31] : memref<49x512xf32, #tpu.memory_space<vmem>>, vector<1x512xf32>
    %100 = arith.mulf %98, %99 : vector<1x512xf32>
    %101 = vector.extract_strided_slice %59 {offsets = [0, 3], sizes = [1, 1], strides = [1, 1]} : vector<2x49xf32> to vector<1x1xf32>
    %102 = vector.broadcast %101 : vector<1x1xf32> to vector<1x512xf32>
    %103 = arith.mulf %100, %102 : vector<1x512xf32>
    %c48_i32_32 = arith.constant 48 : i32
    %104 = tpu.dynamic_rotate %58 by %c48_i32_32 dim 1 : vector<1x512xf32>, i32 -> vector<1x512xf32>
    %105 = arith.mulf %104, %99 : vector<1x512xf32>
    %106 = vector.extract_strided_slice %59 {offsets = [1, 3], sizes = [1, 1], strides = [1, 1]} : vector<2x49xf32> to vector<1x1xf32>
    %107 = vector.broadcast %106 : vector<1x1xf32> to vector<1x512xf32>
    %108 = arith.mulf %105, %107 : vector<1x512xf32>
    %109 = arith.addf %103, %108 : vector<1x512xf32>
    %110 = arith.addf %97, %109 : vector<1x512xf32>
    %c47_i32 = arith.constant 47 : i32
    %111 = tpu.dynamic_rotate %56 by %c47_i32 dim 1 : vector<1x512xf32>, i32 -> vector<1x512xf32>
    %c4 = arith.constant 4 : index
    %c0_33 = arith.constant 0 : index
    %112 = vector.load %arg2[%c4, %c0_33] : memref<49x512xf32, #tpu.memory_space<vmem>>, vector<1x512xf32>
    %113 = arith.mulf %111, %112 : vector<1x512xf32>
    %114 = vector.extract_strided_slice %59 {offsets = [0, 4], sizes = [1, 1], strides = [1, 1]} : vector<2x49xf32> to vector<1x1xf32>
    %115 = vector.broadcast %114 : vector<1x1xf32> to vector<1x512xf32>
    %116 = arith.mulf %113, %115 : vector<1x512xf32>
    %c47_i32_34 = arith.constant 47 : i32
    %117 = tpu.dynamic_rotate %58 by %c47_i32_34 dim 1 : vector<1x512xf32>, i32 -> vector<1x512xf32>
    %118 = arith.mulf %117, %112 : vector<1x512xf32>
    %119 = vector.extract_strided_slice %59 {offsets = [1, 4], sizes = [1, 1], strides = [1, 1]} : vector<2x49xf32> to vector<1x1xf32>
    %120 = vector.broadcast %119 : vector<1x1xf32> to vector<1x512xf32>
    %121 = arith.mulf %118, %120 : vector<1x512xf32>
    %122 = arith.addf %116, %121 : vector<1x512xf32>
    %123 = arith.addf %110, %122 : vector<1x512xf32>
    %c46_i32 = arith.constant 46 : i32
    %124 = tpu.dynamic_rotate %56 by %c46_i32 dim 1 : vector<1x512xf32>, i32 -> vector<1x512xf32>
    %c5 = arith.constant 5 : index
    %c0_35 = arith.constant 0 : index
    %125 = vector.load %arg2[%c5, %c0_35] : memref<49x512xf32, #tpu.memory_space<vmem>>, vector<1x512xf32>
    %126 = arith.mulf %124, %125 : vector<1x512xf32>
    %127 = vector.extract_strided_slice %59 {offsets = [0, 5], sizes = [1, 1], strides = [1, 1]} : vector<2x49xf32> to vector<1x1xf32>
    %128 = vector.broadcast %127 : vector<1x1xf32> to vector<1x512xf32>
    %129 = arith.mulf %126, %128 : vector<1x512xf32>
    %c46_i32_36 = arith.constant 46 : i32
    %130 = tpu.dynamic_rotate %58 by %c46_i32_36 dim 1 : vector<1x512xf32>, i32 -> vector<1x512xf32>
    %131 = arith.mulf %130, %125 : vector<1x512xf32>
    %132 = vector.extract_strided_slice %59 {offsets = [1, 5], sizes = [1, 1], strides = [1, 1]} : vector<2x49xf32> to vector<1x1xf32>
    %133 = vector.broadcast %132 : vector<1x1xf32> to vector<1x512xf32>
    %134 = arith.mulf %131, %133 : vector<1x512xf32>
    %135 = arith.addf %129, %134 : vector<1x512xf32>
    %136 = arith.addf %123, %135 : vector<1x512xf32>
    %c45_i32 = arith.constant 45 : i32
    %137 = tpu.dynamic_rotate %56 by %c45_i32 dim 1 : vector<1x512xf32>, i32 -> vector<1x512xf32>
    %c6 = arith.constant 6 : index
    %c0_37 = arith.constant 0 : index
    %138 = vector.load %arg2[%c6, %c0_37] : memref<49x512xf32, #tpu.memory_space<vmem>>, vector<1x512xf32>
    %139 = arith.mulf %137, %138 : vector<1x512xf32>
    %140 = vector.extract_strided_slice %59 {offsets = [0, 6], sizes = [1, 1], strides = [1, 1]} : vector<2x49xf32> to vector<1x1xf32>
    %141 = vector.broadcast %140 : vector<1x1xf32> to vector<1x512xf32>
    %142 = arith.mulf %139, %141 : vector<1x512xf32>
    %c45_i32_38 = arith.constant 45 : i32
    %143 = tpu.dynamic_rotate %58 by %c45_i32_38 dim 1 : vector<1x512xf32>, i32 -> vector<1x512xf32>
    %144 = arith.mulf %143, %138 : vector<1x512xf32>
    %145 = vector.extract_strided_slice %59 {offsets = [1, 6], sizes = [1, 1], strides = [1, 1]} : vector<2x49xf32> to vector<1x1xf32>
    %146 = vector.broadcast %145 : vector<1x1xf32> to vector<1x512xf32>
    %147 = arith.mulf %144, %146 : vector<1x512xf32>
    %148 = arith.addf %142, %147 : vector<1x512xf32>
    %149 = arith.addf %136, %148 : vector<1x512xf32>
    %c35_i32 = arith.constant 35 : i32
    %150 = tpu.dynamic_rotate %56 by %c35_i32 dim 1 : vector<1x512xf32>, i32 -> vector<1x512xf32>
    %c7 = arith.constant 7 : index
    %c0_39 = arith.constant 0 : index
    %151 = vector.load %arg2[%c7, %c0_39] : memref<49x512xf32, #tpu.memory_space<vmem>>, vector<1x512xf32>
    %152 = arith.mulf %150, %151 : vector<1x512xf32>
    %153 = vector.extract_strided_slice %59 {offsets = [0, 7], sizes = [1, 1], strides = [1, 1]} : vector<2x49xf32> to vector<1x1xf32>
    %154 = vector.broadcast %153 : vector<1x1xf32> to vector<1x512xf32>
    %155 = arith.mulf %152, %154 : vector<1x512xf32>
    %c35_i32_40 = arith.constant 35 : i32
    %156 = tpu.dynamic_rotate %58 by %c35_i32_40 dim 1 : vector<1x512xf32>, i32 -> vector<1x512xf32>
    %157 = arith.mulf %156, %151 : vector<1x512xf32>
    %158 = vector.extract_strided_slice %59 {offsets = [1, 7], sizes = [1, 1], strides = [1, 1]} : vector<2x49xf32> to vector<1x1xf32>
    %159 = vector.broadcast %158 : vector<1x1xf32> to vector<1x512xf32>
    %160 = arith.mulf %157, %159 : vector<1x512xf32>
    %161 = arith.addf %155, %160 : vector<1x512xf32>
    %162 = arith.addf %149, %161 : vector<1x512xf32>
    %c34_i32 = arith.constant 34 : i32
    %163 = tpu.dynamic_rotate %56 by %c34_i32 dim 1 : vector<1x512xf32>, i32 -> vector<1x512xf32>
    %c8 = arith.constant 8 : index
    %c0_41 = arith.constant 0 : index
    %164 = vector.load %arg2[%c8, %c0_41] : memref<49x512xf32, #tpu.memory_space<vmem>>, vector<1x512xf32>
    %165 = arith.mulf %163, %164 : vector<1x512xf32>
    %166 = vector.extract_strided_slice %59 {offsets = [0, 8], sizes = [1, 1], strides = [1, 1]} : vector<2x49xf32> to vector<1x1xf32>
    %167 = vector.broadcast %166 : vector<1x1xf32> to vector<1x512xf32>
    %168 = arith.mulf %165, %167 : vector<1x512xf32>
    %c34_i32_42 = arith.constant 34 : i32
    %169 = tpu.dynamic_rotate %58 by %c34_i32_42 dim 1 : vector<1x512xf32>, i32 -> vector<1x512xf32>
    %170 = arith.mulf %169, %164 : vector<1x512xf32>
    %171 = vector.extract_strided_slice %59 {offsets = [1, 8], sizes = [1, 1], strides = [1, 1]} : vector<2x49xf32> to vector<1x1xf32>
    %172 = vector.broadcast %171 : vector<1x1xf32> to vector<1x512xf32>
    %173 = arith.mulf %170, %172 : vector<1x512xf32>
    %174 = arith.addf %168, %173 : vector<1x512xf32>
    %175 = arith.addf %162, %174 : vector<1x512xf32>
    %c33_i32 = arith.constant 33 : i32
    %176 = tpu.dynamic_rotate %56 by %c33_i32 dim 1 : vector<1x512xf32>, i32 -> vector<1x512xf32>
    %c9 = arith.constant 9 : index
    %c0_43 = arith.constant 0 : index
    %177 = vector.load %arg2[%c9, %c0_43] : memref<49x512xf32, #tpu.memory_space<vmem>>, vector<1x512xf32>
    %178 = arith.mulf %176, %177 : vector<1x512xf32>
    %179 = vector.extract_strided_slice %59 {offsets = [0, 9], sizes = [1, 1], strides = [1, 1]} : vector<2x49xf32> to vector<1x1xf32>
    %180 = vector.broadcast %179 : vector<1x1xf32> to vector<1x512xf32>
    %181 = arith.mulf %178, %180 : vector<1x512xf32>
    %c33_i32_44 = arith.constant 33 : i32
    %182 = tpu.dynamic_rotate %58 by %c33_i32_44 dim 1 : vector<1x512xf32>, i32 -> vector<1x512xf32>
    %183 = arith.mulf %182, %177 : vector<1x512xf32>
    %184 = vector.extract_strided_slice %59 {offsets = [1, 9], sizes = [1, 1], strides = [1, 1]} : vector<2x49xf32> to vector<1x1xf32>
    %185 = vector.broadcast %184 : vector<1x1xf32> to vector<1x512xf32>
    %186 = arith.mulf %183, %185 : vector<1x512xf32>
    %187 = arith.addf %181, %186 : vector<1x512xf32>
    %188 = arith.addf %175, %187 : vector<1x512xf32>
    %c32_i32 = arith.constant 32 : i32
    %189 = tpu.dynamic_rotate %56 by %c32_i32 dim 1 : vector<1x512xf32>, i32 -> vector<1x512xf32>
    %c10 = arith.constant 10 : index
    %c0_45 = arith.constant 0 : index
    %190 = vector.load %arg2[%c10, %c0_45] : memref<49x512xf32, #tpu.memory_space<vmem>>, vector<1x512xf32>
    %191 = arith.mulf %189, %190 : vector<1x512xf32>
    %192 = vector.extract_strided_slice %59 {offsets = [0, 10], sizes = [1, 1], strides = [1, 1]} : vector<2x49xf32> to vector<1x1xf32>
    %193 = vector.broadcast %192 : vector<1x1xf32> to vector<1x512xf32>
    %194 = arith.mulf %191, %193 : vector<1x512xf32>
    %c32_i32_46 = arith.constant 32 : i32
    %195 = tpu.dynamic_rotate %58 by %c32_i32_46 dim 1 : vector<1x512xf32>, i32 -> vector<1x512xf32>
    %196 = arith.mulf %195, %190 : vector<1x512xf32>
    %197 = vector.extract_strided_slice %59 {offsets = [1, 10], sizes = [1, 1], strides = [1, 1]} : vector<2x49xf32> to vector<1x1xf32>
    %198 = vector.broadcast %197 : vector<1x1xf32> to vector<1x512xf32>
    %199 = arith.mulf %196, %198 : vector<1x512xf32>
    %200 = arith.addf %194, %199 : vector<1x512xf32>
    %201 = arith.addf %188, %200 : vector<1x512xf32>
    %c31_i32 = arith.constant 31 : i32
    %202 = tpu.dynamic_rotate %56 by %c31_i32 dim 1 : vector<1x512xf32>, i32 -> vector<1x512xf32>
    %c11 = arith.constant 11 : index
    %c0_47 = arith.constant 0 : index
    %203 = vector.load %arg2[%c11, %c0_47] : memref<49x512xf32, #tpu.memory_space<vmem>>, vector<1x512xf32>
    %204 = arith.mulf %202, %203 : vector<1x512xf32>
    %205 = vector.extract_strided_slice %59 {offsets = [0, 11], sizes = [1, 1], strides = [1, 1]} : vector<2x49xf32> to vector<1x1xf32>
    %206 = vector.broadcast %205 : vector<1x1xf32> to vector<1x512xf32>
    %207 = arith.mulf %204, %206 : vector<1x512xf32>
    %c31_i32_48 = arith.constant 31 : i32
    %208 = tpu.dynamic_rotate %58 by %c31_i32_48 dim 1 : vector<1x512xf32>, i32 -> vector<1x512xf32>
    %209 = arith.mulf %208, %203 : vector<1x512xf32>
    %210 = vector.extract_strided_slice %59 {offsets = [1, 11], sizes = [1, 1], strides = [1, 1]} : vector<2x49xf32> to vector<1x1xf32>
    %211 = vector.broadcast %210 : vector<1x1xf32> to vector<1x512xf32>
    %212 = arith.mulf %209, %211 : vector<1x512xf32>
    %213 = arith.addf %207, %212 : vector<1x512xf32>
    %214 = arith.addf %201, %213 : vector<1x512xf32>
    %c30_i32 = arith.constant 30 : i32
    %215 = tpu.dynamic_rotate %56 by %c30_i32 dim 1 : vector<1x512xf32>, i32 -> vector<1x512xf32>
    %c12 = arith.constant 12 : index
    %c0_49 = arith.constant 0 : index
    %216 = vector.load %arg2[%c12, %c0_49] : memref<49x512xf32, #tpu.memory_space<vmem>>, vector<1x512xf32>
    %217 = arith.mulf %215, %216 : vector<1x512xf32>
    %218 = vector.extract_strided_slice %59 {offsets = [0, 12], sizes = [1, 1], strides = [1, 1]} : vector<2x49xf32> to vector<1x1xf32>
    %219 = vector.broadcast %218 : vector<1x1xf32> to vector<1x512xf32>
    %220 = arith.mulf %217, %219 : vector<1x512xf32>
    %c30_i32_50 = arith.constant 30 : i32
    %221 = tpu.dynamic_rotate %58 by %c30_i32_50 dim 1 : vector<1x512xf32>, i32 -> vector<1x512xf32>
    %222 = arith.mulf %221, %216 : vector<1x512xf32>
    %223 = vector.extract_strided_slice %59 {offsets = [1, 12], sizes = [1, 1], strides = [1, 1]} : vector<2x49xf32> to vector<1x1xf32>
    %224 = vector.broadcast %223 : vector<1x1xf32> to vector<1x512xf32>
    %225 = arith.mulf %222, %224 : vector<1x512xf32>
    %226 = arith.addf %220, %225 : vector<1x512xf32>
    %227 = arith.addf %214, %226 : vector<1x512xf32>
    %c29_i32 = arith.constant 29 : i32
    %228 = tpu.dynamic_rotate %56 by %c29_i32 dim 1 : vector<1x512xf32>, i32 -> vector<1x512xf32>
    %c13 = arith.constant 13 : index
    %c0_51 = arith.constant 0 : index
    %229 = vector.load %arg2[%c13, %c0_51] : memref<49x512xf32, #tpu.memory_space<vmem>>, vector<1x512xf32>
    %230 = arith.mulf %228, %229 : vector<1x512xf32>
    %231 = vector.extract_strided_slice %59 {offsets = [0, 13], sizes = [1, 1], strides = [1, 1]} : vector<2x49xf32> to vector<1x1xf32>
    %232 = vector.broadcast %231 : vector<1x1xf32> to vector<1x512xf32>
    %233 = arith.mulf %230, %232 : vector<1x512xf32>
    %c29_i32_52 = arith.constant 29 : i32
    %234 = tpu.dynamic_rotate %58 by %c29_i32_52 dim 1 : vector<1x512xf32>, i32 -> vector<1x512xf32>
    %235 = arith.mulf %234, %229 : vector<1x512xf32>
    %236 = vector.extract_strided_slice %59 {offsets = [1, 13], sizes = [1, 1], strides = [1, 1]} : vector<2x49xf32> to vector<1x1xf32>
    %237 = vector.broadcast %236 : vector<1x1xf32> to vector<1x512xf32>
    %238 = arith.mulf %235, %237 : vector<1x512xf32>
    %239 = arith.addf %233, %238 : vector<1x512xf32>
    %240 = arith.addf %227, %239 : vector<1x512xf32>
    %c19_i32 = arith.constant 19 : i32
    %241 = tpu.dynamic_rotate %56 by %c19_i32 dim 1 : vector<1x512xf32>, i32 -> vector<1x512xf32>
    %c14 = arith.constant 14 : index
    %c0_53 = arith.constant 0 : index
    %242 = vector.load %arg2[%c14, %c0_53] : memref<49x512xf32, #tpu.memory_space<vmem>>, vector<1x512xf32>
    %243 = arith.mulf %241, %242 : vector<1x512xf32>
    %244 = vector.extract_strided_slice %59 {offsets = [0, 14], sizes = [1, 1], strides = [1, 1]} : vector<2x49xf32> to vector<1x1xf32>
    %245 = vector.broadcast %244 : vector<1x1xf32> to vector<1x512xf32>
    %246 = arith.mulf %243, %245 : vector<1x512xf32>
    %c19_i32_54 = arith.constant 19 : i32
    %247 = tpu.dynamic_rotate %58 by %c19_i32_54 dim 1 : vector<1x512xf32>, i32 -> vector<1x512xf32>
    %248 = arith.mulf %247, %242 : vector<1x512xf32>
    %249 = vector.extract_strided_slice %59 {offsets = [1, 14], sizes = [1, 1], strides = [1, 1]} : vector<2x49xf32> to vector<1x1xf32>
    %250 = vector.broadcast %249 : vector<1x1xf32> to vector<1x512xf32>
    %251 = arith.mulf %248, %250 : vector<1x512xf32>
    %252 = arith.addf %246, %251 : vector<1x512xf32>
    %253 = arith.addf %240, %252 : vector<1x512xf32>
    %c18_i32 = arith.constant 18 : i32
    %254 = tpu.dynamic_rotate %56 by %c18_i32 dim 1 : vector<1x512xf32>, i32 -> vector<1x512xf32>
    %c15 = arith.constant 15 : index
    %c0_55 = arith.constant 0 : index
    %255 = vector.load %arg2[%c15, %c0_55] : memref<49x512xf32, #tpu.memory_space<vmem>>, vector<1x512xf32>
    %256 = arith.mulf %254, %255 : vector<1x512xf32>
    %257 = vector.extract_strided_slice %59 {offsets = [0, 15], sizes = [1, 1], strides = [1, 1]} : vector<2x49xf32> to vector<1x1xf32>
    %258 = vector.broadcast %257 : vector<1x1xf32> to vector<1x512xf32>
    %259 = arith.mulf %256, %258 : vector<1x512xf32>
    %c18_i32_56 = arith.constant 18 : i32
    %260 = tpu.dynamic_rotate %58 by %c18_i32_56 dim 1 : vector<1x512xf32>, i32 -> vector<1x512xf32>
    %261 = arith.mulf %260, %255 : vector<1x512xf32>
    %262 = vector.extract_strided_slice %59 {offsets = [1, 15], sizes = [1, 1], strides = [1, 1]} : vector<2x49xf32> to vector<1x1xf32>
    %263 = vector.broadcast %262 : vector<1x1xf32> to vector<1x512xf32>
    %264 = arith.mulf %261, %263 : vector<1x512xf32>
    %265 = arith.addf %259, %264 : vector<1x512xf32>
    %266 = arith.addf %253, %265 : vector<1x512xf32>
    %c17_i32_57 = arith.constant 17 : i32
    %267 = tpu.dynamic_rotate %56 by %c17_i32_57 dim 1 : vector<1x512xf32>, i32 -> vector<1x512xf32>
    %268 = arith.mulf %267, %4 : vector<1x512xf32>
    %269 = vector.extract_strided_slice %59 {offsets = [0, 16], sizes = [1, 1], strides = [1, 1]} : vector<2x49xf32> to vector<1x1xf32>
    %270 = vector.broadcast %269 : vector<1x1xf32> to vector<1x512xf32>
    %271 = arith.mulf %268, %270 : vector<1x512xf32>
    %c17_i32_58 = arith.constant 17 : i32
    %272 = tpu.dynamic_rotate %58 by %c17_i32_58 dim 1 : vector<1x512xf32>, i32 -> vector<1x512xf32>
    %273 = arith.mulf %272, %4 : vector<1x512xf32>
    %274 = vector.extract_strided_slice %59 {offsets = [1, 16], sizes = [1, 1], strides = [1, 1]} : vector<2x49xf32> to vector<1x1xf32>
    %275 = vector.broadcast %274 : vector<1x1xf32> to vector<1x512xf32>
    %276 = arith.mulf %273, %275 : vector<1x512xf32>
    %277 = arith.addf %271, %276 : vector<1x512xf32>
    %278 = arith.addf %266, %277 : vector<1x512xf32>
    %c16_i32_59 = arith.constant 16 : i32
    %279 = tpu.dynamic_rotate %56 by %c16_i32_59 dim 1 : vector<1x512xf32>, i32 -> vector<1x512xf32>
    %280 = arith.mulf %279, %8 : vector<1x512xf32>
    %281 = vector.extract_strided_slice %59 {offsets = [0, 17], sizes = [1, 1], strides = [1, 1]} : vector<2x49xf32> to vector<1x1xf32>
    %282 = vector.broadcast %281 : vector<1x1xf32> to vector<1x512xf32>
    %283 = arith.mulf %280, %282 : vector<1x512xf32>
    %c16_i32_60 = arith.constant 16 : i32
    %284 = tpu.dynamic_rotate %58 by %c16_i32_60 dim 1 : vector<1x512xf32>, i32 -> vector<1x512xf32>
    %285 = arith.mulf %284, %8 : vector<1x512xf32>
    %286 = vector.extract_strided_slice %59 {offsets = [1, 17], sizes = [1, 1], strides = [1, 1]} : vector<2x49xf32> to vector<1x1xf32>
    %287 = vector.broadcast %286 : vector<1x1xf32> to vector<1x512xf32>
    %288 = arith.mulf %285, %287 : vector<1x512xf32>
    %289 = arith.addf %283, %288 : vector<1x512xf32>
    %290 = arith.addf %278, %289 : vector<1x512xf32>
    %c15_i32_61 = arith.constant 15 : i32
    %291 = tpu.dynamic_rotate %56 by %c15_i32_61 dim 1 : vector<1x512xf32>, i32 -> vector<1x512xf32>
    %292 = arith.mulf %291, %12 : vector<1x512xf32>
    %293 = vector.extract_strided_slice %59 {offsets = [0, 18], sizes = [1, 1], strides = [1, 1]} : vector<2x49xf32> to vector<1x1xf32>
    %294 = vector.broadcast %293 : vector<1x1xf32> to vector<1x512xf32>
    %295 = arith.mulf %292, %294 : vector<1x512xf32>
    %c15_i32_62 = arith.constant 15 : i32
    %296 = tpu.dynamic_rotate %58 by %c15_i32_62 dim 1 : vector<1x512xf32>, i32 -> vector<1x512xf32>
    %297 = arith.mulf %296, %12 : vector<1x512xf32>
    %298 = vector.extract_strided_slice %59 {offsets = [1, 18], sizes = [1, 1], strides = [1, 1]} : vector<2x49xf32> to vector<1x1xf32>
    %299 = vector.broadcast %298 : vector<1x1xf32> to vector<1x512xf32>
    %300 = arith.mulf %297, %299 : vector<1x512xf32>
    %301 = arith.addf %295, %300 : vector<1x512xf32>
    %302 = arith.addf %290, %301 : vector<1x512xf32>
    %c14_i32 = arith.constant 14 : i32
    %303 = tpu.dynamic_rotate %56 by %c14_i32 dim 1 : vector<1x512xf32>, i32 -> vector<1x512xf32>
    %c19 = arith.constant 19 : index
    %c0_63 = arith.constant 0 : index
    %304 = vector.load %arg2[%c19, %c0_63] : memref<49x512xf32, #tpu.memory_space<vmem>>, vector<1x512xf32>
    %305 = arith.mulf %303, %304 : vector<1x512xf32>
    %306 = vector.extract_strided_slice %59 {offsets = [0, 19], sizes = [1, 1], strides = [1, 1]} : vector<2x49xf32> to vector<1x1xf32>
    %307 = vector.broadcast %306 : vector<1x1xf32> to vector<1x512xf32>
    %308 = arith.mulf %305, %307 : vector<1x512xf32>
    %c14_i32_64 = arith.constant 14 : i32
    %309 = tpu.dynamic_rotate %58 by %c14_i32_64 dim 1 : vector<1x512xf32>, i32 -> vector<1x512xf32>
    %310 = arith.mulf %309, %304 : vector<1x512xf32>
    %311 = vector.extract_strided_slice %59 {offsets = [1, 19], sizes = [1, 1], strides = [1, 1]} : vector<2x49xf32> to vector<1x1xf32>
    %312 = vector.broadcast %311 : vector<1x1xf32> to vector<1x512xf32>
    %313 = arith.mulf %310, %312 : vector<1x512xf32>
    %314 = arith.addf %308, %313 : vector<1x512xf32>
    %315 = arith.addf %302, %314 : vector<1x512xf32>
    %c13_i32 = arith.constant 13 : i32
    %316 = tpu.dynamic_rotate %56 by %c13_i32 dim 1 : vector<1x512xf32>, i32 -> vector<1x512xf32>
    %c20 = arith.constant 20 : index
    %c0_65 = arith.constant 0 : index
    %317 = vector.load %arg2[%c20, %c0_65] : memref<49x512xf32, #tpu.memory_space<vmem>>, vector<1x512xf32>
    %318 = arith.mulf %316, %317 : vector<1x512xf32>
    %319 = vector.extract_strided_slice %59 {offsets = [0, 20], sizes = [1, 1], strides = [1, 1]} : vector<2x49xf32> to vector<1x1xf32>
    %320 = vector.broadcast %319 : vector<1x1xf32> to vector<1x512xf32>
    %321 = arith.mulf %318, %320 : vector<1x512xf32>
    %c13_i32_66 = arith.constant 13 : i32
    %322 = tpu.dynamic_rotate %58 by %c13_i32_66 dim 1 : vector<1x512xf32>, i32 -> vector<1x512xf32>
    %323 = arith.mulf %322, %317 : vector<1x512xf32>
    %324 = vector.extract_strided_slice %59 {offsets = [1, 20], sizes = [1, 1], strides = [1, 1]} : vector<2x49xf32> to vector<1x1xf32>
    %325 = vector.broadcast %324 : vector<1x1xf32> to vector<1x512xf32>
    %326 = arith.mulf %323, %325 : vector<1x512xf32>
    %327 = arith.addf %321, %326 : vector<1x512xf32>
    %328 = arith.addf %315, %327 : vector<1x512xf32>
    %c3_i32 = arith.constant 3 : i32
    %329 = tpu.dynamic_rotate %56 by %c3_i32 dim 1 : vector<1x512xf32>, i32 -> vector<1x512xf32>
    %c21 = arith.constant 21 : index
    %c0_67 = arith.constant 0 : index
    %330 = vector.load %arg2[%c21, %c0_67] : memref<49x512xf32, #tpu.memory_space<vmem>>, vector<1x512xf32>
    %331 = arith.mulf %329, %330 : vector<1x512xf32>
    %332 = vector.extract_strided_slice %59 {offsets = [0, 21], sizes = [1, 1], strides = [1, 1]} : vector<2x49xf32> to vector<1x1xf32>
    %333 = vector.broadcast %332 : vector<1x1xf32> to vector<1x512xf32>
    %334 = arith.mulf %331, %333 : vector<1x512xf32>
    %c3_i32_68 = arith.constant 3 : i32
    %335 = tpu.dynamic_rotate %58 by %c3_i32_68 dim 1 : vector<1x512xf32>, i32 -> vector<1x512xf32>
    %336 = arith.mulf %335, %330 : vector<1x512xf32>
    %337 = vector.extract_strided_slice %59 {offsets = [1, 21], sizes = [1, 1], strides = [1, 1]} : vector<2x49xf32> to vector<1x1xf32>
    %338 = vector.broadcast %337 : vector<1x1xf32> to vector<1x512xf32>
    %339 = arith.mulf %336, %338 : vector<1x512xf32>
    %340 = arith.addf %334, %339 : vector<1x512xf32>
    %341 = arith.addf %328, %340 : vector<1x512xf32>
    %c2_i32 = arith.constant 2 : i32
    %342 = tpu.dynamic_rotate %56 by %c2_i32 dim 1 : vector<1x512xf32>, i32 -> vector<1x512xf32>
    %c22 = arith.constant 22 : index
    %c0_69 = arith.constant 0 : index
    %343 = vector.load %arg2[%c22, %c0_69] : memref<49x512xf32, #tpu.memory_space<vmem>>, vector<1x512xf32>
    %344 = arith.mulf %342, %343 : vector<1x512xf32>
    %345 = vector.extract_strided_slice %59 {offsets = [0, 22], sizes = [1, 1], strides = [1, 1]} : vector<2x49xf32> to vector<1x1xf32>
    %346 = vector.broadcast %345 : vector<1x1xf32> to vector<1x512xf32>
    %347 = arith.mulf %344, %346 : vector<1x512xf32>
    %c2_i32_70 = arith.constant 2 : i32
    %348 = tpu.dynamic_rotate %58 by %c2_i32_70 dim 1 : vector<1x512xf32>, i32 -> vector<1x512xf32>
    %349 = arith.mulf %348, %343 : vector<1x512xf32>
    %350 = vector.extract_strided_slice %59 {offsets = [1, 22], sizes = [1, 1], strides = [1, 1]} : vector<2x49xf32> to vector<1x1xf32>
    %351 = vector.broadcast %350 : vector<1x1xf32> to vector<1x512xf32>
    %352 = arith.mulf %349, %351 : vector<1x512xf32>
    %353 = arith.addf %347, %352 : vector<1x512xf32>
    %354 = arith.addf %341, %353 : vector<1x512xf32>
    %c1_i32_71 = arith.constant 1 : i32
    %355 = tpu.dynamic_rotate %56 by %c1_i32_71 dim 1 : vector<1x512xf32>, i32 -> vector<1x512xf32>
    %356 = arith.mulf %355, %16 : vector<1x512xf32>
    %357 = vector.extract_strided_slice %59 {offsets = [0, 23], sizes = [1, 1], strides = [1, 1]} : vector<2x49xf32> to vector<1x1xf32>
    %358 = vector.broadcast %357 : vector<1x1xf32> to vector<1x512xf32>
    %359 = arith.mulf %356, %358 : vector<1x512xf32>
    %c1_i32_72 = arith.constant 1 : i32
    %360 = tpu.dynamic_rotate %58 by %c1_i32_72 dim 1 : vector<1x512xf32>, i32 -> vector<1x512xf32>
    %361 = arith.mulf %360, %16 : vector<1x512xf32>
    %362 = vector.extract_strided_slice %59 {offsets = [1, 23], sizes = [1, 1], strides = [1, 1]} : vector<2x49xf32> to vector<1x1xf32>
    %363 = vector.broadcast %362 : vector<1x1xf32> to vector<1x512xf32>
    %364 = arith.mulf %361, %363 : vector<1x512xf32>
    %365 = arith.addf %359, %364 : vector<1x512xf32>
    %366 = arith.addf %354, %365 : vector<1x512xf32>
    %367 = vector.extract_strided_slice %59 {offsets = [0, 24], sizes = [1, 1], strides = [1, 1]} : vector<2x49xf32> to vector<1x1xf32>
    %368 = vector.broadcast %367 : vector<1x1xf32> to vector<1x512xf32>
    %369 = arith.mulf %56, %368 : vector<1x512xf32>
    %370 = vector.extract_strided_slice %59 {offsets = [1, 24], sizes = [1, 1], strides = [1, 1]} : vector<2x49xf32> to vector<1x1xf32>
    %371 = vector.broadcast %370 : vector<1x1xf32> to vector<1x512xf32>
    %372 = arith.mulf %58, %371 : vector<1x512xf32>
    %373 = arith.addf %369, %372 : vector<1x512xf32>
    %374 = arith.addf %366, %373 : vector<1x512xf32>
    %c511_i32_73 = arith.constant 511 : i32
    %375 = tpu.dynamic_rotate %56 by %c511_i32_73 dim 1 : vector<1x512xf32>, i32 -> vector<1x512xf32>
    %376 = arith.mulf %375, %20 : vector<1x512xf32>
    %377 = vector.extract_strided_slice %59 {offsets = [0, 25], sizes = [1, 1], strides = [1, 1]} : vector<2x49xf32> to vector<1x1xf32>
    %378 = vector.broadcast %377 : vector<1x1xf32> to vector<1x512xf32>
    %379 = arith.mulf %376, %378 : vector<1x512xf32>
    %c511_i32_74 = arith.constant 511 : i32
    %380 = tpu.dynamic_rotate %58 by %c511_i32_74 dim 1 : vector<1x512xf32>, i32 -> vector<1x512xf32>
    %381 = arith.mulf %380, %20 : vector<1x512xf32>
    %382 = vector.extract_strided_slice %59 {offsets = [1, 25], sizes = [1, 1], strides = [1, 1]} : vector<2x49xf32> to vector<1x1xf32>
    %383 = vector.broadcast %382 : vector<1x1xf32> to vector<1x512xf32>
    %384 = arith.mulf %381, %383 : vector<1x512xf32>
    %385 = arith.addf %379, %384 : vector<1x512xf32>
    %386 = arith.addf %374, %385 : vector<1x512xf32>
    %c510_i32 = arith.constant 510 : i32
    %387 = tpu.dynamic_rotate %56 by %c510_i32 dim 1 : vector<1x512xf32>, i32 -> vector<1x512xf32>
    %c26 = arith.constant 26 : index
    %c0_75 = arith.constant 0 : index
    %388 = vector.load %arg2[%c26, %c0_75] : memref<49x512xf32, #tpu.memory_space<vmem>>, vector<1x512xf32>
    %389 = arith.mulf %387, %388 : vector<1x512xf32>
    %390 = vector.extract_strided_slice %59 {offsets = [0, 26], sizes = [1, 1], strides = [1, 1]} : vector<2x49xf32> to vector<1x1xf32>
    %391 = vector.broadcast %390 : vector<1x1xf32> to vector<1x512xf32>
    %392 = arith.mulf %389, %391 : vector<1x512xf32>
    %c510_i32_76 = arith.constant 510 : i32
    %393 = tpu.dynamic_rotate %58 by %c510_i32_76 dim 1 : vector<1x512xf32>, i32 -> vector<1x512xf32>
    %394 = arith.mulf %393, %388 : vector<1x512xf32>
    %395 = vector.extract_strided_slice %59 {offsets = [1, 26], sizes = [1, 1], strides = [1, 1]} : vector<2x49xf32> to vector<1x1xf32>
    %396 = vector.broadcast %395 : vector<1x1xf32> to vector<1x512xf32>
    %397 = arith.mulf %394, %396 : vector<1x512xf32>
    %398 = arith.addf %392, %397 : vector<1x512xf32>
    %399 = arith.addf %386, %398 : vector<1x512xf32>
    %c509_i32 = arith.constant 509 : i32
    %400 = tpu.dynamic_rotate %56 by %c509_i32 dim 1 : vector<1x512xf32>, i32 -> vector<1x512xf32>
    %c27 = arith.constant 27 : index
    %c0_77 = arith.constant 0 : index
    %401 = vector.load %arg2[%c27, %c0_77] : memref<49x512xf32, #tpu.memory_space<vmem>>, vector<1x512xf32>
    %402 = arith.mulf %400, %401 : vector<1x512xf32>
    %403 = vector.extract_strided_slice %59 {offsets = [0, 27], sizes = [1, 1], strides = [1, 1]} : vector<2x49xf32> to vector<1x1xf32>
    %404 = vector.broadcast %403 : vector<1x1xf32> to vector<1x512xf32>
    %405 = arith.mulf %402, %404 : vector<1x512xf32>
    %c509_i32_78 = arith.constant 509 : i32
    %406 = tpu.dynamic_rotate %58 by %c509_i32_78 dim 1 : vector<1x512xf32>, i32 -> vector<1x512xf32>
    %407 = arith.mulf %406, %401 : vector<1x512xf32>
    %408 = vector.extract_strided_slice %59 {offsets = [1, 27], sizes = [1, 1], strides = [1, 1]} : vector<2x49xf32> to vector<1x1xf32>
    %409 = vector.broadcast %408 : vector<1x1xf32> to vector<1x512xf32>
    %410 = arith.mulf %407, %409 : vector<1x512xf32>
    %411 = arith.addf %405, %410 : vector<1x512xf32>
    %412 = arith.addf %399, %411 : vector<1x512xf32>
    %c499_i32 = arith.constant 499 : i32
    %413 = tpu.dynamic_rotate %56 by %c499_i32 dim 1 : vector<1x512xf32>, i32 -> vector<1x512xf32>
    %c28 = arith.constant 28 : index
    %c0_79 = arith.constant 0 : index
    %414 = vector.load %arg2[%c28, %c0_79] : memref<49x512xf32, #tpu.memory_space<vmem>>, vector<1x512xf32>
    %415 = arith.mulf %413, %414 : vector<1x512xf32>
    %416 = vector.extract_strided_slice %59 {offsets = [0, 28], sizes = [1, 1], strides = [1, 1]} : vector<2x49xf32> to vector<1x1xf32>
    %417 = vector.broadcast %416 : vector<1x1xf32> to vector<1x512xf32>
    %418 = arith.mulf %415, %417 : vector<1x512xf32>
    %c499_i32_80 = arith.constant 499 : i32
    %419 = tpu.dynamic_rotate %58 by %c499_i32_80 dim 1 : vector<1x512xf32>, i32 -> vector<1x512xf32>
    %420 = arith.mulf %419, %414 : vector<1x512xf32>
    %421 = vector.extract_strided_slice %59 {offsets = [1, 28], sizes = [1, 1], strides = [1, 1]} : vector<2x49xf32> to vector<1x1xf32>
    %422 = vector.broadcast %421 : vector<1x1xf32> to vector<1x512xf32>
    %423 = arith.mulf %420, %422 : vector<1x512xf32>
    %424 = arith.addf %418, %423 : vector<1x512xf32>
    %425 = arith.addf %412, %424 : vector<1x512xf32>
    %c498_i32 = arith.constant 498 : i32
    %426 = tpu.dynamic_rotate %56 by %c498_i32 dim 1 : vector<1x512xf32>, i32 -> vector<1x512xf32>
    %c29 = arith.constant 29 : index
    %c0_81 = arith.constant 0 : index
    %427 = vector.load %arg2[%c29, %c0_81] : memref<49x512xf32, #tpu.memory_space<vmem>>, vector<1x512xf32>
    %428 = arith.mulf %426, %427 : vector<1x512xf32>
    %429 = vector.extract_strided_slice %59 {offsets = [0, 29], sizes = [1, 1], strides = [1, 1]} : vector<2x49xf32> to vector<1x1xf32>
    %430 = vector.broadcast %429 : vector<1x1xf32> to vector<1x512xf32>
    %431 = arith.mulf %428, %430 : vector<1x512xf32>
    %c498_i32_82 = arith.constant 498 : i32
    %432 = tpu.dynamic_rotate %58 by %c498_i32_82 dim 1 : vector<1x512xf32>, i32 -> vector<1x512xf32>
    %433 = arith.mulf %432, %427 : vector<1x512xf32>
    %434 = vector.extract_strided_slice %59 {offsets = [1, 29], sizes = [1, 1], strides = [1, 1]} : vector<2x49xf32> to vector<1x1xf32>
    %435 = vector.broadcast %434 : vector<1x1xf32> to vector<1x512xf32>
    %436 = arith.mulf %433, %435 : vector<1x512xf32>
    %437 = arith.addf %431, %436 : vector<1x512xf32>
    %438 = arith.addf %425, %437 : vector<1x512xf32>
    %c497_i32_83 = arith.constant 497 : i32
    %439 = tpu.dynamic_rotate %56 by %c497_i32_83 dim 1 : vector<1x512xf32>, i32 -> vector<1x512xf32>
    %440 = arith.mulf %439, %24 : vector<1x512xf32>
    %441 = vector.extract_strided_slice %59 {offsets = [0, 30], sizes = [1, 1], strides = [1, 1]} : vector<2x49xf32> to vector<1x1xf32>
    %442 = vector.broadcast %441 : vector<1x1xf32> to vector<1x512xf32>
    %443 = arith.mulf %440, %442 : vector<1x512xf32>
    %c497_i32_84 = arith.constant 497 : i32
    %444 = tpu.dynamic_rotate %58 by %c497_i32_84 dim 1 : vector<1x512xf32>, i32 -> vector<1x512xf32>
    %445 = arith.mulf %444, %24 : vector<1x512xf32>
    %446 = vector.extract_strided_slice %59 {offsets = [1, 30], sizes = [1, 1], strides = [1, 1]} : vector<2x49xf32> to vector<1x1xf32>
    %447 = vector.broadcast %446 : vector<1x1xf32> to vector<1x512xf32>
    %448 = arith.mulf %445, %447 : vector<1x512xf32>
    %449 = arith.addf %443, %448 : vector<1x512xf32>
    %450 = arith.addf %438, %449 : vector<1x512xf32>
    %c496_i32_85 = arith.constant 496 : i32
    %451 = tpu.dynamic_rotate %56 by %c496_i32_85 dim 1 : vector<1x512xf32>, i32 -> vector<1x512xf32>
    %452 = arith.mulf %451, %28 : vector<1x512xf32>
    %453 = vector.extract_strided_slice %59 {offsets = [0, 31], sizes = [1, 1], strides = [1, 1]} : vector<2x49xf32> to vector<1x1xf32>
    %454 = vector.broadcast %453 : vector<1x1xf32> to vector<1x512xf32>
    %455 = arith.mulf %452, %454 : vector<1x512xf32>
    %c496_i32_86 = arith.constant 496 : i32
    %456 = tpu.dynamic_rotate %58 by %c496_i32_86 dim 1 : vector<1x512xf32>, i32 -> vector<1x512xf32>
    %457 = arith.mulf %456, %28 : vector<1x512xf32>
    %458 = vector.extract_strided_slice %59 {offsets = [1, 31], sizes = [1, 1], strides = [1, 1]} : vector<2x49xf32> to vector<1x1xf32>
    %459 = vector.broadcast %458 : vector<1x1xf32> to vector<1x512xf32>
    %460 = arith.mulf %457, %459 : vector<1x512xf32>
    %461 = arith.addf %455, %460 : vector<1x512xf32>
    %462 = arith.addf %450, %461 : vector<1x512xf32>
    %c495_i32_87 = arith.constant 495 : i32
    %463 = tpu.dynamic_rotate %56 by %c495_i32_87 dim 1 : vector<1x512xf32>, i32 -> vector<1x512xf32>
    %464 = arith.mulf %463, %32 : vector<1x512xf32>
    %465 = vector.extract_strided_slice %59 {offsets = [0, 32], sizes = [1, 1], strides = [1, 1]} : vector<2x49xf32> to vector<1x1xf32>
    %466 = vector.broadcast %465 : vector<1x1xf32> to vector<1x512xf32>
    %467 = arith.mulf %464, %466 : vector<1x512xf32>
    %c495_i32_88 = arith.constant 495 : i32
    %468 = tpu.dynamic_rotate %58 by %c495_i32_88 dim 1 : vector<1x512xf32>, i32 -> vector<1x512xf32>
    %469 = arith.mulf %468, %32 : vector<1x512xf32>
    %470 = vector.extract_strided_slice %59 {offsets = [1, 32], sizes = [1, 1], strides = [1, 1]} : vector<2x49xf32> to vector<1x1xf32>
    %471 = vector.broadcast %470 : vector<1x1xf32> to vector<1x512xf32>
    %472 = arith.mulf %469, %471 : vector<1x512xf32>
    %473 = arith.addf %467, %472 : vector<1x512xf32>
    %474 = arith.addf %462, %473 : vector<1x512xf32>
    %c494_i32 = arith.constant 494 : i32
    %475 = tpu.dynamic_rotate %56 by %c494_i32 dim 1 : vector<1x512xf32>, i32 -> vector<1x512xf32>
    %c33 = arith.constant 33 : index
    %c0_89 = arith.constant 0 : index
    %476 = vector.load %arg2[%c33, %c0_89] : memref<49x512xf32, #tpu.memory_space<vmem>>, vector<1x512xf32>
    %477 = arith.mulf %475, %476 : vector<1x512xf32>
    %478 = vector.extract_strided_slice %59 {offsets = [0, 33], sizes = [1, 1], strides = [1, 1]} : vector<2x49xf32> to vector<1x1xf32>
    %479 = vector.broadcast %478 : vector<1x1xf32> to vector<1x512xf32>
    %480 = arith.mulf %477, %479 : vector<1x512xf32>
    %c494_i32_90 = arith.constant 494 : i32
    %481 = tpu.dynamic_rotate %58 by %c494_i32_90 dim 1 : vector<1x512xf32>, i32 -> vector<1x512xf32>
    %482 = arith.mulf %481, %476 : vector<1x512xf32>
    %483 = vector.extract_strided_slice %59 {offsets = [1, 33], sizes = [1, 1], strides = [1, 1]} : vector<2x49xf32> to vector<1x1xf32>
    %484 = vector.broadcast %483 : vector<1x1xf32> to vector<1x512xf32>
    %485 = arith.mulf %482, %484 : vector<1x512xf32>
    %486 = arith.addf %480, %485 : vector<1x512xf32>
    %487 = arith.addf %474, %486 : vector<1x512xf32>
    %c493_i32 = arith.constant 493 : i32
    %488 = tpu.dynamic_rotate %56 by %c493_i32 dim 1 : vector<1x512xf32>, i32 -> vector<1x512xf32>
    %c34 = arith.constant 34 : index
    %c0_91 = arith.constant 0 : index
    %489 = vector.load %arg2[%c34, %c0_91] : memref<49x512xf32, #tpu.memory_space<vmem>>, vector<1x512xf32>
    %490 = arith.mulf %488, %489 : vector<1x512xf32>
    %491 = vector.extract_strided_slice %59 {offsets = [0, 34], sizes = [1, 1], strides = [1, 1]} : vector<2x49xf32> to vector<1x1xf32>
    %492 = vector.broadcast %491 : vector<1x1xf32> to vector<1x512xf32>
    %493 = arith.mulf %490, %492 : vector<1x512xf32>
    %c493_i32_92 = arith.constant 493 : i32
    %494 = tpu.dynamic_rotate %58 by %c493_i32_92 dim 1 : vector<1x512xf32>, i32 -> vector<1x512xf32>
    %495 = arith.mulf %494, %489 : vector<1x512xf32>
    %496 = vector.extract_strided_slice %59 {offsets = [1, 34], sizes = [1, 1], strides = [1, 1]} : vector<2x49xf32> to vector<1x1xf32>
    %497 = vector.broadcast %496 : vector<1x1xf32> to vector<1x512xf32>
    %498 = arith.mulf %495, %497 : vector<1x512xf32>
    %499 = arith.addf %493, %498 : vector<1x512xf32>
    %500 = arith.addf %487, %499 : vector<1x512xf32>
    %c483_i32 = arith.constant 483 : i32
    %501 = tpu.dynamic_rotate %56 by %c483_i32 dim 1 : vector<1x512xf32>, i32 -> vector<1x512xf32>
    %c35 = arith.constant 35 : index
    %c0_93 = arith.constant 0 : index
    %502 = vector.load %arg2[%c35, %c0_93] : memref<49x512xf32, #tpu.memory_space<vmem>>, vector<1x512xf32>
    %503 = arith.mulf %501, %502 : vector<1x512xf32>
    %504 = vector.extract_strided_slice %59 {offsets = [0, 35], sizes = [1, 1], strides = [1, 1]} : vector<2x49xf32> to vector<1x1xf32>
    %505 = vector.broadcast %504 : vector<1x1xf32> to vector<1x512xf32>
    %506 = arith.mulf %503, %505 : vector<1x512xf32>
    %c483_i32_94 = arith.constant 483 : i32
    %507 = tpu.dynamic_rotate %58 by %c483_i32_94 dim 1 : vector<1x512xf32>, i32 -> vector<1x512xf32>
    %508 = arith.mulf %507, %502 : vector<1x512xf32>
    %509 = vector.extract_strided_slice %59 {offsets = [1, 35], sizes = [1, 1], strides = [1, 1]} : vector<2x49xf32> to vector<1x1xf32>
    %510 = vector.broadcast %509 : vector<1x1xf32> to vector<1x512xf32>
    %511 = arith.mulf %508, %510 : vector<1x512xf32>
    %512 = arith.addf %506, %511 : vector<1x512xf32>
    %513 = arith.addf %500, %512 : vector<1x512xf32>
    %c482_i32 = arith.constant 482 : i32
    %514 = tpu.dynamic_rotate %56 by %c482_i32 dim 1 : vector<1x512xf32>, i32 -> vector<1x512xf32>
    %c36 = arith.constant 36 : index
    %c0_95 = arith.constant 0 : index
    %515 = vector.load %arg2[%c36, %c0_95] : memref<49x512xf32, #tpu.memory_space<vmem>>, vector<1x512xf32>
    %516 = arith.mulf %514, %515 : vector<1x512xf32>
    %517 = vector.extract_strided_slice %59 {offsets = [0, 36], sizes = [1, 1], strides = [1, 1]} : vector<2x49xf32> to vector<1x1xf32>
    %518 = vector.broadcast %517 : vector<1x1xf32> to vector<1x512xf32>
    %519 = arith.mulf %516, %518 : vector<1x512xf32>
    %c482_i32_96 = arith.constant 482 : i32
    %520 = tpu.dynamic_rotate %58 by %c482_i32_96 dim 1 : vector<1x512xf32>, i32 -> vector<1x512xf32>
    %521 = arith.mulf %520, %515 : vector<1x512xf32>
    %522 = vector.extract_strided_slice %59 {offsets = [1, 36], sizes = [1, 1], strides = [1, 1]} : vector<2x49xf32> to vector<1x1xf32>
    %523 = vector.broadcast %522 : vector<1x1xf32> to vector<1x512xf32>
    %524 = arith.mulf %521, %523 : vector<1x512xf32>
    %525 = arith.addf %519, %524 : vector<1x512xf32>
    %526 = arith.addf %513, %525 : vector<1x512xf32>
    %c481_i32 = arith.constant 481 : i32
    %527 = tpu.dynamic_rotate %56 by %c481_i32 dim 1 : vector<1x512xf32>, i32 -> vector<1x512xf32>
    %c37 = arith.constant 37 : index
    %c0_97 = arith.constant 0 : index
    %528 = vector.load %arg2[%c37, %c0_97] : memref<49x512xf32, #tpu.memory_space<vmem>>, vector<1x512xf32>
    %529 = arith.mulf %527, %528 : vector<1x512xf32>
    %530 = vector.extract_strided_slice %59 {offsets = [0, 37], sizes = [1, 1], strides = [1, 1]} : vector<2x49xf32> to vector<1x1xf32>
    %531 = vector.broadcast %530 : vector<1x1xf32> to vector<1x512xf32>
    %532 = arith.mulf %529, %531 : vector<1x512xf32>
    %c481_i32_98 = arith.constant 481 : i32
    %533 = tpu.dynamic_rotate %58 by %c481_i32_98 dim 1 : vector<1x512xf32>, i32 -> vector<1x512xf32>
    %534 = arith.mulf %533, %528 : vector<1x512xf32>
    %535 = vector.extract_strided_slice %59 {offsets = [1, 37], sizes = [1, 1], strides = [1, 1]} : vector<2x49xf32> to vector<1x1xf32>
    %536 = vector.broadcast %535 : vector<1x1xf32> to vector<1x512xf32>
    %537 = arith.mulf %534, %536 : vector<1x512xf32>
    %538 = arith.addf %532, %537 : vector<1x512xf32>
    %539 = arith.addf %526, %538 : vector<1x512xf32>
    %c480_i32 = arith.constant 480 : i32
    %540 = tpu.dynamic_rotate %56 by %c480_i32 dim 1 : vector<1x512xf32>, i32 -> vector<1x512xf32>
    %c38 = arith.constant 38 : index
    %c0_99 = arith.constant 0 : index
    %541 = vector.load %arg2[%c38, %c0_99] : memref<49x512xf32, #tpu.memory_space<vmem>>, vector<1x512xf32>
    %542 = arith.mulf %540, %541 : vector<1x512xf32>
    %543 = vector.extract_strided_slice %59 {offsets = [0, 38], sizes = [1, 1], strides = [1, 1]} : vector<2x49xf32> to vector<1x1xf32>
    %544 = vector.broadcast %543 : vector<1x1xf32> to vector<1x512xf32>
    %545 = arith.mulf %542, %544 : vector<1x512xf32>
    %c480_i32_100 = arith.constant 480 : i32
    %546 = tpu.dynamic_rotate %58 by %c480_i32_100 dim 1 : vector<1x512xf32>, i32 -> vector<1x512xf32>
    %547 = arith.mulf %546, %541 : vector<1x512xf32>
    %548 = vector.extract_strided_slice %59 {offsets = [1, 38], sizes = [1, 1], strides = [1, 1]} : vector<2x49xf32> to vector<1x1xf32>
    %549 = vector.broadcast %548 : vector<1x1xf32> to vector<1x512xf32>
    %550 = arith.mulf %547, %549 : vector<1x512xf32>
    %551 = arith.addf %545, %550 : vector<1x512xf32>
    %552 = arith.addf %539, %551 : vector<1x512xf32>
    %c479_i32 = arith.constant 479 : i32
    %553 = tpu.dynamic_rotate %56 by %c479_i32 dim 1 : vector<1x512xf32>, i32 -> vector<1x512xf32>
    %c39 = arith.constant 39 : index
    %c0_101 = arith.constant 0 : index
    %554 = vector.load %arg2[%c39, %c0_101] : memref<49x512xf32, #tpu.memory_space<vmem>>, vector<1x512xf32>
    %555 = arith.mulf %553, %554 : vector<1x512xf32>
    %556 = vector.extract_strided_slice %59 {offsets = [0, 39], sizes = [1, 1], strides = [1, 1]} : vector<2x49xf32> to vector<1x1xf32>
    %557 = vector.broadcast %556 : vector<1x1xf32> to vector<1x512xf32>
    %558 = arith.mulf %555, %557 : vector<1x512xf32>
    %c479_i32_102 = arith.constant 479 : i32
    %559 = tpu.dynamic_rotate %58 by %c479_i32_102 dim 1 : vector<1x512xf32>, i32 -> vector<1x512xf32>
    %560 = arith.mulf %559, %554 : vector<1x512xf32>
    %561 = vector.extract_strided_slice %59 {offsets = [1, 39], sizes = [1, 1], strides = [1, 1]} : vector<2x49xf32> to vector<1x1xf32>
    %562 = vector.broadcast %561 : vector<1x1xf32> to vector<1x512xf32>
    %563 = arith.mulf %560, %562 : vector<1x512xf32>
    %564 = arith.addf %558, %563 : vector<1x512xf32>
    %565 = arith.addf %552, %564 : vector<1x512xf32>
    %c478_i32 = arith.constant 478 : i32
    %566 = tpu.dynamic_rotate %56 by %c478_i32 dim 1 : vector<1x512xf32>, i32 -> vector<1x512xf32>
    %c40 = arith.constant 40 : index
    %c0_103 = arith.constant 0 : index
    %567 = vector.load %arg2[%c40, %c0_103] : memref<49x512xf32, #tpu.memory_space<vmem>>, vector<1x512xf32>
    %568 = arith.mulf %566, %567 : vector<1x512xf32>
    %569 = vector.extract_strided_slice %59 {offsets = [0, 40], sizes = [1, 1], strides = [1, 1]} : vector<2x49xf32> to vector<1x1xf32>
    %570 = vector.broadcast %569 : vector<1x1xf32> to vector<1x512xf32>
    %571 = arith.mulf %568, %570 : vector<1x512xf32>
    %c478_i32_104 = arith.constant 478 : i32
    %572 = tpu.dynamic_rotate %58 by %c478_i32_104 dim 1 : vector<1x512xf32>, i32 -> vector<1x512xf32>
    %573 = arith.mulf %572, %567 : vector<1x512xf32>
    %574 = vector.extract_strided_slice %59 {offsets = [1, 40], sizes = [1, 1], strides = [1, 1]} : vector<2x49xf32> to vector<1x1xf32>
    %575 = vector.broadcast %574 : vector<1x1xf32> to vector<1x512xf32>
    %576 = arith.mulf %573, %575 : vector<1x512xf32>
    %577 = arith.addf %571, %576 : vector<1x512xf32>
    %578 = arith.addf %565, %577 : vector<1x512xf32>
    %c477_i32 = arith.constant 477 : i32
    %579 = tpu.dynamic_rotate %56 by %c477_i32 dim 1 : vector<1x512xf32>, i32 -> vector<1x512xf32>
    %c41 = arith.constant 41 : index
    %c0_105 = arith.constant 0 : index
    %580 = vector.load %arg2[%c41, %c0_105] : memref<49x512xf32, #tpu.memory_space<vmem>>, vector<1x512xf32>
    %581 = arith.mulf %579, %580 : vector<1x512xf32>
    %582 = vector.extract_strided_slice %59 {offsets = [0, 41], sizes = [1, 1], strides = [1, 1]} : vector<2x49xf32> to vector<1x1xf32>
    %583 = vector.broadcast %582 : vector<1x1xf32> to vector<1x512xf32>
    %584 = arith.mulf %581, %583 : vector<1x512xf32>
    %c477_i32_106 = arith.constant 477 : i32
    %585 = tpu.dynamic_rotate %58 by %c477_i32_106 dim 1 : vector<1x512xf32>, i32 -> vector<1x512xf32>
    %586 = arith.mulf %585, %580 : vector<1x512xf32>
    %587 = vector.extract_strided_slice %59 {offsets = [1, 41], sizes = [1, 1], strides = [1, 1]} : vector<2x49xf32> to vector<1x1xf32>
    %588 = vector.broadcast %587 : vector<1x1xf32> to vector<1x512xf32>
    %589 = arith.mulf %586, %588 : vector<1x512xf32>
    %590 = arith.addf %584, %589 : vector<1x512xf32>
    %591 = arith.addf %578, %590 : vector<1x512xf32>
    %c467_i32 = arith.constant 467 : i32
    %592 = tpu.dynamic_rotate %56 by %c467_i32 dim 1 : vector<1x512xf32>, i32 -> vector<1x512xf32>
    %c42 = arith.constant 42 : index
    %c0_107 = arith.constant 0 : index
    %593 = vector.load %arg2[%c42, %c0_107] : memref<49x512xf32, #tpu.memory_space<vmem>>, vector<1x512xf32>
    %594 = arith.mulf %592, %593 : vector<1x512xf32>
    %595 = vector.extract_strided_slice %59 {offsets = [0, 42], sizes = [1, 1], strides = [1, 1]} : vector<2x49xf32> to vector<1x1xf32>
    %596 = vector.broadcast %595 : vector<1x1xf32> to vector<1x512xf32>
    %597 = arith.mulf %594, %596 : vector<1x512xf32>
    %c467_i32_108 = arith.constant 467 : i32
    %598 = tpu.dynamic_rotate %58 by %c467_i32_108 dim 1 : vector<1x512xf32>, i32 -> vector<1x512xf32>
    %599 = arith.mulf %598, %593 : vector<1x512xf32>
    %600 = vector.extract_strided_slice %59 {offsets = [1, 42], sizes = [1, 1], strides = [1, 1]} : vector<2x49xf32> to vector<1x1xf32>
    %601 = vector.broadcast %600 : vector<1x1xf32> to vector<1x512xf32>
    %602 = arith.mulf %599, %601 : vector<1x512xf32>
    %603 = arith.addf %597, %602 : vector<1x512xf32>
    %604 = arith.addf %591, %603 : vector<1x512xf32>
    %c466_i32 = arith.constant 466 : i32
    %605 = tpu.dynamic_rotate %56 by %c466_i32 dim 1 : vector<1x512xf32>, i32 -> vector<1x512xf32>
    %c43 = arith.constant 43 : index
    %c0_109 = arith.constant 0 : index
    %606 = vector.load %arg2[%c43, %c0_109] : memref<49x512xf32, #tpu.memory_space<vmem>>, vector<1x512xf32>
    %607 = arith.mulf %605, %606 : vector<1x512xf32>
    %608 = vector.extract_strided_slice %59 {offsets = [0, 43], sizes = [1, 1], strides = [1, 1]} : vector<2x49xf32> to vector<1x1xf32>
    %609 = vector.broadcast %608 : vector<1x1xf32> to vector<1x512xf32>
    %610 = arith.mulf %607, %609 : vector<1x512xf32>
    %c466_i32_110 = arith.constant 466 : i32
    %611 = tpu.dynamic_rotate %58 by %c466_i32_110 dim 1 : vector<1x512xf32>, i32 -> vector<1x512xf32>
    %612 = arith.mulf %611, %606 : vector<1x512xf32>
    %613 = vector.extract_strided_slice %59 {offsets = [1, 43], sizes = [1, 1], strides = [1, 1]} : vector<2x49xf32> to vector<1x1xf32>
    %614 = vector.broadcast %613 : vector<1x1xf32> to vector<1x512xf32>
    %615 = arith.mulf %612, %614 : vector<1x512xf32>
    %616 = arith.addf %610, %615 : vector<1x512xf32>
    %617 = arith.addf %604, %616 : vector<1x512xf32>
    %c465_i32 = arith.constant 465 : i32
    %618 = tpu.dynamic_rotate %56 by %c465_i32 dim 1 : vector<1x512xf32>, i32 -> vector<1x512xf32>
    %c44 = arith.constant 44 : index
    %c0_111 = arith.constant 0 : index
    %619 = vector.load %arg2[%c44, %c0_111] : memref<49x512xf32, #tpu.memory_space<vmem>>, vector<1x512xf32>
    %620 = arith.mulf %618, %619 : vector<1x512xf32>
    %621 = vector.extract_strided_slice %59 {offsets = [0, 44], sizes = [1, 1], strides = [1, 1]} : vector<2x49xf32> to vector<1x1xf32>
    %622 = vector.broadcast %621 : vector<1x1xf32> to vector<1x512xf32>
    %623 = arith.mulf %620, %622 : vector<1x512xf32>
    %c465_i32_112 = arith.constant 465 : i32
    %624 = tpu.dynamic_rotate %58 by %c465_i32_112 dim 1 : vector<1x512xf32>, i32 -> vector<1x512xf32>
    %625 = arith.mulf %624, %619 : vector<1x512xf32>
    %626 = vector.extract_strided_slice %59 {offsets = [1, 44], sizes = [1, 1], strides = [1, 1]} : vector<2x49xf32> to vector<1x1xf32>
    %627 = vector.broadcast %626 : vector<1x1xf32> to vector<1x512xf32>
    %628 = arith.mulf %625, %627 : vector<1x512xf32>
    %629 = arith.addf %623, %628 : vector<1x512xf32>
    %630 = arith.addf %617, %629 : vector<1x512xf32>
    %c464_i32 = arith.constant 464 : i32
    %631 = tpu.dynamic_rotate %56 by %c464_i32 dim 1 : vector<1x512xf32>, i32 -> vector<1x512xf32>
    %c45 = arith.constant 45 : index
    %c0_113 = arith.constant 0 : index
    %632 = vector.load %arg2[%c45, %c0_113] : memref<49x512xf32, #tpu.memory_space<vmem>>, vector<1x512xf32>
    %633 = arith.mulf %631, %632 : vector<1x512xf32>
    %634 = vector.extract_strided_slice %59 {offsets = [0, 45], sizes = [1, 1], strides = [1, 1]} : vector<2x49xf32> to vector<1x1xf32>
    %635 = vector.broadcast %634 : vector<1x1xf32> to vector<1x512xf32>
    %636 = arith.mulf %633, %635 : vector<1x512xf32>
    %c464_i32_114 = arith.constant 464 : i32
    %637 = tpu.dynamic_rotate %58 by %c464_i32_114 dim 1 : vector<1x512xf32>, i32 -> vector<1x512xf32>
    %638 = arith.mulf %637, %632 : vector<1x512xf32>
    %639 = vector.extract_strided_slice %59 {offsets = [1, 45], sizes = [1, 1], strides = [1, 1]} : vector<2x49xf32> to vector<1x1xf32>
    %640 = vector.broadcast %639 : vector<1x1xf32> to vector<1x512xf32>
    %641 = arith.mulf %638, %640 : vector<1x512xf32>
    %642 = arith.addf %636, %641 : vector<1x512xf32>
    %643 = arith.addf %630, %642 : vector<1x512xf32>
    %c463_i32 = arith.constant 463 : i32
    %644 = tpu.dynamic_rotate %56 by %c463_i32 dim 1 : vector<1x512xf32>, i32 -> vector<1x512xf32>
    %c46 = arith.constant 46 : index
    %c0_115 = arith.constant 0 : index
    %645 = vector.load %arg2[%c46, %c0_115] : memref<49x512xf32, #tpu.memory_space<vmem>>, vector<1x512xf32>
    %646 = arith.mulf %644, %645 : vector<1x512xf32>
    %647 = vector.extract_strided_slice %59 {offsets = [0, 46], sizes = [1, 1], strides = [1, 1]} : vector<2x49xf32> to vector<1x1xf32>
    %648 = vector.broadcast %647 : vector<1x1xf32> to vector<1x512xf32>
    %649 = arith.mulf %646, %648 : vector<1x512xf32>
    %c463_i32_116 = arith.constant 463 : i32
    %650 = tpu.dynamic_rotate %58 by %c463_i32_116 dim 1 : vector<1x512xf32>, i32 -> vector<1x512xf32>
    %651 = arith.mulf %650, %645 : vector<1x512xf32>
    %652 = vector.extract_strided_slice %59 {offsets = [1, 46], sizes = [1, 1], strides = [1, 1]} : vector<2x49xf32> to vector<1x1xf32>
    %653 = vector.broadcast %652 : vector<1x1xf32> to vector<1x512xf32>
    %654 = arith.mulf %651, %653 : vector<1x512xf32>
    %655 = arith.addf %649, %654 : vector<1x512xf32>
    %656 = arith.addf %643, %655 : vector<1x512xf32>
    %c462_i32 = arith.constant 462 : i32
    %657 = tpu.dynamic_rotate %56 by %c462_i32 dim 1 : vector<1x512xf32>, i32 -> vector<1x512xf32>
    %c47 = arith.constant 47 : index
    %c0_117 = arith.constant 0 : index
    %658 = vector.load %arg2[%c47, %c0_117] : memref<49x512xf32, #tpu.memory_space<vmem>>, vector<1x512xf32>
    %659 = arith.mulf %657, %658 : vector<1x512xf32>
    %660 = vector.extract_strided_slice %59 {offsets = [0, 47], sizes = [1, 1], strides = [1, 1]} : vector<2x49xf32> to vector<1x1xf32>
    %661 = vector.broadcast %660 : vector<1x1xf32> to vector<1x512xf32>
    %662 = arith.mulf %659, %661 : vector<1x512xf32>
    %c462_i32_118 = arith.constant 462 : i32
    %663 = tpu.dynamic_rotate %58 by %c462_i32_118 dim 1 : vector<1x512xf32>, i32 -> vector<1x512xf32>
    %664 = arith.mulf %663, %658 : vector<1x512xf32>
    %665 = vector.extract_strided_slice %59 {offsets = [1, 47], sizes = [1, 1], strides = [1, 1]} : vector<2x49xf32> to vector<1x1xf32>
    %666 = vector.broadcast %665 : vector<1x1xf32> to vector<1x512xf32>
    %667 = arith.mulf %664, %666 : vector<1x512xf32>
    %668 = arith.addf %662, %667 : vector<1x512xf32>
    %669 = arith.addf %656, %668 : vector<1x512xf32>
    %c461_i32 = arith.constant 461 : i32
    %670 = tpu.dynamic_rotate %56 by %c461_i32 dim 1 : vector<1x512xf32>, i32 -> vector<1x512xf32>
    %c48 = arith.constant 48 : index
    %c0_119 = arith.constant 0 : index
    %671 = vector.load %arg2[%c48, %c0_119] : memref<49x512xf32, #tpu.memory_space<vmem>>, vector<1x512xf32>
    %672 = arith.mulf %670, %671 : vector<1x512xf32>
    %673 = vector.extract_strided_slice %59 {offsets = [0, 48], sizes = [1, 1], strides = [1, 1]} : vector<2x49xf32> to vector<1x1xf32>
    %674 = vector.broadcast %673 : vector<1x1xf32> to vector<1x512xf32>
    %675 = arith.mulf %672, %674 : vector<1x512xf32>
    %c461_i32_120 = arith.constant 461 : i32
    %676 = tpu.dynamic_rotate %58 by %c461_i32_120 dim 1 : vector<1x512xf32>, i32 -> vector<1x512xf32>
    %677 = arith.mulf %676, %671 : vector<1x512xf32>
    %678 = vector.extract_strided_slice %59 {offsets = [1, 48], sizes = [1, 1], strides = [1, 1]} : vector<2x49xf32> to vector<1x1xf32>
    %679 = vector.broadcast %678 : vector<1x1xf32> to vector<1x512xf32>
    %680 = arith.mulf %677, %679 : vector<1x512xf32>
    %681 = arith.addf %675, %680 : vector<1x512xf32>
    %682 = arith.addf %669, %681 : vector<1x512xf32>
    %c0_121 = arith.constant 0 : index
    %c0_122 = arith.constant 0 : index
    %683 = vector.load %arg12[%c0_121, %c0_122] : memref<1x1xf32, #tpu.memory_space<vmem>>, vector<1x1xf32>
    %684 = vector.broadcast %683 : vector<1x1xf32> to vector<1x512xf32>
    %685 = arith.addf %682, %684 : vector<1x512xf32>
    %686 = arith.negf %685 : vector<1x512xf32>
    %687 = math.exp %686 : vector<1x512xf32>
    %cst_123 = arith.constant 1.000000e+00 : f32
    %688 = vector.broadcast %cst_123 : f32 to vector<1x512xf32>
    %689 = arith.addf %688, %687 : vector<1x512xf32>
    %690 = arith.divf %688, %689 : vector<1x512xf32>
    %691 = vector.extract_strided_slice %39 {offsets = [0, 0], sizes = [16, 256], strides = [1, 1]} : vector<16x512xf32> to vector<16x256xf32>
    %cst_124 = arith.constant dense<0.000000e+00> : vector<16xf32>
    %692 = vector.multi_reduction <add>, %691, %cst_124 [1] : vector<16x256xf32> to vector<16xf32>
    %693 = vector.shape_cast %692 : vector<16xf32> to vector<16x1xf32>
    %cst_125 = arith.constant 2.560000e+02 : f32
    %694 = vector.broadcast %cst_125 : f32 to vector<16x1xf32>
    %695 = arith.divf %693, %694 : vector<16x1xf32>
    %c0_126 = arith.constant 0 : index
    %c0_127 = arith.constant 0 : index
    %696 = vector.load %arg7[%c0_126, %c0_127] : memref<16x8xf32, #tpu.memory_space<vmem>>, vector<16x8xf32>
    %697 = vector.broadcast %695 : vector<16x1xf32> to vector<16x8xf32>
    %698 = arith.mulf %696, %697 : vector<16x8xf32>
    %cst_128 = arith.constant dense<0.000000e+00> : vector<8xf32>
    %699 = vector.multi_reduction <add>, %698, %cst_128 [0] : vector<16x8xf32> to vector<8xf32>
    %700 = vector.shape_cast %699 : vector<8xf32> to vector<1x8xf32>
    %c0_129 = arith.constant 0 : index
    %c0_130 = arith.constant 0 : index
    %701 = vector.load %arg8[%c0_129, %c0_130] : memref<1x8xf32, #tpu.memory_space<vmem>>, vector<1x8xf32>
    %702 = arith.addf %700, %701 : vector<1x8xf32>
    %cst_131 = arith.constant 0.000000e+00 : f32
    %703 = vector.broadcast %cst_131 : f32 to vector<1x8xf32>
    %704 = arith.maximumf %702, %703 : vector<1x8xf32>
    %c0_132 = arith.constant 0 : index
    %c0_133 = arith.constant 0 : index
    %705 = vector.load %arg9[%c0_132, %c0_133] : memref<16x8xf32, #tpu.memory_space<vmem>>, vector<16x8xf32>
    %706 = vector.broadcast %704 : vector<1x8xf32> to vector<16x8xf32>
    %707 = arith.mulf %705, %706 : vector<16x8xf32>
    %cst_134 = arith.constant dense<0.000000e+00> : vector<16xf32>
    %708 = vector.multi_reduction <add>, %707, %cst_134 [1] : vector<16x8xf32> to vector<16xf32>
    %709 = vector.shape_cast %708 : vector<16xf32> to vector<16x1xf32>
    %c0_135 = arith.constant 0 : index
    %c0_136 = arith.constant 0 : index
    %710 = vector.load %arg10[%c0_135, %c0_136] : memref<16x1xf32, #tpu.memory_space<vmem>>, vector<16x1xf32>
    %711 = arith.addf %709, %710 : vector<16x1xf32>
    %712 = arith.negf %711 : vector<16x1xf32>
    %713 = math.exp %712 : vector<16x1xf32>
    %cst_137 = arith.constant 1.000000e+00 : f32
    %714 = vector.broadcast %cst_137 : f32 to vector<16x1xf32>
    %715 = arith.addf %714, %713 : vector<16x1xf32>
    %716 = arith.divf %714, %715 : vector<16x1xf32>
    %717 = vector.shape_cast %716 : vector<16x1xf32> to vector<16x1xf32>
    %718 = vector.broadcast %717 : vector<16x1xf32> to vector<16x256xf32>
    %719 = vector.extract_strided_slice %39 {offsets = [0, 256], sizes = [16, 256], strides = [1, 1]} : vector<16x512xf32> to vector<16x256xf32>
    %cst_138 = arith.constant dense<0.000000e+00> : vector<16xf32>
    %720 = vector.multi_reduction <add>, %719, %cst_138 [1] : vector<16x256xf32> to vector<16xf32>
    %721 = vector.shape_cast %720 : vector<16xf32> to vector<16x1xf32>
    %cst_139 = arith.constant 2.560000e+02 : f32
    %722 = vector.broadcast %cst_139 : f32 to vector<16x1xf32>
    %723 = arith.divf %721, %722 : vector<16x1xf32>
    %c0_140 = arith.constant 0 : index
    %c0_141 = arith.constant 0 : index
    %724 = vector.load %arg7[%c0_140, %c0_141] : memref<16x8xf32, #tpu.memory_space<vmem>>, vector<16x8xf32>
    %725 = vector.broadcast %723 : vector<16x1xf32> to vector<16x8xf32>
    %726 = arith.mulf %724, %725 : vector<16x8xf32>
    %cst_142 = arith.constant dense<0.000000e+00> : vector<8xf32>
    %727 = vector.multi_reduction <add>, %726, %cst_142 [0] : vector<16x8xf32> to vector<8xf32>
    %728 = vector.shape_cast %727 : vector<8xf32> to vector<1x8xf32>
    %c0_143 = arith.constant 0 : index
    %c0_144 = arith.constant 0 : index
    %729 = vector.load %arg8[%c0_143, %c0_144] : memref<1x8xf32, #tpu.memory_space<vmem>>, vector<1x8xf32>
    %730 = arith.addf %728, %729 : vector<1x8xf32>
    %cst_145 = arith.constant 0.000000e+00 : f32
    %731 = vector.broadcast %cst_145 : f32 to vector<1x8xf32>
    %732 = arith.maximumf %730, %731 : vector<1x8xf32>
    %c0_146 = arith.constant 0 : index
    %c0_147 = arith.constant 0 : index
    %733 = vector.load %arg9[%c0_146, %c0_147] : memref<16x8xf32, #tpu.memory_space<vmem>>, vector<16x8xf32>
    %734 = vector.broadcast %732 : vector<1x8xf32> to vector<16x8xf32>
    %735 = arith.mulf %733, %734 : vector<16x8xf32>
    %cst_148 = arith.constant dense<0.000000e+00> : vector<16xf32>
    %736 = vector.multi_reduction <add>, %735, %cst_148 [1] : vector<16x8xf32> to vector<16xf32>
    %737 = vector.shape_cast %736 : vector<16xf32> to vector<16x1xf32>
    %c0_149 = arith.constant 0 : index
    %c0_150 = arith.constant 0 : index
    %738 = vector.load %arg10[%c0_149, %c0_150] : memref<16x1xf32, #tpu.memory_space<vmem>>, vector<16x1xf32>
    %739 = arith.addf %737, %738 : vector<16x1xf32>
    %740 = arith.negf %739 : vector<16x1xf32>
    %741 = math.exp %740 : vector<16x1xf32>
    %cst_151 = arith.constant 1.000000e+00 : f32
    %742 = vector.broadcast %cst_151 : f32 to vector<16x1xf32>
    %743 = arith.addf %742, %741 : vector<16x1xf32>
    %744 = arith.divf %742, %743 : vector<16x1xf32>
    %745 = vector.shape_cast %744 : vector<16x1xf32> to vector<16x1xf32>
    %746 = vector.broadcast %745 : vector<16x1xf32> to vector<16x256xf32>
    %747 = tpu.concatenate %718, %746 in 1 : vector<16x256xf32>, vector<16x256xf32> -> vector<16x512xf32>
    %748 = arith.mulf %52, %690 : vector<1x512xf32>
    %749 = vector.broadcast %748 : vector<1x512xf32> to vector<16x512xf32>
    %750 = arith.mulf %39, %749 : vector<16x512xf32>
    %751 = arith.mulf %750, %747 : vector<16x512xf32>
    %c0_152 = arith.constant 0 : index
    %c0_153 = arith.constant 0 : index
    %c0_154 = arith.constant 0 : index
    %752 = vector.load %arg13[%c0_152, %c0_153, %c0_154] : memref<4x16x9xf32, #tpu.memory_space<vmem>>, vector<1x16x9xf32>
    %753 = vector.shape_cast %752 : vector<1x16x9xf32> to vector<16x9xf32>
    %c0_155 = arith.constant 0 : index
    %c0_156 = arith.constant 0 : index
    %c0_157 = arith.constant 0 : index
    %754 = vector.load %arg14[%c0_155, %c0_156, %c0_157] : memref<4x16x1xf32, #tpu.memory_space<vmem>>, vector<1x16x1xf32>
    %755 = vector.shape_cast %754 : vector<1x16x1xf32> to vector<16x1xf32>
    %c0_158 = arith.constant 0 : index
    %c0_159 = arith.constant 0 : index
    %c0_160 = arith.constant 0 : index
    %756 = vector.load %arg15[%c0_158, %c0_159, %c0_160] : memref<4x16x16xbf16, #tpu.memory_space<vmem>>, vector<1x16x16xbf16>
    %757 = vector.shape_cast %756 : vector<1x16x16xbf16> to vector<16x16xbf16>
    %c0_161 = arith.constant 0 : index
    %c0_162 = arith.constant 0 : index
    %c0_163 = arith.constant 0 : index
    %758 = vector.load %arg16[%c0_161, %c0_162, %c0_163] : memref<4x16x1xf32, #tpu.memory_space<vmem>>, vector<1x16x1xf32>
    %759 = vector.shape_cast %758 : vector<1x16x1xf32> to vector<16x1xf32>
    %760 = vector.extract_strided_slice %753 {offsets = [0, 0], sizes = [16, 1], strides = [1, 1]} : vector<16x9xf32> to vector<16x1xf32>
    %c17_i32_164 = arith.constant 17 : i32
    %761 = tpu.dynamic_rotate %751 by %c17_i32_164 dim 1 : vector<16x512xf32>, i32 -> vector<16x512xf32>
    %762 = vector.broadcast %4 : vector<1x512xf32> to vector<16x512xf32>
    %763 = arith.mulf %761, %762 : vector<16x512xf32>
    %764 = vector.broadcast %760 : vector<16x1xf32> to vector<16x512xf32>
    %765 = arith.mulf %764, %763 : vector<16x512xf32>
    %766 = vector.extract_strided_slice %753 {offsets = [0, 1], sizes = [16, 1], strides = [1, 1]} : vector<16x9xf32> to vector<16x1xf32>
    %c16_i32_165 = arith.constant 16 : i32
    %767 = tpu.dynamic_rotate %751 by %c16_i32_165 dim 1 : vector<16x512xf32>, i32 -> vector<16x512xf32>
    %768 = vector.broadcast %8 : vector<1x512xf32> to vector<16x512xf32>
    %769 = arith.mulf %767, %768 : vector<16x512xf32>
    %770 = vector.broadcast %766 : vector<16x1xf32> to vector<16x512xf32>
    %771 = arith.mulf %770, %769 : vector<16x512xf32>
    %772 = arith.addf %765, %771 : vector<16x512xf32>
    %773 = vector.extract_strided_slice %753 {offsets = [0, 2], sizes = [16, 1], strides = [1, 1]} : vector<16x9xf32> to vector<16x1xf32>
    %c15_i32_166 = arith.constant 15 : i32
    %774 = tpu.dynamic_rotate %751 by %c15_i32_166 dim 1 : vector<16x512xf32>, i32 -> vector<16x512xf32>
    %775 = vector.broadcast %12 : vector<1x512xf32> to vector<16x512xf32>
    %776 = arith.mulf %774, %775 : vector<16x512xf32>
    %777 = vector.broadcast %773 : vector<16x1xf32> to vector<16x512xf32>
    %778 = arith.mulf %777, %776 : vector<16x512xf32>
    %779 = arith.addf %772, %778 : vector<16x512xf32>
    %780 = vector.extract_strided_slice %753 {offsets = [0, 3], sizes = [16, 1], strides = [1, 1]} : vector<16x9xf32> to vector<16x1xf32>
    %c1_i32_167 = arith.constant 1 : i32
    %781 = tpu.dynamic_rotate %751 by %c1_i32_167 dim 1 : vector<16x512xf32>, i32 -> vector<16x512xf32>
    %782 = vector.broadcast %16 : vector<1x512xf32> to vector<16x512xf32>
    %783 = arith.mulf %781, %782 : vector<16x512xf32>
    %784 = vector.broadcast %780 : vector<16x1xf32> to vector<16x512xf32>
    %785 = arith.mulf %784, %783 : vector<16x512xf32>
    %786 = arith.addf %779, %785 : vector<16x512xf32>
    %787 = vector.extract_strided_slice %753 {offsets = [0, 4], sizes = [16, 1], strides = [1, 1]} : vector<16x9xf32> to vector<16x1xf32>
    %788 = vector.broadcast %787 : vector<16x1xf32> to vector<16x512xf32>
    %789 = arith.mulf %788, %751 : vector<16x512xf32>
    %790 = arith.addf %786, %789 : vector<16x512xf32>
    %791 = vector.extract_strided_slice %753 {offsets = [0, 5], sizes = [16, 1], strides = [1, 1]} : vector<16x9xf32> to vector<16x1xf32>
    %c511_i32_168 = arith.constant 511 : i32
    %792 = tpu.dynamic_rotate %751 by %c511_i32_168 dim 1 : vector<16x512xf32>, i32 -> vector<16x512xf32>
    %793 = vector.broadcast %20 : vector<1x512xf32> to vector<16x512xf32>
    %794 = arith.mulf %792, %793 : vector<16x512xf32>
    %795 = vector.broadcast %791 : vector<16x1xf32> to vector<16x512xf32>
    %796 = arith.mulf %795, %794 : vector<16x512xf32>
    %797 = arith.addf %790, %796 : vector<16x512xf32>
    %798 = vector.extract_strided_slice %753 {offsets = [0, 6], sizes = [16, 1], strides = [1, 1]} : vector<16x9xf32> to vector<16x1xf32>
    %c497_i32_169 = arith.constant 497 : i32
    %799 = tpu.dynamic_rotate %751 by %c497_i32_169 dim 1 : vector<16x512xf32>, i32 -> vector<16x512xf32>
    %800 = vector.broadcast %24 : vector<1x512xf32> to vector<16x512xf32>
    %801 = arith.mulf %799, %800 : vector<16x512xf32>
    %802 = vector.broadcast %798 : vector<16x1xf32> to vector<16x512xf32>
    %803 = arith.mulf %802, %801 : vector<16x512xf32>
    %804 = arith.addf %797, %803 : vector<16x512xf32>
    %805 = vector.extract_strided_slice %753 {offsets = [0, 7], sizes = [16, 1], strides = [1, 1]} : vector<16x9xf32> to vector<16x1xf32>
    %c496_i32_170 = arith.constant 496 : i32
    %806 = tpu.dynamic_rotate %751 by %c496_i32_170 dim 1 : vector<16x512xf32>, i32 -> vector<16x512xf32>
    %807 = vector.broadcast %28 : vector<1x512xf32> to vector<16x512xf32>
    %808 = arith.mulf %806, %807 : vector<16x512xf32>
    %809 = vector.broadcast %805 : vector<16x1xf32> to vector<16x512xf32>
    %810 = arith.mulf %809, %808 : vector<16x512xf32>
    %811 = arith.addf %804, %810 : vector<16x512xf32>
    %812 = vector.extract_strided_slice %753 {offsets = [0, 8], sizes = [16, 1], strides = [1, 1]} : vector<16x9xf32> to vector<16x1xf32>
    %c495_i32_171 = arith.constant 495 : i32
    %813 = tpu.dynamic_rotate %751 by %c495_i32_171 dim 1 : vector<16x512xf32>, i32 -> vector<16x512xf32>
    %814 = vector.broadcast %32 : vector<1x512xf32> to vector<16x512xf32>
    %815 = arith.mulf %813, %814 : vector<16x512xf32>
    %816 = vector.broadcast %812 : vector<16x1xf32> to vector<16x512xf32>
    %817 = arith.mulf %816, %815 : vector<16x512xf32>
    %818 = arith.addf %811, %817 : vector<16x512xf32>
    %819 = vector.broadcast %755 : vector<16x1xf32> to vector<16x512xf32>
    %820 = arith.addf %818, %819 : vector<16x512xf32>
    %cst_172 = arith.constant 0.000000e+00 : f32
    %821 = vector.broadcast %cst_172 : f32 to vector<16x512xf32>
    %822 = arith.maximumf %820, %821 : vector<16x512xf32>
    %823 = arith.truncf %822 : vector<16x512xf32> to vector<16x512xbf16>
    %cst_173 = arith.constant dense<0.000000e+00> : vector<16x512xf32>
    %824 = tpu.matmul %757, %823, %cst_173 {dimension_numbers = #tpu.dot_dimension_numbers<[1], [0], [0], [1], [0, 0, 1, 1], [], []>} : vector<16x16xbf16>, vector<16x512xbf16>, vector<16x512xf32> -> vector<16x512xf32>
    %825 = vector.broadcast %759 : vector<16x1xf32> to vector<16x512xf32>
    %826 = arith.addf %824, %825 : vector<16x512xf32>
    %c1_174 = arith.constant 1 : index
    %c0_175 = arith.constant 0 : index
    %c0_176 = arith.constant 0 : index
    %827 = vector.load %arg13[%c1_174, %c0_175, %c0_176] : memref<4x16x9xf32, #tpu.memory_space<vmem>>, vector<1x16x9xf32>
    %828 = vector.shape_cast %827 : vector<1x16x9xf32> to vector<16x9xf32>
    %c1_177 = arith.constant 1 : index
    %c0_178 = arith.constant 0 : index
    %c0_179 = arith.constant 0 : index
    %829 = vector.load %arg14[%c1_177, %c0_178, %c0_179] : memref<4x16x1xf32, #tpu.memory_space<vmem>>, vector<1x16x1xf32>
    %830 = vector.shape_cast %829 : vector<1x16x1xf32> to vector<16x1xf32>
    %c1_180 = arith.constant 1 : index
    %c0_181 = arith.constant 0 : index
    %c0_182 = arith.constant 0 : index
    %831 = vector.load %arg15[%c1_180, %c0_181, %c0_182] : memref<4x16x16xbf16, #tpu.memory_space<vmem>>, vector<1x16x16xbf16>
    %832 = vector.shape_cast %831 : vector<1x16x16xbf16> to vector<16x16xbf16>
    %c1_183 = arith.constant 1 : index
    %c0_184 = arith.constant 0 : index
    %c0_185 = arith.constant 0 : index
    %833 = vector.load %arg16[%c1_183, %c0_184, %c0_185] : memref<4x16x1xf32, #tpu.memory_space<vmem>>, vector<1x16x1xf32>
    %834 = vector.shape_cast %833 : vector<1x16x1xf32> to vector<16x1xf32>
    %835 = vector.extract_strided_slice %828 {offsets = [0, 0], sizes = [16, 1], strides = [1, 1]} : vector<16x9xf32> to vector<16x1xf32>
    %c17_i32_186 = arith.constant 17 : i32
    %836 = tpu.dynamic_rotate %826 by %c17_i32_186 dim 1 : vector<16x512xf32>, i32 -> vector<16x512xf32>
    %837 = vector.broadcast %4 : vector<1x512xf32> to vector<16x512xf32>
    %838 = arith.mulf %836, %837 : vector<16x512xf32>
    %839 = vector.broadcast %835 : vector<16x1xf32> to vector<16x512xf32>
    %840 = arith.mulf %839, %838 : vector<16x512xf32>
    %841 = vector.extract_strided_slice %828 {offsets = [0, 1], sizes = [16, 1], strides = [1, 1]} : vector<16x9xf32> to vector<16x1xf32>
    %c16_i32_187 = arith.constant 16 : i32
    %842 = tpu.dynamic_rotate %826 by %c16_i32_187 dim 1 : vector<16x512xf32>, i32 -> vector<16x512xf32>
    %843 = vector.broadcast %8 : vector<1x512xf32> to vector<16x512xf32>
    %844 = arith.mulf %842, %843 : vector<16x512xf32>
    %845 = vector.broadcast %841 : vector<16x1xf32> to vector<16x512xf32>
    %846 = arith.mulf %845, %844 : vector<16x512xf32>
    %847 = arith.addf %840, %846 : vector<16x512xf32>
    %848 = vector.extract_strided_slice %828 {offsets = [0, 2], sizes = [16, 1], strides = [1, 1]} : vector<16x9xf32> to vector<16x1xf32>
    %c15_i32_188 = arith.constant 15 : i32
    %849 = tpu.dynamic_rotate %826 by %c15_i32_188 dim 1 : vector<16x512xf32>, i32 -> vector<16x512xf32>
    %850 = vector.broadcast %12 : vector<1x512xf32> to vector<16x512xf32>
    %851 = arith.mulf %849, %850 : vector<16x512xf32>
    %852 = vector.broadcast %848 : vector<16x1xf32> to vector<16x512xf32>
    %853 = arith.mulf %852, %851 : vector<16x512xf32>
    %854 = arith.addf %847, %853 : vector<16x512xf32>
    %855 = vector.extract_strided_slice %828 {offsets = [0, 3], sizes = [16, 1], strides = [1, 1]} : vector<16x9xf32> to vector<16x1xf32>
    %c1_i32_189 = arith.constant 1 : i32
    %856 = tpu.dynamic_rotate %826 by %c1_i32_189 dim 1 : vector<16x512xf32>, i32 -> vector<16x512xf32>
    %857 = vector.broadcast %16 : vector<1x512xf32> to vector<16x512xf32>
    %858 = arith.mulf %856, %857 : vector<16x512xf32>
    %859 = vector.broadcast %855 : vector<16x1xf32> to vector<16x512xf32>
    %860 = arith.mulf %859, %858 : vector<16x512xf32>
    %861 = arith.addf %854, %860 : vector<16x512xf32>
    %862 = vector.extract_strided_slice %828 {offsets = [0, 4], sizes = [16, 1], strides = [1, 1]} : vector<16x9xf32> to vector<16x1xf32>
    %863 = vector.broadcast %862 : vector<16x1xf32> to vector<16x512xf32>
    %864 = arith.mulf %863, %826 : vector<16x512xf32>
    %865 = arith.addf %861, %864 : vector<16x512xf32>
    %866 = vector.extract_strided_slice %828 {offsets = [0, 5], sizes = [16, 1], strides = [1, 1]} : vector<16x9xf32> to vector<16x1xf32>
    %c511_i32_190 = arith.constant 511 : i32
    %867 = tpu.dynamic_rotate %826 by %c511_i32_190 dim 1 : vector<16x512xf32>, i32 -> vector<16x512xf32>
    %868 = vector.broadcast %20 : vector<1x512xf32> to vector<16x512xf32>
    %869 = arith.mulf %867, %868 : vector<16x512xf32>
    %870 = vector.broadcast %866 : vector<16x1xf32> to vector<16x512xf32>
    %871 = arith.mulf %870, %869 : vector<16x512xf32>
    %872 = arith.addf %865, %871 : vector<16x512xf32>
    %873 = vector.extract_strided_slice %828 {offsets = [0, 6], sizes = [16, 1], strides = [1, 1]} : vector<16x9xf32> to vector<16x1xf32>
    %c497_i32_191 = arith.constant 497 : i32
    %874 = tpu.dynamic_rotate %826 by %c497_i32_191 dim 1 : vector<16x512xf32>, i32 -> vector<16x512xf32>
    %875 = vector.broadcast %24 : vector<1x512xf32> to vector<16x512xf32>
    %876 = arith.mulf %874, %875 : vector<16x512xf32>
    %877 = vector.broadcast %873 : vector<16x1xf32> to vector<16x512xf32>
    %878 = arith.mulf %877, %876 : vector<16x512xf32>
    %879 = arith.addf %872, %878 : vector<16x512xf32>
    %880 = vector.extract_strided_slice %828 {offsets = [0, 7], sizes = [16, 1], strides = [1, 1]} : vector<16x9xf32> to vector<16x1xf32>
    %c496_i32_192 = arith.constant 496 : i32
    %881 = tpu.dynamic_rotate %826 by %c496_i32_192 dim 1 : vector<16x512xf32>, i32 -> vector<16x512xf32>
    %882 = vector.broadcast %28 : vector<1x512xf32> to vector<16x512xf32>
    %883 = arith.mulf %881, %882 : vector<16x512xf32>
    %884 = vector.broadcast %880 : vector<16x1xf32> to vector<16x512xf32>
    %885 = arith.mulf %884, %883 : vector<16x512xf32>
    %886 = arith.addf %879, %885 : vector<16x512xf32>
    %887 = vector.extract_strided_slice %828 {offsets = [0, 8], sizes = [16, 1], strides = [1, 1]} : vector<16x9xf32> to vector<16x1xf32>
    %c495_i32_193 = arith.constant 495 : i32
    %888 = tpu.dynamic_rotate %826 by %c495_i32_193 dim 1 : vector<16x512xf32>, i32 -> vector<16x512xf32>
    %889 = vector.broadcast %32 : vector<1x512xf32> to vector<16x512xf32>
    %890 = arith.mulf %888, %889 : vector<16x512xf32>
    %891 = vector.broadcast %887 : vector<16x1xf32> to vector<16x512xf32>
    %892 = arith.mulf %891, %890 : vector<16x512xf32>
    %893 = arith.addf %886, %892 : vector<16x512xf32>
    %894 = vector.broadcast %830 : vector<16x1xf32> to vector<16x512xf32>
    %895 = arith.addf %893, %894 : vector<16x512xf32>
    %cst_194 = arith.constant 0.000000e+00 : f32
    %896 = vector.broadcast %cst_194 : f32 to vector<16x512xf32>
    %897 = arith.maximumf %895, %896 : vector<16x512xf32>
    %898 = arith.truncf %897 : vector<16x512xf32> to vector<16x512xbf16>
    %cst_195 = arith.constant dense<0.000000e+00> : vector<16x512xf32>
    %899 = tpu.matmul %832, %898, %cst_195 {dimension_numbers = #tpu.dot_dimension_numbers<[1], [0], [0], [1], [0, 0, 1, 1], [], []>} : vector<16x16xbf16>, vector<16x512xbf16>, vector<16x512xf32> -> vector<16x512xf32>
    %900 = vector.broadcast %834 : vector<16x1xf32> to vector<16x512xf32>
    %901 = arith.addf %899, %900 : vector<16x512xf32>
    %c0_196 = arith.constant 0 : index
    %c0_197 = arith.constant 0 : index
    %902 = vector.load %arg17[%c0_196, %c0_197] : memref<256x256xbf16, #tpu.memory_space<vmem>>, vector<256x256xbf16>
    %903 = vector.extract_strided_slice %901 {offsets = [0, 0], sizes = [16, 256], strides = [1, 1]} : vector<16x512xf32> to vector<16x256xf32>
    %904 = arith.truncf %903 : vector<16x256xf32> to vector<16x256xbf16>
    %cst_198 = arith.constant dense<0.000000e+00> : vector<16x256xf32>
    %905 = tpu.matmul %904, %902, %cst_198 {dimension_numbers = #tpu.dot_dimension_numbers<[1], [0], [0], [1], [0, 0, 1, 1], [], []>} : vector<16x256xbf16>, vector<256x256xbf16>, vector<16x256xf32> -> vector<16x256xf32>
    %906 = vector.extract_strided_slice %901 {offsets = [0, 256], sizes = [16, 256], strides = [1, 1]} : vector<16x512xf32> to vector<16x256xf32>
    %907 = arith.truncf %906 : vector<16x256xf32> to vector<16x256xbf16>
    %cst_199 = arith.constant dense<0.000000e+00> : vector<16x256xf32>
    %908 = tpu.matmul %907, %902, %cst_199 {dimension_numbers = #tpu.dot_dimension_numbers<[1], [0], [0], [1], [0, 0, 1, 1], [], []>} : vector<16x256xbf16>, vector<256x256xbf16>, vector<16x256xf32> -> vector<16x256xf32>
    %909 = tpu.concatenate %905, %908 in 1 : vector<16x256xf32>, vector<16x256xf32> -> vector<16x512xf32>
    %c0_200 = arith.constant 0 : index
    %c0_201 = arith.constant 0 : index
    %c0_202 = arith.constant 0 : index
    %910 = vector.load %arg18[%c0_200, %c0_201, %c0_202] : memref<2x16x16xbf16, #tpu.memory_space<vmem>>, vector<1x16x16xbf16>
    %911 = vector.shape_cast %910 : vector<1x16x16xbf16> to vector<16x16xbf16>
    %912 = arith.truncf %909 : vector<16x512xf32> to vector<16x512xbf16>
    %cst_203 = arith.constant dense<0.000000e+00> : vector<16x512xf32>
    %913 = tpu.matmul %911, %912, %cst_203 {dimension_numbers = #tpu.dot_dimension_numbers<[1], [0], [0], [1], [0, 0, 1, 1], [], []>} : vector<16x16xbf16>, vector<16x512xbf16>, vector<16x512xf32> -> vector<16x512xf32>
    %c0_204 = arith.constant 0 : index
    %c0_205 = arith.constant 0 : index
    %c0_206 = arith.constant 0 : index
    %914 = vector.load %arg19[%c0_204, %c0_205, %c0_206] : memref<2x16x1xf32, #tpu.memory_space<vmem>>, vector<1x16x1xf32>
    %915 = vector.shape_cast %914 : vector<1x16x1xf32> to vector<16x1xf32>
    %916 = vector.broadcast %915 : vector<16x1xf32> to vector<16x512xf32>
    %917 = arith.addf %913, %916 : vector<16x512xf32>
    %cst_207 = arith.constant 0.000000e+00 : f32
    %918 = vector.broadcast %cst_207 : f32 to vector<16x512xf32>
    %919 = arith.maximumf %917, %918 : vector<16x512xf32>
    %c1_208 = arith.constant 1 : index
    %c0_209 = arith.constant 0 : index
    %c0_210 = arith.constant 0 : index
    %920 = vector.load %arg18[%c1_208, %c0_209, %c0_210] : memref<2x16x16xbf16, #tpu.memory_space<vmem>>, vector<1x16x16xbf16>
    %921 = vector.shape_cast %920 : vector<1x16x16xbf16> to vector<16x16xbf16>
    %922 = arith.truncf %919 : vector<16x512xf32> to vector<16x512xbf16>
    %cst_211 = arith.constant dense<0.000000e+00> : vector<16x512xf32>
    %923 = tpu.matmul %921, %922, %cst_211 {dimension_numbers = #tpu.dot_dimension_numbers<[1], [0], [0], [1], [0, 0, 1, 1], [], []>} : vector<16x16xbf16>, vector<16x512xbf16>, vector<16x512xf32> -> vector<16x512xf32>
    %c1_212 = arith.constant 1 : index
    %c0_213 = arith.constant 0 : index
    %c0_214 = arith.constant 0 : index
    %924 = vector.load %arg19[%c1_212, %c0_213, %c0_214] : memref<2x16x1xf32, #tpu.memory_space<vmem>>, vector<1x16x1xf32>
    %925 = vector.shape_cast %924 : vector<1x16x1xf32> to vector<16x1xf32>
    %926 = vector.broadcast %925 : vector<16x1xf32> to vector<16x512xf32>
    %927 = arith.addf %923, %926 : vector<16x512xf32>
    %cst_215 = arith.constant 0.000000e+00 : f32
    %928 = vector.broadcast %cst_215 : f32 to vector<16x512xf32>
    %929 = arith.maximumf %927, %928 : vector<16x512xf32>
    %930 = vector.extract_strided_slice %929 {offsets = [0, 0], sizes = [16, 256], strides = [1, 1]} : vector<16x512xf32> to vector<16x256xf32>
    %931 = arith.truncf %930 : vector<16x256xf32> to vector<16x256xbf16>
    %cst_216 = arith.constant dense<0.000000e+00> : vector<16x256xf32>
    %932 = tpu.matmul %931, %902, %cst_216 {dimension_numbers = #tpu.dot_dimension_numbers<[1], [0], [0], [1], [0, 0, 1, 1], [], []>} : vector<16x256xbf16>, vector<256x256xbf16>, vector<16x256xf32> -> vector<16x256xf32>
    %933 = vector.extract_strided_slice %929 {offsets = [0, 256], sizes = [16, 256], strides = [1, 1]} : vector<16x512xf32> to vector<16x256xf32>
    %934 = arith.truncf %933 : vector<16x256xf32> to vector<16x256xbf16>
    %cst_217 = arith.constant dense<0.000000e+00> : vector<16x256xf32>
    %935 = tpu.matmul %934, %902, %cst_217 {dimension_numbers = #tpu.dot_dimension_numbers<[1], [0], [0], [1], [0, 0, 1, 1], [], []>} : vector<16x256xbf16>, vector<256x256xbf16>, vector<16x256xf32> -> vector<16x256xf32>
    %936 = tpu.concatenate %932, %935 in 1 : vector<16x256xf32>, vector<16x256xf32> -> vector<16x512xf32>
    %cst_218 = arith.constant 3.906250e-03 : f32
    %937 = vector.broadcast %cst_218 : f32 to vector<16x512xf32>
    %938 = arith.mulf %936, %937 : vector<16x512xf32>
    %c0_219 = arith.constant 0 : index
    %c0_220 = arith.constant 0 : index
    %939 = vector.load %arg20[%c0_219, %c0_220] : memref<16x32xbf16, #tpu.memory_space<vmem>>, vector<16x32xbf16>
    %940 = tpu.concatenate %901, %938 in 0 : vector<16x512xf32>, vector<16x512xf32> -> vector<32x512xf32>
    %941 = arith.truncf %940 : vector<32x512xf32> to vector<32x512xbf16>
    %cst_221 = arith.constant dense<0.000000e+00> : vector<16x512xf32>
    %942 = tpu.matmul %939, %941, %cst_221 {dimension_numbers = #tpu.dot_dimension_numbers<[1], [0], [0], [1], [0, 0, 1, 1], [], []>} : vector<16x32xbf16>, vector<32x512xbf16>, vector<16x512xf32> -> vector<16x512xf32>
    %c0_222 = arith.constant 0 : index
    %c0_223 = arith.constant 0 : index
    %943 = vector.load %arg21[%c0_222, %c0_223] : memref<16x1xf32, #tpu.memory_space<vmem>>, vector<16x1xf32>
    %944 = vector.broadcast %943 : vector<16x1xf32> to vector<16x512xf32>
    %945 = arith.addf %942, %944 : vector<16x512xf32>
    %c2_224 = arith.constant 2 : index
    %c0_225 = arith.constant 0 : index
    %c0_226 = arith.constant 0 : index
    %946 = vector.load %arg13[%c2_224, %c0_225, %c0_226] : memref<4x16x9xf32, #tpu.memory_space<vmem>>, vector<1x16x9xf32>
    %947 = vector.shape_cast %946 : vector<1x16x9xf32> to vector<16x9xf32>
    %c2_227 = arith.constant 2 : index
    %c0_228 = arith.constant 0 : index
    %c0_229 = arith.constant 0 : index
    %948 = vector.load %arg14[%c2_227, %c0_228, %c0_229] : memref<4x16x1xf32, #tpu.memory_space<vmem>>, vector<1x16x1xf32>
    %949 = vector.shape_cast %948 : vector<1x16x1xf32> to vector<16x1xf32>
    %c2_230 = arith.constant 2 : index
    %c0_231 = arith.constant 0 : index
    %c0_232 = arith.constant 0 : index
    %950 = vector.load %arg15[%c2_230, %c0_231, %c0_232] : memref<4x16x16xbf16, #tpu.memory_space<vmem>>, vector<1x16x16xbf16>
    %951 = vector.shape_cast %950 : vector<1x16x16xbf16> to vector<16x16xbf16>
    %c2_233 = arith.constant 2 : index
    %c0_234 = arith.constant 0 : index
    %c0_235 = arith.constant 0 : index
    %952 = vector.load %arg16[%c2_233, %c0_234, %c0_235] : memref<4x16x1xf32, #tpu.memory_space<vmem>>, vector<1x16x1xf32>
    %953 = vector.shape_cast %952 : vector<1x16x1xf32> to vector<16x1xf32>
    %954 = vector.extract_strided_slice %947 {offsets = [0, 0], sizes = [16, 1], strides = [1, 1]} : vector<16x9xf32> to vector<16x1xf32>
    %c17_i32_236 = arith.constant 17 : i32
    %955 = tpu.dynamic_rotate %945 by %c17_i32_236 dim 1 : vector<16x512xf32>, i32 -> vector<16x512xf32>
    %956 = vector.broadcast %4 : vector<1x512xf32> to vector<16x512xf32>
    %957 = arith.mulf %955, %956 : vector<16x512xf32>
    %958 = vector.broadcast %954 : vector<16x1xf32> to vector<16x512xf32>
    %959 = arith.mulf %958, %957 : vector<16x512xf32>
    %960 = vector.extract_strided_slice %947 {offsets = [0, 1], sizes = [16, 1], strides = [1, 1]} : vector<16x9xf32> to vector<16x1xf32>
    %c16_i32_237 = arith.constant 16 : i32
    %961 = tpu.dynamic_rotate %945 by %c16_i32_237 dim 1 : vector<16x512xf32>, i32 -> vector<16x512xf32>
    %962 = vector.broadcast %8 : vector<1x512xf32> to vector<16x512xf32>
    %963 = arith.mulf %961, %962 : vector<16x512xf32>
    %964 = vector.broadcast %960 : vector<16x1xf32> to vector<16x512xf32>
    %965 = arith.mulf %964, %963 : vector<16x512xf32>
    %966 = arith.addf %959, %965 : vector<16x512xf32>
    %967 = vector.extract_strided_slice %947 {offsets = [0, 2], sizes = [16, 1], strides = [1, 1]} : vector<16x9xf32> to vector<16x1xf32>
    %c15_i32_238 = arith.constant 15 : i32
    %968 = tpu.dynamic_rotate %945 by %c15_i32_238 dim 1 : vector<16x512xf32>, i32 -> vector<16x512xf32>
    %969 = vector.broadcast %12 : vector<1x512xf32> to vector<16x512xf32>
    %970 = arith.mulf %968, %969 : vector<16x512xf32>
    %971 = vector.broadcast %967 : vector<16x1xf32> to vector<16x512xf32>
    %972 = arith.mulf %971, %970 : vector<16x512xf32>
    %973 = arith.addf %966, %972 : vector<16x512xf32>
    %974 = vector.extract_strided_slice %947 {offsets = [0, 3], sizes = [16, 1], strides = [1, 1]} : vector<16x9xf32> to vector<16x1xf32>
    %c1_i32_239 = arith.constant 1 : i32
    %975 = tpu.dynamic_rotate %945 by %c1_i32_239 dim 1 : vector<16x512xf32>, i32 -> vector<16x512xf32>
    %976 = vector.broadcast %16 : vector<1x512xf32> to vector<16x512xf32>
    %977 = arith.mulf %975, %976 : vector<16x512xf32>
    %978 = vector.broadcast %974 : vector<16x1xf32> to vector<16x512xf32>
    %979 = arith.mulf %978, %977 : vector<16x512xf32>
    %980 = arith.addf %973, %979 : vector<16x512xf32>
    %981 = vector.extract_strided_slice %947 {offsets = [0, 4], sizes = [16, 1], strides = [1, 1]} : vector<16x9xf32> to vector<16x1xf32>
    %982 = vector.broadcast %981 : vector<16x1xf32> to vector<16x512xf32>
    %983 = arith.mulf %982, %945 : vector<16x512xf32>
    %984 = arith.addf %980, %983 : vector<16x512xf32>
    %985 = vector.extract_strided_slice %947 {offsets = [0, 5], sizes = [16, 1], strides = [1, 1]} : vector<16x9xf32> to vector<16x1xf32>
    %c511_i32_240 = arith.constant 511 : i32
    %986 = tpu.dynamic_rotate %945 by %c511_i32_240 dim 1 : vector<16x512xf32>, i32 -> vector<16x512xf32>
    %987 = vector.broadcast %20 : vector<1x512xf32> to vector<16x512xf32>
    %988 = arith.mulf %986, %987 : vector<16x512xf32>
    %989 = vector.broadcast %985 : vector<16x1xf32> to vector<16x512xf32>
    %990 = arith.mulf %989, %988 : vector<16x512xf32>
    %991 = arith.addf %984, %990 : vector<16x512xf32>
    %992 = vector.extract_strided_slice %947 {offsets = [0, 6], sizes = [16, 1], strides = [1, 1]} : vector<16x9xf32> to vector<16x1xf32>
    %c497_i32_241 = arith.constant 497 : i32
    %993 = tpu.dynamic_rotate %945 by %c497_i32_241 dim 1 : vector<16x512xf32>, i32 -> vector<16x512xf32>
    %994 = vector.broadcast %24 : vector<1x512xf32> to vector<16x512xf32>
    %995 = arith.mulf %993, %994 : vector<16x512xf32>
    %996 = vector.broadcast %992 : vector<16x1xf32> to vector<16x512xf32>
    %997 = arith.mulf %996, %995 : vector<16x512xf32>
    %998 = arith.addf %991, %997 : vector<16x512xf32>
    %999 = vector.extract_strided_slice %947 {offsets = [0, 7], sizes = [16, 1], strides = [1, 1]} : vector<16x9xf32> to vector<16x1xf32>
    %c496_i32_242 = arith.constant 496 : i32
    %1000 = tpu.dynamic_rotate %945 by %c496_i32_242 dim 1 : vector<16x512xf32>, i32 -> vector<16x512xf32>
    %1001 = vector.broadcast %28 : vector<1x512xf32> to vector<16x512xf32>
    %1002 = arith.mulf %1000, %1001 : vector<16x512xf32>
    %1003 = vector.broadcast %999 : vector<16x1xf32> to vector<16x512xf32>
    %1004 = arith.mulf %1003, %1002 : vector<16x512xf32>
    %1005 = arith.addf %998, %1004 : vector<16x512xf32>
    %1006 = vector.extract_strided_slice %947 {offsets = [0, 8], sizes = [16, 1], strides = [1, 1]} : vector<16x9xf32> to vector<16x1xf32>
    %c495_i32_243 = arith.constant 495 : i32
    %1007 = tpu.dynamic_rotate %945 by %c495_i32_243 dim 1 : vector<16x512xf32>, i32 -> vector<16x512xf32>
    %1008 = vector.broadcast %32 : vector<1x512xf32> to vector<16x512xf32>
    %1009 = arith.mulf %1007, %1008 : vector<16x512xf32>
    %1010 = vector.broadcast %1006 : vector<16x1xf32> to vector<16x512xf32>
    %1011 = arith.mulf %1010, %1009 : vector<16x512xf32>
    %1012 = arith.addf %1005, %1011 : vector<16x512xf32>
    %1013 = vector.broadcast %949 : vector<16x1xf32> to vector<16x512xf32>
    %1014 = arith.addf %1012, %1013 : vector<16x512xf32>
    %cst_244 = arith.constant 0.000000e+00 : f32
    %1015 = vector.broadcast %cst_244 : f32 to vector<16x512xf32>
    %1016 = arith.maximumf %1014, %1015 : vector<16x512xf32>
    %1017 = arith.truncf %1016 : vector<16x512xf32> to vector<16x512xbf16>
    %cst_245 = arith.constant dense<0.000000e+00> : vector<16x512xf32>
    %1018 = tpu.matmul %951, %1017, %cst_245 {dimension_numbers = #tpu.dot_dimension_numbers<[1], [0], [0], [1], [0, 0, 1, 1], [], []>} : vector<16x16xbf16>, vector<16x512xbf16>, vector<16x512xf32> -> vector<16x512xf32>
    %1019 = vector.broadcast %953 : vector<16x1xf32> to vector<16x512xf32>
    %1020 = arith.addf %1018, %1019 : vector<16x512xf32>
    %cst_246 = arith.constant 0.000000e+00 : f32
    %1021 = vector.broadcast %cst_246 : f32 to vector<16x512xf32>
    %1022 = arith.maximumf %1020, %1021 : vector<16x512xf32>
    %c3_247 = arith.constant 3 : index
    %c0_248 = arith.constant 0 : index
    %c0_249 = arith.constant 0 : index
    %1023 = vector.load %arg13[%c3_247, %c0_248, %c0_249] : memref<4x16x9xf32, #tpu.memory_space<vmem>>, vector<1x16x9xf32>
    %1024 = vector.shape_cast %1023 : vector<1x16x9xf32> to vector<16x9xf32>
    %c3_250 = arith.constant 3 : index
    %c0_251 = arith.constant 0 : index
    %c0_252 = arith.constant 0 : index
    %1025 = vector.load %arg14[%c3_250, %c0_251, %c0_252] : memref<4x16x1xf32, #tpu.memory_space<vmem>>, vector<1x16x1xf32>
    %1026 = vector.shape_cast %1025 : vector<1x16x1xf32> to vector<16x1xf32>
    %c3_253 = arith.constant 3 : index
    %c0_254 = arith.constant 0 : index
    %c0_255 = arith.constant 0 : index
    %1027 = vector.load %arg15[%c3_253, %c0_254, %c0_255] : memref<4x16x16xbf16, #tpu.memory_space<vmem>>, vector<1x16x16xbf16>
    %1028 = vector.shape_cast %1027 : vector<1x16x16xbf16> to vector<16x16xbf16>
    %c3_256 = arith.constant 3 : index
    %c0_257 = arith.constant 0 : index
    %c0_258 = arith.constant 0 : index
    %1029 = vector.load %arg16[%c3_256, %c0_257, %c0_258] : memref<4x16x1xf32, #tpu.memory_space<vmem>>, vector<1x16x1xf32>
    %1030 = vector.shape_cast %1029 : vector<1x16x1xf32> to vector<16x1xf32>
    %1031 = vector.extract_strided_slice %1024 {offsets = [0, 0], sizes = [16, 1], strides = [1, 1]} : vector<16x9xf32> to vector<16x1xf32>
    %c17_i32_259 = arith.constant 17 : i32
    %1032 = tpu.dynamic_rotate %1022 by %c17_i32_259 dim 1 : vector<16x512xf32>, i32 -> vector<16x512xf32>
    %1033 = vector.broadcast %4 : vector<1x512xf32> to vector<16x512xf32>
    %1034 = arith.mulf %1032, %1033 : vector<16x512xf32>
    %1035 = vector.broadcast %1031 : vector<16x1xf32> to vector<16x512xf32>
    %1036 = arith.mulf %1035, %1034 : vector<16x512xf32>
    %1037 = vector.extract_strided_slice %1024 {offsets = [0, 1], sizes = [16, 1], strides = [1, 1]} : vector<16x9xf32> to vector<16x1xf32>
    %c16_i32_260 = arith.constant 16 : i32
    %1038 = tpu.dynamic_rotate %1022 by %c16_i32_260 dim 1 : vector<16x512xf32>, i32 -> vector<16x512xf32>
    %1039 = vector.broadcast %8 : vector<1x512xf32> to vector<16x512xf32>
    %1040 = arith.mulf %1038, %1039 : vector<16x512xf32>
    %1041 = vector.broadcast %1037 : vector<16x1xf32> to vector<16x512xf32>
    %1042 = arith.mulf %1041, %1040 : vector<16x512xf32>
    %1043 = arith.addf %1036, %1042 : vector<16x512xf32>
    %1044 = vector.extract_strided_slice %1024 {offsets = [0, 2], sizes = [16, 1], strides = [1, 1]} : vector<16x9xf32> to vector<16x1xf32>
    %c15_i32_261 = arith.constant 15 : i32
    %1045 = tpu.dynamic_rotate %1022 by %c15_i32_261 dim 1 : vector<16x512xf32>, i32 -> vector<16x512xf32>
    %1046 = vector.broadcast %12 : vector<1x512xf32> to vector<16x512xf32>
    %1047 = arith.mulf %1045, %1046 : vector<16x512xf32>
    %1048 = vector.broadcast %1044 : vector<16x1xf32> to vector<16x512xf32>
    %1049 = arith.mulf %1048, %1047 : vector<16x512xf32>
    %1050 = arith.addf %1043, %1049 : vector<16x512xf32>
    %1051 = vector.extract_strided_slice %1024 {offsets = [0, 3], sizes = [16, 1], strides = [1, 1]} : vector<16x9xf32> to vector<16x1xf32>
    %c1_i32_262 = arith.constant 1 : i32
    %1052 = tpu.dynamic_rotate %1022 by %c1_i32_262 dim 1 : vector<16x512xf32>, i32 -> vector<16x512xf32>
    %1053 = vector.broadcast %16 : vector<1x512xf32> to vector<16x512xf32>
    %1054 = arith.mulf %1052, %1053 : vector<16x512xf32>
    %1055 = vector.broadcast %1051 : vector<16x1xf32> to vector<16x512xf32>
    %1056 = arith.mulf %1055, %1054 : vector<16x512xf32>
    %1057 = arith.addf %1050, %1056 : vector<16x512xf32>
    %1058 = vector.extract_strided_slice %1024 {offsets = [0, 4], sizes = [16, 1], strides = [1, 1]} : vector<16x9xf32> to vector<16x1xf32>
    %1059 = vector.broadcast %1058 : vector<16x1xf32> to vector<16x512xf32>
    %1060 = arith.mulf %1059, %1022 : vector<16x512xf32>
    %1061 = arith.addf %1057, %1060 : vector<16x512xf32>
    %1062 = vector.extract_strided_slice %1024 {offsets = [0, 5], sizes = [16, 1], strides = [1, 1]} : vector<16x9xf32> to vector<16x1xf32>
    %c511_i32_263 = arith.constant 511 : i32
    %1063 = tpu.dynamic_rotate %1022 by %c511_i32_263 dim 1 : vector<16x512xf32>, i32 -> vector<16x512xf32>
    %1064 = vector.broadcast %20 : vector<1x512xf32> to vector<16x512xf32>
    %1065 = arith.mulf %1063, %1064 : vector<16x512xf32>
    %1066 = vector.broadcast %1062 : vector<16x1xf32> to vector<16x512xf32>
    %1067 = arith.mulf %1066, %1065 : vector<16x512xf32>
    %1068 = arith.addf %1061, %1067 : vector<16x512xf32>
    %1069 = vector.extract_strided_slice %1024 {offsets = [0, 6], sizes = [16, 1], strides = [1, 1]} : vector<16x9xf32> to vector<16x1xf32>
    %c497_i32_264 = arith.constant 497 : i32
    %1070 = tpu.dynamic_rotate %1022 by %c497_i32_264 dim 1 : vector<16x512xf32>, i32 -> vector<16x512xf32>
    %1071 = vector.broadcast %24 : vector<1x512xf32> to vector<16x512xf32>
    %1072 = arith.mulf %1070, %1071 : vector<16x512xf32>
    %1073 = vector.broadcast %1069 : vector<16x1xf32> to vector<16x512xf32>
    %1074 = arith.mulf %1073, %1072 : vector<16x512xf32>
    %1075 = arith.addf %1068, %1074 : vector<16x512xf32>
    %1076 = vector.extract_strided_slice %1024 {offsets = [0, 7], sizes = [16, 1], strides = [1, 1]} : vector<16x9xf32> to vector<16x1xf32>
    %c496_i32_265 = arith.constant 496 : i32
    %1077 = tpu.dynamic_rotate %1022 by %c496_i32_265 dim 1 : vector<16x512xf32>, i32 -> vector<16x512xf32>
    %1078 = vector.broadcast %28 : vector<1x512xf32> to vector<16x512xf32>
    %1079 = arith.mulf %1077, %1078 : vector<16x512xf32>
    %1080 = vector.broadcast %1076 : vector<16x1xf32> to vector<16x512xf32>
    %1081 = arith.mulf %1080, %1079 : vector<16x512xf32>
    %1082 = arith.addf %1075, %1081 : vector<16x512xf32>
    %1083 = vector.extract_strided_slice %1024 {offsets = [0, 8], sizes = [16, 1], strides = [1, 1]} : vector<16x9xf32> to vector<16x1xf32>
    %c495_i32_266 = arith.constant 495 : i32
    %1084 = tpu.dynamic_rotate %1022 by %c495_i32_266 dim 1 : vector<16x512xf32>, i32 -> vector<16x512xf32>
    %1085 = vector.broadcast %32 : vector<1x512xf32> to vector<16x512xf32>
    %1086 = arith.mulf %1084, %1085 : vector<16x512xf32>
    %1087 = vector.broadcast %1083 : vector<16x1xf32> to vector<16x512xf32>
    %1088 = arith.mulf %1087, %1086 : vector<16x512xf32>
    %1089 = arith.addf %1082, %1088 : vector<16x512xf32>
    %1090 = vector.broadcast %1026 : vector<16x1xf32> to vector<16x512xf32>
    %1091 = arith.addf %1089, %1090 : vector<16x512xf32>
    %cst_267 = arith.constant 0.000000e+00 : f32
    %1092 = vector.broadcast %cst_267 : f32 to vector<16x512xf32>
    %1093 = arith.maximumf %1091, %1092 : vector<16x512xf32>
    %1094 = arith.truncf %1093 : vector<16x512xf32> to vector<16x512xbf16>
    %cst_268 = arith.constant dense<0.000000e+00> : vector<16x512xf32>
    %1095 = tpu.matmul %1028, %1094, %cst_268 {dimension_numbers = #tpu.dot_dimension_numbers<[1], [0], [0], [1], [0, 0, 1, 1], [], []>} : vector<16x16xbf16>, vector<16x512xbf16>, vector<16x512xf32> -> vector<16x512xf32>
    %1096 = vector.broadcast %1030 : vector<16x1xf32> to vector<16x512xf32>
    %1097 = arith.addf %1095, %1096 : vector<16x512xf32>
    %1098 = arith.addf %945, %1097 : vector<16x512xf32>
    %c0_269 = arith.constant 0 : index
    %c0_270 = arith.constant 0 : index
    %1099 = vector.load %arg22[%c0_269, %c0_270] : memref<16x144xbf16, #tpu.memory_space<vmem>>, vector<16x144xbf16>
    %c0_271 = arith.constant 0 : index
    %c0_272 = arith.constant 0 : index
    %1100 = vector.load %arg23[%c0_271, %c0_272] : memref<16x1xf32, #tpu.memory_space<vmem>>, vector<16x1xf32>
    %c17_i32_273 = arith.constant 17 : i32
    %1101 = tpu.dynamic_rotate %1098 by %c17_i32_273 dim 1 : vector<16x512xf32>, i32 -> vector<16x512xf32>
    %1102 = vector.broadcast %4 : vector<1x512xf32> to vector<16x512xf32>
    %1103 = arith.mulf %1101, %1102 : vector<16x512xf32>
    %c16_i32_274 = arith.constant 16 : i32
    %1104 = tpu.dynamic_rotate %1098 by %c16_i32_274 dim 1 : vector<16x512xf32>, i32 -> vector<16x512xf32>
    %1105 = vector.broadcast %8 : vector<1x512xf32> to vector<16x512xf32>
    %1106 = arith.mulf %1104, %1105 : vector<16x512xf32>
    %c15_i32_275 = arith.constant 15 : i32
    %1107 = tpu.dynamic_rotate %1098 by %c15_i32_275 dim 1 : vector<16x512xf32>, i32 -> vector<16x512xf32>
    %1108 = vector.broadcast %12 : vector<1x512xf32> to vector<16x512xf32>
    %1109 = arith.mulf %1107, %1108 : vector<16x512xf32>
    %c1_i32_276 = arith.constant 1 : i32
    %1110 = tpu.dynamic_rotate %1098 by %c1_i32_276 dim 1 : vector<16x512xf32>, i32 -> vector<16x512xf32>
    %1111 = vector.broadcast %16 : vector<1x512xf32> to vector<16x512xf32>
    %1112 = arith.mulf %1110, %1111 : vector<16x512xf32>
    %c511_i32_277 = arith.constant 511 : i32
    %1113 = tpu.dynamic_rotate %1098 by %c511_i32_277 dim 1 : vector<16x512xf32>, i32 -> vector<16x512xf32>
    %1114 = vector.broadcast %20 : vector<1x512xf32> to vector<16x512xf32>
    %1115 = arith.mulf %1113, %1114 : vector<16x512xf32>
    %c497_i32_278 = arith.constant 497 : i32
    %1116 = tpu.dynamic_rotate %1098 by %c497_i32_278 dim 1 : vector<16x512xf32>, i32 -> vector<16x512xf32>
    %1117 = vector.broadcast %24 : vector<1x512xf32> to vector<16x512xf32>
    %1118 = arith.mulf %1116, %1117 : vector<16x512xf32>
    %c496_i32_279 = arith.constant 496 : i32
    %1119 = tpu.dynamic_rotate %1098 by %c496_i32_279 dim 1 : vector<16x512xf32>, i32 -> vector<16x512xf32>
    %1120 = vector.broadcast %28 : vector<1x512xf32> to vector<16x512xf32>
    %1121 = arith.mulf %1119, %1120 : vector<16x512xf32>
    %c495_i32_280 = arith.constant 495 : i32
    %1122 = tpu.dynamic_rotate %1098 by %c495_i32_280 dim 1 : vector<16x512xf32>, i32 -> vector<16x512xf32>
    %1123 = vector.broadcast %32 : vector<1x512xf32> to vector<16x512xf32>
    %1124 = arith.mulf %1122, %1123 : vector<16x512xf32>
    %1125 = tpu.concatenate %1103, %1106, %1109, %1112, %1098, %1115, %1118, %1121, %1124 in 0 : vector<16x512xf32>, vector<16x512xf32>, vector<16x512xf32>, vector<16x512xf32>, vector<16x512xf32>, vector<16x512xf32>, vector<16x512xf32>, vector<16x512xf32>, vector<16x512xf32> -> vector<144x512xf32>
    %1126 = arith.truncf %1125 : vector<144x512xf32> to vector<144x512xbf16>
    %cst_281 = arith.constant dense<0.000000e+00> : vector<16x512xf32>
    %1127 = tpu.matmul %1099, %1126, %cst_281 {dimension_numbers = #tpu.dot_dimension_numbers<[1], [0], [0], [1], [0, 0, 1, 1], [], []>} : vector<16x144xbf16>, vector<144x512xbf16>, vector<16x512xf32> -> vector<16x512xf32>
    %1128 = vector.broadcast %1100 : vector<16x1xf32> to vector<16x512xf32>
    %1129 = arith.addf %1127, %1128 : vector<16x512xf32>
    %1130 = math.tanh %1129 : vector<16x512xf32>
    %c0_282 = arith.constant 0 : index
    %c0_283 = arith.constant 0 : index
    %1131 = vector.load %arg24[%c0_282, %c0_283] : memref<16x512xf32, #tpu.memory_space<vmem>>, vector<16x512xf32>
    tpu.vector_store %arg24[%c0_282, %c0_283], %1130 {strides = array<i32>} : memref<16x512xf32, #tpu.memory_space<vmem>>, vector<16x512xf32>,
    return
  }
  func.func @transform_0(%arg0: i32) -> (i32, i32) {
    %c0_i32 = arith.constant 0 : i32
    %c0_i32_0 = arith.constant 0 : i32
    %c0_i32_1 = arith.constant 0 : i32
    return %c0_i32, %c0_i32_0 : i32, i32
  }
  func.func @transform_1(%arg0: i32) -> (i32, i32) {
    %c0_i32 = arith.constant 0 : i32
    %c0_i32_0 = arith.constant 0 : i32
    %c0_i32_1 = arith.constant 0 : i32
    return %c0_i32, %c0_i32_0 : i32, i32
  }
  func.func @transform_2(%arg0: i32) -> (i32, i32) {
    %c0_i32 = arith.constant 0 : i32
    %c0_i32_0 = arith.constant 0 : i32
    %c0_i32_1 = arith.constant 0 : i32
    return %c0_i32, %c0_i32_0 : i32, i32
  }
  func.func @transform_3(%arg0: i32) -> (i32, i32) {
    %c0_i32 = arith.constant 0 : i32
    %c0_i32_0 = arith.constant 0 : i32
    %c0_i32_1 = arith.constant 0 : i32
    return %c0_i32, %c0_i32_0 : i32, i32
  }
  func.func @transform_4(%arg0: i32) -> (i32, i32) {
    %c0_i32 = arith.constant 0 : i32
    %c0_i32_0 = arith.constant 0 : i32
    %c0_i32_1 = arith.constant 0 : i32
    return %c0_i32, %c0_i32_0 : i32, i32
  }
  func.func @transform_5(%arg0: i32) -> (i32, i32) {
    %c0_i32 = arith.constant 0 : i32
    %c0_i32_0 = arith.constant 0 : i32
    %c0_i32_1 = arith.constant 0 : i32
    return %c0_i32, %c0_i32_0 : i32, i32
  }
  func.func @transform_6(%arg0: i32) -> (i32, i32) {
    %c0_i32 = arith.constant 0 : i32
    %c0_i32_0 = arith.constant 0 : i32
    %c0_i32_1 = arith.constant 0 : i32
    return %c0_i32, %c0_i32_0 : i32, i32
  }
  func.func @transform_7(%arg0: i32) -> (i32, i32) {
    %c0_i32 = arith.constant 0 : i32
    %c0_i32_0 = arith.constant 0 : i32
    %c0_i32_1 = arith.constant 0 : i32
    return %c0_i32, %c0_i32_0 : i32, i32
  }
  func.func @transform_8(%arg0: i32) -> (i32, i32) {
    %c0_i32 = arith.constant 0 : i32
    %c0_i32_0 = arith.constant 0 : i32
    %c0_i32_1 = arith.constant 0 : i32
    return %c0_i32, %c0_i32_0 : i32, i32
  }
  func.func @transform_9(%arg0: i32) -> (i32, i32) {
    %c0_i32 = arith.constant 0 : i32
    %c0_i32_0 = arith.constant 0 : i32
    %c0_i32_1 = arith.constant 0 : i32
    return %c0_i32, %c0_i32_0 : i32, i32
  }
  func.func @transform_10(%arg0: i32) -> (i32, i32) {
    %c0_i32 = arith.constant 0 : i32
    %c0_i32_0 = arith.constant 0 : i32
    %c0_i32_1 = arith.constant 0 : i32
    return %c0_i32, %c0_i32_0 : i32, i32
  }
  func.func @transform_11(%arg0: i32) -> (i32, i32) {
    %c0_i32 = arith.constant 0 : i32
    %c0_i32_0 = arith.constant 0 : i32
    %c0_i32_1 = arith.constant 0 : i32
    return %c0_i32, %c0_i32_0 : i32, i32
  }
  func.func @transform_12(%arg0: i32) -> (i32, i32, i32) {
    %c0_i32 = arith.constant 0 : i32
    %c0_i32_0 = arith.constant 0 : i32
    %c0_i32_1 = arith.constant 0 : i32
    %c0_i32_2 = arith.constant 0 : i32
    return %c0_i32, %c0_i32_0, %c0_i32_1 : i32, i32, i32
  }
  func.func @transform_13(%arg0: i32) -> (i32, i32, i32) {
    %c0_i32 = arith.constant 0 : i32
    %c0_i32_0 = arith.constant 0 : i32
    %c0_i32_1 = arith.constant 0 : i32
    %c0_i32_2 = arith.constant 0 : i32
    return %c0_i32, %c0_i32_0, %c0_i32_1 : i32, i32, i32
  }
  func.func @transform_14(%arg0: i32) -> (i32, i32, i32) {
    %c0_i32 = arith.constant 0 : i32
    %c0_i32_0 = arith.constant 0 : i32
    %c0_i32_1 = arith.constant 0 : i32
    %c0_i32_2 = arith.constant 0 : i32
    return %c0_i32, %c0_i32_0, %c0_i32_1 : i32, i32, i32
  }
  func.func @transform_15(%arg0: i32) -> (i32, i32, i32) {
    %c0_i32 = arith.constant 0 : i32
    %c0_i32_0 = arith.constant 0 : i32
    %c0_i32_1 = arith.constant 0 : i32
    %c0_i32_2 = arith.constant 0 : i32
    return %c0_i32, %c0_i32_0, %c0_i32_1 : i32, i32, i32
  }
  func.func @transform_16(%arg0: i32) -> (i32, i32) {
    %c0_i32 = arith.constant 0 : i32
    %c0_i32_0 = arith.constant 0 : i32
    %c0_i32_1 = arith.constant 0 : i32
    return %c0_i32, %c0_i32_0 : i32, i32
  }
  func.func @transform_17(%arg0: i32) -> (i32, i32, i32) {
    %c0_i32 = arith.constant 0 : i32
    %c0_i32_0 = arith.constant 0 : i32
    %c0_i32_1 = arith.constant 0 : i32
    %c0_i32_2 = arith.constant 0 : i32
    return %c0_i32, %c0_i32_0, %c0_i32_1 : i32, i32, i32
  }
  func.func @transform_18(%arg0: i32) -> (i32, i32, i32) {
    %c0_i32 = arith.constant 0 : i32
    %c0_i32_0 = arith.constant 0 : i32
    %c0_i32_1 = arith.constant 0 : i32
    %c0_i32_2 = arith.constant 0 : i32
    return %c0_i32, %c0_i32_0, %c0_i32_1 : i32, i32, i32
  }
  func.func @transform_19(%arg0: i32) -> (i32, i32) {
    %c0_i32 = arith.constant 0 : i32
    %c0_i32_0 = arith.constant 0 : i32
    %c0_i32_1 = arith.constant 0 : i32
    return %c0_i32, %c0_i32_0 : i32, i32
  }
  func.func @transform_20(%arg0: i32) -> (i32, i32) {
    %c0_i32 = arith.constant 0 : i32
    %c0_i32_0 = arith.constant 0 : i32
    %c0_i32_1 = arith.constant 0 : i32
    return %c0_i32, %c0_i32_0 : i32, i32
  }
  func.func @transform_21(%arg0: i32) -> (i32, i32) {
    %c0_i32 = arith.constant 0 : i32
    %c0_i32_0 = arith.constant 0 : i32
    %c0_i32_1 = arith.constant 0 : i32
    return %c0_i32, %c0_i32_0 : i32, i32
  }
  func.func @transform_22(%arg0: i32) -> (i32, i32) {
    %c0_i32 = arith.constant 0 : i32
    %c0_i32_0 = arith.constant 0 : i32
    %c0_i32_1 = arith.constant 0 : i32
    return %c0_i32, %c0_i32_0 : i32, i32
  }
  func.func @transform_23(%arg0: i32) -> (i32, i32) {
    %c0_i32 = arith.constant 0 : i32
    %c0_i32_0 = arith.constant 0 : i32
    %c0_i32_1 = arith.constant 0 : i32
    return %c0_i32, %c0_i32_0 : i32, i32
  }
}

</mosaic_0001>

<llo_original>
// kernel: _lambda_.1
$region0: #{_lambda_.1}
  #allocation0 [shape = 'u32[]', space=smem, size = 0x4, offset = 0x4, fixed_abs, tag = 'smem constant byte address 0x4 - core index']
  #allocation1 [shape = 'u32[72,128]{1,0:T(1,128)}', space=vmem, size = 0x9000, scoped, tag = 'internal scratch']
  #allocation2 [shape = 'f32[1,1]{1,0:T(1,128)S(1)}', space=vmem, size = 0x200, scoped, tag = 'scoped memory for _lambda_.1']
  %s0 = inlined_call_operand.vmem [shape: f32[8,512], index: 0, kind: input, shape index: {}]
  %s1 = inlined_call_operand.hbm [shape: f32[49,512], index: 1, kind: input, shape index: {}]
  %s2 = inlined_call_operand.hbm [shape: bf16[16,72], index: 2, kind: input, shape index: {}]
  %s3 = inlined_call_operand.vmem [shape: f32[16,1], index: 3, kind: input, shape index: {}]
  %s4 = inlined_call_operand.hbm [shape: f32[2,16], index: 4, kind: input, shape index: {}]
  %s5 = inlined_call_operand.vmem [shape: f32[2,1], index: 5, kind: input, shape index: {}]
  %s6 = inlined_call_operand.vmem [shape: f32[16,8], index: 6, kind: input, shape index: {}]
  %s7 = inlined_call_operand.hbm [shape: f32[1,8], index: 7, kind: input, shape index: {}]
  %s8 = inlined_call_operand.vmem [shape: f32[16,8], index: 8, kind: input, shape index: {}]
  %s9 = inlined_call_operand.vmem [shape: f32[16,1], index: 9, kind: input, shape index: {}]
  %s10 = inlined_call_operand.hbm [shape: f32[2,49], index: 10, kind: input, shape index: {}]
  %s11 = inlined_call_operand.<no memory space> [shape: f32[1,1], index: 11, kind: input, shape index: {}]
  %s12 = inlined_call_operand.vmem [shape: f32[4,16,9], index: 12, kind: input, shape index: {}]
  %s13 = inlined_call_operand.vmem [shape: f32[4,16,1], index: 13, kind: input, shape index: {}]
  %s14 = inlined_call_operand.hbm [shape: bf16[4,16,16], index: 14, kind: input, shape index: {}]
  %s15 = inlined_call_operand.vmem [shape: f32[4,16,1], index: 15, kind: input, shape index: {}]
  %s16 = inlined_call_operand.hbm [shape: bf16[256,256], index: 16, kind: input, shape index: {}]
  %s17 = inlined_call_operand.hbm [shape: bf16[2,16,16], index: 17, kind: input, shape index: {}]
  %s18 = inlined_call_operand.vmem [shape: f32[2,16,1], index: 18, kind: input, shape index: {}]
  %s19 = inlined_call_operand.hbm [shape: bf16[16,32], index: 19, kind: input, shape index: {}]
  %s20 = inlined_call_operand.vmem [shape: f32[16,1], index: 20, kind: input, shape index: {}]
  %s21 = inlined_call_operand.hbm [shape: bf16[16,144], index: 21, kind: input, shape index: {}]
  %s22 = inlined_call_operand.vmem [shape: f32[16,1], index: 22, kind: input, shape index: {}]
  %s23 = inlined_call_operand.vmem [shape: f32[16,512], index: 23, kind: output, shape index: {}]
  %s24 = sld [smem:[#allocation0]]
  $region142: #{_lambda_.1} parent=0
    _
  %s26 = ssub.s32 1, %s24
  %s27 = scalar_select 0, %s26, %s24
  %v28 = vstv %s11
  %29 = vst [vmem:[#allocation2] sm:$0x1] %v28
  $region1: #{_lambda_.1} parent=0
    #allocation3 [shape = 'u8[114688]{0}', space=vmem, size = 0x1c000, scoped, tag = 'input window, operand 1, single buffered']
    #allocation4 [shape = 's32[1]{0}', space=sflag, size = 0x4, scoped, tag = 'scoped memory for _lambda_.1']
    #allocation5 [shape = 'u8[4096]{0}', space=vmem, size = 0x1000, scoped, tag = 'input window, operand 2, single buffered']
    #allocation6 [shape = 's32[1]{0}', space=sflag, size = 0x4, scoped, tag = 'scoped memory for _lambda_.1']
    #allocation7 [shape = 'u8[1024]{0}', space=vmem, size = 0x400, scoped, tag = 'input window, operand 4, single buffered']
    #allocation8 [shape = 'u8[512]{0}', space=vmem, size = 0x400, scoped, tag = 'input window, operand 7, single buffered']
    #allocation9 [shape = 's32[1]{0}', space=sflag, size = 0x4, scoped, tag = 'scoped memory for _lambda_.1']
    #allocation10 [shape = 'u8[1024]{0}', space=vmem, size = 0x400, scoped, tag = 'input window, operand 10, single buffered']
    #allocation11 [shape = 'u8[16384]{0}', space=vmem, size = 0x4000, scoped, tag = 'input window, operand 14, single buffered']
    #allocation12 [shape = 's32[1]{0}', space=sflag, size = 0x4, scoped, tag = 'scoped memory for _lambda_.1']
    #allocation13 [shape = 'u8[131072]{0}', space=vmem, size = 0x20000, scoped, tag = 'input window, operand 16, single buffered']
    #allocation14 [shape = 'u8[8192]{0}', space=vmem, size = 0x2000, scoped, tag = 'input window, operand 17, single buffered']
    #allocation15 [shape = 's32[1]{0}', space=sflag, size = 0x4, scoped, tag = 'scoped memory for _lambda_.1']
    #allocation16 [shape = 'u8[4096]{0}', space=vmem, size = 0x1000, scoped, tag = 'input window, operand 19, single buffered']
    #allocation17 [shape = 'u8[8192]{0}', space=vmem, size = 0x2000, scoped, tag = 'input window, operand 21, single buffered']
    #allocation18 [shape = 's32[1]{0}', space=sflag, size = 0x4, scoped, tag = 'scoped memory for _lambda_.1']
    %30 = vsyncpa [#allocation4], 0
    %31 = vsyncpa [#allocation6], 0
    %32 = vsyncpa [#allocation9], 0
    %33 = vsyncpa [#allocation12], 0
    %34 = vsyncpa [#allocation15], 0
    %35 = vsyncpa [#allocation18], 0
    // Predicated region
    $region2: #{_lambda_.1} parent=1 // pred_check
      _
    $region3: #{_lambda_.1} parent=1 // pred_check_branch
      %37 = sbr.rel (0) target = $region5
    $region4: #{_lambda_.1} parent=1 // pred_region
      _
    $region5: #{_lambda_.1} parent=1 // pred_fallthru
      _
    // Predicated region
    $region6: #{_lambda_.1} parent=1 // pred_check
      _
    $region7: #{_lambda_.1} parent=1 // pred_check_branch
      %39 = sbr.rel (0) target = $region9
    $region8: #{_lambda_.1} parent=1 // pred_region
      %41 = vsyncadd [#allocation4], 0
      %s42 = sshll.u32 %s1, 4
      %s43 = int_to_ptr.hbm [resolvable:$true] %s42
      %s44 = sshll.u32 [#allocation3], 4
      %s45 = int_to_ptr.vmem [resolvable:$true] %s44
      %50 = dma.hbm_to_vmem [thread:$0]  %s43, 3584, %s45, [#allocation4], 512, 512, 32
    $region9: #{_lambda_.1} parent=1 // pred_fallthru
      _
    // Predicated region
    $region10: #{_lambda_.1} parent=1 // pred_check
      _
    $region11: #{_lambda_.1} parent=1 // pred_check_branch
      %52 = sbr.rel (0) target = $region13
    $region12: #{_lambda_.1} parent=1 // pred_region
      %54 = vsyncadd [#allocation6], 0
      %s55 = sshll.u32 %s2, 4
      %s56 = int_to_ptr.hbm [resolvable:$true] %s55
      %s57 = sshll.u32 [#allocation5], 4
      %s58 = int_to_ptr.vmem [resolvable:$true] %s57
      %63 = dma.hbm_to_vmem [thread:$0]  %s56, 128, %s58, [#allocation6], 64, 64, 4
    $region13: #{_lambda_.1} parent=1 // pred_fallthru
      _
    // Predicated region
    $region14: #{_lambda_.1} parent=1 // pred_check
      _
    $region15: #{_lambda_.1} parent=1 // pred_check_branch
      %65 = sbr.rel (0) target = $region17
    $region16: #{_lambda_.1} parent=1 // pred_region
      _
    $region17: #{_lambda_.1} parent=1 // pred_fallthru
      _
    // Predicated region
    $region18: #{_lambda_.1} parent=1 // pred_check
      _
    $region19: #{_lambda_.1} parent=1 // pred_check_branch
      %67 = sbr.rel (0) target = $region21
    $region20: #{_lambda_.1} parent=1 // pred_region
      %69 = vsyncadd [#allocation6], 0
      %s71 = sshll.u32 %s4, 4
      %s72 = int_to_ptr.hbm [resolvable:$true] %s71
      %s73 = sshll.u32 [#allocation7], 4
      %s74 = int_to_ptr.vmem [resolvable:$true] %s73
      %76 = dma.hbm_to_vmem [thread:$0]  %s72, 32, %s74, [#allocation6]
    $region21: #{_lambda_.1} parent=1 // pred_fallthru
      _
    // Predicated region
    $region22: #{_lambda_.1} parent=1 // pred_check
      _
    $region23: #{_lambda_.1} parent=1 // pred_check_branch
      %78 = sbr.rel (0) target = $region25
    $region24: #{_lambda_.1} parent=1 // pred_region
      _
    $region25: #{_lambda_.1} parent=1 // pred_fallthru
      _
    // Predicated region
    $region26: #{_lambda_.1} parent=1 // pred_check
      _
    $region27: #{_lambda_.1} parent=1 // pred_check_branch
      %80 = sbr.rel (0) target = $region29
    $region28: #{_lambda_.1} parent=1 // pred_region
      _
    $region29: #{_lambda_.1} parent=1 // pred_fallthru
      _
    // Predicated region
    $region30: #{_lambda_.1} parent=1 // pred_check
      _
    $region31: #{_lambda_.1} parent=1 // pred_check_branch
      %82 = sbr.rel (0) target = $region33
    $region32: #{_lambda_.1} parent=1 // pred_region
      %84 = vsyncadd [#allocation9], 0
      %s86 = sshll.u32 %s7, 4
      %s87 = int_to_ptr.hbm [resolvable:$true] %s86
      %s88 = sshll.u32 [#allocation8], 4
      %s89 = int_to_ptr.vmem [resolvable:$true] %s88
      %91 = dma.hbm_to_vmem [thread:$0]  %s87, 16, %s89, [#allocation9]
    $region33: #{_lambda_.1} parent=1 // pred_fallthru
      _
    // Predicated region
    $region34: #{_lambda_.1} parent=1 // pred_check
      _
    $region35: #{_lambda_.1} parent=1 // pred_check_branch
      %93 = sbr.rel (0) target = $region37
    $region36: #{_lambda_.1} parent=1 // pred_region
      _
    $region37: #{_lambda_.1} parent=1 // pred_fallthru
      _
    // Predicated region
    $region38: #{_lambda_.1} parent=1 // pred_check
      _
    $region39: #{_lambda_.1} parent=1 // pred_check_branch
      %95 = sbr.rel (0) target = $region41
    $region40: #{_lambda_.1} parent=1 // pred_region
      _
    $region41: #{_lambda_.1} parent=1 // pred_fallthru
      _
    // Predicated region
    $region42: #{_lambda_.1} parent=1 // pred_check
      _
    $region43: #{_lambda_.1} parent=1 // pred_check_branch
      %97 = sbr.rel (0) target = $region45
    $region44: #{_lambda_.1} parent=1 // pred_region
      %99 = vsyncadd [#allocation9], 0
      %s101 = sshll.u32 %s10, 4
      %s102 = int_to_ptr.hbm [resolvable:$true] %s101
      %s103 = sshll.u32 [#allocation10], 4
      %s104 = int_to_ptr.vmem [resolvable:$true] %s103
      %106 = dma.hbm_to_vmem [thread:$0]  %s102, 32, %s104, [#allocation9]
    $region45: #{_lambda_.1} parent=1 // pred_fallthru
      _
    // Predicated region
    $region46: #{_lambda_.1} parent=1 // pred_check
      _
    $region47: #{_lambda_.1} parent=1 // pred_check_branch
      %108 = sbr.rel (0) target = $region49
    $region48: #{_lambda_.1} parent=1 // pred_region
      _
    $region49: #{_lambda_.1} parent=1 // pred_fallthru
      _
    // Predicated region
    $region50: #{_lambda_.1} parent=1 // pred_check
      _
    $region51: #{_lambda_.1} parent=1 // pred_check_branch
      %110 = sbr.rel (0) target = $region53
    $region52: #{_lambda_.1} parent=1 // pred_region
      _
    $region53: #{_lambda_.1} parent=1 // pred_fallthru
      _
    // Predicated region
    $region54: #{_lambda_.1} parent=1 // pred_check
      _
    $region55: #{_lambda_.1} parent=1 // pred_check_branch
      %112 = sbr.rel (0) target = $region57
    $region56: #{_lambda_.1} parent=1 // pred_region
      _
    $region57: #{_lambda_.1} parent=1 // pred_fallthru
      _
    // Predicated region
    $region58: #{_lambda_.1} parent=1 // pred_check
      _
    $region59: #{_lambda_.1} parent=1 // pred_check_branch
      %114 = sbr.rel (0) target = $region61
    $region60: #{_lambda_.1} parent=1 // pred_region
      %116 = vsyncadd [#allocation12], 0
      %s117 = sshll.u32 %s14, 4
      %s118 = int_to_ptr.hbm [resolvable:$true] %s117
      %s119 = sshll.u32 [#allocation11], 4
      %s120 = int_to_ptr.vmem [resolvable:$true] %s119
      %125 = dma.hbm_to_vmem [thread:$0]  %s118, 512, %s120, [#allocation12], 64, 64, 4
    $region61: #{_lambda_.1} parent=1 // pred_fallthru
      _
    // Predicated region
    $region62: #{_lambda_.1} parent=1 // pred_check
      _
    $region63: #{_lambda_.1} parent=1 // pred_check_branch
      %127 = sbr.rel (0) target = $region65
    $region64: #{_lambda_.1} parent=1 // pred_region
      _
    $region65: #{_lambda_.1} parent=1 // pred_fallthru
      _
    // Predicated region
    $region66: #{_lambda_.1} parent=1 // pred_check
      _
    $region67: #{_lambda_.1} parent=1 // pred_check_branch
      %129 = sbr.rel (0) target = $region69
    $region68: #{_lambda_.1} parent=1 // pred_region
      %131 = vsyncadd [#allocation12], 0
      %s132 = sshll.u32 %s16, 4
      %s133 = int_to_ptr.hbm [resolvable:$true] %s132
      %s134 = sshll.u32 [#allocation13], 4
      %s135 = int_to_ptr.vmem [resolvable:$true] %s134
      %140 = dma.hbm_to_vmem [thread:$0]  %s133, 4096, %s135, [#allocation12], 128, 128, 8
    $region69: #{_lambda_.1} parent=1 // pred_fallthru
      _
    // Predicated region
    $region70: #{_lambda_.1} parent=1 // pred_check
      _
    $region71: #{_lambda_.1} parent=1 // pred_check_branch
      %142 = sbr.rel (0) target = $region73
    $region72: #{_lambda_.1} parent=1 // pred_region
      %144 = vsyncadd [#allocation15], 0
      %s145 = sshll.u32 %s17, 4
      %s146 = int_to_ptr.hbm [resolvable:$true] %s145
      %s147 = sshll.u32 [#allocation14], 4
      %s148 = int_to_ptr.vmem [resolvable:$true] %s147
      %153 = dma.hbm_to_vmem [thread:$0]  %s146, 256, %s148, [#allocation15], 64, 64, 4
    $region73: #{_lambda_.1} parent=1 // pred_fallthru
      _
    // Predicated region
    $region74: #{_lambda_.1} parent=1 // pred_check
      _
    $region75: #{_lambda_.1} parent=1 // pred_check_branch
      %155 = sbr.rel (0) target = $region77
    $region76: #{_lambda_.1} parent=1 // pred_region
      _
    $region77: #{_lambda_.1} parent=1 // pred_fallthru
      _
    // Predicated region
    $region78: #{_lambda_.1} parent=1 // pred_check
      _
    $region79: #{_lambda_.1} parent=1 // pred_check_branch
      %157 = sbr.rel (0) target = $region81
    $region80: #{_lambda_.1} parent=1 // pred_region
      %159 = vsyncadd [#allocation15], 0
      %s160 = sshll.u32 %s19, 4
      %s161 = int_to_ptr.hbm [resolvable:$true] %s160
      %s162 = sshll.u32 [#allocation16], 4
      %s163 = int_to_ptr.vmem [resolvable:$true] %s162
      %168 = dma.hbm_to_vmem [thread:$0]  %s161, 128, %s163, [#allocation15], 64, 64, 4
    $region81: #{_lambda_.1} parent=1 // pred_fallthru
      _
    // Predicated region
    $region82: #{_lambda_.1} parent=1 // pred_check
      _
    $region83: #{_lambda_.1} parent=1 // pred_check_branch
      %170 = sbr.rel (0) target = $region85
    $region84: #{_lambda_.1} parent=1 // pred_region
      _
    $region85: #{_lambda_.1} parent=1 // pred_fallthru
      _
    // Predicated region
    $region86: #{_lambda_.1} parent=1 // pred_check
      _
    $region87: #{_lambda_.1} parent=1 // pred_check_branch
      %172 = sbr.rel (0) target = $region89
    $region88: #{_lambda_.1} parent=1 // pred_region
      %174 = vsyncadd [#allocation18], 0
      %s175 = sshll.u32 %s21, 4
      %s176 = int_to_ptr.hbm [resolvable:$true] %s175
      %s177 = sshll.u32 [#allocation17], 4
      %s178 = int_to_ptr.vmem [resolvable:$true] %s177
      %183 = dma.hbm_to_vmem [thread:$0]  %s176, 256, %s178, [#allocation18], 128, 128, 8
    $region89: #{_lambda_.1} parent=1 // pred_fallthru
      _
    // Predicated region
    $region90: #{_lambda_.1} parent=1 // pred_check
      _
    $region91: #{_lambda_.1} parent=1 // pred_check_branch
      %185 = sbr.rel (0) target = $region93
    $region92: #{_lambda_.1} parent=1 // pred_region
      _
    $region93: #{_lambda_.1} parent=1 // pred_fallthru
      _
    // Predicated region
    $region94: #{_lambda_.1} parent=1 // pred_check
      _
    $region95: #{_lambda_.1} parent=1 // pred_check_branch
      %187 = sbr.rel (0) target = $region97
    $region96: #{_lambda_.1} parent=1 // pred_region
      %189 = dma.done [#allocation4], 3584
    $region97: #{_lambda_.1} parent=1 // pred_fallthru
      _
    // Predicated region
    $region98: #{_lambda_.1} parent=1 // pred_check
      _
    $region99: #{_lambda_.1} parent=1 // pred_check_branch
      %191 = sbr.rel (0) target = $region101
    $region100: #{_lambda_.1} parent=1 // pred_region
      %193 = dma.done [#allocation6], 128
    $region101: #{_lambda_.1} parent=1 // pred_fallthru
      _
    // Predicated region
    $region102: #{_lambda_.1} parent=1 // pred_check
      _
    $region103: #{_lambda_.1} parent=1 // pred_check_branch
      %195 = sbr.rel (0) target = $region105
    $region104: #{_lambda_.1} parent=1 // pred_region
      %197 = dma.done [#allocation6], 32
    $region105: #{_lambda_.1} parent=1 // pred_fallthru
      _
    // Predicated region
    $region106: #{_lambda_.1} parent=1 // pred_check
      _
    $region107: #{_lambda_.1} parent=1 // pred_check_branch
      %199 = sbr.rel (0) target = $region109
    $region108: #{_lambda_.1} parent=1 // pred_region
      %201 = dma.done [#allocation9], 16
    $region109: #{_lambda_.1} parent=1 // pred_fallthru
      _
    // Predicated region
    $region110: #{_lambda_.1} parent=1 // pred_check
      _
    $region111: #{_lambda_.1} parent=1 // pred_check_branch
      %203 = sbr.rel (0) target = $region113
    $region112: #{_lambda_.1} parent=1 // pred_region
      %205 = dma.done [#allocation9], 32
    $region113: #{_lambda_.1} parent=1 // pred_fallthru
      _
    // Predicated region
    $region114: #{_lambda_.1} parent=1 // pred_check
      _
    $region115: #{_lambda_.1} parent=1 // pred_check_branch
      %207 = sbr.rel (0) target = $region117
    $region116: #{_lambda_.1} parent=1 // pred_region
      %209 = dma.done [#allocation12], 512
    $region117: #{_lambda_.1} parent=1 // pred_fallthru
      _
    // Predicated region
    $region118: #{_lambda_.1} parent=1 // pred_check
      _
    $region119: #{_lambda_.1} parent=1 // pred_check_branch
      %211 = sbr.rel (0) target = $region121
    $region120: #{_lambda_.1} parent=1 // pred_region
      %213 = dma.done [#allocation12], 4096
    $region121: #{_lambda_.1} parent=1 // pred_fallthru
      _
    // Predicated region
    $region122: #{_lambda_.1} parent=1 // pred_check
      _
    $region123: #{_lambda_.1} parent=1 // pred_check_branch
      %215 = sbr.rel (0) target = $region125
    $region124: #{_lambda_.1} parent=1 // pred_region
      %217 = dma.done [#allocation15], 256
    $region125: #{_lambda_.1} parent=1 // pred_fallthru
      _
    // Predicated region
    $region126: #{_lambda_.1} parent=1 // pred_check
      _
    $region127: #{_lambda_.1} parent=1 // pred_check_branch
      %219 = sbr.rel (0) target = $region129
    $region128: #{_lambda_.1} parent=1 // pred_region
      %221 = dma.done [#allocation15], 128
    $region129: #{_lambda_.1} parent=1 // pred_fallthru
      _
    // Predicated region
    $region130: #{_lambda_.1} parent=1 // pred_check
      _
    $region131: #{_lambda_.1} parent=1 // pred_check_branch
      %223 = sbr.rel (0) target = $region133
    $region132: #{_lambda_.1} parent=1 // pred_region
      %225 = dma.done [#allocation18], 256
    $region133: #{_lambda_.1} parent=1 // pred_fallthru
      _
    %v227 = vld [vmem:[%s0] sm:$0xff]
    %v228 = vld [vmem:[%s0 + $0x8] sm:$0xff]
    %v229 = vld [vmem:[%s0 + $0x10] sm:$0xff]
    %v230 = vld [vmem:[%s0 + $0x18] sm:$0xff]
    %v231 = vld [vmem:[#allocation5] sm:$0xf]
    %v232 = vld [vmem:[#allocation5 + $0x4] sm:$0xf]
    %v233 = vld [vmem:[%s3] sm:$0xff]
    %v234 = vld [vmem:[%s3 + $0x8] sm:$0xff]
    %235 = vrot.lane.b32.xlu0 %v227, 17
    %v236 = vpop.permute.xlu0 %235
    %237 = vrot.lane.b32.xlu0 %v228, 17
    %v238 = vpop.permute.xlu0 %237
    %239 = vrot.lane.b32.xlu0 %v229, 17
    %v240 = vpop.permute.xlu0 %239
    %241 = vrot.lane.b32.xlu0 %v230, 17
    %v242 = vpop.permute.xlu0 %241
    %v243 = vlaneseq
    %v244 = vand.u32 %v243, 127
    %vm245 = vcmp.lt.s32.totalorder %v244, 17
    %v246 = vsel %vm245, %v240, %v242
    %v247 = vsel %vm245, %v238, %v240
    %v248 = vsel %vm245, %v236, %v238
    %v249 = vsel %vm245, %v242, %v236
    %s250 = scalar_lea.vmem [#allocation3], 64
    %v251 = vld [vmem:[%s250] ss:$8 sm:$0xf]
    %v253 = vperm.slane %v251, 0
    %v254 = vperm.slane %v251, 1
    %v255 = vperm.slane %v251, 2
    %v256 = vperm.slane %v251, 3
    %v261 = vmul.f32 %v249, %v253
    %v262 = vmul.f32 %v248, %v254
    %v263 = vmul.f32 %v247, %v255
    %v264 = vmul.f32 %v246, %v256
    %265 = vrot.lane.b32.xlu0 %v227, 16
    %v266 = vpop.permute.xlu0 %265
    %267 = vrot.lane.b32.xlu0 %v228, 16
    %v268 = vpop.permute.xlu0 %267
    %269 = vrot.lane.b32.xlu0 %v229, 16
    %v270 = vpop.permute.xlu0 %269
    %271 = vrot.lane.b32.xlu0 %v230, 16
    %v272 = vpop.permute.xlu0 %271
    %vm273 = vcmp.lt.s32.totalorder %v244, 16
    %v274 = vsel %vm273, %v270, %v272
    %v275 = vsel %vm273, %v268, %v270
    %v276 = vsel %vm273, %v266, %v268
    %v277 = vsel %vm273, %v272, %v266
    %s278 = scalar_lea.vmem [#allocation3], 65
    %v279 = vld [vmem:[%s278] ss:$8 sm:$0xf]
    %v281 = vperm.slane %v279, 0
    %v282 = vperm.slane %v279, 1
    %v283 = vperm.slane %v279, 2
    %v284 = vperm.slane %v279, 3
    %v289 = vmul.f32 %v277, %v281
    %v290 = vmul.f32 %v276, %v282
    %v291 = vmul.f32 %v275, %v283
    %v292 = vmul.f32 %v274, %v284
    %293 = vrot.lane.b32.xlu0 %v227, 15
    %v294 = vpop.permute.xlu0 %293
    %295 = vrot.lane.b32.xlu0 %v228, 15
    %v296 = vpop.permute.xlu0 %295
    %297 = vrot.lane.b32.xlu0 %v229, 15
    %v298 = vpop.permute.xlu0 %297
    %299 = vrot.lane.b32.xlu0 %v230, 15
    %v300 = vpop.permute.xlu0 %299
    %vm301 = vcmp.lt.s32.totalorder %v244, 15
    %v302 = vsel %vm301, %v298, %v300
    %v303 = vsel %vm301, %v296, %v298
    %v304 = vsel %vm301, %v294, %v296
    %v305 = vsel %vm301, %v300, %v294
    %s306 = scalar_lea.vmem [#allocation3], 66
    %v307 = vld [vmem:[%s306] ss:$8 sm:$0xf]
    %v309 = vperm.slane %v307, 0
    %v310 = vperm.slane %v307, 1
    %v311 = vperm.slane %v307, 2
    %v312 = vperm.slane %v307, 3
    %v317 = vmul.f32 %v305, %v309
    %v318 = vmul.f32 %v304, %v310
    %v319 = vmul.f32 %v303, %v311
    %v320 = vmul.f32 %v302, %v312
    %321 = vrot.lane.b32.xlu0 %v227, 1
    %v322 = vpop.permute.xlu0 %321
    %323 = vrot.lane.b32.xlu0 %v228, 1
    %v324 = vpop.permute.xlu0 %323
    %325 = vrot.lane.b32.xlu0 %v229, 1
    %v326 = vpop.permute.xlu0 %325
    %327 = vrot.lane.b32.xlu0 %v230, 1
    %v328 = vpop.permute.xlu0 %327
    %vm329 = vcmp.lt.s32.totalorder %v244, 1
    %v330 = vsel %vm329, %v326, %v328
    %v331 = vsel %vm329, %v324, %v326
    %v332 = vsel %vm329, %v322, %v324
    %v333 = vsel %vm329, %v328, %v322
    %s334 = scalar_lea.vmem [#allocation3], 71
    %v335 = vld [vmem:[%s334] ss:$8 sm:$0xf]
    %v337 = vperm.slane %v335, 0
    %v338 = vperm.slane %v335, 1
    %v339 = vperm.slane %v335, 2
    %v340 = vperm.slane %v335, 3
    %v345 = vmul.f32 %v333, %v337
    %v346 = vmul.f32 %v332, %v338
    %v347 = vmul.f32 %v331, %v339
    %v348 = vmul.f32 %v330, %v340
    %349 = vrot.lane.b32.xlu0 %v227, 127
    %v350 = vpop.permute.xlu0 %349
    %351 = vrot.lane.b32.xlu0 %v228, 127
    %v352 = vpop.permute.xlu0 %351
    %353 = vrot.lane.b32.xlu0 %v229, 127
    %v354 = vpop.permute.xlu0 %353
    %355 = vrot.lane.b32.xlu0 %v230, 127
    %v356 = vpop.permute.xlu0 %355
    %vm357 = vcmp.lt.s32.totalorder %v244, 127
    %v358 = vsel %vm357, %v354, %v356
    %v359 = vsel %vm357, %v352, %v354
    %v360 = vsel %vm357, %v350, %v352
    %v361 = vsel %vm357, %v356, %v350
    %s362 = scalar_lea.vmem [#allocation3], 97
    %v363 = vld [vmem:[%s362] ss:$8 sm:$0xf]
    %v365 = vperm.slane %v363, 0
    %v366 = vperm.slane %v363, 1
    %v367 = vperm.slane %v363, 2
    %v368 = vperm.slane %v363, 3
    %v373 = vmul.f32 %v360, %v365
    %v374 = vmul.f32 %v359, %v366
    %v375 = vmul.f32 %v358, %v367
    %v376 = vmul.f32 %v361, %v368
    %377 = vrot.lane.b32.xlu0 %v227, 113
    %v378 = vpop.permute.xlu0 %377
    %379 = vrot.lane.b32.xlu0 %v228, 113
    %v380 = vpop.permute.xlu0 %379
    %381 = vrot.lane.b32.xlu0 %v229, 113
    %v382 = vpop.permute.xlu0 %381
    %383 = vrot.lane.b32.xlu0 %v230, 113
    %v384 = vpop.permute.xlu0 %383
    %vm385 = vcmp.lt.s32.totalorder %v244, 113
    %v386 = vsel %vm385, %v382, %v384
    %v387 = vsel %vm385, %v380, %v382
    %v388 = vsel %vm385, %v378, %v380
    %v389 = vsel %vm385, %v384, %v378
    %s390 = scalar_lea.vmem [#allocation3], 102
    %v391 = vld [vmem:[%s390] ss:$8 sm:$0xf]
    %v393 = vperm.slane %v391, 0
    %v394 = vperm.slane %v391, 1
    %v395 = vperm.slane %v391, 2
    %v396 = vperm.slane %v391, 3
    %v401 = vmul.f32 %v388, %v393
    %v402 = vmul.f32 %v387, %v394
    %v403 = vmul.f32 %v386, %v395
    %v404 = vmul.f32 %v389, %v396
    %405 = vrot.lane.b32.xlu0 %v227, 112
    %v406 = vpop.permute.xlu0 %405
    %407 = vrot.lane.b32.xlu0 %v228, 112
    %v408 = vpop.permute.xlu0 %407
    %409 = vrot.lane.b32.xlu0 %v229, 112
    %v410 = vpop.permute.xlu0 %409
    %411 = vrot.lane.b32.xlu0 %v230, 112
    %v412 = vpop.permute.xlu0 %411
    %vm413 = vcmp.lt.s32.totalorder %v244, 112
    %v414 = vsel %vm413, %v410, %v412
    %v415 = vsel %vm413, %v408, %v410
    %v416 = vsel %vm413, %v406, %v408
    %v417 = vsel %vm413, %v412, %v406
    %s418 = scalar_lea.vmem [#allocation3], 103
    %v419 = vld [vmem:[%s418] ss:$8 sm:$0xf]
    %v421 = vperm.slane %v419, 0
    %v422 = vperm.slane %v419, 1
    %v423 = vperm.slane %v419, 2
    %v424 = vperm.slane %v419, 3
    %v429 = vmul.f32 %v416, %v421
    %v430 = vmul.f32 %v415, %v422
    %v431 = vmul.f32 %v414, %v423
    %v432 = vmul.f32 %v417, %v424
    %433 = vrot.lane.b32.xlu0 %v227, 111
    %v434 = vpop.permute.xlu0 %433
    %435 = vrot.lane.b32.xlu0 %v228, 111
    %v436 = vpop.permute.xlu0 %435
    %437 = vrot.lane.b32.xlu0 %v229, 111
    %v438 = vpop.permute.xlu0 %437
    %439 = vrot.lane.b32.xlu0 %v230, 111
    %v440 = vpop.permute.xlu0 %439
    %vm441 = vcmp.lt.s32.totalorder %v244, 111
    %v442 = vsel %vm441, %v438, %v440
    %v443 = vsel %vm441, %v436, %v438
    %v444 = vsel %vm441, %v434, %v436
    %v445 = vsel %vm441, %v440, %v434
    %s446 = scalar_lea.vmem [#allocation3], 128
    %v447 = vld [vmem:[%s446] ss:$8 sm:$0xf]
    %v449 = vperm.slane %v447, 0
    %v450 = vperm.slane %v447, 1
    %v451 = vperm.slane %v447, 2
    %v452 = vperm.slane %v447, 3
    %v457 = vmul.f32 %v444, %v449
    %v458 = vmul.f32 %v443, %v450
    %v459 = vmul.f32 %v442, %v451
    %v460 = vmul.f32 %v445, %v452
    %v461 = vpack.c.bf16 %v289, %v261
    %v462 = vpack.c.bf16 %v290, %v262
    %v463 = vpack.c.bf16 %v291, %v263
    %v464 = vpack.c.bf16 %v292, %v264
    %v465 = vpack.c.bf16 %v345, %v317
    %v466 = vpack.c.bf16 %v346, %v318
    %v467 = vpack.c.bf16 %v347, %v319
    %v468 = vpack.c.bf16 %v348, %v320
    %v469 = vpack.c.bf16 %v373, %v227
    %v470 = vpack.c.bf16 %v374, %v228
    %v471 = vpack.c.bf16 %v375, %v229
    %v472 = vpack.c.bf16 %v376, %v230
    %v473 = vpack.c.bf16 %v429, %v401
    %v474 = vpack.c.bf16 %v430, %v402
    %v475 = vpack.c.bf16 %v431, %v403
    %v476 = vpack.c.bf16 %v432, %v404
    %v477 = vpack.c.bf16 %v457, %v457
    %v478 = vpack.c.bf16 %v458, %v458
    %v479 = vpack.c.bf16 %v459, %v459
    %v480 = vpack.c.bf16 %v460, %v460
    %482 = vset.pattern.permute.xlu0 0
    %483 = vperm.xlu0 %482, %v233
    %v484 = vpop.permute.xlu0 %483
    %487 = vset.pattern.permute.xlu0 0
    %488 = vperm.xlu0 %487, %v234
    %v489 = vpop.permute.xlu0 %488
    %v493 = vunpack.c.l.b16 %v231
    %v494 = vunpack.c.l.b16 %v232
    %v495 = vpack.c.b16 %v494, %v493
    %vm496 = vcmask 588800
    %v498 = vsel %vm496, %v495, 0
    %vm500 = vcmask 1043456
    %v502 = vsel %vm500, %v477, 0
    %v505 = vsel %vm500, %v478, 0
    %v508 = vsel %vm500, %v479, 0
    %v511 = vsel %vm500, %v480, 0
    %513 = vmatpush.bf16.msra.mxu0 0
    %514 = vmatpush.bf16.msra.mxu0 0
    %515 = vmatpush.bf16.msra.mxu0 0
    %516 = vmatpush.bf16.msra.mxu0 %v502
    %517 = vmatpush.bf16.msra.mxu0 %v473
    %518 = vmatpush.bf16.msra.mxu0 %v469
    %519 = vmatpush.bf16.msra.mxu0 %v465
    %520 = vmatpush.bf16.msra.mxu0 %v461
    %521 = vmatmul.bf16.gmra.mxu0 %v498
    %v522 = vpop.f32.mrf.mxu0
    %v523 = vadd.f32 %v484, %v522
    %v524 = vpop.f32.mrf.mxu0
    %v525 = vadd.f32 %v489, %v524
    %526 = vdwg.mxu0
    %527 = vmatpush.bf16.msra.mxu0 0
    %528 = vmatpush.bf16.msra.mxu0 0
    %529 = vmatpush.bf16.msra.mxu0 0
    %530 = vmatpush.bf16.msra.mxu0 %v505
    %531 = vmatpush.bf16.msra.mxu0 %v474
    %532 = vmatpush.bf16.msra.mxu0 %v470
    %533 = vmatpush.bf16.msra.mxu0 %v466
    %534 = vmatpush.bf16.msra.mxu0 %v462
    %535 = vmatmul.bf16.gmra.mxu0 %v498
    %v536 = vpop.f32.mrf.mxu0
    %v537 = vadd.f32 %v484, %v536
    %v538 = vpop.f32.mrf.mxu0
    %v539 = vadd.f32 %v489, %v538
    %540 = vdwg.mxu0
    %541 = vmatpush.bf16.msra.mxu0 0
    %542 = vmatpush.bf16.msra.mxu0 0
    %543 = vmatpush.bf16.msra.mxu0 0
    %544 = vmatpush.bf16.msra.mxu0 %v508
    %545 = vmatpush.bf16.msra.mxu0 %v475
    %546 = vmatpush.bf16.msra.mxu0 %v471
    %547 = vmatpush.bf16.msra.mxu0 %v467
    %548 = vmatpush.bf16.msra.mxu0 %v463
    %549 = vmatmul.bf16.gmra.mxu0 %v498
    %v550 = vpop.f32.mrf.mxu0
    %v551 = vadd.f32 %v484, %v550
    %v552 = vpop.f32.mrf.mxu0
    %v553 = vadd.f32 %v489, %v552
    %554 = vdwg.mxu0
    %555 = vmatpush.bf16.msra.mxu0 0
    %556 = vmatpush.bf16.msra.mxu0 0
    %557 = vmatpush.bf16.msra.mxu0 0
    %558 = vmatpush.bf16.msra.mxu0 %v511
    %559 = vmatpush.bf16.msra.mxu0 %v476
    %560 = vmatpush.bf16.msra.mxu0 %v472
    %561 = vmatpush.bf16.msra.mxu0 %v468
    %562 = vmatpush.bf16.msra.mxu0 %v464
    %563 = vmatmul.bf16.gmra.mxu0 %v498
    %v564 = vpop.f32.mrf.mxu0
    %v565 = vadd.f32 %v484, %v564
    %v566 = vpop.f32.mrf.mxu0
    %v567 = vadd.f32 %v489, %v566
    %568 = vdwg.mxu0
    %v569 = vld [vmem:[#allocation7] sm:$0x3]
    %v570 = vld [vmem:[%s5] sm:$0x3]
    %572 = vset.pattern.permute.xlu0 0
    %573 = vperm.xlu0 %572, %v570
    %v574 = vpop.permute.xlu0 %573
    %vm576 = vcmask 130048
    %v578 = vsel %vm576, %v569, 0
    %580 = vmatpush.msra.mxu0 0.0
    %581 = vmatpush.msra.mxu0 0.0
    %582 = vmatpush.msra.mxu0 0.0
    %583 = vmatpush.msra.mxu0 0.0
    %584 = vmatpush.msra.mxu0 0.0
    %585 = vmatpush.msra.mxu0 0.0
    %586 = vmatpush.msra.mxu0 0.0
    %587 = vmatpush.msra.mxu0 0.0
    %588 = vmatpush.msra.mxu0 0.0
    %589 = vmatpush.msra.mxu0 0.0
    %590 = vmatpush.msra.mxu0 0.0
    %591 = vmatpush.msra.mxu0 0.0
    %592 = vmatpush.msra.mxu0 0.0
    %593 = vmatpush.msra.mxu0 0.0
    %594 = vmatpush.msra.mxu0 %v525
    %595 = vmatpush.msra.mxu0 %v523
    %596 = vmatmul.f32.gmra.mxu0 %v578
    %v597 = vpop.f32.mrf.mxu0
    %v598 = vadd.f32 %v574, %v597
    %599 = vdwg.mxu0
    %600 = vmatpush.msra.mxu0 0.0
    %601 = vmatpush.msra.mxu0 0.0
    %602 = vmatpush.msra.mxu0 0.0
    %603 = vmatpush.msra.mxu0 0.0
    %604 = vmatpush.msra.mxu0 0.0
    %605 = vmatpush.msra.mxu0 0.0
    %606 = vmatpush.msra.mxu0 0.0
    %607 = vmatpush.msra.mxu0 0.0
    %608 = vmatpush.msra.mxu0 0.0
    %609 = vmatpush.msra.mxu0 0.0
    %610 = vmatpush.msra.mxu0 0.0
    %611 = vmatpush.msra.mxu0 0.0
    %612 = vmatpush.msra.mxu0 0.0
    %613 = vmatpush.msra.mxu0 0.0
    %614 = vmatpush.msra.mxu0 %v539
    %615 = vmatpush.msra.mxu0 %v537
    %616 = vmatmul.f32.gmra.mxu0 %v578
    %v617 = vpop.f32.mrf.mxu0
    %v618 = vadd.f32 %v574, %v617
    %619 = vdwg.mxu0
    %620 = vmatpush.msra.mxu0 0.0
    %621 = vmatpush.msra.mxu0 0.0
    %622 = vmatpush.msra.mxu0 0.0
    %623 = vmatpush.msra.mxu0 0.0
    %624 = vmatpush.msra.mxu0 0.0
    %625 = vmatpush.msra.mxu0 0.0
    %626 = vmatpush.msra.mxu0 0.0
    %627 = vmatpush.msra.mxu0 0.0
    %628 = vmatpush.msra.mxu0 0.0
    %629 = vmatpush.msra.mxu0 0.0
    %630 = vmatpush.msra.mxu0 0.0
    %631 = vmatpush.msra.mxu0 0.0
    %632 = vmatpush.msra.mxu0 0.0
    %633 = vmatpush.msra.mxu0 0.0
    %634 = vmatpush.msra.mxu0 %v553
    %635 = vmatpush.msra.mxu0 %v551
    %636 = vmatmul.f32.gmra.mxu0 %v578
    %v637 = vpop.f32.mrf.mxu0
    %v638 = vadd.f32 %v574, %v637
    %639 = vdwg.mxu0
    %640 = vmatpush.msra.mxu0 0.0
    %641 = vmatpush.msra.mxu0 0.0
    %642 = vmatpush.msra.mxu0 0.0
    %643 = vmatpush.msra.mxu0 0.0
    %644 = vmatpush.msra.mxu0 0.0
    %645 = vmatpush.msra.mxu0 0.0
    %646 = vmatpush.msra.mxu0 0.0
    %647 = vmatpush.msra.mxu0 0.0
    %648 = vmatpush.msra.mxu0 0.0
    %649 = vmatpush.msra.mxu0 0.0
    %650 = vmatpush.msra.mxu0 0.0
    %651 = vmatpush.msra.mxu0 0.0
    %652 = vmatpush.msra.mxu0 0.0
    %653 = vmatpush.msra.mxu0 0.0
    %654 = vmatpush.msra.mxu0 %v567
    %655 = vmatpush.msra.mxu0 %v565
    %656 = vmatmul.f32.gmra.mxu0 %v578
    %v657 = vpop.f32.mrf.mxu0
    %v658 = vadd.f32 %v574, %v657
    %659 = vdwg.mxu0
    %v660 = vxor.u32 %v598, 2147483648
    %v661 = vxor.u32 %v618, 2147483648
    %v662 = vxor.u32 %v638, 2147483648
    %v663 = vxor.u32 %v658, 2147483648
    %v664 = vmul.f32 %v660, 1.442695
    %v665 = vpow.pop %v664
    %v666 = vmul.f32 %v661, 1.442695
    %v667 = vpow.pop %v666
    %v668 = vmul.f32 %v662, 1.442695
    %v669 = vpow.pop %v668
    %v670 = vmul.f32 %v663, 1.442695
    %v671 = vpow.pop %v670
    %v672 = vadd.f32 %v665, 1.0
    %v673 = vadd.f32 %v667, 1.0
    %v674 = vadd.f32 %v669, 1.0
    %v675 = vadd.f32 %v671, 1.0
    %v676 = vrcp.pop %v672
    %v677 = vmul.f32 %v672, %v676
    %v678 = vsub.f32 1.0, %v677
    %v679 = vmul.f32 %v676, %v678
    %v680 = vadd.f32 %v676, %v679
    %vm681 = vweird.f32 %v672
    %vm682 = vweird.f32 %v676
    %vm683 = vmor %vm681, %vm682
    %v684 = vsel %vm683, %v676, %v680
    %v685 = vand.u32 2147483647, %v672
    %vm686 = vcmp.eq.f32.partialorder %v685, 8.507059e+37
    %v687 = vand.u32 %v672, 2147483648
    %v688 = vor.u32 1.1754944e-38, %v687
    %v689 = vsel %vm686, %v688, %v684
    %v690 = vmul.f32 1.0, %v689
    %v691 = vrcp.pop %v673
    %v692 = vmul.f32 %v673, %v691
    %v693 = vsub.f32 1.0, %v692
    %v694 = vmul.f32 %v691, %v693
    %v695 = vadd.f32 %v691, %v694
    %vm696 = vweird.f32 %v673
    %vm697 = vweird.f32 %v691
    %vm698 = vmor %vm696, %vm697
    %v699 = vsel %vm698, %v691, %v695
    %v700 = vand.u32 2147483647, %v673
    %vm701 = vcmp.eq.f32.partialorder %v700, 8.507059e+37
    %v702 = vand.u32 %v673, 2147483648
    %v703 = vor.u32 1.1754944e-38, %v702
    %v704 = vsel %vm701, %v703, %v699
    %v705 = vmul.f32 1.0, %v704
    %v706 = vrcp.pop %v674
    %v707 = vmul.f32 %v674, %v706
    %v708 = vsub.f32 1.0, %v707
    %v709 = vmul.f32 %v706, %v708
    %v710 = vadd.f32 %v706, %v709
    %vm711 = vweird.f32 %v674
    %vm712 = vweird.f32 %v706
    %vm713 = vmor %vm711, %vm712
    %v714 = vsel %vm713, %v706, %v710
    %v715 = vand.u32 2147483647, %v674
    %vm716 = vcmp.eq.f32.partialorder %v715, 8.507059e+37
    %v717 = vand.u32 %v674, 2147483648
    %v718 = vor.u32 1.1754944e-38, %v717
    %v719 = vsel %vm716, %v718, %v714
    %v720 = vmul.f32 1.0, %v719
    %v721 = vrcp.pop %v675
    %v722 = vmul.f32 %v675, %v721
    %v723 = vsub.f32 1.0, %v722
    %v724 = vmul.f32 %v721, %v723
    %v725 = vadd.f32 %v721, %v724
    %vm726 = vweird.f32 %v675
    %vm727 = vweird.f32 %v721
    %vm728 = vmor %vm726, %vm727
    %v729 = vsel %vm728, %v721, %v725
    %v730 = vand.u32 2147483647, %v675
    %vm731 = vcmp.eq.f32.partialorder %v730, 8.507059e+37
    %v732 = vand.u32 %v675, 2147483648
    %v733 = vor.u32 1.1754944e-38, %v732
    %v734 = vsel %vm731, %v733, %v729
    %v735 = vmul.f32 1.0, %v734
    %v740 = vrot.slane %v690, 1
    %v741 = vrot.slane %v705, 1
    %v742 = vrot.slane %v720, 1
    %v743 = vrot.slane %v735, 1
    %v748 = vmul.f32 %v690, %v740
    %v749 = vmul.f32 %v705, %v741
    %v750 = vmul.f32 %v720, %v742
    %v751 = vmul.f32 %v735, %v743
    %v752 = vadd.f32 %v523, %v525
    %v753 = vrot.slane %v752, 4
    %v754 = vadd.f32 %v752, %v753
    %v755 = vrot.slane %v754, 2
    %v756 = vadd.f32 %v754, %v755
    %v757 = vrot.slane %v756, 1
    %v758 = vadd.f32 %v756, %v757
    %v759 = vadd.f32 %v537, %v539
    %v760 = vrot.slane %v759, 4
    %v761 = vadd.f32 %v759, %v760
    %v762 = vrot.slane %v761, 2
    %v763 = vadd.f32 %v761, %v762
    %v764 = vrot.slane %v763, 1
    %v765 = vadd.f32 %v763, %v764
    %v766 = vadd.f32 %v551, %v553
    %v767 = vrot.slane %v766, 4
    %v768 = vadd.f32 %v766, %v767
    %v769 = vrot.slane %v768, 2
    %v770 = vadd.f32 %v768, %v769
    %v771 = vrot.slane %v770, 1
    %v772 = vadd.f32 %v770, %v771
    %v773 = vadd.f32 %v565, %v567
    %v774 = vrot.slane %v773, 4
    %v775 = vadd.f32 %v773, %v774
    %v776 = vrot.slane %v775, 2
    %v777 = vadd.f32 %v775, %v776
    %v778 = vrot.slane %v777, 1
    %v779 = vadd.f32 %v777, %v778
    %v780 = vrcp.pop 16.0
    %v781 = vmul.f32 16.0, %v780
    %v782 = vsub.f32 1.0, %v781
    %v783 = vmul.f32 %v780, %v782
    %v784 = vadd.f32 %v780, %v783
    %vm785 = vweird.f32 %v780
    %v786 = vsel %vm785, %v780, %v784
    %v787 = vmul.f32 %v758, %v786
    %v788 = vmul.f32 %v765, %v786
    %v789 = vmul.f32 %v772, %v786
    %v790 = vmul.f32 %v779, %v786
    %v791 = vmax.f32 %v523, %v525
    %v792 = vrot.slane %v791, 4
    %v793 = vmax.f32 %v791, %v792
    %v794 = vrot.slane %v793, 2
    %v795 = vmax.f32 %v793, %v794
    %v796 = vrot.slane %v795, 1
    %v797 = vmax.f32 %v795, %v796
    %v798 = vmax.f32 %v537, %v539
    %v799 = vrot.slane %v798, 4
    %v800 = vmax.f32 %v798, %v799
    %v801 = vrot.slane %v800, 2
    %v802 = vmax.f32 %v800, %v801
    %v803 = vrot.slane %v802, 1
    %v804 = vmax.f32 %v802, %v803
    %v805 = vmax.f32 %v551, %v553
    %v806 = vrot.slane %v805, 4
    %v807 = vmax.f32 %v805, %v806
    %v808 = vrot.slane %v807, 2
    %v809 = vmax.f32 %v807, %v808
    %v810 = vrot.slane %v809, 1
    %v811 = vmax.f32 %v809, %v810
    %v812 = vmax.f32 %v565, %v567
    %v813 = vrot.slane %v812, 4
    %v814 = vmax.f32 %v812, %v813
    %v815 = vrot.slane %v814, 2
    %v816 = vmax.f32 %v814, %v815
    %v817 = vrot.slane %v816, 1
    %v818 = vmax.f32 %v816, %v817
    %v819 = vld [vmem:[#allocation10] sm:$0x3]
    %820 = vrot.lane.b32.xlu0 %v787, 51
    %v821 = vpop.permute.xlu0 %820
    %822 = vrot.lane.b32.xlu0 %v788, 51
    %v823 = vpop.permute.xlu0 %822
    %824 = vrot.lane.b32.xlu0 %v789, 51
    %v825 = vpop.permute.xlu0 %824
    %826 = vrot.lane.b32.xlu0 %v790, 51
    %v827 = vpop.permute.xlu0 %826
    %vm828 = vcmp.lt.s32.totalorder %v244, 51
    %v829 = vsel %vm828, %v825, %v827
    %v830 = vsel %vm828, %v823, %v825
    %v831 = vsel %vm828, %v821, %v823
    %v832 = vsel %vm828, %v827, %v821
    %v833 = vld [vmem:[#allocation3] ss:$8 sm:$0xf]
    %v835 = vperm.slane %v833, 0
    %v836 = vperm.slane %v833, 1
    %v837 = vperm.slane %v833, 2
    %v838 = vperm.slane %v833, 3
    %v843 = vmul.f32 %v832, %v835
    %v844 = vmul.f32 %v831, %v836
    %v845 = vmul.f32 %v830, %v837
    %v846 = vmul.f32 %v829, %v838
    %848 = vset.pattern.permute.xlu0 0
    %849 = vperm.xlu0 %848, %v819
    %v850 = vpop.permute.xlu0 %849
    %v852 = vmul.f32 %v843, %v850
    %v853 = vmul.f32 %v844, %v850
    %v854 = vmul.f32 %v845, %v850
    %v855 = vmul.f32 %v846, %v850
    %856 = vrot.lane.b32.xlu0 %v797, 51
    %v857 = vpop.permute.xlu0 %856
    %858 = vrot.lane.b32.xlu0 %v804, 51
    %v859 = vpop.permute.xlu0 %858
    %860 = vrot.lane.b32.xlu0 %v811, 51
    %v861 = vpop.permute.xlu0 %860
    %862 = vrot.lane.b32.xlu0 %v818, 51
    %v863 = vpop.permute.xlu0 %862
    %v864 = vsel %vm828, %v861, %v863
    %v865 = vsel %vm828, %v859, %v861
    %v866 = vsel %vm828, %v857, %v859
    %v867 = vsel %vm828, %v863, %v857
    %v868 = vmul.f32 %v867, %v835
    %v869 = vmul.f32 %v866, %v836
    %v870 = vmul.f32 %v865, %v837
    %v871 = vmul.f32 %v864, %v838
    %v872 = vrot.slane %v850, 1
    %v874 = vmul.f32 %v868, %v872
    %v875 = vmul.f32 %v869, %v872
    %v876 = vmul.f32 %v870, %v872
    %v877 = vmul.f32 %v871, %v872
    %v878 = vadd.f32 %v852, %v874
    %v879 = vadd.f32 %v853, %v875
    %v880 = vadd.f32 %v854, %v876
    %v881 = vadd.f32 %v855, %v877
    %882 = vrot.lane.b32.xlu0 %v787, 50
    %v883 = vpop.permute.xlu0 %882
    %884 = vrot.lane.b32.xlu0 %v788, 50
    %v885 = vpop.permute.xlu0 %884
    %886 = vrot.lane.b32.xlu0 %v789, 50
    %v887 = vpop.permute.xlu0 %886
    %888 = vrot.lane.b32.xlu0 %v790, 50
    %v889 = vpop.permute.xlu0 %888
    %vm890 = vcmp.lt.s32.totalorder %v244, 50
    %v891 = vsel %vm890, %v887, %v889
    %v892 = vsel %vm890, %v885, %v887
    %v893 = vsel %vm890, %v883, %v885
    %v894 = vsel %vm890, %v889, %v883
    %s895 = scalar_lea.vmem [#allocation3], 1
    %v896 = vld [vmem:[%s895] ss:$8 sm:$0xf]
    %v898 = vperm.slane %v896, 0
    %v899 = vperm.slane %v896, 1
    %v900 = vperm.slane %v896, 2
    %v901 = vperm.slane %v896, 3
    %v906 = vmul.f32 %v894, %v898
    %v907 = vmul.f32 %v893, %v899
    %v908 = vmul.f32 %v892, %v900
    %v909 = vmul.f32 %v891, %v901
    %910 = vset.pattern.permute.xlu0 1
    %911 = vperm.xlu0 %910, %v819
    %v912 = vpop.permute.xlu0 %911
    %v914 = vmul.f32 %v906, %v912
    %v915 = vmul.f32 %v907, %v912
    %v916 = vmul.f32 %v908, %v912
    %v917 = vmul.f32 %v909, %v912
    %918 = vrot.lane.b32.xlu0 %v797, 50
    %v919 = vpop.permute.xlu0 %918
    %920 = vrot.lane.b32.xlu0 %v804, 50
    %v921 = vpop.permute.xlu0 %920
    %922 = vrot.lane.b32.xlu0 %v811, 50
    %v923 = vpop.permute.xlu0 %922
    %924 = vrot.lane.b32.xlu0 %v818, 50
    %v925 = vpop.permute.xlu0 %924
    %v926 = vsel %vm890, %v923, %v925
    %v927 = vsel %vm890, %v921, %v923
    %v928 = vsel %vm890, %v919, %v921
    %v929 = vsel %vm890, %v925, %v919
    %v930 = vmul.f32 %v929, %v898
    %v931 = vmul.f32 %v928, %v899
    %v932 = vmul.f32 %v927, %v900
    %v933 = vmul.f32 %v926, %v901
    %v934 = vrot.slane %v912, 1
    %v936 = vmul.f32 %v930, %v934
    %v937 = vmul.f32 %v931, %v934
    %v938 = vmul.f32 %v932, %v934
    %v939 = vmul.f32 %v933, %v934
    %v940 = vadd.f32 %v914, %v936
    %v941 = vadd.f32 %v915, %v937
    %v942 = vadd.f32 %v916, %v938
    %v943 = vadd.f32 %v917, %v939
    %v944 = vadd.f32 %v878, %v940
    %v945 = vadd.f32 %v879, %v941
    %v946 = vadd.f32 %v880, %v942
    %v947 = vadd.f32 %v881, %v943
    %948 = vrot.lane.b32.xlu0 %v787, 49
    %v949 = vpop.permute.xlu0 %948
    %950 = vrot.lane.b32.xlu0 %v788, 49
    %v951 = vpop.permute.xlu0 %950
    %952 = vrot.lane.b32.xlu0 %v789, 49
    %v953 = vpop.permute.xlu0 %952
    %954 = vrot.lane.b32.xlu0 %v790, 49
    %v955 = vpop.permute.xlu0 %954
    %vm956 = vcmp.lt.s32.totalorder %v244, 49
    %v957 = vsel %vm956, %v953, %v955
    %v958 = vsel %vm956, %v951, %v953
    %v959 = vsel %vm956, %v949, %v951
    %v960 = vsel %vm956, %v955, %v949
    %s961 = scalar_lea.vmem [#allocation3], 2
    %v962 = vld [vmem:[%s961] ss:$8 sm:$0xf]
    %v964 = vperm.slane %v962, 0
    %v965 = vperm.slane %v962, 1
    %v966 = vperm.slane %v962, 2
    %v967 = vperm.slane %v962, 3
    %v972 = vmul.f32 %v960, %v964
    %v973 = vmul.f32 %v959, %v965
    %v974 = vmul.f32 %v958, %v966
    %v975 = vmul.f32 %v957, %v967
    %976 = vset.pattern.permute.xlu0 2
    %977 = vperm.xlu0 %976, %v819
    %v978 = vpop.permute.xlu0 %977
    %v980 = vmul.f32 %v972, %v978
    %v981 = vmul.f32 %v973, %v978
    %v982 = vmul.f32 %v974, %v978
    %v983 = vmul.f32 %v975, %v978
    %984 = vrot.lane.b32.xlu0 %v797, 49
    %v985 = vpop.permute.xlu0 %984
    %986 = vrot.lane.b32.xlu0 %v804, 49
    %v987 = vpop.permute.xlu0 %986
    %988 = vrot.lane.b32.xlu0 %v811, 49
    %v989 = vpop.permute.xlu0 %988
    %990 = vrot.lane.b32.xlu0 %v818, 49
    %v991 = vpop.permute.xlu0 %990
    %v992 = vsel %vm956, %v989, %v991
    %v993 = vsel %vm956, %v987, %v989
    %v994 = vsel %vm956, %v985, %v987
    %v995 = vsel %vm956, %v991, %v985
    %v996 = vmul.f32 %v995, %v964
    %v997 = vmul.f32 %v994, %v965
    %v998 = vmul.f32 %v993, %v966
    %v999 = vmul.f32 %v992, %v967
    %v1000 = vrot.slane %v978, 1
    %v1002 = vmul.f32 %v996, %v1000
    %v1003 = vmul.f32 %v997, %v1000
    %v1004 = vmul.f32 %v998, %v1000
    %v1005 = vmul.f32 %v999, %v1000
    %v1006 = vadd.f32 %v980, %v1002
    %v1007 = vadd.f32 %v981, %v1003
    %v1008 = vadd.f32 %v982, %v1004
    %v1009 = vadd.f32 %v983, %v1005
    %v1010 = vadd.f32 %v944, %v1006
    %v1011 = vadd.f32 %v945, %v1007
    %v1012 = vadd.f32 %v946, %v1008
    %v1013 = vadd.f32 %v947, %v1009
    %1014 = vrot.lane.b32.xlu0 %v787, 48
    %v1015 = vpop.permute.xlu0 %1014
    %1016 = vrot.lane.b32.xlu0 %v788, 48
    %v1017 = vpop.permute.xlu0 %1016
    %1018 = vrot.lane.b32.xlu0 %v789, 48
    %v1019 = vpop.permute.xlu0 %1018
    %1020 = vrot.lane.b32.xlu0 %v790, 48
    %v1021 = vpop.permute.xlu0 %1020
    %vm1022 = vcmp.lt.s32.totalorder %v244, 48
    %v1023 = vsel %vm1022, %v1019, %v1021
    %v1024 = vsel %vm1022, %v1017, %v1019
    %v1025 = vsel %vm1022, %v1015, %v1017
    %v1026 = vsel %vm1022, %v1021, %v1015
    %s1027 = scalar_lea.vmem [#allocation3], 3
    %v1028 = vld [vmem:[%s1027] ss:$8 sm:$0xf]
    %v1030 = vperm.slane %v1028, 0
    %v1031 = vperm.slane %v1028, 1
    %v1032 = vperm.slane %v1028, 2
    %v1033 = vperm.slane %v1028, 3
    %v1038 = vmul.f32 %v1026, %v1030
    %v1039 = vmul.f32 %v1025, %v1031
    %v1040 = vmul.f32 %v1024, %v1032
    %v1041 = vmul.f32 %v1023, %v1033
    %1042 = vset.pattern.permute.xlu0 3
    %1043 = vperm.xlu0 %1042, %v819
    %v1044 = vpop.permute.xlu0 %1043
    %v1046 = vmul.f32 %v1038, %v1044
    %v1047 = vmul.f32 %v1039, %v1044
    %v1048 = vmul.f32 %v1040, %v1044
    %v1049 = vmul.f32 %v1041, %v1044
    %1050 = vrot.lane.b32.xlu0 %v797, 48
    %v1051 = vpop.permute.xlu0 %1050
    %1052 = vrot.lane.b32.xlu0 %v804, 48
    %v1053 = vpop.permute.xlu0 %1052
    %1054 = vrot.lane.b32.xlu0 %v811, 48
    %v1055 = vpop.permute.xlu0 %1054
    %1056 = vrot.lane.b32.xlu0 %v818, 48
    %v1057 = vpop.permute.xlu0 %1056
    %v1058 = vsel %vm1022, %v1055, %v1057
    %v1059 = vsel %vm1022, %v1053, %v1055
    %v1060 = vsel %vm1022, %v1051, %v1053
    %v1061 = vsel %vm1022, %v1057, %v1051
    %v1062 = vmul.f32 %v1061, %v1030
    %v1063 = vmul.f32 %v1060, %v1031
    %v1064 = vmul.f32 %v1059, %v1032
    %v1065 = vmul.f32 %v1058, %v1033
    %v1066 = vrot.slane %v1044, 1
    %v1068 = vmul.f32 %v1062, %v1066
    %v1069 = vmul.f32 %v1063, %v1066
    %v1070 = vmul.f32 %v1064, %v1066
    %v1071 = vmul.f32 %v1065, %v1066
    %v1072 = vadd.f32 %v1046, %v1068
    %v1073 = vadd.f32 %v1047, %v1069
    %v1074 = vadd.f32 %v1048, %v1070
    %v1075 = vadd.f32 %v1049, %v1071
    %v1076 = vadd.f32 %v1010, %v1072
    %v1077 = vadd.f32 %v1011, %v1073
    %v1078 = vadd.f32 %v1012, %v1074
    %v1079 = vadd.f32 %v1013, %v1075
    %1080 = vrot.lane.b32.xlu0 %v787, 47
    %v1081 = vpop.permute.xlu0 %1080
    %1082 = vrot.lane.b32.xlu0 %v788, 47
    %v1083 = vpop.permute.xlu0 %1082
    %1084 = vrot.lane.b32.xlu0 %v789, 47
    %v1085 = vpop.permute.xlu0 %1084
    %1086 = vrot.lane.b32.xlu0 %v790, 47
    %v1087 = vpop.permute.xlu0 %1086
    %vm1088 = vcmp.lt.s32.totalorder %v244, 47
    %v1089 = vsel %vm1088, %v1085, %v1087
    %v1090 = vsel %vm1088, %v1083, %v1085
    %v1091 = vsel %vm1088, %v1081, %v1083
    %v1092 = vsel %vm1088, %v1087, %v1081
    %s1093 = scalar_lea.vmem [#allocation3], 4
    %v1094 = vld [vmem:[%s1093] ss:$8 sm:$0xf]
    %v1096 = vperm.slane %v1094, 0
    %v1097 = vperm.slane %v1094, 1
    %v1098 = vperm.slane %v1094, 2
    %v1099 = vperm.slane %v1094, 3
    %v1104 = vmul.f32 %v1092, %v1096
    %v1105 = vmul.f32 %v1091, %v1097
    %v1106 = vmul.f32 %v1090, %v1098
    %v1107 = vmul.f32 %v1089, %v1099
    %1108 = vset.pattern.permute.xlu0 4
    %1109 = vperm.xlu0 %1108, %v819
    %v1110 = vpop.permute.xlu0 %1109
    %v1112 = vmul.f32 %v1104, %v1110
    %v1113 = vmul.f32 %v1105, %v1110
    %v1114 = vmul.f32 %v1106, %v1110
    %v1115 = vmul.f32 %v1107, %v1110
    %1116 = vrot.lane.b32.xlu0 %v797, 47
    %v1117 = vpop.permute.xlu0 %1116
    %1118 = vrot.lane.b32.xlu0 %v804, 47
    %v1119 = vpop.permute.xlu0 %1118
    %1120 = vrot.lane.b32.xlu0 %v811, 47
    %v1121 = vpop.permute.xlu0 %1120
    %1122 = vrot.lane.b32.xlu0 %v818, 47
    %v1123 = vpop.permute.xlu0 %1122
    %v1124 = vsel %vm1088, %v1121, %v1123
    %v1125 = vsel %vm1088, %v1119, %v1121
    %v1126 = vsel %vm1088, %v1117, %v1119
    %v1127 = vsel %vm1088, %v1123, %v1117
    %v1128 = vmul.f32 %v1127, %v1096
    %v1129 = vmul.f32 %v1126, %v1097
    %v1130 = vmul.f32 %v1125, %v1098
    %v1131 = vmul.f32 %v1124, %v1099
    %v1132 = vrot.slane %v1110, 1
    %v1134 = vmul.f32 %v1128, %v1132
    %v1135 = vmul.f32 %v1129, %v1132
    %v1136 = vmul.f32 %v1130, %v1132
    %v1137 = vmul.f32 %v1131, %v1132
    %v1138 = vadd.f32 %v1112, %v1134
    %v1139 = vadd.f32 %v1113, %v1135
    %v1140 = vadd.f32 %v1114, %v1136
    %v1141 = vadd.f32 %v1115, %v1137
    %v1142 = vadd.f32 %v1076, %v1138
    %v1143 = vadd.f32 %v1077, %v1139
    %v1144 = vadd.f32 %v1078, %v1140
    %v1145 = vadd.f32 %v1079, %v1141
    %1146 = vrot.lane.b32.xlu0 %v787, 46
    %v1147 = vpop.permute.xlu0 %1146
    %1148 = vrot.lane.b32.xlu0 %v788, 46
    %v1149 = vpop.permute.xlu0 %1148
    %1150 = vrot.lane.b32.xlu0 %v789, 46
    %v1151 = vpop.permute.xlu0 %1150
    %1152 = vrot.lane.b32.xlu0 %v790, 46
    %v1153 = vpop.permute.xlu0 %1152
    %vm1154 = vcmp.lt.s32.totalorder %v244, 46
    %v1155 = vsel %vm1154, %v1151, %v1153
    %v1156 = vsel %vm1154, %v1149, %v1151
    %v1157 = vsel %vm1154, %v1147, %v1149
    %v1158 = vsel %vm1154, %v1153, %v1147
    %s1159 = scalar_lea.vmem [#allocation3], 5
    %v1160 = vld [vmem:[%s1159] ss:$8 sm:$0xf]
    %v1162 = vperm.slane %v1160, 0
    %v1163 = vperm.slane %v1160, 1
    %v1164 = vperm.slane %v1160, 2
    %v1165 = vperm.slane %v1160, 3
    %v1170 = vmul.f32 %v1158, %v1162
    %v1171 = vmul.f32 %v1157, %v1163
    %v1172 = vmul.f32 %v1156, %v1164
    %v1173 = vmul.f32 %v1155, %v1165
    %1174 = vset.pattern.permute.xlu0 5
    %1175 = vperm.xlu0 %1174, %v819
    %v1176 = vpop.permute.xlu0 %1175
    %v1178 = vmul.f32 %v1170, %v1176
    %v1179 = vmul.f32 %v1171, %v1176
    %v1180 = vmul.f32 %v1172, %v1176
    %v1181 = vmul.f32 %v1173, %v1176
    %1182 = vrot.lane.b32.xlu0 %v797, 46
    %v1183 = vpop.permute.xlu0 %1182
    %1184 = vrot.lane.b32.xlu0 %v804, 46
    %v1185 = vpop.permute.xlu0 %1184
    %1186 = vrot.lane.b32.xlu0 %v811, 46
    %v1187 = vpop.permute.xlu0 %1186
    %1188 = vrot.lane.b32.xlu0 %v818, 46
    %v1189 = vpop.permute.xlu0 %1188
    %v1190 = vsel %vm1154, %v1187, %v1189
    %v1191 = vsel %vm1154, %v1185, %v1187
    %v1192 = vsel %vm1154, %v1183, %v1185
    %v1193 = vsel %vm1154, %v1189, %v1183
    %v1194 = vmul.f32 %v1193, %v1162
    %v1195 = vmul.f32 %v1192, %v1163
    %v1196 = vmul.f32 %v1191, %v1164
    %v1197 = vmul.f32 %v1190, %v1165
    %v1198 = vrot.slane %v1176, 1
    %v1200 = vmul.f32 %v1194, %v1198
    %v1201 = vmul.f32 %v1195, %v1198
    %v1202 = vmul.f32 %v1196, %v1198
    %v1203 = vmul.f32 %v1197, %v1198
    %v1204 = vadd.f32 %v1178, %v1200
    %v1205 = vadd.f32 %v1179, %v1201
    %v1206 = vadd.f32 %v1180, %v1202
    %v1207 = vadd.f32 %v1181, %v1203
    %v1208 = vadd.f32 %v1142, %v1204
    %v1209 = vadd.f32 %v1143, %v1205
    %v1210 = vadd.f32 %v1144, %v1206
    %v1211 = vadd.f32 %v1145, %v1207
    %1212 = vrot.lane.b32.xlu0 %v787, 45
    %v1213 = vpop.permute.xlu0 %1212
    %1214 = vrot.lane.b32.xlu0 %v788, 45
    %v1215 = vpop.permute.xlu0 %1214
    %1216 = vrot.lane.b32.xlu0 %v789, 45
    %v1217 = vpop.permute.xlu0 %1216
    %1218 = vrot.lane.b32.xlu0 %v790, 45
    %v1219 = vpop.permute.xlu0 %1218
    %vm1220 = vcmp.lt.s32.totalorder %v244, 45
    %v1221 = vsel %vm1220, %v1217, %v1219
    %v1222 = vsel %vm1220, %v1215, %v1217
    %v1223 = vsel %vm1220, %v1213, %v1215
    %v1224 = vsel %vm1220, %v1219, %v1213
    %s1225 = scalar_lea.vmem [#allocation3], 6
    %v1226 = vld [vmem:[%s1225] ss:$8 sm:$0xf]
    %v1228 = vperm.slane %v1226, 0
    %v1229 = vperm.slane %v1226, 1
    %v1230 = vperm.slane %v1226, 2
    %v1231 = vperm.slane %v1226, 3
    %v1236 = vmul.f32 %v1224, %v1228
    %v1237 = vmul.f32 %v1223, %v1229
    %v1238 = vmul.f32 %v1222, %v1230
    %v1239 = vmul.f32 %v1221, %v1231
    %1240 = vset.pattern.permute.xlu0 6
    %1241 = vperm.xlu0 %1240, %v819
    %v1242 = vpop.permute.xlu0 %1241
    %v1244 = vmul.f32 %v1236, %v1242
    %v1245 = vmul.f32 %v1237, %v1242
    %v1246 = vmul.f32 %v1238, %v1242
    %v1247 = vmul.f32 %v1239, %v1242
    %1248 = vrot.lane.b32.xlu0 %v797, 45
    %v1249 = vpop.permute.xlu0 %1248
    %1250 = vrot.lane.b32.xlu0 %v804, 45
    %v1251 = vpop.permute.xlu0 %1250
    %1252 = vrot.lane.b32.xlu0 %v811, 45
    %v1253 = vpop.permute.xlu0 %1252
    %1254 = vrot.lane.b32.xlu0 %v818, 45
    %v1255 = vpop.permute.xlu0 %1254
    %v1256 = vsel %vm1220, %v1253, %v1255
    %v1257 = vsel %vm1220, %v1251, %v1253
    %v1258 = vsel %vm1220, %v1249, %v1251
    %v1259 = vsel %vm1220, %v1255, %v1249
    %v1260 = vmul.f32 %v1259, %v1228
    %v1261 = vmul.f32 %v1258, %v1229
    %v1262 = vmul.f32 %v1257, %v1230
    %v1263 = vmul.f32 %v1256, %v1231
    %v1264 = vrot.slane %v1242, 1
    %v1266 = vmul.f32 %v1260, %v1264
    %v1267 = vmul.f32 %v1261, %v1264
    %v1268 = vmul.f32 %v1262, %v1264
    %v1269 = vmul.f32 %v1263, %v1264
    %v1270 = vadd.f32 %v1244, %v1266
    %v1271 = vadd.f32 %v1245, %v1267
    %v1272 = vadd.f32 %v1246, %v1268
    %v1273 = vadd.f32 %v1247, %v1269
    %v1274 = vadd.f32 %v1208, %v1270
    %v1275 = vadd.f32 %v1209, %v1271
    %v1276 = vadd.f32 %v1210, %v1272
    %v1277 = vadd.f32 %v1211, %v1273
    %1278 = vrot.lane.b32.xlu0 %v787, 35
    %v1279 = vpop.permute.xlu0 %1278
    %1280 = vrot.lane.b32.xlu0 %v788, 35
    %v1281 = vpop.permute.xlu0 %1280
    %1282 = vrot.lane.b32.xlu0 %v789, 35
    %v1283 = vpop.permute.xlu0 %1282
    %1284 = vrot.lane.b32.xlu0 %v790, 35
    %v1285 = vpop.permute.xlu0 %1284
    %vm1286 = vcmp.lt.s32.totalorder %v244, 35
    %v1287 = vsel %vm1286, %v1283, %v1285
    %v1288 = vsel %vm1286, %v1281, %v1283
    %v1289 = vsel %vm1286, %v1279, %v1281
    %v1290 = vsel %vm1286, %v1285, %v1279
    %s1291 = scalar_lea.vmem [#allocation3], 7
    %v1292 = vld [vmem:[%s1291] ss:$8 sm:$0xf]
    %v1294 = vperm.slane %v1292, 0
    %v1295 = vperm.slane %v1292, 1
    %v1296 = vperm.slane %v1292, 2
    %v1297 = vperm.slane %v1292, 3
    %v1302 = vmul.f32 %v1290, %v1294
    %v1303 = vmul.f32 %v1289, %v1295
    %v1304 = vmul.f32 %v1288, %v1296
    %v1305 = vmul.f32 %v1287, %v1297
    %1306 = vset.pattern.permute.xlu0 7
    %1307 = vperm.xlu0 %1306, %v819
    %v1308 = vpop.permute.xlu0 %1307
    %v1310 = vmul.f32 %v1302, %v1308
    %v1311 = vmul.f32 %v1303, %v1308
    %v1312 = vmul.f32 %v1304, %v1308
    %v1313 = vmul.f32 %v1305, %v1308
    %1314 = vrot.lane.b32.xlu0 %v797, 35
    %v1315 = vpop.permute.xlu0 %1314
    %1316 = vrot.lane.b32.xlu0 %v804, 35
    %v1317 = vpop.permute.xlu0 %1316
    %1318 = vrot.lane.b32.xlu0 %v811, 35
    %v1319 = vpop.permute.xlu0 %1318
    %1320 = vrot.lane.b32.xlu0 %v818, 35
    %v1321 = vpop.permute.xlu0 %1320
    %v1322 = vsel %vm1286, %v1319, %v1321
    %v1323 = vsel %vm1286, %v1317, %v1319
    %v1324 = vsel %vm1286, %v1315, %v1317
    %v1325 = vsel %vm1286, %v1321, %v1315
    %v1326 = vmul.f32 %v1325, %v1294
    %v1327 = vmul.f32 %v1324, %v1295
    %v1328 = vmul.f32 %v1323, %v1296
    %v1329 = vmul.f32 %v1322, %v1297
    %v1330 = vrot.slane %v1308, 1
    %v1332 = vmul.f32 %v1326, %v1330
    %v1333 = vmul.f32 %v1327, %v1330
    %v1334 = vmul.f32 %v1328, %v1330
    %v1335 = vmul.f32 %v1329, %v1330
    %v1336 = vadd.f32 %v1310, %v1332
    %v1337 = vadd.f32 %v1311, %v1333
    %v1338 = vadd.f32 %v1312, %v1334
    %v1339 = vadd.f32 %v1313, %v1335
    %v1340 = vadd.f32 %v1274, %v1336
    %v1341 = vadd.f32 %v1275, %v1337
    %v1342 = vadd.f32 %v1276, %v1338
    %v1343 = vadd.f32 %v1277, %v1339
    %1344 = vrot.lane.b32.xlu0 %v787, 34
    %v1345 = vpop.permute.xlu0 %1344
    %1346 = vrot.lane.b32.xlu0 %v788, 34
    %v1347 = vpop.permute.xlu0 %1346
    %1348 = vrot.lane.b32.xlu0 %v789, 34
    %v1349 = vpop.permute.xlu0 %1348
    %1350 = vrot.lane.b32.xlu0 %v790, 34
    %v1351 = vpop.permute.xlu0 %1350
    %vm1352 = vcmp.lt.s32.totalorder %v244, 34
    %v1353 = vsel %vm1352, %v1349, %v1351
    %v1354 = vsel %vm1352, %v1347, %v1349
    %v1355 = vsel %vm1352, %v1345, %v1347
    %v1356 = vsel %vm1352, %v1351, %v1345
    %s1357 = scalar_lea.vmem [#allocation3], 32
    %v1358 = vld [vmem:[%s1357] ss:$8 sm:$0xf]
    %v1360 = vperm.slane %v1358, 0
    %v1361 = vperm.slane %v1358, 1
    %v1362 = vperm.slane %v1358, 2
    %v1363 = vperm.slane %v1358, 3
    %v1368 = vmul.f32 %v1356, %v1360
    %v1369 = vmul.f32 %v1355, %v1361
    %v1370 = vmul.f32 %v1354, %v1362
    %v1371 = vmul.f32 %v1353, %v1363
    %1372 = vset.pattern.permute.xlu0 8
    %1373 = vperm.xlu0 %1372, %v819
    %v1374 = vpop.permute.xlu0 %1373
    %v1376 = vmul.f32 %v1368, %v1374
    %v1377 = vmul.f32 %v1369, %v1374
    %v1378 = vmul.f32 %v1370, %v1374
    %v1379 = vmul.f32 %v1371, %v1374
    %1380 = vrot.lane.b32.xlu0 %v797, 34
    %v1381 = vpop.permute.xlu0 %1380
    %1382 = vrot.lane.b32.xlu0 %v804, 34
    %v1383 = vpop.permute.xlu0 %1382
    %1384 = vrot.lane.b32.xlu0 %v811, 34
    %v1385 = vpop.permute.xlu0 %1384
    %1386 = vrot.lane.b32.xlu0 %v818, 34
    %v1387 = vpop.permute.xlu0 %1386
    %v1388 = vsel %vm1352, %v1385, %v1387
    %v1389 = vsel %vm1352, %v1383, %v1385
    %v1390 = vsel %vm1352, %v1381, %v1383
    %v1391 = vsel %vm1352, %v1387, %v1381
    %v1392 = vmul.f32 %v1391, %v1360
    %v1393 = vmul.f32 %v1390, %v1361
    %v1394 = vmul.f32 %v1389, %v1362
    %v1395 = vmul.f32 %v1388, %v1363
    %v1396 = vrot.slane %v1374, 1
    %v1398 = vmul.f32 %v1392, %v1396
    %v1399 = vmul.f32 %v1393, %v1396
    %v1400 = vmul.f32 %v1394, %v1396
    %v1401 = vmul.f32 %v1395, %v1396
    %v1402 = vadd.f32 %v1376, %v1398
    %v1403 = vadd.f32 %v1377, %v1399
    %v1404 = vadd.f32 %v1378, %v1400
    %v1405 = vadd.f32 %v1379, %v1401
    %v1406 = vadd.f32 %v1340, %v1402
    %v1407 = vadd.f32 %v1341, %v1403
    %v1408 = vadd.f32 %v1342, %v1404
    %v1409 = vadd.f32 %v1343, %v1405
    %1410 = vrot.lane.b32.xlu0 %v787, 33
    %v1411 = vpop.permute.xlu0 %1410
    %1412 = vrot.lane.b32.xlu0 %v788, 33
    %v1413 = vpop.permute.xlu0 %1412
    %1414 = vrot.lane.b32.xlu0 %v789, 33
    %v1415 = vpop.permute.xlu0 %1414
    %1416 = vrot.lane.b32.xlu0 %v790, 33
    %v1417 = vpop.permute.xlu0 %1416
    %vm1418 = vcmp.lt.s32.totalorder %v244, 33
    %v1419 = vsel %vm1418, %v1415, %v1417
    %v1420 = vsel %vm1418, %v1413, %v1415
    %v1421 = vsel %vm1418, %v1411, %v1413
    %v1422 = vsel %vm1418, %v1417, %v1411
    %s1423 = scalar_lea.vmem [#allocation3], 33
    %v1424 = vld [vmem:[%s1423] ss:$8 sm:$0xf]
    %v1426 = vperm.slane %v1424, 0
    %v1427 = vperm.slane %v1424, 1
    %v1428 = vperm.slane %v1424, 2
    %v1429 = vperm.slane %v1424, 3
    %v1434 = vmul.f32 %v1422, %v1426
    %v1435 = vmul.f32 %v1421, %v1427
    %v1436 = vmul.f32 %v1420, %v1428
    %v1437 = vmul.f32 %v1419, %v1429
    %1438 = vset.pattern.permute.xlu0 9
    %1439 = vperm.xlu0 %1438, %v819
    %v1440 = vpop.permute.xlu0 %1439
    %v1442 = vmul.f32 %v1434, %v1440
    %v1443 = vmul.f32 %v1435, %v1440
    %v1444 = vmul.f32 %v1436, %v1440
    %v1445 = vmul.f32 %v1437, %v1440
    %1446 = vrot.lane.b32.xlu0 %v797, 33
    %v1447 = vpop.permute.xlu0 %1446
    %1448 = vrot.lane.b32.xlu0 %v804, 33
    %v1449 = vpop.permute.xlu0 %1448
    %1450 = vrot.lane.b32.xlu0 %v811, 33
    %v1451 = vpop.permute.xlu0 %1450
    %1452 = vrot.lane.b32.xlu0 %v818, 33
    %v1453 = vpop.permute.xlu0 %1452
    %v1454 = vsel %vm1418, %v1451, %v1453
    %v1455 = vsel %vm1418, %v1449, %v1451
    %v1456 = vsel %vm1418, %v1447, %v1449
    %v1457 = vsel %vm1418, %v1453, %v1447
    %v1458 = vmul.f32 %v1457, %v1426
    %v1459 = vmul.f32 %v1456, %v1427
    %v1460 = vmul.f32 %v1455, %v1428
    %v1461 = vmul.f32 %v1454, %v1429
    %v1462 = vrot.slane %v1440, 1
    %v1464 = vmul.f32 %v1458, %v1462
    %v1465 = vmul.f32 %v1459, %v1462
    %v1466 = vmul.f32 %v1460, %v1462
    %v1467 = vmul.f32 %v1461, %v1462
    %v1468 = vadd.f32 %v1442, %v1464
    %v1469 = vadd.f32 %v1443, %v1465
    %v1470 = vadd.f32 %v1444, %v1466
    %v1471 = vadd.f32 %v1445, %v1467
    %v1472 = vadd.f32 %v1406, %v1468
    %v1473 = vadd.f32 %v1407, %v1469
    %v1474 = vadd.f32 %v1408, %v1470
    %v1475 = vadd.f32 %v1409, %v1471
    %1476 = vrot.lane.b32.xlu0 %v787, 32
    %v1477 = vpop.permute.xlu0 %1476
    %1478 = vrot.lane.b32.xlu0 %v788, 32
    %v1479 = vpop.permute.xlu0 %1478
    %1480 = vrot.lane.b32.xlu0 %v789, 32
    %v1481 = vpop.permute.xlu0 %1480
    %1482 = vrot.lane.b32.xlu0 %v790, 32
    %v1483 = vpop.permute.xlu0 %1482
    %vm1484 = vcmp.lt.s32.totalorder %v244, 32
    %v1485 = vsel %vm1484, %v1481, %v1483
    %v1486 = vsel %vm1484, %v1479, %v1481
    %v1487 = vsel %vm1484, %v1477, %v1479
    %v1488 = vsel %vm1484, %v1483, %v1477
    %s1489 = scalar_lea.vmem [#allocation3], 34
    %v1490 = vld [vmem:[%s1489] ss:$8 sm:$0xf]
    %v1492 = vperm.slane %v1490, 0
    %v1493 = vperm.slane %v1490, 1
    %v1494 = vperm.slane %v1490, 2
    %v1495 = vperm.slane %v1490, 3
    %v1500 = vmul.f32 %v1488, %v1492
    %v1501 = vmul.f32 %v1487, %v1493
    %v1502 = vmul.f32 %v1486, %v1494
    %v1503 = vmul.f32 %v1485, %v1495
    %1504 = vset.pattern.permute.xlu0 10
    %1505 = vperm.xlu0 %1504, %v819
    %v1506 = vpop.permute.xlu0 %1505
    %v1508 = vmul.f32 %v1500, %v1506
    %v1509 = vmul.f32 %v1501, %v1506
    %v1510 = vmul.f32 %v1502, %v1506
    %v1511 = vmul.f32 %v1503, %v1506
    %1512 = vrot.lane.b32.xlu0 %v797, 32
    %v1513 = vpop.permute.xlu0 %1512
    %1514 = vrot.lane.b32.xlu0 %v804, 32
    %v1515 = vpop.permute.xlu0 %1514
    %1516 = vrot.lane.b32.xlu0 %v811, 32
    %v1517 = vpop.permute.xlu0 %1516
    %1518 = vrot.lane.b32.xlu0 %v818, 32
    %v1519 = vpop.permute.xlu0 %1518
    %v1520 = vsel %vm1484, %v1517, %v1519
    %v1521 = vsel %vm1484, %v1515, %v1517
    %v1522 = vsel %vm1484, %v1513, %v1515
    %v1523 = vsel %vm1484, %v1519, %v1513
    %v1524 = vmul.f32 %v1523, %v1492
    %v1525 = vmul.f32 %v1522, %v1493
    %v1526 = vmul.f32 %v1521, %v1494
    %v1527 = vmul.f32 %v1520, %v1495
    %v1528 = vrot.slane %v1506, 1
    %v1530 = vmul.f32 %v1524, %v1528
    %v1531 = vmul.f32 %v1525, %v1528
    %v1532 = vmul.f32 %v1526, %v1528
    %v1533 = vmul.f32 %v1527, %v1528
    %v1534 = vadd.f32 %v1508, %v1530
    %v1535 = vadd.f32 %v1509, %v1531
    %v1536 = vadd.f32 %v1510, %v1532
    %v1537 = vadd.f32 %v1511, %v1533
    %v1538 = vadd.f32 %v1472, %v1534
    %v1539 = vadd.f32 %v1473, %v1535
    %v1540 = vadd.f32 %v1474, %v1536
    %v1541 = vadd.f32 %v1475, %v1537
    %1542 = vrot.lane.b32.xlu0 %v787, 31
    %v1543 = vpop.permute.xlu0 %1542
    %1544 = vrot.lane.b32.xlu0 %v788, 31
    %v1545 = vpop.permute.xlu0 %1544
    %1546 = vrot.lane.b32.xlu0 %v789, 31
    %v1547 = vpop.permute.xlu0 %1546
    %1548 = vrot.lane.b32.xlu0 %v790, 31
    %v1549 = vpop.permute.xlu0 %1548
    %vm1550 = vcmp.lt.s32.totalorder %v244, 31
    %v1551 = vsel %vm1550, %v1547, %v1549
    %v1552 = vsel %vm1550, %v1545, %v1547
    %v1553 = vsel %vm1550, %v1543, %v1545
    %v1554 = vsel %vm1550, %v1549, %v1543
    %s1555 = scalar_lea.vmem [#allocation3], 35
    %v1556 = vld [vmem:[%s1555] ss:$8 sm:$0xf]
    %v1558 = vperm.slane %v1556, 0
    %v1559 = vperm.slane %v1556, 1
    %v1560 = vperm.slane %v1556, 2
    %v1561 = vperm.slane %v1556, 3
    %v1566 = vmul.f32 %v1554, %v1558
    %v1567 = vmul.f32 %v1553, %v1559
    %v1568 = vmul.f32 %v1552, %v1560
    %v1569 = vmul.f32 %v1551, %v1561
    %1570 = vset.pattern.permute.xlu0 11
    %1571 = vperm.xlu0 %1570, %v819
    %v1572 = vpop.permute.xlu0 %1571
    %v1574 = vmul.f32 %v1566, %v1572
    %v1575 = vmul.f32 %v1567, %v1572
    %v1576 = vmul.f32 %v1568, %v1572
    %v1577 = vmul.f32 %v1569, %v1572
    %1578 = vrot.lane.b32.xlu0 %v797, 31
    %v1579 = vpop.permute.xlu0 %1578
    %1580 = vrot.lane.b32.xlu0 %v804, 31
    %v1581 = vpop.permute.xlu0 %1580
    %1582 = vrot.lane.b32.xlu0 %v811, 31
    %v1583 = vpop.permute.xlu0 %1582
    %1584 = vrot.lane.b32.xlu0 %v818, 31
    %v1585 = vpop.permute.xlu0 %1584
    %v1586 = vsel %vm1550, %v1583, %v1585
    %v1587 = vsel %vm1550, %v1581, %v1583
    %v1588 = vsel %vm1550, %v1579, %v1581
    %v1589 = vsel %vm1550, %v1585, %v1579
    %v1590 = vmul.f32 %v1589, %v1558
    %v1591 = vmul.f32 %v1588, %v1559
    %v1592 = vmul.f32 %v1587, %v1560
    %v1593 = vmul.f32 %v1586, %v1561
    %v1594 = vrot.slane %v1572, 1
    %v1596 = vmul.f32 %v1590, %v1594
    %v1597 = vmul.f32 %v1591, %v1594
    %v1598 = vmul.f32 %v1592, %v1594
    %v1599 = vmul.f32 %v1593, %v1594
    %v1600 = vadd.f32 %v1574, %v1596
    %v1601 = vadd.f32 %v1575, %v1597
    %v1602 = vadd.f32 %v1576, %v1598
    %v1603 = vadd.f32 %v1577, %v1599
    %v1604 = vadd.f32 %v1538, %v1600
    %v1605 = vadd.f32 %v1539, %v1601
    %v1606 = vadd.f32 %v1540, %v1602
    %v1607 = vadd.f32 %v1541, %v1603
    %1608 = vrot.lane.b32.xlu0 %v787, 30
    %v1609 = vpop.permute.xlu0 %1608
    %1610 = vrot.lane.b32.xlu0 %v788, 30
    %v1611 = vpop.permute.xlu0 %1610
    %1612 = vrot.lane.b32.xlu0 %v789, 30
    %v1613 = vpop.permute.xlu0 %1612
    %1614 = vrot.lane.b32.xlu0 %v790, 30
    %v1615 = vpop.permute.xlu0 %1614
    %vm1616 = vcmp.lt.s32.totalorder %v244, 30
    %v1617 = vsel %vm1616, %v1613, %v1615
    %v1618 = vsel %vm1616, %v1611, %v1613
    %v1619 = vsel %vm1616, %v1609, %v1611
    %v1620 = vsel %vm1616, %v1615, %v1609
    %s1621 = scalar_lea.vmem [#allocation3], 36
    %v1622 = vld [vmem:[%s1621] ss:$8 sm:$0xf]
    %v1624 = vperm.slane %v1622, 0
    %v1625 = vperm.slane %v1622, 1
    %v1626 = vperm.slane %v1622, 2
    %v1627 = vperm.slane %v1622, 3
    %v1632 = vmul.f32 %v1620, %v1624
    %v1633 = vmul.f32 %v1619, %v1625
    %v1634 = vmul.f32 %v1618, %v1626
    %v1635 = vmul.f32 %v1617, %v1627
    %1636 = vset.pattern.permute.xlu0 12
    %1637 = vperm.xlu0 %1636, %v819
    %v1638 = vpop.permute.xlu0 %1637
    %v1640 = vmul.f32 %v1632, %v1638
    %v1641 = vmul.f32 %v1633, %v1638
    %v1642 = vmul.f32 %v1634, %v1638
    %v1643 = vmul.f32 %v1635, %v1638
    %1644 = vrot.lane.b32.xlu0 %v797, 30
    %v1645 = vpop.permute.xlu0 %1644
    %1646 = vrot.lane.b32.xlu0 %v804, 30
    %v1647 = vpop.permute.xlu0 %1646
    %1648 = vrot.lane.b32.xlu0 %v811, 30
    %v1649 = vpop.permute.xlu0 %1648
    %1650 = vrot.lane.b32.xlu0 %v818, 30
    %v1651 = vpop.permute.xlu0 %1650
    %v1652 = vsel %vm1616, %v1649, %v1651
    %v1653 = vsel %vm1616, %v1647, %v1649
    %v1654 = vsel %vm1616, %v1645, %v1647
    %v1655 = vsel %vm1616, %v1651, %v1645
    %v1656 = vmul.f32 %v1655, %v1624
    %v1657 = vmul.f32 %v1654, %v1625
    %v1658 = vmul.f32 %v1653, %v1626
    %v1659 = vmul.f32 %v1652, %v1627
    %v1660 = vrot.slane %v1638, 1
    %v1662 = vmul.f32 %v1656, %v1660
    %v1663 = vmul.f32 %v1657, %v1660
    %v1664 = vmul.f32 %v1658, %v1660
    %v1665 = vmul.f32 %v1659, %v1660
    %v1666 = vadd.f32 %v1640, %v1662
    %v1667 = vadd.f32 %v1641, %v1663
    %v1668 = vadd.f32 %v1642, %v1664
    %v1669 = vadd.f32 %v1643, %v1665
    %v1670 = vadd.f32 %v1604, %v1666
    %v1671 = vadd.f32 %v1605, %v1667
    %v1672 = vadd.f32 %v1606, %v1668
    %v1673 = vadd.f32 %v1607, %v1669
    %1674 = vrot.lane.b32.xlu0 %v787, 29
    %v1675 = vpop.permute.xlu0 %1674
    %1676 = vrot.lane.b32.xlu0 %v788, 29
    %v1677 = vpop.permute.xlu0 %1676
    %1678 = vrot.lane.b32.xlu0 %v789, 29
    %v1679 = vpop.permute.xlu0 %1678
    %1680 = vrot.lane.b32.xlu0 %v790, 29
    %v1681 = vpop.permute.xlu0 %1680
    %vm1682 = vcmp.lt.s32.totalorder %v244, 29
    %v1683 = vsel %vm1682, %v1679, %v1681
    %v1684 = vsel %vm1682, %v1677, %v1679
    %v1685 = vsel %vm1682, %v1675, %v1677
    %v1686 = vsel %vm1682, %v1681, %v1675
    %s1687 = scalar_lea.vmem [#allocation3], 37
    %v1688 = vld [vmem:[%s1687] ss:$8 sm:$0xf]
    %v1690 = vperm.slane %v1688, 0
    %v1691 = vperm.slane %v1688, 1
    %v1692 = vperm.slane %v1688, 2
    %v1693 = vperm.slane %v1688, 3
    %v1698 = vmul.f32 %v1686, %v1690
    %v1699 = vmul.f32 %v1685, %v1691
    %v1700 = vmul.f32 %v1684, %v1692
    %v1701 = vmul.f32 %v1683, %v1693
    %1702 = vset.pattern.permute.xlu0 13
    %1703 = vperm.xlu0 %1702, %v819
    %v1704 = vpop.permute.xlu0 %1703
    %v1706 = vmul.f32 %v1698, %v1704
    %v1707 = vmul.f32 %v1699, %v1704
    %v1708 = vmul.f32 %v1700, %v1704
    %v1709 = vmul.f32 %v1701, %v1704
    %1710 = vrot.lane.b32.xlu0 %v797, 29
    %v1711 = vpop.permute.xlu0 %1710
    %1712 = vrot.lane.b32.xlu0 %v804, 29
    %v1713 = vpop.permute.xlu0 %1712
    %1714 = vrot.lane.b32.xlu0 %v811, 29
    %v1715 = vpop.permute.xlu0 %1714
    %1716 = vrot.lane.b32.xlu0 %v818, 29
    %v1717 = vpop.permute.xlu0 %1716
    %v1718 = vsel %vm1682, %v1715, %v1717
    %v1719 = vsel %vm1682, %v1713, %v1715
    %v1720 = vsel %vm1682, %v1711, %v1713
    %v1721 = vsel %vm1682, %v1717, %v1711
    %v1722 = vmul.f32 %v1721, %v1690
    %v1723 = vmul.f32 %v1720, %v1691
    %v1724 = vmul.f32 %v1719, %v1692
    %v1725 = vmul.f32 %v1718, %v1693
    %v1726 = vrot.slane %v1704, 1
    %v1728 = vmul.f32 %v1722, %v1726
    %v1729 = vmul.f32 %v1723, %v1726
    %v1730 = vmul.f32 %v1724, %v1726
    %v1731 = vmul.f32 %v1725, %v1726
    %v1732 = vadd.f32 %v1706, %v1728
    %v1733 = vadd.f32 %v1707, %v1729
    %v1734 = vadd.f32 %v1708, %v1730
    %v1735 = vadd.f32 %v1709, %v1731
    %v1736 = vadd.f32 %v1670, %v1732
    %v1737 = vadd.f32 %v1671, %v1733
    %v1738 = vadd.f32 %v1672, %v1734
    %v1739 = vadd.f32 %v1673, %v1735
    %1740 = vrot.lane.b32.xlu0 %v787, 19
    %v1741 = vpop.permute.xlu0 %1740
    %1742 = vrot.lane.b32.xlu0 %v788, 19
    %v1743 = vpop.permute.xlu0 %1742
    %1744 = vrot.lane.b32.xlu0 %v789, 19
    %v1745 = vpop.permute.xlu0 %1744
    %1746 = vrot.lane.b32.xlu0 %v790, 19
    %v1747 = vpop.permute.xlu0 %1746
    %vm1748 = vcmp.lt.s32.totalorder %v244, 19
    %v1749 = vsel %vm1748, %v1745, %v1747
    %v1750 = vsel %vm1748, %v1743, %v1745
    %v1751 = vsel %vm1748, %v1741, %v1743
    %v1752 = vsel %vm1748, %v1747, %v1741
    %s1753 = scalar_lea.vmem [#allocation3], 38
    %v1754 = vld [vmem:[%s1753] ss:$8 sm:$0xf]
    %v1756 = vperm.slane %v1754, 0
    %v1757 = vperm.slane %v1754, 1
    %v1758 = vperm.slane %v1754, 2
    %v1759 = vperm.slane %v1754, 3
    %v1764 = vmul.f32 %v1752, %v1756
    %v1765 = vmul.f32 %v1751, %v1757
    %v1766 = vmul.f32 %v1750, %v1758
    %v1767 = vmul.f32 %v1749, %v1759
    %1768 = vset.pattern.permute.xlu0 14
    %1769 = vperm.xlu0 %1768, %v819
    %v1770 = vpop.permute.xlu0 %1769
    %v1772 = vmul.f32 %v1764, %v1770
    %v1773 = vmul.f32 %v1765, %v1770
    %v1774 = vmul.f32 %v1766, %v1770
    %v1775 = vmul.f32 %v1767, %v1770
    %1776 = vrot.lane.b32.xlu0 %v797, 19
    %v1777 = vpop.permute.xlu0 %1776
    %1778 = vrot.lane.b32.xlu0 %v804, 19
    %v1779 = vpop.permute.xlu0 %1778
    %1780 = vrot.lane.b32.xlu0 %v811, 19
    %v1781 = vpop.permute.xlu0 %1780
    %1782 = vrot.lane.b32.xlu0 %v818, 19
    %v1783 = vpop.permute.xlu0 %1782
    %v1784 = vsel %vm1748, %v1781, %v1783
    %v1785 = vsel %vm1748, %v1779, %v1781
    %v1786 = vsel %vm1748, %v1777, %v1779
    %v1787 = vsel %vm1748, %v1783, %v1777
    %v1788 = vmul.f32 %v1787, %v1756
    %v1789 = vmul.f32 %v1786, %v1757
    %v1790 = vmul.f32 %v1785, %v1758
    %v1791 = vmul.f32 %v1784, %v1759
    %v1792 = vrot.slane %v1770, 1
    %v1794 = vmul.f32 %v1788, %v1792
    %v1795 = vmul.f32 %v1789, %v1792
    %v1796 = vmul.f32 %v1790, %v1792
    %v1797 = vmul.f32 %v1791, %v1792
    %v1798 = vadd.f32 %v1772, %v1794
    %v1799 = vadd.f32 %v1773, %v1795
    %v1800 = vadd.f32 %v1774, %v1796
    %v1801 = vadd.f32 %v1775, %v1797
    %v1802 = vadd.f32 %v1736, %v1798
    %v1803 = vadd.f32 %v1737, %v1799
    %v1804 = vadd.f32 %v1738, %v1800
    %v1805 = vadd.f32 %v1739, %v1801
    %1806 = vrot.lane.b32.xlu0 %v787, 18
    %v1807 = vpop.permute.xlu0 %1806
    %1808 = vrot.lane.b32.xlu0 %v788, 18
    %v1809 = vpop.permute.xlu0 %1808
    %1810 = vrot.lane.b32.xlu0 %v789, 18
    %v1811 = vpop.permute.xlu0 %1810
    %1812 = vrot.lane.b32.xlu0 %v790, 18
    %v1813 = vpop.permute.xlu0 %1812
    %vm1814 = vcmp.lt.s32.totalorder %v244, 18
    %v1815 = vsel %vm1814, %v1811, %v1813
    %v1816 = vsel %vm1814, %v1809, %v1811
    %v1817 = vsel %vm1814, %v1807, %v1809
    %v1818 = vsel %vm1814, %v1813, %v1807
    %s1819 = scalar_lea.vmem [#allocation3], 39
    %v1820 = vld [vmem:[%s1819] ss:$8 sm:$0xf]
    %v1822 = vperm.slane %v1820, 0
    %v1823 = vperm.slane %v1820, 1
    %v1824 = vperm.slane %v1820, 2
    %v1825 = vperm.slane %v1820, 3
    %v1830 = vmul.f32 %v1818, %v1822
    %v1831 = vmul.f32 %v1817, %v1823
    %v1832 = vmul.f32 %v1816, %v1824
    %v1833 = vmul.f32 %v1815, %v1825
    %1834 = vset.pattern.permute.xlu0 15
    %1835 = vperm.xlu0 %1834, %v819
    %v1836 = vpop.permute.xlu0 %1835
    %v1838 = vmul.f32 %v1830, %v1836
    %v1839 = vmul.f32 %v1831, %v1836
    %v1840 = vmul.f32 %v1832, %v1836
    %v1841 = vmul.f32 %v1833, %v1836
    %1842 = vrot.lane.b32.xlu0 %v797, 18
    %v1843 = vpop.permute.xlu0 %1842
    %1844 = vrot.lane.b32.xlu0 %v804, 18
    %v1845 = vpop.permute.xlu0 %1844
    %1846 = vrot.lane.b32.xlu0 %v811, 18
    %v1847 = vpop.permute.xlu0 %1846
    %1848 = vrot.lane.b32.xlu0 %v818, 18
    %v1849 = vpop.permute.xlu0 %1848
    %v1850 = vsel %vm1814, %v1847, %v1849
    %v1851 = vsel %vm1814, %v1845, %v1847
    %v1852 = vsel %vm1814, %v1843, %v1845
    %v1853 = vsel %vm1814, %v1849, %v1843
    %v1854 = vmul.f32 %v1853, %v1822
    %v1855 = vmul.f32 %v1852, %v1823
    %v1856 = vmul.f32 %v1851, %v1824
    %v1857 = vmul.f32 %v1850, %v1825
    %v1858 = vrot.slane %v1836, 1
    %v1860 = vmul.f32 %v1854, %v1858
    %v1861 = vmul.f32 %v1855, %v1858
    %v1862 = vmul.f32 %v1856, %v1858
    %v1863 = vmul.f32 %v1857, %v1858
    %v1864 = vadd.f32 %v1838, %v1860
    %v1865 = vadd.f32 %v1839, %v1861
    %v1866 = vadd.f32 %v1840, %v1862
    %v1867 = vadd.f32 %v1841, %v1863
    %v1868 = vadd.f32 %v1802, %v1864
    %v1869 = vadd.f32 %v1803, %v1865
    %v1870 = vadd.f32 %v1804, %v1866
    %v1871 = vadd.f32 %v1805, %v1867
    %1872 = vrot.lane.b32.xlu0 %v787, 17
    %v1873 = vpop.permute.xlu0 %1872
    %1874 = vrot.lane.b32.xlu0 %v788, 17
    %v1875 = vpop.permute.xlu0 %1874
    %1876 = vrot.lane.b32.xlu0 %v789, 17
    %v1877 = vpop.permute.xlu0 %1876
    %1878 = vrot.lane.b32.xlu0 %v790, 17
    %v1879 = vpop.permute.xlu0 %1878
    %v1880 = vsel %vm245, %v1877, %v1879
    %v1881 = vsel %vm245, %v1875, %v1877
    %v1882 = vsel %vm245, %v1873, %v1875
    %v1883 = vsel %vm245, %v1879, %v1873
    %v1884 = vmul.f32 %v1883, %v253
    %v1885 = vmul.f32 %v1882, %v254
    %v1886 = vmul.f32 %v1881, %v255
    %v1887 = vmul.f32 %v1880, %v256
    %1888 = vset.pattern.permute.xlu0 16
    %1889 = vperm.xlu0 %1888, %v819
    %v1890 = vpop.permute.xlu0 %1889
    %v1892 = vmul.f32 %v1884, %v1890
    %v1893 = vmul.f32 %v1885, %v1890
    %v1894 = vmul.f32 %v1886, %v1890
    %v1895 = vmul.f32 %v1887, %v1890
    %1896 = vrot.lane.b32.xlu0 %v797, 17
    %v1897 = vpop.permute.xlu0 %1896
    %1898 = vrot.lane.b32.xlu0 %v804, 17
    %v1899 = vpop.permute.xlu0 %1898
    %1900 = vrot.lane.b32.xlu0 %v811, 17
    %v1901 = vpop.permute.xlu0 %1900
    %1902 = vrot.lane.b32.xlu0 %v818, 17
    %v1903 = vpop.permute.xlu0 %1902
    %v1904 = vsel %vm245, %v1901, %v1903
    %v1905 = vsel %vm245, %v1899, %v1901
    %v1906 = vsel %vm245, %v1897, %v1899
    %v1907 = vsel %vm245, %v1903, %v1897
    %v1908 = vmul.f32 %v1907, %v253
    %v1909 = vmul.f32 %v1906, %v254
    %v1910 = vmul.f32 %v1905, %v255
    %v1911 = vmul.f32 %v1904, %v256
    %v1912 = vrot.slane %v1890, 1
    %v1914 = vmul.f32 %v1908, %v1912
    %v1915 = vmul.f32 %v1909, %v1912
    %v1916 = vmul.f32 %v1910, %v1912
    %v1917 = vmul.f32 %v1911, %v1912
    %v1918 = vadd.f32 %v1892, %v1914
    %v1919 = vadd.f32 %v1893, %v1915
    %v1920 = vadd.f32 %v1894, %v1916
    %v1921 = vadd.f32 %v1895, %v1917
    %v1922 = vadd.f32 %v1868, %v1918
    %v1923 = vadd.f32 %v1869, %v1919
    %v1924 = vadd.f32 %v1870, %v1920
    %v1925 = vadd.f32 %v1871, %v1921
    %1926 = vrot.lane.b32.xlu0 %v787, 16
    %v1927 = vpop.permute.xlu0 %1926
    %1928 = vrot.lane.b32.xlu0 %v788, 16
    %v1929 = vpop.permute.xlu0 %1928
    %1930 = vrot.lane.b32.xlu0 %v789, 16
    %v1931 = vpop.permute.xlu0 %1930
    %1932 = vrot.lane.b32.xlu0 %v790, 16
    %v1933 = vpop.permute.xlu0 %1932
    %v1934 = vsel %vm273, %v1931, %v1933
    %v1935 = vsel %vm273, %v1929, %v1931
    %v1936 = vsel %vm273, %v1927, %v1929
    %v1937 = vsel %vm273, %v1933, %v1927
    %v1938 = vmul.f32 %v1937, %v281
    %v1939 = vmul.f32 %v1936, %v282
    %v1940 = vmul.f32 %v1935, %v283
    %v1941 = vmul.f32 %v1934, %v284
    %1942 = vset.pattern.permute.xlu0 17
    %1943 = vperm.xlu0 %1942, %v819
    %v1944 = vpop.permute.xlu0 %1943
    %v1946 = vmul.f32 %v1938, %v1944
    %v1947 = vmul.f32 %v1939, %v1944
    %v1948 = vmul.f32 %v1940, %v1944
    %v1949 = vmul.f32 %v1941, %v1944
    %1950 = vrot.lane.b32.xlu0 %v797, 16
    %v1951 = vpop.permute.xlu0 %1950
    %1952 = vrot.lane.b32.xlu0 %v804, 16
    %v1953 = vpop.permute.xlu0 %1952
    %1954 = vrot.lane.b32.xlu0 %v811, 16
    %v1955 = vpop.permute.xlu0 %1954
    %1956 = vrot.lane.b32.xlu0 %v818, 16
    %v1957 = vpop.permute.xlu0 %1956
    %v1958 = vsel %vm273, %v1955, %v1957
    %v1959 = vsel %vm273, %v1953, %v1955
    %v1960 = vsel %vm273, %v1951, %v1953
    %v1961 = vsel %vm273, %v1957, %v1951
    %v1962 = vmul.f32 %v1961, %v281
    %v1963 = vmul.f32 %v1960, %v282
    %v1964 = vmul.f32 %v1959, %v283
    %v1965 = vmul.f32 %v1958, %v284
    %v1966 = vrot.slane %v1944, 1
    %v1968 = vmul.f32 %v1962, %v1966
    %v1969 = vmul.f32 %v1963, %v1966
    %v1970 = vmul.f32 %v1964, %v1966
    %v1971 = vmul.f32 %v1965, %v1966
    %v1972 = vadd.f32 %v1946, %v1968
    %v1973 = vadd.f32 %v1947, %v1969
    %v1974 = vadd.f32 %v1948, %v1970
    %v1975 = vadd.f32 %v1949, %v1971
    %v1976 = vadd.f32 %v1922, %v1972
    %v1977 = vadd.f32 %v1923, %v1973
    %v1978 = vadd.f32 %v1924, %v1974
    %v1979 = vadd.f32 %v1925, %v1975
    %1980 = vrot.lane.b32.xlu0 %v787, 15
    %v1981 = vpop.permute.xlu0 %1980
    %1982 = vrot.lane.b32.xlu0 %v788, 15
    %v1983 = vpop.permute.xlu0 %1982
    %1984 = vrot.lane.b32.xlu0 %v789, 15
    %v1985 = vpop.permute.xlu0 %1984
    %1986 = vrot.lane.b32.xlu0 %v790, 15
    %v1987 = vpop.permute.xlu0 %1986
    %v1988 = vsel %vm301, %v1985, %v1987
    %v1989 = vsel %vm301, %v1983, %v1985
    %v1990 = vsel %vm301, %v1981, %v1983
    %v1991 = vsel %vm301, %v1987, %v1981
    %v1992 = vmul.f32 %v1991, %v309
    %v1993 = vmul.f32 %v1990, %v310
    %v1994 = vmul.f32 %v1989, %v311
    %v1995 = vmul.f32 %v1988, %v312
    %1996 = vset.pattern.permute.xlu0 18
    %1997 = vperm.xlu0 %1996, %v819
    %v1998 = vpop.permute.xlu0 %1997
    %v2000 = vmul.f32 %v1992, %v1998
    %v2001 = vmul.f32 %v1993, %v1998
    %v2002 = vmul.f32 %v1994, %v1998
    %v2003 = vmul.f32 %v1995, %v1998
    %2004 = vrot.lane.b32.xlu0 %v797, 15
    %v2005 = vpop.permute.xlu0 %2004
    %2006 = vrot.lane.b32.xlu0 %v804, 15
    %v2007 = vpop.permute.xlu0 %2006
    %2008 = vrot.lane.b32.xlu0 %v811, 15
    %v2009 = vpop.permute.xlu0 %2008
    %2010 = vrot.lane.b32.xlu0 %v818, 15
    %v2011 = vpop.permute.xlu0 %2010
    %v2012 = vsel %vm301, %v2009, %v2011
    %v2013 = vsel %vm301, %v2007, %v2009
    %v2014 = vsel %vm301, %v2005, %v2007
    %v2015 = vsel %vm301, %v2011, %v2005
    %v2016 = vmul.f32 %v2015, %v309
    %v2017 = vmul.f32 %v2014, %v310
    %v2018 = vmul.f32 %v2013, %v311
    %v2019 = vmul.f32 %v2012, %v312
    %v2020 = vrot.slane %v1998, 1
    %v2022 = vmul.f32 %v2016, %v2020
    %v2023 = vmul.f32 %v2017, %v2020
    %v2024 = vmul.f32 %v2018, %v2020
    %v2025 = vmul.f32 %v2019, %v2020
    %v2026 = vadd.f32 %v2000, %v2022
    %v2027 = vadd.f32 %v2001, %v2023
    %v2028 = vadd.f32 %v2002, %v2024
    %v2029 = vadd.f32 %v2003, %v2025
    %v2030 = vadd.f32 %v1976, %v2026
    %v2031 = vadd.f32 %v1977, %v2027
    %v2032 = vadd.f32 %v1978, %v2028
    %v2033 = vadd.f32 %v1979, %v2029
    %2034 = vrot.lane.b32.xlu0 %v787, 14
    %v2035 = vpop.permute.xlu0 %2034
    %2036 = vrot.lane.b32.xlu0 %v788, 14
    %v2037 = vpop.permute.xlu0 %2036
    %2038 = vrot.lane.b32.xlu0 %v789, 14
    %v2039 = vpop.permute.xlu0 %2038
    %2040 = vrot.lane.b32.xlu0 %v790, 14
    %v2041 = vpop.permute.xlu0 %2040
    %vm2042 = vcmp.lt.s32.totalorder %v244, 14
    %v2043 = vsel %vm2042, %v2039, %v2041
    %v2044 = vsel %vm2042, %v2037, %v2039
    %v2045 = vsel %vm2042, %v2035, %v2037
    %v2046 = vsel %vm2042, %v2041, %v2035
    %s2047 = scalar_lea.vmem [#allocation3], 67
    %v2048 = vld [vmem:[%s2047] ss:$8 sm:$0xf]
    %v2050 = vperm.slane %v2048, 0
    %v2051 = vperm.slane %v2048, 1
    %v2052 = vperm.slane %v2048, 2
    %v2053 = vperm.slane %v2048, 3
    %v2058 = vmul.f32 %v2046, %v2050
    %v2059 = vmul.f32 %v2045, %v2051
    %v2060 = vmul.f32 %v2044, %v2052
    %v2061 = vmul.f32 %v2043, %v2053
    %2062 = vset.pattern.permute.xlu0 19
    %2063 = vperm.xlu0 %2062, %v819
    %v2064 = vpop.permute.xlu0 %2063
    %v2066 = vmul.f32 %v2058, %v2064
    %v2067 = vmul.f32 %v2059, %v2064
    %v2068 = vmul.f32 %v2060, %v2064
    %v2069 = vmul.f32 %v2061, %v2064
    %2070 = vrot.lane.b32.xlu0 %v797, 14
    %v2071 = vpop.permute.xlu0 %2070
    %2072 = vrot.lane.b32.xlu0 %v804, 14
    %v2073 = vpop.permute.xlu0 %2072
    %2074 = vrot.lane.b32.xlu0 %v811, 14
    %v2075 = vpop.permute.xlu0 %2074
    %2076 = vrot.lane.b32.xlu0 %v818, 14
    %v2077 = vpop.permute.xlu0 %2076
    %v2078 = vsel %vm2042, %v2075, %v2077
    %v2079 = vsel %vm2042, %v2073, %v2075
    %v2080 = vsel %vm2042, %v2071, %v2073
    %v2081 = vsel %vm2042, %v2077, %v2071
    %v2082 = vmul.f32 %v2081, %v2050
    %v2083 = vmul.f32 %v2080, %v2051
    %v2084 = vmul.f32 %v2079, %v2052
    %v2085 = vmul.f32 %v2078, %v2053
    %v2086 = vrot.slane %v2064, 1
    %v2088 = vmul.f32 %v2082, %v2086
    %v2089 = vmul.f32 %v2083, %v2086
    %v2090 = vmul.f32 %v2084, %v2086
    %v2091 = vmul.f32 %v2085, %v2086
    %v2092 = vadd.f32 %v2066, %v2088
    %v2093 = vadd.f32 %v2067, %v2089
    %v2094 = vadd.f32 %v2068, %v2090
    %v2095 = vadd.f32 %v2069, %v2091
    %v2096 = vadd.f32 %v2030, %v2092
    %v2097 = vadd.f32 %v2031, %v2093
    %v2098 = vadd.f32 %v2032, %v2094
    %v2099 = vadd.f32 %v2033, %v2095
    %2100 = vrot.lane.b32.xlu0 %v787, 13
    %v2101 = vpop.permute.xlu0 %2100
    %2102 = vrot.lane.b32.xlu0 %v788, 13
    %v2103 = vpop.permute.xlu0 %2102
    %2104 = vrot.lane.b32.xlu0 %v789, 13
    %v2105 = vpop.permute.xlu0 %2104
    %2106 = vrot.lane.b32.xlu0 %v790, 13
    %v2107 = vpop.permute.xlu0 %2106
    %vm2108 = vcmp.lt.s32.totalorder %v244, 13
    %v2109 = vsel %vm2108, %v2105, %v2107
    %v2110 = vsel %vm2108, %v2103, %v2105
    %v2111 = vsel %vm2108, %v2101, %v2103
    %v2112 = vsel %vm2108, %v2107, %v2101
    %s2113 = scalar_lea.vmem [#allocation3], 68
    %v2114 = vld [vmem:[%s2113] ss:$8 sm:$0xf]
    %v2116 = vperm.slane %v2114, 0
    %v2117 = vperm.slane %v2114, 1
    %v2118 = vperm.slane %v2114, 2
    %v2119 = vperm.slane %v2114, 3
    %v2124 = vmul.f32 %v2112, %v2116
    %v2125 = vmul.f32 %v2111, %v2117
    %v2126 = vmul.f32 %v2110, %v2118
    %v2127 = vmul.f32 %v2109, %v2119
    %2128 = vset.pattern.permute.xlu0 20
    %2129 = vperm.xlu0 %2128, %v819
    %v2130 = vpop.permute.xlu0 %2129
    %v2132 = vmul.f32 %v2124, %v2130
    %v2133 = vmul.f32 %v2125, %v2130
    %v2134 = vmul.f32 %v2126, %v2130
    %v2135 = vmul.f32 %v2127, %v2130
    %2136 = vrot.lane.b32.xlu0 %v797, 13
    %v2137 = vpop.permute.xlu0 %2136
    %2138 = vrot.lane.b32.xlu0 %v804, 13
    %v2139 = vpop.permute.xlu0 %2138
    %2140 = vrot.lane.b32.xlu0 %v811, 13
    %v2141 = vpop.permute.xlu0 %2140
    %2142 = vrot.lane.b32.xlu0 %v818, 13
    %v2143 = vpop.permute.xlu0 %2142
    %v2144 = vsel %vm2108, %v2141, %v2143
    %v2145 = vsel %vm2108, %v2139, %v2141
    %v2146 = vsel %vm2108, %v2137, %v2139
    %v2147 = vsel %vm2108, %v2143, %v2137
    %v2148 = vmul.f32 %v2147, %v2116
    %v2149 = vmul.f32 %v2146, %v2117
    %v2150 = vmul.f32 %v2145, %v2118
    %v2151 = vmul.f32 %v2144, %v2119
    %v2152 = vrot.slane %v2130, 1
    %v2154 = vmul.f32 %v2148, %v2152
    %v2155 = vmul.f32 %v2149, %v2152
    %v2156 = vmul.f32 %v2150, %v2152
    %v2157 = vmul.f32 %v2151, %v2152
    %v2158 = vadd.f32 %v2132, %v2154
    %v2159 = vadd.f32 %v2133, %v2155
    %v2160 = vadd.f32 %v2134, %v2156
    %v2161 = vadd.f32 %v2135, %v2157
    %v2162 = vadd.f32 %v2096, %v2158
    %v2163 = vadd.f32 %v2097, %v2159
    %v2164 = vadd.f32 %v2098, %v2160
    %v2165 = vadd.f32 %v2099, %v2161
    %2166 = vrot.lane.b32.xlu0 %v787, 3
    %v2167 = vpop.permute.xlu0 %2166
    %2168 = vrot.lane.b32.xlu0 %v788, 3
    %v2169 = vpop.permute.xlu0 %2168
    %2170 = vrot.lane.b32.xlu0 %v789, 3
    %v2171 = vpop.permute.xlu0 %2170
    %2172 = vrot.lane.b32.xlu0 %v790, 3
    %v2173 = vpop.permute.xlu0 %2172
    %vm2174 = vcmp.lt.s32.totalorder %v244, 3
    %v2175 = vsel %vm2174, %v2171, %v2173
    %v2176 = vsel %vm2174, %v2169, %v2171
    %v2177 = vsel %vm2174, %v2167, %v2169
    %v2178 = vsel %vm2174, %v2173, %v2167
    %s2179 = scalar_lea.vmem [#allocation3], 69
    %v2180 = vld [vmem:[%s2179] ss:$8 sm:$0xf]
    %v2182 = vperm.slane %v2180, 0
    %v2183 = vperm.slane %v2180, 1
    %v2184 = vperm.slane %v2180, 2
    %v2185 = vperm.slane %v2180, 3
    %v2190 = vmul.f32 %v2178, %v2182
    %v2191 = vmul.f32 %v2177, %v2183
    %v2192 = vmul.f32 %v2176, %v2184
    %v2193 = vmul.f32 %v2175, %v2185
    %2194 = vset.pattern.permute.xlu0 21
    %2195 = vperm.xlu0 %2194, %v819
    %v2196 = vpop.permute.xlu0 %2195
    %v2198 = vmul.f32 %v2190, %v2196
    %v2199 = vmul.f32 %v2191, %v2196
    %v2200 = vmul.f32 %v2192, %v2196
    %v2201 = vmul.f32 %v2193, %v2196
    %2202 = vrot.lane.b32.xlu0 %v797, 3
    %v2203 = vpop.permute.xlu0 %2202
    %2204 = vrot.lane.b32.xlu0 %v804, 3
    %v2205 = vpop.permute.xlu0 %2204
    %2206 = vrot.lane.b32.xlu0 %v811, 3
    %v2207 = vpop.permute.xlu0 %2206
    %2208 = vrot.lane.b32.xlu0 %v818, 3
    %v2209 = vpop.permute.xlu0 %2208
    %v2210 = vsel %vm2174, %v2207, %v2209
    %v2211 = vsel %vm2174, %v2205, %v2207
    %v2212 = vsel %vm2174, %v2203, %v2205
    %v2213 = vsel %vm2174, %v2209, %v2203
    %v2214 = vmul.f32 %v2213, %v2182
    %v2215 = vmul.f32 %v2212, %v2183
    %v2216 = vmul.f32 %v2211, %v2184
    %v2217 = vmul.f32 %v2210, %v2185
    %v2218 = vrot.slane %v2196, 1
    %v2220 = vmul.f32 %v2214, %v2218
    %v2221 = vmul.f32 %v2215, %v2218
    %v2222 = vmul.f32 %v2216, %v2218
    %v2223 = vmul.f32 %v2217, %v2218
    %v2224 = vadd.f32 %v2198, %v2220
    %v2225 = vadd.f32 %v2199, %v2221
    %v2226 = vadd.f32 %v2200, %v2222
    %v2227 = vadd.f32 %v2201, %v2223
    %v2228 = vadd.f32 %v2162, %v2224
    %v2229 = vadd.f32 %v2163, %v2225
    %v2230 = vadd.f32 %v2164, %v2226
    %v2231 = vadd.f32 %v2165, %v2227
    %2232 = vrot.lane.b32.xlu0 %v787, 2
    %v2233 = vpop.permute.xlu0 %2232
    %2234 = vrot.lane.b32.xlu0 %v788, 2
    %v2235 = vpop.permute.xlu0 %2234
    %2236 = vrot.lane.b32.xlu0 %v789, 2
    %v2237 = vpop.permute.xlu0 %2236
    %2238 = vrot.lane.b32.xlu0 %v790, 2
    %v2239 = vpop.permute.xlu0 %2238
    %vm2240 = vcmp.lt.s32.totalorder %v244, 2
    %v2241 = vsel %vm2240, %v2237, %v2239
    %v2242 = vsel %vm2240, %v2235, %v2237
    %v2243 = vsel %vm2240, %v2233, %v2235
    %v2244 = vsel %vm2240, %v2239, %v2233
    %s2245 = scalar_lea.vmem [#allocation3], 70
    %v2246 = vld [vmem:[%s2245] ss:$8 sm:$0xf]
    %v2248 = vperm.slane %v2246, 0
    %v2249 = vperm.slane %v2246, 1
    %v2250 = vperm.slane %v2246, 2
    %v2251 = vperm.slane %v2246, 3
    %v2256 = vmul.f32 %v2244, %v2248
    %v2257 = vmul.f32 %v2243, %v2249
    %v2258 = vmul.f32 %v2242, %v2250
    %v2259 = vmul.f32 %v2241, %v2251
    %2260 = vset.pattern.permute.xlu0 22
    %2261 = vperm.xlu0 %2260, %v819
    %v2262 = vpop.permute.xlu0 %2261
    %v2264 = vmul.f32 %v2256, %v2262
    %v2265 = vmul.f32 %v2257, %v2262
    %v2266 = vmul.f32 %v2258, %v2262
    %v2267 = vmul.f32 %v2259, %v2262
    %2268 = vrot.lane.b32.xlu0 %v797, 2
    %v2269 = vpop.permute.xlu0 %2268
    %2270 = vrot.lane.b32.xlu0 %v804, 2
    %v2271 = vpop.permute.xlu0 %2270
    %2272 = vrot.lane.b32.xlu0 %v811, 2
    %v2273 = vpop.permute.xlu0 %2272
    %2274 = vrot.lane.b32.xlu0 %v818, 2
    %v2275 = vpop.permute.xlu0 %2274
    %v2276 = vsel %vm2240, %v2273, %v2275
    %v2277 = vsel %vm2240, %v2271, %v2273
    %v2278 = vsel %vm2240, %v2269, %v2271
    %v2279 = vsel %vm2240, %v2275, %v2269
    %v2280 = vmul.f32 %v2279, %v2248
    %v2281 = vmul.f32 %v2278, %v2249
    %v2282 = vmul.f32 %v2277, %v2250
    %v2283 = vmul.f32 %v2276, %v2251
    %v2284 = vrot.slane %v2262, 1
    %v2286 = vmul.f32 %v2280, %v2284
    %v2287 = vmul.f32 %v2281, %v2284
    %v2288 = vmul.f32 %v2282, %v2284
    %v2289 = vmul.f32 %v2283, %v2284
    %v2290 = vadd.f32 %v2264, %v2286
    %v2291 = vadd.f32 %v2265, %v2287
    %v2292 = vadd.f32 %v2266, %v2288
    %v2293 = vadd.f32 %v2267, %v2289
    %v2294 = vadd.f32 %v2228, %v2290
    %v2295 = vadd.f32 %v2229, %v2291
    %v2296 = vadd.f32 %v2230, %v2292
    %v2297 = vadd.f32 %v2231, %v2293
    %2298 = vrot.lane.b32.xlu0 %v787, 1
    %v2299 = vpop.permute.xlu0 %2298
    %2300 = vrot.lane.b32.xlu0 %v788, 1
    %v2301 = vpop.permute.xlu0 %2300
    %2302 = vrot.lane.b32.xlu0 %v789, 1
    %v2303 = vpop.permute.xlu0 %2302
    %2304 = vrot.lane.b32.xlu0 %v790, 1
    %v2305 = vpop.permute.xlu0 %2304
    %v2306 = vsel %vm329, %v2303, %v2305
    %v2307 = vsel %vm329, %v2301, %v2303
    %v2308 = vsel %vm329, %v2299, %v2301
    %v2309 = vsel %vm329, %v2305, %v2299
    %v2310 = vmul.f32 %v2309, %v337
    %v2311 = vmul.f32 %v2308, %v338
    %v2312 = vmul.f32 %v2307, %v339
    %v2313 = vmul.f32 %v2306, %v340
    %2314 = vset.pattern.permute.xlu0 23
    %2315 = vperm.xlu0 %2314, %v819
    %v2316 = vpop.permute.xlu0 %2315
    %v2318 = vmul.f32 %v2310, %v2316
    %v2319 = vmul.f32 %v2311, %v2316
    %v2320 = vmul.f32 %v2312, %v2316
    %v2321 = vmul.f32 %v2313, %v2316
    %2322 = vrot.lane.b32.xlu0 %v797, 1
    %v2323 = vpop.permute.xlu0 %2322
    %2324 = vrot.lane.b32.xlu0 %v804, 1
    %v2325 = vpop.permute.xlu0 %2324
    %2326 = vrot.lane.b32.xlu0 %v811, 1
    %v2327 = vpop.permute.xlu0 %2326
    %2328 = vrot.lane.b32.xlu0 %v818, 1
    %v2329 = vpop.permute.xlu0 %2328
    %v2330 = vsel %vm329, %v2327, %v2329
    %v2331 = vsel %vm329, %v2325, %v2327
    %v2332 = vsel %vm329, %v2323, %v2325
    %v2333 = vsel %vm329, %v2329, %v2323
    %v2334 = vmul.f32 %v2333, %v337
    %v2335 = vmul.f32 %v2332, %v338
    %v2336 = vmul.f32 %v2331, %v339
    %v2337 = vmul.f32 %v2330, %v340
    %v2338 = vrot.slane %v2316, 1
    %v2340 = vmul.f32 %v2334, %v2338
    %v2341 = vmul.f32 %v2335, %v2338
    %v2342 = vmul.f32 %v2336, %v2338
    %v2343 = vmul.f32 %v2337, %v2338
    %v2344 = vadd.f32 %v2318, %v2340
    %v2345 = vadd.f32 %v2319, %v2341
    %v2346 = vadd.f32 %v2320, %v2342
    %v2347 = vadd.f32 %v2321, %v2343
    %v2348 = vadd.f32 %v2294, %v2344
    %v2349 = vadd.f32 %v2295, %v2345
    %v2350 = vadd.f32 %v2296, %v2346
    %v2351 = vadd.f32 %v2297, %v2347
    %2352 = vset.pattern.permute.xlu0 24
    %2353 = vperm.xlu0 %2352, %v819
    %v2354 = vpop.permute.xlu0 %2353
    %v2356 = vmul.f32 %v787, %v2354
    %v2357 = vmul.f32 %v788, %v2354
    %v2358 = vmul.f32 %v789, %v2354
    %v2359 = vmul.f32 %v790, %v2354
    %v2360 = vmul.f32 %v797, %v2354
    %v2361 = vmul.f32 %v804, %v2354
    %v2362 = vmul.f32 %v811, %v2354
    %v2363 = vmul.f32 %v818, %v2354
    %v2368 = vrot.slane %v2360, 1
    %v2369 = vrot.slane %v2361, 1
    %v2370 = vrot.slane %v2362, 1
    %v2371 = vrot.slane %v2363, 1
    %v2376 = vadd.f32 %v2356, %v2368
    %v2377 = vadd.f32 %v2357, %v2369
    %v2378 = vadd.f32 %v2358, %v2370
    %v2379 = vadd.f32 %v2359, %v2371
    %v2380 = vadd.f32 %v2348, %v2376
    %v2381 = vadd.f32 %v2349, %v2377
    %v2382 = vadd.f32 %v2350, %v2378
    %v2383 = vadd.f32 %v2351, %v2379
    %2384 = vrot.lane.b32.xlu0 %v787, 127
    %v2385 = vpop.permute.xlu0 %2384
    %2386 = vrot.lane.b32.xlu0 %v788, 127
    %v2387 = vpop.permute.xlu0 %2386
    %2388 = vrot.lane.b32.xlu0 %v789, 127
    %v2389 = vpop.permute.xlu0 %2388
    %2390 = vrot.lane.b32.xlu0 %v790, 127
    %v2391 = vpop.permute.xlu0 %2390
    %v2392 = vsel %vm357, %v2389, %v2391
    %v2393 = vsel %vm357, %v2387, %v2389
    %v2394 = vsel %vm357, %v2385, %v2387
    %v2395 = vsel %vm357, %v2391, %v2385
    %v2396 = vmul.f32 %v2394, %v365
    %v2397 = vmul.f32 %v2393, %v366
    %v2398 = vmul.f32 %v2392, %v367
    %v2399 = vmul.f32 %v2395, %v368
    %2400 = vset.pattern.permute.xlu0 25
    %2401 = vperm.xlu0 %2400, %v819
    %v2402 = vpop.permute.xlu0 %2401
    %v2404 = vmul.f32 %v2396, %v2402
    %v2405 = vmul.f32 %v2397, %v2402
    %v2406 = vmul.f32 %v2398, %v2402
    %v2407 = vmul.f32 %v2399, %v2402
    %2408 = vrot.lane.b32.xlu0 %v797, 127
    %v2409 = vpop.permute.xlu0 %2408
    %2410 = vrot.lane.b32.xlu0 %v804, 127
    %v2411 = vpop.permute.xlu0 %2410
    %2412 = vrot.lane.b32.xlu0 %v811, 127
    %v2413 = vpop.permute.xlu0 %2412
    %2414 = vrot.lane.b32.xlu0 %v818, 127
    %v2415 = vpop.permute.xlu0 %2414
    %v2416 = vsel %vm357, %v2413, %v2415
    %v2417 = vsel %vm357, %v2411, %v2413
    %v2418 = vsel %vm357, %v2409, %v2411
    %v2419 = vsel %vm357, %v2415, %v2409
    %v2420 = vmul.f32 %v2418, %v365
    %v2421 = vmul.f32 %v2417, %v366
    %v2422 = vmul.f32 %v2416, %v367
    %v2423 = vmul.f32 %v2419, %v368
    %v2424 = vrot.slane %v2402, 1
    %v2426 = vmul.f32 %v2420, %v2424
    %v2427 = vmul.f32 %v2421, %v2424
    %v2428 = vmul.f32 %v2422, %v2424
    %v2429 = vmul.f32 %v2423, %v2424
    %v2430 = vadd.f32 %v2404, %v2426
    %v2431 = vadd.f32 %v2405, %v2427
    %v2432 = vadd.f32 %v2406, %v2428
    %v2433 = vadd.f32 %v2407, %v2429
    %v2434 = vadd.f32 %v2380, %v2430
    %v2435 = vadd.f32 %v2381, %v2431
    %v2436 = vadd.f32 %v2382, %v2432
    %v2437 = vadd.f32 %v2383, %v2433
    %2438 = vrot.lane.b32.xlu0 %v787, 126
    %v2439 = vpop.permute.xlu0 %2438
    %2440 = vrot.lane.b32.xlu0 %v788, 126
    %v2441 = vpop.permute.xlu0 %2440
    %2442 = vrot.lane.b32.xlu0 %v789, 126
    %v2443 = vpop.permute.xlu0 %2442
    %2444 = vrot.lane.b32.xlu0 %v790, 126
    %v2445 = vpop.permute.xlu0 %2444
    %vm2446 = vcmp.lt.s32.totalorder %v244, 126
    %v2447 = vsel %vm2446, %v2443, %v2445
    %v2448 = vsel %vm2446, %v2441, %v2443
    %v2449 = vsel %vm2446, %v2439, %v2441
    %v2450 = vsel %vm2446, %v2445, %v2439
    %s2451 = scalar_lea.vmem [#allocation3], 98
    %v2452 = vld [vmem:[%s2451] ss:$8 sm:$0xf]
    %v2454 = vperm.slane %v2452, 0
    %v2455 = vperm.slane %v2452, 1
    %v2456 = vperm.slane %v2452, 2
    %v2457 = vperm.slane %v2452, 3
    %v2462 = vmul.f32 %v2449, %v2454
    %v2463 = vmul.f32 %v2448, %v2455
    %v2464 = vmul.f32 %v2447, %v2456
    %v2465 = vmul.f32 %v2450, %v2457
    %2466 = vset.pattern.permute.xlu0 26
    %2467 = vperm.xlu0 %2466, %v819
    %v2468 = vpop.permute.xlu0 %2467
    %v2470 = vmul.f32 %v2462, %v2468
    %v2471 = vmul.f32 %v2463, %v2468
    %v2472 = vmul.f32 %v2464, %v2468
    %v2473 = vmul.f32 %v2465, %v2468
    %2474 = vrot.lane.b32.xlu0 %v797, 126
    %v2475 = vpop.permute.xlu0 %2474
    %2476 = vrot.lane.b32.xlu0 %v804, 126
    %v2477 = vpop.permute.xlu0 %2476
    %2478 = vrot.lane.b32.xlu0 %v811, 126
    %v2479 = vpop.permute.xlu0 %2478
    %2480 = vrot.lane.b32.xlu0 %v818, 126
    %v2481 = vpop.permute.xlu0 %2480
    %v2482 = vsel %vm2446, %v2479, %v2481
    %v2483 = vsel %vm2446, %v2477, %v2479
    %v2484 = vsel %vm2446, %v2475, %v2477
    %v2485 = vsel %vm2446, %v2481, %v2475
    %v2486 = vmul.f32 %v2484, %v2454
    %v2487 = vmul.f32 %v2483, %v2455
    %v2488 = vmul.f32 %v2482, %v2456
    %v2489 = vmul.f32 %v2485, %v2457
    %v2490 = vrot.slane %v2468, 1
    %v2492 = vmul.f32 %v2486, %v2490
    %v2493 = vmul.f32 %v2487, %v2490
    %v2494 = vmul.f32 %v2488, %v2490
    %v2495 = vmul.f32 %v2489, %v2490
    %v2496 = vadd.f32 %v2470, %v2492
    %v2497 = vadd.f32 %v2471, %v2493
    %v2498 = vadd.f32 %v2472, %v2494
    %v2499 = vadd.f32 %v2473, %v2495
    %v2500 = vadd.f32 %v2434, %v2496
    %v2501 = vadd.f32 %v2435, %v2497
    %v2502 = vadd.f32 %v2436, %v2498
    %v2503 = vadd.f32 %v2437, %v2499
    %2504 = vrot.lane.b32.xlu0 %v787, 125
    %v2505 = vpop.permute.xlu0 %2504
    %2506 = vrot.lane.b32.xlu0 %v788, 125
    %v2507 = vpop.permute.xlu0 %2506
    %2508 = vrot.lane.b32.xlu0 %v789, 125
    %v2509 = vpop.permute.xlu0 %2508
    %2510 = vrot.lane.b32.xlu0 %v790, 125
    %v2511 = vpop.permute.xlu0 %2510
    %vm2512 = vcmp.lt.s32.totalorder %v244, 125
    %v2513 = vsel %vm2512, %v2509, %v2511
    %v2514 = vsel %vm2512, %v2507, %v2509
    %v2515 = vsel %vm2512, %v2505, %v2507
    %v2516 = vsel %vm2512, %v2511, %v2505
    %s2517 = scalar_lea.vmem [#allocation3], 99
    %v2518 = vld [vmem:[%s2517] ss:$8 sm:$0xf]
    %v2520 = vperm.slane %v2518, 0
    %v2521 = vperm.slane %v2518, 1
    %v2522 = vperm.slane %v2518, 2
    %v2523 = vperm.slane %v2518, 3
    %v2528 = vmul.f32 %v2515, %v2520
    %v2529 = vmul.f32 %v2514, %v2521
    %v2530 = vmul.f32 %v2513, %v2522
    %v2531 = vmul.f32 %v2516, %v2523
    %2532 = vset.pattern.permute.xlu0 27
    %2533 = vperm.xlu0 %2532, %v819
    %v2534 = vpop.permute.xlu0 %2533
    %v2536 = vmul.f32 %v2528, %v2534
    %v2537 = vmul.f32 %v2529, %v2534
    %v2538 = vmul.f32 %v2530, %v2534
    %v2539 = vmul.f32 %v2531, %v2534
    %2540 = vrot.lane.b32.xlu0 %v797, 125
    %v2541 = vpop.permute.xlu0 %2540
    %2542 = vrot.lane.b32.xlu0 %v804, 125
    %v2543 = vpop.permute.xlu0 %2542
    %2544 = vrot.lane.b32.xlu0 %v811, 125
    %v2545 = vpop.permute.xlu0 %2544
    %2546 = vrot.lane.b32.xlu0 %v818, 125
    %v2547 = vpop.permute.xlu0 %2546
    %v2548 = vsel %vm2512, %v2545, %v2547
    %v2549 = vsel %vm2512, %v2543, %v2545
    %v2550 = vsel %vm2512, %v2541, %v2543
    %v2551 = vsel %vm2512, %v2547, %v2541
    %v2552 = vmul.f32 %v2550, %v2520
    %v2553 = vmul.f32 %v2549, %v2521
    %v2554 = vmul.f32 %v2548, %v2522
    %v2555 = vmul.f32 %v2551, %v2523
    %v2556 = vrot.slane %v2534, 1
    %v2558 = vmul.f32 %v2552, %v2556
    %v2559 = vmul.f32 %v2553, %v2556
    %v2560 = vmul.f32 %v2554, %v2556
    %v2561 = vmul.f32 %v2555, %v2556
    %v2562 = vadd.f32 %v2536, %v2558
    %v2563 = vadd.f32 %v2537, %v2559
    %v2564 = vadd.f32 %v2538, %v2560
    %v2565 = vadd.f32 %v2539, %v2561
    %v2566 = vadd.f32 %v2500, %v2562
    %v2567 = vadd.f32 %v2501, %v2563
    %v2568 = vadd.f32 %v2502, %v2564
    %v2569 = vadd.f32 %v2503, %v2565
    %2570 = vrot.lane.b32.xlu0 %v787, 115
    %v2571 = vpop.permute.xlu0 %2570
    %2572 = vrot.lane.b32.xlu0 %v788, 115
    %v2573 = vpop.permute.xlu0 %2572
    %2574 = vrot.lane.b32.xlu0 %v789, 115
    %v2575 = vpop.permute.xlu0 %2574
    %2576 = vrot.lane.b32.xlu0 %v790, 115
    %v2577 = vpop.permute.xlu0 %2576
    %vm2578 = vcmp.lt.s32.totalorder %v244, 115
    %v2579 = vsel %vm2578, %v2575, %v2577
    %v2580 = vsel %vm2578, %v2573, %v2575
    %v2581 = vsel %vm2578, %v2571, %v2573
    %v2582 = vsel %vm2578, %v2577, %v2571
    %s2583 = scalar_lea.vmem [#allocation3], 100
    %v2584 = vld [vmem:[%s2583] ss:$8 sm:$0xf]
    %v2586 = vperm.slane %v2584, 0
    %v2587 = vperm.slane %v2584, 1
    %v2588 = vperm.slane %v2584, 2
    %v2589 = vperm.slane %v2584, 3
    %v2594 = vmul.f32 %v2581, %v2586
    %v2595 = vmul.f32 %v2580, %v2587
    %v2596 = vmul.f32 %v2579, %v2588
    %v2597 = vmul.f32 %v2582, %v2589
    %2598 = vset.pattern.permute.xlu0 28
    %2599 = vperm.xlu0 %2598, %v819
    %v2600 = vpop.permute.xlu0 %2599
    %v2602 = vmul.f32 %v2594, %v2600
    %v2603 = vmul.f32 %v2595, %v2600
    %v2604 = vmul.f32 %v2596, %v2600
    %v2605 = vmul.f32 %v2597, %v2600
    %2606 = vrot.lane.b32.xlu0 %v797, 115
    %v2607 = vpop.permute.xlu0 %2606
    %2608 = vrot.lane.b32.xlu0 %v804, 115
    %v2609 = vpop.permute.xlu0 %2608
    %2610 = vrot.lane.b32.xlu0 %v811, 115
    %v2611 = vpop.permute.xlu0 %2610
    %2612 = vrot.lane.b32.xlu0 %v818, 115
    %v2613 = vpop.permute.xlu0 %2612
    %v2614 = vsel %vm2578, %v2611, %v2613
    %v2615 = vsel %vm2578, %v2609, %v2611
    %v2616 = vsel %vm2578, %v2607, %v2609
    %v2617 = vsel %vm2578, %v2613, %v2607
    %v2618 = vmul.f32 %v2616, %v2586
    %v2619 = vmul.f32 %v2615, %v2587
    %v2620 = vmul.f32 %v2614, %v2588
    %v2621 = vmul.f32 %v2617, %v2589
    %v2622 = vrot.slane %v2600, 1
    %v2624 = vmul.f32 %v2618, %v2622
    %v2625 = vmul.f32 %v2619, %v2622
    %v2626 = vmul.f32 %v2620, %v2622
    %v2627 = vmul.f32 %v2621, %v2622
    %v2628 = vadd.f32 %v2602, %v2624
    %v2629 = vadd.f32 %v2603, %v2625
    %v2630 = vadd.f32 %v2604, %v2626
    %v2631 = vadd.f32 %v2605, %v2627
    %v2632 = vadd.f32 %v2566, %v2628
    %v2633 = vadd.f32 %v2567, %v2629
    %v2634 = vadd.f32 %v2568, %v2630
    %v2635 = vadd.f32 %v2569, %v2631
    %2636 = vrot.lane.b32.xlu0 %v787, 114
    %v2637 = vpop.permute.xlu0 %2636
    %2638 = vrot.lane.b32.xlu0 %v788, 114
    %v2639 = vpop.permute.xlu0 %2638
    %2640 = vrot.lane.b32.xlu0 %v789, 114
    %v2641 = vpop.permute.xlu0 %2640
    %2642 = vrot.lane.b32.xlu0 %v790, 114
    %v2643 = vpop.permute.xlu0 %2642
    %vm2644 = vcmp.lt.s32.totalorder %v244, 114
    %v2645 = vsel %vm2644, %v2641, %v2643
    %v2646 = vsel %vm2644, %v2639, %v2641
    %v2647 = vsel %vm2644, %v2637, %v2639
    %v2648 = vsel %vm2644, %v2643, %v2637
    %s2649 = scalar_lea.vmem [#allocation3], 101
    %v2650 = vld [vmem:[%s2649] ss:$8 sm:$0xf]
    %v2652 = vperm.slane %v2650, 0
    %v2653 = vperm.slane %v2650, 1
    %v2654 = vperm.slane %v2650, 2
    %v2655 = vperm.slane %v2650, 3
    %v2660 = vmul.f32 %v2647, %v2652
    %v2661 = vmul.f32 %v2646, %v2653
    %v2662 = vmul.f32 %v2645, %v2654
    %v2663 = vmul.f32 %v2648, %v2655
    %2664 = vset.pattern.permute.xlu0 29
    %2665 = vperm.xlu0 %2664, %v819
    %v2666 = vpop.permute.xlu0 %2665
    %v2668 = vmul.f32 %v2660, %v2666
    %v2669 = vmul.f32 %v2661, %v2666
    %v2670 = vmul.f32 %v2662, %v2666
    %v2671 = vmul.f32 %v2663, %v2666
    %2672 = vrot.lane.b32.xlu0 %v797, 114
    %v2673 = vpop.permute.xlu0 %2672
    %2674 = vrot.lane.b32.xlu0 %v804, 114
    %v2675 = vpop.permute.xlu0 %2674
    %2676 = vrot.lane.b32.xlu0 %v811, 114
    %v2677 = vpop.permute.xlu0 %2676
    %2678 = vrot.lane.b32.xlu0 %v818, 114
    %v2679 = vpop.permute.xlu0 %2678
    %v2680 = vsel %vm2644, %v2677, %v2679
    %v2681 = vsel %vm2644, %v2675, %v2677
    %v2682 = vsel %vm2644, %v2673, %v2675
    %v2683 = vsel %vm2644, %v2679, %v2673
    %v2684 = vmul.f32 %v2682, %v2652
    %v2685 = vmul.f32 %v2681, %v2653
    %v2686 = vmul.f32 %v2680, %v2654
    %v2687 = vmul.f32 %v2683, %v2655
    %v2688 = vrot.slane %v2666, 1
    %v2690 = vmul.f32 %v2684, %v2688
    %v2691 = vmul.f32 %v2685, %v2688
    %v2692 = vmul.f32 %v2686, %v2688
    %v2693 = vmul.f32 %v2687, %v2688
    %v2694 = vadd.f32 %v2668, %v2690
    %v2695 = vadd.f32 %v2669, %v2691
    %v2696 = vadd.f32 %v2670, %v2692
    %v2697 = vadd.f32 %v2671, %v2693
    %v2698 = vadd.f32 %v2632, %v2694
    %v2699 = vadd.f32 %v2633, %v2695
    %v2700 = vadd.f32 %v2634, %v2696
    %v2701 = vadd.f32 %v2635, %v2697
    %2702 = vrot.lane.b32.xlu0 %v787, 113
    %v2703 = vpop.permute.xlu0 %2702
    %2704 = vrot.lane.b32.xlu0 %v788, 113
    %v2705 = vpop.permute.xlu0 %2704
    %2706 = vrot.lane.b32.xlu0 %v789, 113
    %v2707 = vpop.permute.xlu0 %2706
    %2708 = vrot.lane.b32.xlu0 %v790, 113
    %v2709 = vpop.permute.xlu0 %2708
    %v2710 = vsel %vm385, %v2707, %v2709
    %v2711 = vsel %vm385, %v2705, %v2707
    %v2712 = vsel %vm385, %v2703, %v2705
    %v2713 = vsel %vm385, %v2709, %v2703
    %v2714 = vmul.f32 %v2712, %v393
    %v2715 = vmul.f32 %v2711, %v394
    %v2716 = vmul.f32 %v2710, %v395
    %v2717 = vmul.f32 %v2713, %v396
    %2718 = vset.pattern.permute.xlu0 30
    %2719 = vperm.xlu0 %2718, %v819
    %v2720 = vpop.permute.xlu0 %2719
    %v2722 = vmul.f32 %v2714, %v2720
    %v2723 = vmul.f32 %v2715, %v2720
    %v2724 = vmul.f32 %v2716, %v2720
    %v2725 = vmul.f32 %v2717, %v2720
    %2726 = vrot.lane.b32.xlu0 %v797, 113
    %v2727 = vpop.permute.xlu0 %2726
    %2728 = vrot.lane.b32.xlu0 %v804, 113
    %v2729 = vpop.permute.xlu0 %2728
    %2730 = vrot.lane.b32.xlu0 %v811, 113
    %v2731 = vpop.permute.xlu0 %2730
    %2732 = vrot.lane.b32.xlu0 %v818, 113
    %v2733 = vpop.permute.xlu0 %2732
    %v2734 = vsel %vm385, %v2731, %v2733
    %v2735 = vsel %vm385, %v2729, %v2731
    %v2736 = vsel %vm385, %v2727, %v2729
    %v2737 = vsel %vm385, %v2733, %v2727
    %v2738 = vmul.f32 %v2736, %v393
    %v2739 = vmul.f32 %v2735, %v394
    %v2740 = vmul.f32 %v2734, %v395
    %v2741 = vmul.f32 %v2737, %v396
    %v2742 = vrot.slane %v2720, 1
    %v2744 = vmul.f32 %v2738, %v2742
    %v2745 = vmul.f32 %v2739, %v2742
    %v2746 = vmul.f32 %v2740, %v2742
    %v2747 = vmul.f32 %v2741, %v2742
    %v2748 = vadd.f32 %v2722, %v2744
    %v2749 = vadd.f32 %v2723, %v2745
    %v2750 = vadd.f32 %v2724, %v2746
    %v2751 = vadd.f32 %v2725, %v2747
    %v2752 = vadd.f32 %v2698, %v2748
    %v2753 = vadd.f32 %v2699, %v2749
    %v2754 = vadd.f32 %v2700, %v2750
    %v2755 = vadd.f32 %v2701, %v2751
    %2756 = vrot.lane.b32.xlu0 %v787, 112
    %v2757 = vpop.permute.xlu0 %2756
    %2758 = vrot.lane.b32.xlu0 %v788, 112
    %v2759 = vpop.permute.xlu0 %2758
    %2760 = vrot.lane.b32.xlu0 %v789, 112
    %v2761 = vpop.permute.xlu0 %2760
    %2762 = vrot.lane.b32.xlu0 %v790, 112
    %v2763 = vpop.permute.xlu0 %2762
    %v2764 = vsel %vm413, %v2761, %v2763
    %v2765 = vsel %vm413, %v2759, %v2761
    %v2766 = vsel %vm413, %v2757, %v2759
    %v2767 = vsel %vm413, %v2763, %v2757
    %v2768 = vmul.f32 %v2766, %v421
    %v2769 = vmul.f32 %v2765, %v422
    %v2770 = vmul.f32 %v2764, %v423
    %v2771 = vmul.f32 %v2767, %v424
    %2772 = vset.pattern.permute.xlu0 31
    %2773 = vperm.xlu0 %2772, %v819
    %v2774 = vpop.permute.xlu0 %2773
    %v2776 = vmul.f32 %v2768, %v2774
    %v2777 = vmul.f32 %v2769, %v2774
    %v2778 = vmul.f32 %v2770, %v2774
    %v2779 = vmul.f32 %v2771, %v2774
    %2780 = vrot.lane.b32.xlu0 %v797, 112
    %v2781 = vpop.permute.xlu0 %2780
    %2782 = vrot.lane.b32.xlu0 %v804, 112
    %v2783 = vpop.permute.xlu0 %2782
    %2784 = vrot.lane.b32.xlu0 %v811, 112
    %v2785 = vpop.permute.xlu0 %2784
    %2786 = vrot.lane.b32.xlu0 %v818, 112
    %v2787 = vpop.permute.xlu0 %2786
    %v2788 = vsel %vm413, %v2785, %v2787
    %v2789 = vsel %vm413, %v2783, %v2785
    %v2790 = vsel %vm413, %v2781, %v2783
    %v2791 = vsel %vm413, %v2787, %v2781
    %v2792 = vmul.f32 %v2790, %v421
    %v2793 = vmul.f32 %v2789, %v422
    %v2794 = vmul.f32 %v2788, %v423
    %v2795 = vmul.f32 %v2791, %v424
    %v2796 = vrot.slane %v2774, 1
    %v2798 = vmul.f32 %v2792, %v2796
    %v2799 = vmul.f32 %v2793, %v2796
    %v2800 = vmul.f32 %v2794, %v2796
    %v2801 = vmul.f32 %v2795, %v2796
    %v2802 = vadd.f32 %v2776, %v2798
    %v2803 = vadd.f32 %v2777, %v2799
    %v2804 = vadd.f32 %v2778, %v2800
    %v2805 = vadd.f32 %v2779, %v2801
    %v2806 = vadd.f32 %v2752, %v2802
    %v2807 = vadd.f32 %v2753, %v2803
    %v2808 = vadd.f32 %v2754, %v2804
    %v2809 = vadd.f32 %v2755, %v2805
    %2810 = vrot.lane.b32.xlu0 %v787, 111
    %v2811 = vpop.permute.xlu0 %2810
    %2812 = vrot.lane.b32.xlu0 %v788, 111
    %v2813 = vpop.permute.xlu0 %2812
    %2814 = vrot.lane.b32.xlu0 %v789, 111
    %v2815 = vpop.permute.xlu0 %2814
    %2816 = vrot.lane.b32.xlu0 %v790, 111
    %v2817 = vpop.permute.xlu0 %2816
    %v2818 = vsel %vm441, %v2815, %v2817
    %v2819 = vsel %vm441, %v2813, %v2815
    %v2820 = vsel %vm441, %v2811, %v2813
    %v2821 = vsel %vm441, %v2817, %v2811
    %v2822 = vmul.f32 %v2820, %v449
    %v2823 = vmul.f32 %v2819, %v450
    %v2824 = vmul.f32 %v2818, %v451
    %v2825 = vmul.f32 %v2821, %v452
    %2826 = vset.pattern.permute.xlu0 32
    %2827 = vperm.xlu0 %2826, %v819
    %v2828 = vpop.permute.xlu0 %2827
    %v2830 = vmul.f32 %v2822, %v2828
    %v2831 = vmul.f32 %v2823, %v2828
    %v2832 = vmul.f32 %v2824, %v2828
    %v2833 = vmul.f32 %v2825, %v2828
    %2834 = vrot.lane.b32.xlu0 %v797, 111
    %v2835 = vpop.permute.xlu0 %2834
    %2836 = vrot.lane.b32.xlu0 %v804, 111
    %v2837 = vpop.permute.xlu0 %2836
    %2838 = vrot.lane.b32.xlu0 %v811, 111
    %v2839 = vpop.permute.xlu0 %2838
    %2840 = vrot.lane.b32.xlu0 %v818, 111
    %v2841 = vpop.permute.xlu0 %2840
    %v2842 = vsel %vm441, %v2839, %v2841
    %v2843 = vsel %vm441, %v2837, %v2839
    %v2844 = vsel %vm441, %v2835, %v2837
    %v2845 = vsel %vm441, %v2841, %v2835
    %v2846 = vmul.f32 %v2844, %v449
    %v2847 = vmul.f32 %v2843, %v450
    %v2848 = vmul.f32 %v2842, %v451
    %v2849 = vmul.f32 %v2845, %v452
    %v2850 = vrot.slane %v2828, 1
    %v2852 = vmul.f32 %v2846, %v2850
    %v2853 = vmul.f32 %v2847, %v2850
    %v2854 = vmul.f32 %v2848, %v2850
    %v2855 = vmul.f32 %v2849, %v2850
    %v2856 = vadd.f32 %v2830, %v2852
    %v2857 = vadd.f32 %v2831, %v2853
    %v2858 = vadd.f32 %v2832, %v2854
    %v2859 = vadd.f32 %v2833, %v2855
    %v2860 = vadd.f32 %v2806, %v2856
    %v2861 = vadd.f32 %v2807, %v2857
    %v2862 = vadd.f32 %v2808, %v2858
    %v2863 = vadd.f32 %v2809, %v2859
    %2864 = vrot.lane.b32.xlu0 %v787, 110
    %v2865 = vpop.permute.xlu0 %2864
    %2866 = vrot.lane.b32.xlu0 %v788, 110
    %v2867 = vpop.permute.xlu0 %2866
    %2868 = vrot.lane.b32.xlu0 %v789, 110
    %v2869 = vpop.permute.xlu0 %2868
    %2870 = vrot.lane.b32.xlu0 %v790, 110
    %v2871 = vpop.permute.xlu0 %2870
    %vm2872 = vcmp.lt.s32.totalorder %v244, 110
    %v2873 = vsel %vm2872, %v2869, %v2871
    %v2874 = vsel %vm2872, %v2867, %v2869
    %v2875 = vsel %vm2872, %v2865, %v2867
    %v2876 = vsel %vm2872, %v2871, %v2865
    %s2877 = scalar_lea.vmem [#allocation3], 129
    %v2878 = vld [vmem:[%s2877] ss:$8 sm:$0xf]
    %v2880 = vperm.slane %v2878, 0
    %v2881 = vperm.slane %v2878, 1
    %v2882 = vperm.slane %v2878, 2
    %v2883 = vperm.slane %v2878, 3
    %v2888 = vmul.f32 %v2875, %v2880
    %v2889 = vmul.f32 %v2874, %v2881
    %v2890 = vmul.f32 %v2873, %v2882
    %v2891 = vmul.f32 %v2876, %v2883
    %2892 = vset.pattern.permute.xlu0 33
    %2893 = vperm.xlu0 %2892, %v819
    %v2894 = vpop.permute.xlu0 %2893
    %v2896 = vmul.f32 %v2888, %v2894
    %v2897 = vmul.f32 %v2889, %v2894
    %v2898 = vmul.f32 %v2890, %v2894
    %v2899 = vmul.f32 %v2891, %v2894
    %2900 = vrot.lane.b32.xlu0 %v797, 110
    %v2901 = vpop.permute.xlu0 %2900
    %2902 = vrot.lane.b32.xlu0 %v804, 110
    %v2903 = vpop.permute.xlu0 %2902
    %2904 = vrot.lane.b32.xlu0 %v811, 110
    %v2905 = vpop.permute.xlu0 %2904
    %2906 = vrot.lane.b32.xlu0 %v818, 110
    %v2907 = vpop.permute.xlu0 %2906
    %v2908 = vsel %vm2872, %v2905, %v2907
    %v2909 = vsel %vm2872, %v2903, %v2905
    %v2910 = vsel %vm2872, %v2901, %v2903
    %v2911 = vsel %vm2872, %v2907, %v2901
    %v2912 = vmul.f32 %v2910, %v2880
    %v2913 = vmul.f32 %v2909, %v2881
    %v2914 = vmul.f32 %v2908, %v2882
    %v2915 = vmul.f32 %v2911, %v2883
    %v2916 = vrot.slane %v2894, 1
    %v2918 = vmul.f32 %v2912, %v2916
    %v2919 = vmul.f32 %v2913, %v2916
    %v2920 = vmul.f32 %v2914, %v2916
    %v2921 = vmul.f32 %v2915, %v2916
    %v2922 = vadd.f32 %v2896, %v2918
    %v2923 = vadd.f32 %v2897, %v2919
    %v2924 = vadd.f32 %v2898, %v2920
    %v2925 = vadd.f32 %v2899, %v2921
    %v2926 = vadd.f32 %v2860, %v2922
    %v2927 = vadd.f32 %v2861, %v2923
    %v2928 = vadd.f32 %v2862, %v2924
    %v2929 = vadd.f32 %v2863, %v2925
    %2930 = vrot.lane.b32.xlu0 %v787, 109
    %v2931 = vpop.permute.xlu0 %2930
    %2932 = vrot.lane.b32.xlu0 %v788, 109
    %v2933 = vpop.permute.xlu0 %2932
    %2934 = vrot.lane.b32.xlu0 %v789, 109
    %v2935 = vpop.permute.xlu0 %2934
    %2936 = vrot.lane.b32.xlu0 %v790, 109
    %v2937 = vpop.permute.xlu0 %2936
    %vm2938 = vcmp.lt.s32.totalorder %v244, 109
    %v2939 = vsel %vm2938, %v2935, %v2937
    %v2940 = vsel %vm2938, %v2933, %v2935
    %v2941 = vsel %vm2938, %v2931, %v2933
    %v2942 = vsel %vm2938, %v2937, %v2931
    %s2943 = scalar_lea.vmem [#allocation3], 130
    %v2944 = vld [vmem:[%s2943] ss:$8 sm:$0xf]
    %v2946 = vperm.slane %v2944, 0
    %v2947 = vperm.slane %v2944, 1
    %v2948 = vperm.slane %v2944, 2
    %v2949 = vperm.slane %v2944, 3
    %v2954 = vmul.f32 %v2941, %v2946
    %v2955 = vmul.f32 %v2940, %v2947
    %v2956 = vmul.f32 %v2939, %v2948
    %v2957 = vmul.f32 %v2942, %v2949
    %2958 = vset.pattern.permute.xlu0 34
    %2959 = vperm.xlu0 %2958, %v819
    %v2960 = vpop.permute.xlu0 %2959
    %v2962 = vmul.f32 %v2954, %v2960
    %v2963 = vmul.f32 %v2955, %v2960
    %v2964 = vmul.f32 %v2956, %v2960
    %v2965 = vmul.f32 %v2957, %v2960
    %2966 = vrot.lane.b32.xlu0 %v797, 109
    %v2967 = vpop.permute.xlu0 %2966
    %2968 = vrot.lane.b32.xlu0 %v804, 109
    %v2969 = vpop.permute.xlu0 %2968
    %2970 = vrot.lane.b32.xlu0 %v811, 109
    %v2971 = vpop.permute.xlu0 %2970
    %2972 = vrot.lane.b32.xlu0 %v818, 109
    %v2973 = vpop.permute.xlu0 %2972
    %v2974 = vsel %vm2938, %v2971, %v2973
    %v2975 = vsel %vm2938, %v2969, %v2971
    %v2976 = vsel %vm2938, %v2967, %v2969
    %v2977 = vsel %vm2938, %v2973, %v2967
    %v2978 = vmul.f32 %v2976, %v2946
    %v2979 = vmul.f32 %v2975, %v2947
    %v2980 = vmul.f32 %v2974, %v2948
    %v2981 = vmul.f32 %v2977, %v2949
    %v2982 = vrot.slane %v2960, 1
    %v2984 = vmul.f32 %v2978, %v2982
    %v2985 = vmul.f32 %v2979, %v2982
    %v2986 = vmul.f32 %v2980, %v2982
    %v2987 = vmul.f32 %v2981, %v2982
    %v2988 = vadd.f32 %v2962, %v2984
    %v2989 = vadd.f32 %v2963, %v2985
    %v2990 = vadd.f32 %v2964, %v2986
    %v2991 = vadd.f32 %v2965, %v2987
    %v2992 = vadd.f32 %v2926, %v2988
    %v2993 = vadd.f32 %v2927, %v2989
    %v2994 = vadd.f32 %v2928, %v2990
    %v2995 = vadd.f32 %v2929, %v2991
    %2996 = vrot.lane.b32.xlu0 %v787, 99
    %v2997 = vpop.permute.xlu0 %2996
    %2998 = vrot.lane.b32.xlu0 %v788, 99
    %v2999 = vpop.permute.xlu0 %2998
    %3000 = vrot.lane.b32.xlu0 %v789, 99
    %v3001 = vpop.permute.xlu0 %3000
    %3002 = vrot.lane.b32.xlu0 %v790, 99
    %v3003 = vpop.permute.xlu0 %3002
    %vm3004 = vcmp.lt.s32.totalorder %v244, 99
    %v3005 = vsel %vm3004, %v3001, %v3003
    %v3006 = vsel %vm3004, %v2999, %v3001
    %v3007 = vsel %vm3004, %v2997, %v2999
    %v3008 = vsel %vm3004, %v3003, %v2997
    %s3009 = scalar_lea.vmem [#allocation3], 131
    %v3010 = vld [vmem:[%s3009] ss:$8 sm:$0xf]
    %v3012 = vperm.slane %v3010, 0
    %v3013 = vperm.slane %v3010, 1
    %v3014 = vperm.slane %v3010, 2
    %v3015 = vperm.slane %v3010, 3
    %v3020 = vmul.f32 %v3007, %v3012
    %v3021 = vmul.f32 %v3006, %v3013
    %v3022 = vmul.f32 %v3005, %v3014
    %v3023 = vmul.f32 %v3008, %v3015
    %3024 = vset.pattern.permute.xlu0 35
    %3025 = vperm.xlu0 %3024, %v819
    %v3026 = vpop.permute.xlu0 %3025
    %v3028 = vmul.f32 %v3020, %v3026
    %v3029 = vmul.f32 %v3021, %v3026
    %v3030 = vmul.f32 %v3022, %v3026
    %v3031 = vmul.f32 %v3023, %v3026
    %3032 = vrot.lane.b32.xlu0 %v797, 99
    %v3033 = vpop.permute.xlu0 %3032
    %3034 = vrot.lane.b32.xlu0 %v804, 99
    %v3035 = vpop.permute.xlu0 %3034
    %3036 = vrot.lane.b32.xlu0 %v811, 99
    %v3037 = vpop.permute.xlu0 %3036
    %3038 = vrot.lane.b32.xlu0 %v818, 99
    %v3039 = vpop.permute.xlu0 %3038
    %v3040 = vsel %vm3004, %v3037, %v3039
    %v3041 = vsel %vm3004, %v3035, %v3037
    %v3042 = vsel %vm3004, %v3033, %v3035
    %v3043 = vsel %vm3004, %v3039, %v3033
    %v3044 = vmul.f32 %v3042, %v3012
    %v3045 = vmul.f32 %v3041, %v3013
    %v3046 = vmul.f32 %v3040, %v3014
    %v3047 = vmul.f32 %v3043, %v3015
    %v3048 = vrot.slane %v3026, 1
    %v3050 = vmul.f32 %v3044, %v3048
    %v3051 = vmul.f32 %v3045, %v3048
    %v3052 = vmul.f32 %v3046, %v3048
    %v3053 = vmul.f32 %v3047, %v3048
    %v3054 = vadd.f32 %v3028, %v3050
    %v3055 = vadd.f32 %v3029, %v3051
    %v3056 = vadd.f32 %v3030, %v3052
    %v3057 = vadd.f32 %v3031, %v3053
    %v3058 = vadd.f32 %v2992, %v3054
    %v3059 = vadd.f32 %v2993, %v3055
    %v3060 = vadd.f32 %v2994, %v3056
    %v3061 = vadd.f32 %v2995, %v3057
    %3062 = vrot.lane.b32.xlu0 %v787, 98
    %v3063 = vpop.permute.xlu0 %3062
    %3064 = vrot.lane.b32.xlu0 %v788, 98
    %v3065 = vpop.permute.xlu0 %3064
    %3066 = vrot.lane.b32.xlu0 %v789, 98
    %v3067 = vpop.permute.xlu0 %3066
    %3068 = vrot.lane.b32.xlu0 %v790, 98
    %v3069 = vpop.permute.xlu0 %3068
    %vm3070 = vcmp.lt.s32.totalorder %v244, 98
    %v3071 = vsel %vm3070, %v3067, %v3069
    %v3072 = vsel %vm3070, %v3065, %v3067
    %v3073 = vsel %vm3070, %v3063, %v3065
    %v3074 = vsel %vm3070, %v3069, %v3063
    %s3075 = scalar_lea.vmem [#allocation3], 132
    %v3076 = vld [vmem:[%s3075] ss:$8 sm:$0xf]
    %v3078 = vperm.slane %v3076, 0
    %v3079 = vperm.slane %v3076, 1
    %v3080 = vperm.slane %v3076, 2
    %v3081 = vperm.slane %v3076, 3
    %v3086 = vmul.f32 %v3073, %v3078
    %v3087 = vmul.f32 %v3072, %v3079
    %v3088 = vmul.f32 %v3071, %v3080
    %v3089 = vmul.f32 %v3074, %v3081
    %3090 = vset.pattern.permute.xlu0 36
    %3091 = vperm.xlu0 %3090, %v819
    %v3092 = vpop.permute.xlu0 %3091
    %v3094 = vmul.f32 %v3086, %v3092
    %v3095 = vmul.f32 %v3087, %v3092
    %v3096 = vmul.f32 %v3088, %v3092
    %v3097 = vmul.f32 %v3089, %v3092
    %3098 = vrot.lane.b32.xlu0 %v797, 98
    %v3099 = vpop.permute.xlu0 %3098
    %3100 = vrot.lane.b32.xlu0 %v804, 98
    %v3101 = vpop.permute.xlu0 %3100
    %3102 = vrot.lane.b32.xlu0 %v811, 98
    %v3103 = vpop.permute.xlu0 %3102
    %3104 = vrot.lane.b32.xlu0 %v818, 98
    %v3105 = vpop.permute.xlu0 %3104
    %v3106 = vsel %vm3070, %v3103, %v3105
    %v3107 = vsel %vm3070, %v3101, %v3103
    %v3108 = vsel %vm3070, %v3099, %v3101
    %v3109 = vsel %vm3070, %v3105, %v3099
    %v3110 = vmul.f32 %v3108, %v3078
    %v3111 = vmul.f32 %v3107, %v3079
    %v3112 = vmul.f32 %v3106, %v3080
    %v3113 = vmul.f32 %v3109, %v3081
    %v3114 = vrot.slane %v3092, 1
    %v3116 = vmul.f32 %v3110, %v3114
    %v3117 = vmul.f32 %v3111, %v3114
    %v3118 = vmul.f32 %v3112, %v3114
    %v3119 = vmul.f32 %v3113, %v3114
    %v3120 = vadd.f32 %v3094, %v3116
    %v3121 = vadd.f32 %v3095, %v3117
    %v3122 = vadd.f32 %v3096, %v3118
    %v3123 = vadd.f32 %v3097, %v3119
    %v3124 = vadd.f32 %v3058, %v3120
    %v3125 = vadd.f32 %v3059, %v3121
    %v3126 = vadd.f32 %v3060, %v3122
    %v3127 = vadd.f32 %v3061, %v3123
    %3128 = vrot.lane.b32.xlu0 %v787, 97
    %v3129 = vpop.permute.xlu0 %3128
    %3130 = vrot.lane.b32.xlu0 %v788, 97
    %v3131 = vpop.permute.xlu0 %3130
    %3132 = vrot.lane.b32.xlu0 %v789, 97
    %v3133 = vpop.permute.xlu0 %3132
    %3134 = vrot.lane.b32.xlu0 %v790, 97
    %v3135 = vpop.permute.xlu0 %3134
    %vm3136 = vcmp.lt.s32.totalorder %v244, 97
    %v3137 = vsel %vm3136, %v3133, %v3135
    %v3138 = vsel %vm3136, %v3131, %v3133
    %v3139 = vsel %vm3136, %v3129, %v3131
    %v3140 = vsel %vm3136, %v3135, %v3129
    %s3141 = scalar_lea.vmem [#allocation3], 133
    %v3142 = vld [vmem:[%s3141] ss:$8 sm:$0xf]
    %v3144 = vperm.slane %v3142, 0
    %v3145 = vperm.slane %v3142, 1
    %v3146 = vperm.slane %v3142, 2
    %v3147 = vperm.slane %v3142, 3
    %v3152 = vmul.f32 %v3139, %v3144
    %v3153 = vmul.f32 %v3138, %v3145
    %v3154 = vmul.f32 %v3137, %v3146
    %v3155 = vmul.f32 %v3140, %v3147
    %3156 = vset.pattern.permute.xlu0 37
    %3157 = vperm.xlu0 %3156, %v819
    %v3158 = vpop.permute.xlu0 %3157
    %v3160 = vmul.f32 %v3152, %v3158
    %v3161 = vmul.f32 %v3153, %v3158
    %v3162 = vmul.f32 %v3154, %v3158
    %v3163 = vmul.f32 %v3155, %v3158
    %3164 = vrot.lane.b32.xlu0 %v797, 97
    %v3165 = vpop.permute.xlu0 %3164
    %3166 = vrot.lane.b32.xlu0 %v804, 97
    %v3167 = vpop.permute.xlu0 %3166
    %3168 = vrot.lane.b32.xlu0 %v811, 97
    %v3169 = vpop.permute.xlu0 %3168
    %3170 = vrot.lane.b32.xlu0 %v818, 97
    %v3171 = vpop.permute.xlu0 %3170
    %v3172 = vsel %vm3136, %v3169, %v3171
    %v3173 = vsel %vm3136, %v3167, %v3169
    %v3174 = vsel %vm3136, %v3165, %v3167
    %v3175 = vsel %vm3136, %v3171, %v3165
    %v3176 = vmul.f32 %v3174, %v3144
    %v3177 = vmul.f32 %v3173, %v3145
    %v3178 = vmul.f32 %v3172, %v3146
    %v3179 = vmul.f32 %v3175, %v3147
    %v3180 = vrot.slane %v3158, 1
    %v3182 = vmul.f32 %v3176, %v3180
    %v3183 = vmul.f32 %v3177, %v3180
    %v3184 = vmul.f32 %v3178, %v3180
    %v3185 = vmul.f32 %v3179, %v3180
    %v3186 = vadd.f32 %v3160, %v3182
    %v3187 = vadd.f32 %v3161, %v3183
    %v3188 = vadd.f32 %v3162, %v3184
    %v3189 = vadd.f32 %v3163, %v3185
    %v3190 = vadd.f32 %v3124, %v3186
    %v3191 = vadd.f32 %v3125, %v3187
    %v3192 = vadd.f32 %v3126, %v3188
    %v3193 = vadd.f32 %v3127, %v3189
    %3194 = vrot.lane.b32.xlu0 %v787, 96
    %v3195 = vpop.permute.xlu0 %3194
    %3196 = vrot.lane.b32.xlu0 %v788, 96
    %v3197 = vpop.permute.xlu0 %3196
    %3198 = vrot.lane.b32.xlu0 %v789, 96
    %v3199 = vpop.permute.xlu0 %3198
    %3200 = vrot.lane.b32.xlu0 %v790, 96
    %v3201 = vpop.permute.xlu0 %3200
    %vm3202 = vcmp.lt.s32.totalorder %v244, 96
    %v3203 = vsel %vm3202, %v3199, %v3201
    %v3204 = vsel %vm3202, %v3197, %v3199
    %v3205 = vsel %vm3202, %v3195, %v3197
    %v3206 = vsel %vm3202, %v3201, %v3195
    %s3207 = scalar_lea.vmem [#allocation3], 134
    %v3208 = vld [vmem:[%s3207] ss:$8 sm:$0xf]
    %v3210 = vperm.slane %v3208, 0
    %v3211 = vperm.slane %v3208, 1
    %v3212 = vperm.slane %v3208, 2
    %v3213 = vperm.slane %v3208, 3
    %v3218 = vmul.f32 %v3205, %v3210
    %v3219 = vmul.f32 %v3204, %v3211
    %v3220 = vmul.f32 %v3203, %v3212
    %v3221 = vmul.f32 %v3206, %v3213
    %3222 = vset.pattern.permute.xlu0 38
    %3223 = vperm.xlu0 %3222, %v819
    %v3224 = vpop.permute.xlu0 %3223
    %v3226 = vmul.f32 %v3218, %v3224
    %v3227 = vmul.f32 %v3219, %v3224
    %v3228 = vmul.f32 %v3220, %v3224
    %v3229 = vmul.f32 %v3221, %v3224
    %3230 = vrot.lane.b32.xlu0 %v797, 96
    %v3231 = vpop.permute.xlu0 %3230
    %3232 = vrot.lane.b32.xlu0 %v804, 96
    %v3233 = vpop.permute.xlu0 %3232
    %3234 = vrot.lane.b32.xlu0 %v811, 96
    %v3235 = vpop.permute.xlu0 %3234
    %3236 = vrot.lane.b32.xlu0 %v818, 96
    %v3237 = vpop.permute.xlu0 %3236
    %v3238 = vsel %vm3202, %v3235, %v3237
    %v3239 = vsel %vm3202, %v3233, %v3235
    %v3240 = vsel %vm3202, %v3231, %v3233
    %v3241 = vsel %vm3202, %v3237, %v3231
    %v3242 = vmul.f32 %v3240, %v3210
    %v3243 = vmul.f32 %v3239, %v3211
    %v3244 = vmul.f32 %v3238, %v3212
    %v3245 = vmul.f32 %v3241, %v3213
    %v3246 = vrot.slane %v3224, 1
    %v3248 = vmul.f32 %v3242, %v3246
    %v3249 = vmul.f32 %v3243, %v3246
    %v3250 = vmul.f32 %v3244, %v3246
    %v3251 = vmul.f32 %v3245, %v3246
    %v3252 = vadd.f32 %v3226, %v3248
    %v3253 = vadd.f32 %v3227, %v3249
    %v3254 = vadd.f32 %v3228, %v3250
    %v3255 = vadd.f32 %v3229, %v3251
    %v3256 = vadd.f32 %v3190, %v3252
    %v3257 = vadd.f32 %v3191, %v3253
    %v3258 = vadd.f32 %v3192, %v3254
    %v3259 = vadd.f32 %v3193, %v3255
    %3260 = vrot.lane.b32.xlu0 %v787, 95
    %v3261 = vpop.permute.xlu0 %3260
    %3262 = vrot.lane.b32.xlu0 %v788, 95
    %v3263 = vpop.permute.xlu0 %3262
    %3264 = vrot.lane.b32.xlu0 %v789, 95
    %v3265 = vpop.permute.xlu0 %3264
    %3266 = vrot.lane.b32.xlu0 %v790, 95
    %v3267 = vpop.permute.xlu0 %3266
    %vm3268 = vcmp.lt.s32.totalorder %v244, 95
    %v3269 = vsel %vm3268, %v3265, %v3267
    %v3270 = vsel %vm3268, %v3263, %v3265
    %v3271 = vsel %vm3268, %v3261, %v3263
    %v3272 = vsel %vm3268, %v3267, %v3261
    %s3273 = scalar_lea.vmem [#allocation3], 135
    %v3274 = vld [vmem:[%s3273] ss:$8 sm:$0xf]
    %v3276 = vperm.slane %v3274, 0
    %v3277 = vperm.slane %v3274, 1
    %v3278 = vperm.slane %v3274, 2
    %v3279 = vperm.slane %v3274, 3
    %v3284 = vmul.f32 %v3271, %v3276
    %v3285 = vmul.f32 %v3270, %v3277
    %v3286 = vmul.f32 %v3269, %v3278
    %v3287 = vmul.f32 %v3272, %v3279
    %3288 = vset.pattern.permute.xlu0 39
    %3289 = vperm.xlu0 %3288, %v819
    %v3290 = vpop.permute.xlu0 %3289
    %v3292 = vmul.f32 %v3284, %v3290
    %v3293 = vmul.f32 %v3285, %v3290
    %v3294 = vmul.f32 %v3286, %v3290
    %v3295 = vmul.f32 %v3287, %v3290
    %3296 = vrot.lane.b32.xlu0 %v797, 95
    %v3297 = vpop.permute.xlu0 %3296
    %3298 = vrot.lane.b32.xlu0 %v804, 95
    %v3299 = vpop.permute.xlu0 %3298
    %3300 = vrot.lane.b32.xlu0 %v811, 95
    %v3301 = vpop.permute.xlu0 %3300
    %3302 = vrot.lane.b32.xlu0 %v818, 95
    %v3303 = vpop.permute.xlu0 %3302
    %v3304 = vsel %vm3268, %v3301, %v3303
    %v3305 = vsel %vm3268, %v3299, %v3301
    %v3306 = vsel %vm3268, %v3297, %v3299
    %v3307 = vsel %vm3268, %v3303, %v3297
    %v3308 = vmul.f32 %v3306, %v3276
    %v3309 = vmul.f32 %v3305, %v3277
    %v3310 = vmul.f32 %v3304, %v3278
    %v3311 = vmul.f32 %v3307, %v3279
    %v3312 = vrot.slane %v3290, 1
    %v3314 = vmul.f32 %v3308, %v3312
    %v3315 = vmul.f32 %v3309, %v3312
    %v3316 = vmul.f32 %v3310, %v3312
    %v3317 = vmul.f32 %v3311, %v3312
    %v3318 = vadd.f32 %v3292, %v3314
    %v3319 = vadd.f32 %v3293, %v3315
    %v3320 = vadd.f32 %v3294, %v3316
    %v3321 = vadd.f32 %v3295, %v3317
    %v3322 = vadd.f32 %v3256, %v3318
    %v3323 = vadd.f32 %v3257, %v3319
    %v3324 = vadd.f32 %v3258, %v3320
    %v3325 = vadd.f32 %v3259, %v3321
    %3326 = vrot.lane.b32.xlu0 %v787, 94
    %v3327 = vpop.permute.xlu0 %3326
    %3328 = vrot.lane.b32.xlu0 %v788, 94
    %v3329 = vpop.permute.xlu0 %3328
    %3330 = vrot.lane.b32.xlu0 %v789, 94
    %v3331 = vpop.permute.xlu0 %3330
    %3332 = vrot.lane.b32.xlu0 %v790, 94
    %v3333 = vpop.permute.xlu0 %3332
    %vm3334 = vcmp.lt.s32.totalorder %v244, 94
    %v3335 = vsel %vm3334, %v3331, %v3333
    %v3336 = vsel %vm3334, %v3329, %v3331
    %v3337 = vsel %vm3334, %v3327, %v3329
    %v3338 = vsel %vm3334, %v3333, %v3327
    %s3339 = scalar_lea.vmem [#allocation3], 160
    %v3340 = vld [vmem:[%s3339] ss:$8 sm:$0xf]
    %v3342 = vperm.slane %v3340, 0
    %v3343 = vperm.slane %v3340, 1
    %v3344 = vperm.slane %v3340, 2
    %v3345 = vperm.slane %v3340, 3
    %v3350 = vmul.f32 %v3337, %v3342
    %v3351 = vmul.f32 %v3336, %v3343
    %v3352 = vmul.f32 %v3335, %v3344
    %v3353 = vmul.f32 %v3338, %v3345
    %3354 = vset.pattern.permute.xlu0 40
    %3355 = vperm.xlu0 %3354, %v819
    %v3356 = vpop.permute.xlu0 %3355
    %v3358 = vmul.f32 %v3350, %v3356
    %v3359 = vmul.f32 %v3351, %v3356
    %v3360 = vmul.f32 %v3352, %v3356
    %v3361 = vmul.f32 %v3353, %v3356
    %3362 = vrot.lane.b32.xlu0 %v797, 94
    %v3363 = vpop.permute.xlu0 %3362
    %3364 = vrot.lane.b32.xlu0 %v804, 94
    %v3365 = vpop.permute.xlu0 %3364
    %3366 = vrot.lane.b32.xlu0 %v811, 94
    %v3367 = vpop.permute.xlu0 %3366
    %3368 = vrot.lane.b32.xlu0 %v818, 94
    %v3369 = vpop.permute.xlu0 %3368
    %v3370 = vsel %vm3334, %v3367, %v3369
    %v3371 = vsel %vm3334, %v3365, %v3367
    %v3372 = vsel %vm3334, %v3363, %v3365
    %v3373 = vsel %vm3334, %v3369, %v3363
    %v3374 = vmul.f32 %v3372, %v3342
    %v3375 = vmul.f32 %v3371, %v3343
    %v3376 = vmul.f32 %v3370, %v3344
    %v3377 = vmul.f32 %v3373, %v3345
    %v3378 = vrot.slane %v3356, 1
    %v3380 = vmul.f32 %v3374, %v3378
    %v3381 = vmul.f32 %v3375, %v3378
    %v3382 = vmul.f32 %v3376, %v3378
    %v3383 = vmul.f32 %v3377, %v3378
    %v3384 = vadd.f32 %v3358, %v3380
    %v3385 = vadd.f32 %v3359, %v3381
    %v3386 = vadd.f32 %v3360, %v3382
    %v3387 = vadd.f32 %v3361, %v3383
    %v3388 = vadd.f32 %v3322, %v3384
    %v3389 = vadd.f32 %v3323, %v3385
    %v3390 = vadd.f32 %v3324, %v3386
    %v3391 = vadd.f32 %v3325, %v3387
    %3392 = vrot.lane.b32.xlu0 %v787, 93
    %v3393 = vpop.permute.xlu0 %3392
    %3394 = vrot.lane.b32.xlu0 %v788, 93
    %v3395 = vpop.permute.xlu0 %3394
    %3396 = vrot.lane.b32.xlu0 %v789, 93
    %v3397 = vpop.permute.xlu0 %3396
    %3398 = vrot.lane.b32.xlu0 %v790, 93
    %v3399 = vpop.permute.xlu0 %3398
    %vm3400 = vcmp.lt.s32.totalorder %v244, 93
    %v3401 = vsel %vm3400, %v3397, %v3399
    %v3402 = vsel %vm3400, %v3395, %v3397
    %v3403 = vsel %vm3400, %v3393, %v3395
    %v3404 = vsel %vm3400, %v3399, %v3393
    %s3405 = scalar_lea.vmem [#allocation3], 161
    %v3406 = vld [vmem:[%s3405] ss:$8 sm:$0xf]
    %v3408 = vperm.slane %v3406, 0
    %v3409 = vperm.slane %v3406, 1
    %v3410 = vperm.slane %v3406, 2
    %v3411 = vperm.slane %v3406, 3
    %v3416 = vmul.f32 %v3403, %v3408
    %v3417 = vmul.f32 %v3402, %v3409
    %v3418 = vmul.f32 %v3401, %v3410
    %v3419 = vmul.f32 %v3404, %v3411
    %3420 = vset.pattern.permute.xlu0 41
    %3421 = vperm.xlu0 %3420, %v819
    %v3422 = vpop.permute.xlu0 %3421
    %v3424 = vmul.f32 %v3416, %v3422
    %v3425 = vmul.f32 %v3417, %v3422
    %v3426 = vmul.f32 %v3418, %v3422
    %v3427 = vmul.f32 %v3419, %v3422
    %3428 = vrot.lane.b32.xlu0 %v797, 93
    %v3429 = vpop.permute.xlu0 %3428
    %3430 = vrot.lane.b32.xlu0 %v804, 93
    %v3431 = vpop.permute.xlu0 %3430
    %3432 = vrot.lane.b32.xlu0 %v811, 93
    %v3433 = vpop.permute.xlu0 %3432
    %3434 = vrot.lane.b32.xlu0 %v818, 93
    %v3435 = vpop.permute.xlu0 %3434
    %v3436 = vsel %vm3400, %v3433, %v3435
    %v3437 = vsel %vm3400, %v3431, %v3433
    %v3438 = vsel %vm3400, %v3429, %v3431
    %v3439 = vsel %vm3400, %v3435, %v3429
    %v3440 = vmul.f32 %v3438, %v3408
    %v3441 = vmul.f32 %v3437, %v3409
    %v3442 = vmul.f32 %v3436, %v3410
    %v3443 = vmul.f32 %v3439, %v3411
    %v3444 = vrot.slane %v3422, 1
    %v3446 = vmul.f32 %v3440, %v3444
    %v3447 = vmul.f32 %v3441, %v3444
    %v3448 = vmul.f32 %v3442, %v3444
    %v3449 = vmul.f32 %v3443, %v3444
    %v3450 = vadd.f32 %v3424, %v3446
    %v3451 = vadd.f32 %v3425, %v3447
    %v3452 = vadd.f32 %v3426, %v3448
    %v3453 = vadd.f32 %v3427, %v3449
    %v3454 = vadd.f32 %v3388, %v3450
    %v3455 = vadd.f32 %v3389, %v3451
    %v3456 = vadd.f32 %v3390, %v3452
    %v3457 = vadd.f32 %v3391, %v3453
    %3458 = vrot.lane.b32.xlu0 %v787, 83
    %v3459 = vpop.permute.xlu0 %3458
    %3460 = vrot.lane.b32.xlu0 %v788, 83
    %v3461 = vpop.permute.xlu0 %3460
    %3462 = vrot.lane.b32.xlu0 %v789, 83
    %v3463 = vpop.permute.xlu0 %3462
    %3464 = vrot.lane.b32.xlu0 %v790, 83
    %v3465 = vpop.permute.xlu0 %3464
    %vm3466 = vcmp.lt.s32.totalorder %v244, 83
    %v3467 = vsel %vm3466, %v3463, %v3465
    %v3468 = vsel %vm3466, %v3461, %v3463
    %v3469 = vsel %vm3466, %v3459, %v3461
    %v3470 = vsel %vm3466, %v3465, %v3459
    %s3471 = scalar_lea.vmem [#allocation3], 162
    %v3472 = vld [vmem:[%s3471] ss:$8 sm:$0xf]
    %v3474 = vperm.slane %v3472, 0
    %v3475 = vperm.slane %v3472, 1
    %v3476 = vperm.slane %v3472, 2
    %v3477 = vperm.slane %v3472, 3
    %v3482 = vmul.f32 %v3469, %v3474
    %v3483 = vmul.f32 %v3468, %v3475
    %v3484 = vmul.f32 %v3467, %v3476
    %v3485 = vmul.f32 %v3470, %v3477
    %3486 = vset.pattern.permute.xlu0 42
    %3487 = vperm.xlu0 %3486, %v819
    %v3488 = vpop.permute.xlu0 %3487
    %v3490 = vmul.f32 %v3482, %v3488
    %v3491 = vmul.f32 %v3483, %v3488
    %v3492 = vmul.f32 %v3484, %v3488
    %v3493 = vmul.f32 %v3485, %v3488
    %3494 = vrot.lane.b32.xlu0 %v797, 83
    %v3495 = vpop.permute.xlu0 %3494
    %3496 = vrot.lane.b32.xlu0 %v804, 83
    %v3497 = vpop.permute.xlu0 %3496
    %3498 = vrot.lane.b32.xlu0 %v811, 83
    %v3499 = vpop.permute.xlu0 %3498
    %3500 = vrot.lane.b32.xlu0 %v818, 83
    %v3501 = vpop.permute.xlu0 %3500
    %v3502 = vsel %vm3466, %v3499, %v3501
    %v3503 = vsel %vm3466, %v3497, %v3499
    %v3504 = vsel %vm3466, %v3495, %v3497
    %v3505 = vsel %vm3466, %v3501, %v3495
    %v3506 = vmul.f32 %v3504, %v3474
    %v3507 = vmul.f32 %v3503, %v3475
    %v3508 = vmul.f32 %v3502, %v3476
    %v3509 = vmul.f32 %v3505, %v3477
    %v3510 = vrot.slane %v3488, 1
    %v3512 = vmul.f32 %v3506, %v3510
    %v3513 = vmul.f32 %v3507, %v3510
    %v3514 = vmul.f32 %v3508, %v3510
    %v3515 = vmul.f32 %v3509, %v3510
    %v3516 = vadd.f32 %v3490, %v3512
    %v3517 = vadd.f32 %v3491, %v3513
    %v3518 = vadd.f32 %v3492, %v3514
    %v3519 = vadd.f32 %v3493, %v3515
    %v3520 = vadd.f32 %v3454, %v3516
    %v3521 = vadd.f32 %v3455, %v3517
    %v3522 = vadd.f32 %v3456, %v3518
    %v3523 = vadd.f32 %v3457, %v3519
    %3524 = vrot.lane.b32.xlu0 %v787, 82
    %v3525 = vpop.permute.xlu0 %3524
    %3526 = vrot.lane.b32.xlu0 %v788, 82
    %v3527 = vpop.permute.xlu0 %3526
    %3528 = vrot.lane.b32.xlu0 %v789, 82
    %v3529 = vpop.permute.xlu0 %3528
    %3530 = vrot.lane.b32.xlu0 %v790, 82
    %v3531 = vpop.permute.xlu0 %3530
    %vm3532 = vcmp.lt.s32.totalorder %v244, 82
    %v3533 = vsel %vm3532, %v3529, %v3531
    %v3534 = vsel %vm3532, %v3527, %v3529
    %v3535 = vsel %vm3532, %v3525, %v3527
    %v3536 = vsel %vm3532, %v3531, %v3525
    %s3537 = scalar_lea.vmem [#allocation3], 163
    %v3538 = vld [vmem:[%s3537] ss:$8 sm:$0xf]
    %v3540 = vperm.slane %v3538, 0
    %v3541 = vperm.slane %v3538, 1
    %v3542 = vperm.slane %v3538, 2
    %v3543 = vperm.slane %v3538, 3
    %v3548 = vmul.f32 %v3535, %v3540
    %v3549 = vmul.f32 %v3534, %v3541
    %v3550 = vmul.f32 %v3533, %v3542
    %v3551 = vmul.f32 %v3536, %v3543
    %3552 = vset.pattern.permute.xlu0 43
    %3553 = vperm.xlu0 %3552, %v819
    %v3554 = vpop.permute.xlu0 %3553
    %v3556 = vmul.f32 %v3548, %v3554
    %v3557 = vmul.f32 %v3549, %v3554
    %v3558 = vmul.f32 %v3550, %v3554
    %v3559 = vmul.f32 %v3551, %v3554
    %3560 = vrot.lane.b32.xlu0 %v797, 82
    %v3561 = vpop.permute.xlu0 %3560
    %3562 = vrot.lane.b32.xlu0 %v804, 82
    %v3563 = vpop.permute.xlu0 %3562
    %3564 = vrot.lane.b32.xlu0 %v811, 82
    %v3565 = vpop.permute.xlu0 %3564
    %3566 = vrot.lane.b32.xlu0 %v818, 82
    %v3567 = vpop.permute.xlu0 %3566
    %v3568 = vsel %vm3532, %v3565, %v3567
    %v3569 = vsel %vm3532, %v3563, %v3565
    %v3570 = vsel %vm3532, %v3561, %v3563
    %v3571 = vsel %vm3532, %v3567, %v3561
    %v3572 = vmul.f32 %v3570, %v3540
    %v3573 = vmul.f32 %v3569, %v3541
    %v3574 = vmul.f32 %v3568, %v3542
    %v3575 = vmul.f32 %v3571, %v3543
    %v3576 = vrot.slane %v3554, 1
    %v3578 = vmul.f32 %v3572, %v3576
    %v3579 = vmul.f32 %v3573, %v3576
    %v3580 = vmul.f32 %v3574, %v3576
    %v3581 = vmul.f32 %v3575, %v3576
    %v3582 = vadd.f32 %v3556, %v3578
    %v3583 = vadd.f32 %v3557, %v3579
    %v3584 = vadd.f32 %v3558, %v3580
    %v3585 = vadd.f32 %v3559, %v3581
    %v3586 = vadd.f32 %v3520, %v3582
    %v3587 = vadd.f32 %v3521, %v3583
    %v3588 = vadd.f32 %v3522, %v3584
    %v3589 = vadd.f32 %v3523, %v3585
    %3590 = vrot.lane.b32.xlu0 %v787, 81
    %v3591 = vpop.permute.xlu0 %3590
    %3592 = vrot.lane.b32.xlu0 %v788, 81
    %v3593 = vpop.permute.xlu0 %3592
    %3594 = vrot.lane.b32.xlu0 %v789, 81
    %v3595 = vpop.permute.xlu0 %3594
    %3596 = vrot.lane.b32.xlu0 %v790, 81
    %v3597 = vpop.permute.xlu0 %3596
    %vm3598 = vcmp.lt.s32.totalorder %v244, 81
    %v3599 = vsel %vm3598, %v3595, %v3597
    %v3600 = vsel %vm3598, %v3593, %v3595
    %v3601 = vsel %vm3598, %v3591, %v3593
    %v3602 = vsel %vm3598, %v3597, %v3591
    %s3603 = scalar_lea.vmem [#allocation3], 164
    %v3604 = vld [vmem:[%s3603] ss:$8 sm:$0xf]
    %v3606 = vperm.slane %v3604, 0
    %v3607 = vperm.slane %v3604, 1
    %v3608 = vperm.slane %v3604, 2
    %v3609 = vperm.slane %v3604, 3
    %v3614 = vmul.f32 %v3601, %v3606
    %v3615 = vmul.f32 %v3600, %v3607
    %v3616 = vmul.f32 %v3599, %v3608
    %v3617 = vmul.f32 %v3602, %v3609
    %3618 = vset.pattern.permute.xlu0 44
    %3619 = vperm.xlu0 %3618, %v819
    %v3620 = vpop.permute.xlu0 %3619
    %v3622 = vmul.f32 %v3614, %v3620
    %v3623 = vmul.f32 %v3615, %v3620
    %v3624 = vmul.f32 %v3616, %v3620
    %v3625 = vmul.f32 %v3617, %v3620
    %3626 = vrot.lane.b32.xlu0 %v797, 81
    %v3627 = vpop.permute.xlu0 %3626
    %3628 = vrot.lane.b32.xlu0 %v804, 81
    %v3629 = vpop.permute.xlu0 %3628
    %3630 = vrot.lane.b32.xlu0 %v811, 81
    %v3631 = vpop.permute.xlu0 %3630
    %3632 = vrot.lane.b32.xlu0 %v818, 81
    %v3633 = vpop.permute.xlu0 %3632
    %v3634 = vsel %vm3598, %v3631, %v3633
    %v3635 = vsel %vm3598, %v3629, %v3631
    %v3636 = vsel %vm3598, %v3627, %v3629
    %v3637 = vsel %vm3598, %v3633, %v3627
    %v3638 = vmul.f32 %v3636, %v3606
    %v3639 = vmul.f32 %v3635, %v3607
    %v3640 = vmul.f32 %v3634, %v3608
    %v3641 = vmul.f32 %v3637, %v3609
    %v3642 = vrot.slane %v3620, 1
    %v3644 = vmul.f32 %v3638, %v3642
    %v3645 = vmul.f32 %v3639, %v3642
    %v3646 = vmul.f32 %v3640, %v3642
    %v3647 = vmul.f32 %v3641, %v3642
    %v3648 = vadd.f32 %v3622, %v3644
    %v3649 = vadd.f32 %v3623, %v3645
    %v3650 = vadd.f32 %v3624, %v3646
    %v3651 = vadd.f32 %v3625, %v3647
    %v3652 = vadd.f32 %v3586, %v3648
    %v3653 = vadd.f32 %v3587, %v3649
    %v3654 = vadd.f32 %v3588, %v3650
    %v3655 = vadd.f32 %v3589, %v3651
    %3656 = vrot.lane.b32.xlu0 %v787, 80
    %v3657 = vpop.permute.xlu0 %3656
    %3658 = vrot.lane.b32.xlu0 %v788, 80
    %v3659 = vpop.permute.xlu0 %3658
    %3660 = vrot.lane.b32.xlu0 %v789, 80
    %v3661 = vpop.permute.xlu0 %3660
    %3662 = vrot.lane.b32.xlu0 %v790, 80
    %v3663 = vpop.permute.xlu0 %3662
    %vm3664 = vcmp.lt.s32.totalorder %v244, 80
    %v3665 = vsel %vm3664, %v3661, %v3663
    %v3666 = vsel %vm3664, %v3659, %v3661
    %v3667 = vsel %vm3664, %v3657, %v3659
    %v3668 = vsel %vm3664, %v3663, %v3657
    %s3669 = scalar_lea.vmem [#allocation3], 165
    %v3670 = vld [vmem:[%s3669] ss:$8 sm:$0xf]
    %v3672 = vperm.slane %v3670, 0
    %v3673 = vperm.slane %v3670, 1
    %v3674 = vperm.slane %v3670, 2
    %v3675 = vperm.slane %v3670, 3
    %v3680 = vmul.f32 %v3667, %v3672
    %v3681 = vmul.f32 %v3666, %v3673
    %v3682 = vmul.f32 %v3665, %v3674
    %v3683 = vmul.f32 %v3668, %v3675
    %3684 = vset.pattern.permute.xlu0 45
    %3685 = vperm.xlu0 %3684, %v819
    %v3686 = vpop.permute.xlu0 %3685
    %v3688 = vmul.f32 %v3680, %v3686
    %v3689 = vmul.f32 %v3681, %v3686
    %v3690 = vmul.f32 %v3682, %v3686
    %v3691 = vmul.f32 %v3683, %v3686
    %3692 = vrot.lane.b32.xlu0 %v797, 80
    %v3693 = vpop.permute.xlu0 %3692
    %3694 = vrot.lane.b32.xlu0 %v804, 80
    %v3695 = vpop.permute.xlu0 %3694
    %3696 = vrot.lane.b32.xlu0 %v811, 80
    %v3697 = vpop.permute.xlu0 %3696
    %3698 = vrot.lane.b32.xlu0 %v818, 80
    %v3699 = vpop.permute.xlu0 %3698
    %v3700 = vsel %vm3664, %v3697, %v3699
    %v3701 = vsel %vm3664, %v3695, %v3697
    %v3702 = vsel %vm3664, %v3693, %v3695
    %v3703 = vsel %vm3664, %v3699, %v3693
    %v3704 = vmul.f32 %v3702, %v3672
    %v3705 = vmul.f32 %v3701, %v3673
    %v3706 = vmul.f32 %v3700, %v3674
    %v3707 = vmul.f32 %v3703, %v3675
    %v3708 = vrot.slane %v3686, 1
    %v3710 = vmul.f32 %v3704, %v3708
    %v3711 = vmul.f32 %v3705, %v3708
    %v3712 = vmul.f32 %v3706, %v3708
    %v3713 = vmul.f32 %v3707, %v3708
    %v3714 = vadd.f32 %v3688, %v3710
    %v3715 = vadd.f32 %v3689, %v3711
    %v3716 = vadd.f32 %v3690, %v3712
    %v3717 = vadd.f32 %v3691, %v3713
    %v3718 = vadd.f32 %v3652, %v3714
    %v3719 = vadd.f32 %v3653, %v3715
    %v3720 = vadd.f32 %v3654, %v3716
    %v3721 = vadd.f32 %v3655, %v3717
    %3722 = vrot.lane.b32.xlu0 %v787, 79
    %v3723 = vpop.permute.xlu0 %3722
    %3724 = vrot.lane.b32.xlu0 %v788, 79
    %v3725 = vpop.permute.xlu0 %3724
    %3726 = vrot.lane.b32.xlu0 %v789, 79
    %v3727 = vpop.permute.xlu0 %3726
    %3728 = vrot.lane.b32.xlu0 %v790, 79
    %v3729 = vpop.permute.xlu0 %3728
    %vm3730 = vcmp.lt.s32.totalorder %v244, 79
    %v3731 = vsel %vm3730, %v3727, %v3729
    %v3732 = vsel %vm3730, %v3725, %v3727
    %v3733 = vsel %vm3730, %v3723, %v3725
    %v3734 = vsel %vm3730, %v3729, %v3723
    %s3735 = scalar_lea.vmem [#allocation3], 166
    %v3736 = vld [vmem:[%s3735] ss:$8 sm:$0xf]
    %v3738 = vperm.slane %v3736, 0
    %v3739 = vperm.slane %v3736, 1
    %v3740 = vperm.slane %v3736, 2
    %v3741 = vperm.slane %v3736, 3
    %v3746 = vmul.f32 %v3733, %v3738
    %v3747 = vmul.f32 %v3732, %v3739
    %v3748 = vmul.f32 %v3731, %v3740
    %v3749 = vmul.f32 %v3734, %v3741
    %3750 = vset.pattern.permute.xlu0 46
    %3751 = vperm.xlu0 %3750, %v819
    %v3752 = vpop.permute.xlu0 %3751
    %v3754 = vmul.f32 %v3746, %v3752
    %v3755 = vmul.f32 %v3747, %v3752
    %v3756 = vmul.f32 %v3748, %v3752
    %v3757 = vmul.f32 %v3749, %v3752
    %3758 = vrot.lane.b32.xlu0 %v797, 79
    %v3759 = vpop.permute.xlu0 %3758
    %3760 = vrot.lane.b32.xlu0 %v804, 79
    %v3761 = vpop.permute.xlu0 %3760
    %3762 = vrot.lane.b32.xlu0 %v811, 79
    %v3763 = vpop.permute.xlu0 %3762
    %3764 = vrot.lane.b32.xlu0 %v818, 79
    %v3765 = vpop.permute.xlu0 %3764
    %v3766 = vsel %vm3730, %v3763, %v3765
    %v3767 = vsel %vm3730, %v3761, %v3763
    %v3768 = vsel %vm3730, %v3759, %v3761
    %v3769 = vsel %vm3730, %v3765, %v3759
    %v3770 = vmul.f32 %v3768, %v3738
    %v3771 = vmul.f32 %v3767, %v3739
    %v3772 = vmul.f32 %v3766, %v3740
    %v3773 = vmul.f32 %v3769, %v3741
    %v3774 = vrot.slane %v3752, 1
    %v3776 = vmul.f32 %v3770, %v3774
    %v3777 = vmul.f32 %v3771, %v3774
    %v3778 = vmul.f32 %v3772, %v3774
    %v3779 = vmul.f32 %v3773, %v3774
    %v3780 = vadd.f32 %v3754, %v3776
    %v3781 = vadd.f32 %v3755, %v3777
    %v3782 = vadd.f32 %v3756, %v3778
    %v3783 = vadd.f32 %v3757, %v3779
    %v3784 = vadd.f32 %v3718, %v3780
    %v3785 = vadd.f32 %v3719, %v3781
    %v3786 = vadd.f32 %v3720, %v3782
    %v3787 = vadd.f32 %v3721, %v3783
    %3788 = vrot.lane.b32.xlu0 %v787, 78
    %v3789 = vpop.permute.xlu0 %3788
    %3790 = vrot.lane.b32.xlu0 %v788, 78
    %v3791 = vpop.permute.xlu0 %3790
    %3792 = vrot.lane.b32.xlu0 %v789, 78
    %v3793 = vpop.permute.xlu0 %3792
    %3794 = vrot.lane.b32.xlu0 %v790, 78
    %v3795 = vpop.permute.xlu0 %3794
    %vm3796 = vcmp.lt.s32.totalorder %v244, 78
    %v3797 = vsel %vm3796, %v3793, %v3795
    %v3798 = vsel %vm3796, %v3791, %v3793
    %v3799 = vsel %vm3796, %v3789, %v3791
    %v3800 = vsel %vm3796, %v3795, %v3789
    %s3801 = scalar_lea.vmem [#allocation3], 167
    %v3802 = vld [vmem:[%s3801] ss:$8 sm:$0xf]
    %v3804 = vperm.slane %v3802, 0
    %v3805 = vperm.slane %v3802, 1
    %v3806 = vperm.slane %v3802, 2
    %v3807 = vperm.slane %v3802, 3
    %v3812 = vmul.f32 %v3799, %v3804
    %v3813 = vmul.f32 %v3798, %v3805
    %v3814 = vmul.f32 %v3797, %v3806
    %v3815 = vmul.f32 %v3800, %v3807
    %3816 = vset.pattern.permute.xlu0 47
    %3817 = vperm.xlu0 %3816, %v819
    %v3818 = vpop.permute.xlu0 %3817
    %v3820 = vmul.f32 %v3812, %v3818
    %v3821 = vmul.f32 %v3813, %v3818
    %v3822 = vmul.f32 %v3814, %v3818
    %v3823 = vmul.f32 %v3815, %v3818
    %3824 = vrot.lane.b32.xlu0 %v797, 78
    %v3825 = vpop.permute.xlu0 %3824
    %3826 = vrot.lane.b32.xlu0 %v804, 78
    %v3827 = vpop.permute.xlu0 %3826
    %3828 = vrot.lane.b32.xlu0 %v811, 78
    %v3829 = vpop.permute.xlu0 %3828
    %3830 = vrot.lane.b32.xlu0 %v818, 78
    %v3831 = vpop.permute.xlu0 %3830
    %v3832 = vsel %vm3796, %v3829, %v3831
    %v3833 = vsel %vm3796, %v3827, %v3829
    %v3834 = vsel %vm3796, %v3825, %v3827
    %v3835 = vsel %vm3796, %v3831, %v3825
    %v3836 = vmul.f32 %v3834, %v3804
    %v3837 = vmul.f32 %v3833, %v3805
    %v3838 = vmul.f32 %v3832, %v3806
    %v3839 = vmul.f32 %v3835, %v3807
    %v3840 = vrot.slane %v3818, 1
    %v3842 = vmul.f32 %v3836, %v3840
    %v3843 = vmul.f32 %v3837, %v3840
    %v3844 = vmul.f32 %v3838, %v3840
    %v3845 = vmul.f32 %v3839, %v3840
    %v3846 = vadd.f32 %v3820, %v3842
    %v3847 = vadd.f32 %v3821, %v3843
    %v3848 = vadd.f32 %v3822, %v3844
    %v3849 = vadd.f32 %v3823, %v3845
    %v3850 = vadd.f32 %v3784, %v3846
    %v3851 = vadd.f32 %v3785, %v3847
    %v3852 = vadd.f32 %v3786, %v3848
    %v3853 = vadd.f32 %v3787, %v3849
    %3854 = vrot.lane.b32.xlu0 %v787, 77
    %v3855 = vpop.permute.xlu0 %3854
    %3856 = vrot.lane.b32.xlu0 %v788, 77
    %v3857 = vpop.permute.xlu0 %3856
    %3858 = vrot.lane.b32.xlu0 %v789, 77
    %v3859 = vpop.permute.xlu0 %3858
    %3860 = vrot.lane.b32.xlu0 %v790, 77
    %v3861 = vpop.permute.xlu0 %3860
    %vm3862 = vcmp.lt.s32.totalorder %v244, 77
    %v3863 = vsel %vm3862, %v3859, %v3861
    %v3864 = vsel %vm3862, %v3857, %v3859
    %v3865 = vsel %vm3862, %v3855, %v3857
    %v3866 = vsel %vm3862, %v3861, %v3855
    %s3867 = scalar_lea.vmem [#allocation3], 192
    %v3868 = vld [vmem:[%s3867] ss:$8 sm:$0xf]
    %v3870 = vperm.slane %v3868, 0
    %v3871 = vperm.slane %v3868, 1
    %v3872 = vperm.slane %v3868, 2
    %v3873 = vperm.slane %v3868, 3
    %v3878 = vmul.f32 %v3865, %v3870
    %v3879 = vmul.f32 %v3864, %v3871
    %v3880 = vmul.f32 %v3863, %v3872
    %v3881 = vmul.f32 %v3866, %v3873
    %3882 = vset.pattern.permute.xlu0 48
    %3883 = vperm.xlu0 %3882, %v819
    %v3884 = vpop.permute.xlu0 %3883
    %v3886 = vmul.f32 %v3878, %v3884
    %v3887 = vmul.f32 %v3879, %v3884
    %v3888 = vmul.f32 %v3880, %v3884
    %v3889 = vmul.f32 %v3881, %v3884
    %3890 = vrot.lane.b32.xlu0 %v797, 77
    %v3891 = vpop.permute.xlu0 %3890
    %3892 = vrot.lane.b32.xlu0 %v804, 77
    %v3893 = vpop.permute.xlu0 %3892
    %3894 = vrot.lane.b32.xlu0 %v811, 77
    %v3895 = vpop.permute.xlu0 %3894
    %3896 = vrot.lane.b32.xlu0 %v818, 77
    %v3897 = vpop.permute.xlu0 %3896
    %v3898 = vsel %vm3862, %v3895, %v3897
    %v3899 = vsel %vm3862, %v3893, %v3895
    %v3900 = vsel %vm3862, %v3891, %v3893
    %v3901 = vsel %vm3862, %v3897, %v3891
    %v3902 = vmul.f32 %v3900, %v3870
    %v3903 = vmul.f32 %v3899, %v3871
    %v3904 = vmul.f32 %v3898, %v3872
    %v3905 = vmul.f32 %v3901, %v3873
    %v3906 = vrot.slane %v3884, 1
    %v3908 = vmul.f32 %v3902, %v3906
    %v3909 = vmul.f32 %v3903, %v3906
    %v3910 = vmul.f32 %v3904, %v3906
    %v3911 = vmul.f32 %v3905, %v3906
    %v3912 = vadd.f32 %v3886, %v3908
    %v3913 = vadd.f32 %v3887, %v3909
    %v3914 = vadd.f32 %v3888, %v3910
    %v3915 = vadd.f32 %v3889, %v3911
    %v3916 = vadd.f32 %v3850, %v3912
    %v3917 = vadd.f32 %v3851, %v3913
    %v3918 = vadd.f32 %v3852, %v3914
    %v3919 = vadd.f32 %v3853, %v3915
    %v3920 = vld [vmem:[#allocation2] sm:$0x1]
    %3922 = vset.pattern.permute.xlu0 0
    %3923 = vperm.xlu0 %3922, %v3920
    %v3924 = vpop.permute.xlu0 %3923
    %v3926 = vperm.slane %v3924, 0
    %v3927 = vadd.f32 %v3916, %v3926
    %v3928 = vadd.f32 %v3917, %v3926
    %v3929 = vadd.f32 %v3918, %v3926
    %v3930 = vadd.f32 %v3919, %v3926
    %v3931 = vxor.u32 %v3927, 2147483648
    %v3932 = vxor.u32 %v3928, 2147483648
    %v3933 = vxor.u32 %v3929, 2147483648
    %v3934 = vxor.u32 %v3930, 2147483648
    %v3935 = vmul.f32 %v3931, 1.442695
    %v3936 = vpow.pop %v3935
    %v3937 = vmul.f32 %v3932, 1.442695
    %v3938 = vpow.pop %v3937
    %v3939 = vmul.f32 %v3933, 1.442695
    %v3940 = vpow.pop %v3939
    %v3941 = vmul.f32 %v3934, 1.442695
    %v3942 = vpow.pop %v3941
    %v3943 = vadd.f32 %v3936, 1.0
    %v3944 = vadd.f32 %v3938, 1.0
    %v3945 = vadd.f32 %v3940, 1.0
    %v3946 = vadd.f32 %v3942, 1.0
    %v3947 = vrcp.pop %v3943
    %v3948 = vmul.f32 %v3943, %v3947
    %v3949 = vsub.f32 1.0, %v3948
    %v3950 = vmul.f32 %v3947, %v3949
    %v3951 = vadd.f32 %v3947, %v3950
    %vm3952 = vweird.f32 %v3943
    %vm3953 = vweird.f32 %v3947
    %vm3954 = vmor %vm3952, %vm3953
    %v3955 = vsel %vm3954, %v3947, %v3951
    %v3956 = vand.u32 2147483647, %v3943
    %vm3957 = vcmp.eq.f32.partialorder %v3956, 8.507059e+37
    %v3958 = vand.u32 %v3943, 2147483648
    %v3959 = vor.u32 1.1754944e-38, %v3958
    %v3960 = vsel %vm3957, %v3959, %v3955
    %v3961 = vmul.f32 1.0, %v3960
    %v3962 = vrcp.pop %v3944
    %v3963 = vmul.f32 %v3944, %v3962
    %v3964 = vsub.f32 1.0, %v3963
    %v3965 = vmul.f32 %v3962, %v3964
    %v3966 = vadd.f32 %v3962, %v3965
    %vm3967 = vweird.f32 %v3944
    %vm3968 = vweird.f32 %v3962
    %vm3969 = vmor %vm3967, %vm3968
    %v3970 = vsel %vm3969, %v3962, %v3966
    %v3971 = vand.u32 2147483647, %v3944
    %vm3972 = vcmp.eq.f32.partialorder %v3971, 8.507059e+37
    %v3973 = vand.u32 %v3944, 2147483648
    %v3974 = vor.u32 1.1754944e-38, %v3973
    %v3975 = vsel %vm3972, %v3974, %v3970
    %v3976 = vmul.f32 1.0, %v3975
    %v3977 = vrcp.pop %v3945
    %v3978 = vmul.f32 %v3945, %v3977
    %v3979 = vsub.f32 1.0, %v3978
    %v3980 = vmul.f32 %v3977, %v3979
    %v3981 = vadd.f32 %v3977, %v3980
    %vm3982 = vweird.f32 %v3945
    %vm3983 = vweird.f32 %v3977
    %vm3984 = vmor %vm3982, %vm3983
    %v3985 = vsel %vm3984, %v3977, %v3981
    %v3986 = vand.u32 2147483647, %v3945
    %vm3987 = vcmp.eq.f32.partialorder %v3986, 8.507059e+37
    %v3988 = vand.u32 %v3945, 2147483648
    %v3989 = vor.u32 1.1754944e-38, %v3988
    %v3990 = vsel %vm3987, %v3989, %v3985
    %v3991 = vmul.f32 1.0, %v3990
    %v3992 = vrcp.pop %v3946
    %v3993 = vmul.f32 %v3946, %v3992
    %v3994 = vsub.f32 1.0, %v3993
    %v3995 = vmul.f32 %v3992, %v3994
    %v3996 = vadd.f32 %v3992, %v3995
    %vm3997 = vweird.f32 %v3946
    %vm3998 = vweird.f32 %v3992
    %vm3999 = vmor %vm3997, %vm3998
    %v4000 = vsel %vm3999, %v3992, %v3996
    %v4001 = vand.u32 2147483647, %v3946
    %vm4002 = vcmp.eq.f32.partialorder %v4001, 8.507059e+37
    %v4003 = vand.u32 %v3946, 2147483648
    %v4004 = vor.u32 1.1754944e-38, %v4003
    %v4005 = vsel %vm4002, %v4004, %v4000
    %v4006 = vmul.f32 1.0, %v4005
    %v4007 = vadd.f32 %v523, %v537
    %4008 = vadd.xlane.f32.xlu0 %v4007
    %v4009 = vpop.xlane.xlu0 %4008
    %v4010 = vadd.f32 %v525, %v539
    %4011 = vadd.xlane.f32.xlu0 %v4010
    %v4012 = vpop.xlane.xlu0 %4011
    %v4013 = vrcp.pop 256.0
    %v4014 = vmul.f32 256.0, %v4013
    %v4015 = vsub.f32 1.0, %v4014
    %v4016 = vmul.f32 %v4013, %v4015
    %v4017 = vadd.f32 %v4013, %v4016
    %vm4018 = vweird.f32 %v4013
    %v4019 = vsel %vm4018, %v4013, %v4017
    %v4020 = vmul.f32 %v4009, %v4019
    %v4021 = vmul.f32 %v4012, %v4019
    %v4022 = vld [vmem:[%s6] sm:$0xff]
    %v4023 = vld [vmem:[%s6 + $0x8] sm:$0xff]
    %v4024 = vmul.f32 %v4022, %v4020
    %v4025 = vmul.f32 %v4023, %v4021
    %vm4026 = vcmask 64512
    %v4027 = vsel %vm4026, %v4024, 0.0
    %v4028 = vsel %vm4026, %v4025, 0.0
    %v4029 = vadd.f32 %v4027, %v4028
    %v4030 = vrot.slane %v4029, 4
    %v4031 = vadd.f32 %v4029, %v4030
    %v4032 = vrot.slane %v4031, 2
    %v4033 = vadd.f32 %v4031, %v4032
    %v4034 = vrot.slane %v4033, 1
    %v4035 = vadd.f32 %v4033, %v4034
    %v4036 = vld [vmem:[#allocation8] sm:$0x1]
    %v4037 = vadd.f32 %v4035, %v4036
    %v4038 = vmax.f32 %v4037, 0.0
    %v4039 = vld [vmem:[%s8] sm:$0xff]
    %v4040 = vld [vmem:[%s8 + $0x8] sm:$0xff]
    %v4041 = vperm.slane %v4038, 0
    %v4042 = vmul.f32 %v4039, %v4041
    %v4043 = vmul.f32 %v4040, %v4041
    %v4044 = vsel %vm4026, %v4042, 0.0
    %4045 = vadd.xlane.f32.xlu0 %v4044
    %v4046 = vpop.xlane.xlu0 %4045
    %v4047 = vsel %vm4026, %v4043, 0.0
    %4048 = vadd.xlane.f32.xlu0 %v4047
    %v4049 = vpop.xlane.xlu0 %4048
    %v4050 = vld [vmem:[%s9] sm:$0xff]
    %v4051 = vld [vmem:[%s9 + $0x8] sm:$0xff]
    %v4052 = vadd.f32 %v4046, %v4050
    %v4053 = vadd.f32 %v4049, %v4051
    %v4054 = vxor.u32 %v4052, 2147483648
    %v4055 = vxor.u32 %v4053, 2147483648
    %v4056 = vmul.f32 %v4054, 1.442695
    %v4057 = vpow.pop %v4056
    %v4058 = vmul.f32 %v4055, 1.442695
    %v4059 = vpow.pop %v4058
    %v4060 = vadd.f32 %v4057, 1.0
    %v4061 = vadd.f32 %v4059, 1.0
    %v4062 = vrcp.pop %v4060
    %v4063 = vmul.f32 %v4060, %v4062
    %v4064 = vsub.f32 1.0, %v4063
    %v4065 = vmul.f32 %v4062, %v4064
    %v4066 = vadd.f32 %v4062, %v4065
    %vm4067 = vweird.f32 %v4060
    %vm4068 = vweird.f32 %v4062
    %vm4069 = vmor %vm4067, %vm4068
    %v4070 = vsel %vm4069, %v4062, %v4066
    %v4071 = vand.u32 2147483647, %v4060
    %vm4072 = vcmp.eq.f32.partialorder %v4071, 8.507059e+37
    %v4073 = vand.u32 %v4060, 2147483648
    %v4074 = vor.u32 1.1754944e-38, %v4073
    %v4075 = vsel %vm4072, %v4074, %v4070
    %v4076 = vmul.f32 1.0, %v4075
    %v4077 = vrcp.pop %v4061
    %v4078 = vmul.f32 %v4061, %v4077
    %v4079 = vsub.f32 1.0, %v4078
    %v4080 = vmul.f32 %v4077, %v4079
    %v4081 = vadd.f32 %v4077, %v4080
    %vm4082 = vweird.f32 %v4061
    %vm4083 = vweird.f32 %v4077
    %vm4084 = vmor %vm4082, %vm4083
    %v4085 = vsel %vm4084, %v4077, %v4081
    %v4086 = vand.u32 2147483647, %v4061
    %vm4087 = vcmp.eq.f32.partialorder %v4086, 8.507059e+37
    %v4088 = vand.u32 %v4061, 2147483648
    %v4089 = vor.u32 1.1754944e-38, %v4088
    %v4090 = vsel %vm4087, %v4089, %v4085
    %v4091 = vmul.f32 1.0, %v4090
    %4093 = vset.pattern.permute.xlu0 0
    %4094 = vperm.xlu0 %4093, %v4076
    %v4095 = vpop.permute.xlu0 %4094
    %4098 = vset.pattern.permute.xlu0 0
    %4099 = vperm.xlu0 %4098, %v4091
    %v4100 = vpop.permute.xlu0 %4099
    %v4102 = vadd.f32 %v551, %v565
    %4103 = vadd.xlane.f32.xlu0 %v4102
    %v4104 = vpop.xlane.xlu0 %4103
    %v4105 = vadd.f32 %v553, %v567
    %4106 = vadd.xlane.f32.xlu0 %v4105
    %v4107 = vpop.xlane.xlu0 %4106
    %v4108 = vmul.f32 %v4104, %v4019
    %v4109 = vmul.f32 %v4107, %v4019
    %v4110 = vmul.f32 %v4022, %v4108
    %v4111 = vmul.f32 %v4023, %v4109
    %v4112 = vsel %vm4026, %v4110, 0.0
    %v4113 = vsel %vm4026, %v4111, 0.0
    %v4114 = vadd.f32 %v4112, %v4113
    %v4115 = vrot.slane %v4114, 4
    %v4116 = vadd.f32 %v4114, %v4115
    %v4117 = vrot.slane %v4116, 2
    %v4118 = vadd.f32 %v4116, %v4117
    %v4119 = vrot.slane %v4118, 1
    %v4120 = vadd.f32 %v4118, %v4119
    %v4121 = vadd.f32 %v4120, %v4036
    %v4122 = vmax.f32 %v4121, 0.0
    %v4123 = vperm.slane %v4122, 0
    %v4124 = vmul.f32 %v4039, %v4123
    %v4125 = vmul.f32 %v4040, %v4123
    %v4126 = vsel %vm4026, %v4124, 0.0
    %4127 = vadd.xlane.f32.xlu0 %v4126
    %v4128 = vpop.xlane.xlu0 %4127
    %v4129 = vsel %vm4026, %v4125, 0.0
    %4130 = vadd.xlane.f32.xlu0 %v4129
    %v4131 = vpop.xlane.xlu0 %4130
    %v4132 = vadd.f32 %v4128, %v4050
    %v4133 = vadd.f32 %v4131, %v4051
    %v4134 = vxor.u32 %v4132, 2147483648
    %v4135 = vxor.u32 %v4133, 2147483648
    %v4136 = vmul.f32 %v4134, 1.442695
    %v4137 = vpow.pop %v4136
    %v4138 = vmul.f32 %v4135, 1.442695
    %v4139 = vpow.pop %v4138
    %v4140 = vadd.f32 %v4137, 1.0
    %v4141 = vadd.f32 %v4139, 1.0
    %v4142 = vrcp.pop %v4140
    %v4143 = vmul.f32 %v4140, %v4142
    %v4144 = vsub.f32 1.0, %v4143
    %v4145 = vmul.f32 %v4142, %v4144
    %v4146 = vadd.f32 %v4142, %v4145
    %vm4147 = vweird.f32 %v4140
    %vm4148 = vweird.f32 %v4142
    %vm4149 = vmor %vm4147, %vm4148
    %v4150 = vsel %vm4149, %v4142, %v4146
    %v4151 = vand.u32 2147483647, %v4140
    %vm4152 = vcmp.eq.f32.partialorder %v4151, 8.507059e+37
    %v4153 = vand.u32 %v4140, 2147483648
    %v4154 = vor.u32 1.1754944e-38, %v4153
    %v4155 = vsel %vm4152, %v4154, %v4150
    %v4156 = vmul.f32 1.0, %v4155
    %v4157 = vrcp.pop %v4141
    %v4158 = vmul.f32 %v4141, %v4157
    %v4159 = vsub.f32 1.0, %v4158
    %v4160 = vmul.f32 %v4157, %v4159
    %v4161 = vadd.f32 %v4157, %v4160
    %vm4162 = vweird.f32 %v4141
    %vm4163 = vweird.f32 %v4157
    %vm4164 = vmor %vm4162, %vm4163
    %v4165 = vsel %vm4164, %v4157, %v4161
    %v4166 = vand.u32 2147483647, %v4141
    %vm4167 = vcmp.eq.f32.partialorder %v4166, 8.507059e+37
    %v4168 = vand.u32 %v4141, 2147483648
    %v4169 = vor.u32 1.1754944e-38, %v4168
    %v4170 = vsel %vm4167, %v4169, %v4165
    %v4171 = vmul.f32 1.0, %v4170
    %4173 = vset.pattern.permute.xlu0 0
    %4174 = vperm.xlu0 %4173, %v4156
    %v4175 = vpop.permute.xlu0 %4174
    %4178 = vset.pattern.permute.xlu0 0
    %4179 = vperm.xlu0 %4178, %v4171
    %v4180 = vpop.permute.xlu0 %4179
    %v4182 = vmul.f32 %v748, %v3961
    %v4183 = vmul.f32 %v749, %v3976
    %v4184 = vmul.f32 %v750, %v3991
    %v4185 = vmul.f32 %v751, %v4006
    %v4186 = vperm.slane %v4182, 0
    %v4187 = vperm.slane %v4183, 0
    %v4188 = vperm.slane %v4184, 0
    %v4189 = vperm.slane %v4185, 0
    %v4190 = vmul.f32 %v523, %v4186
    %v4191 = vmul.f32 %v537, %v4187
    %v4192 = vmul.f32 %v551, %v4188
    %v4193 = vmul.f32 %v565, %v4189
    %v4194 = vmul.f32 %v525, %v4186
    %v4195 = vmul.f32 %v539, %v4187
    %v4196 = vmul.f32 %v553, %v4188
    %v4197 = vmul.f32 %v567, %v4189
    %v4198 = vmul.f32 %v4190, %v4095
    %v4199 = vmul.f32 %v4191, %v4095
    %v4200 = vmul.f32 %v4192, %v4175
    %v4201 = vmul.f32 %v4193, %v4175
    %v4202 = vmul.f32 %v4194, %v4100
    %v4203 = vmul.f32 %v4195, %v4100
    %v4204 = vmul.f32 %v4196, %v4180
    %v4205 = vmul.f32 %v4197, %v4180
    %v4206 = vld [vmem:[%s12] sm:$0xff]
    %v4207 = vld [vmem:[%s12 + $0x8] sm:$0xff]
    %v4208 = vld [vmem:[%s13] sm:$0xff]
    %v4209 = vld [vmem:[%s13 + $0x8] sm:$0xff]
    %v4210 = vld [vmem:[#allocation11] sm:$0xf]
    %v4211 = vld [vmem:[#allocation11 + $0x4] sm:$0xf]
    %v4212 = vld [vmem:[%s15] sm:$0xff]
    %v4213 = vld [vmem:[%s15 + $0x8] sm:$0xff]
    %4214 = vrot.lane.b32.xlu0 %v4198, 17
    %v4215 = vpop.permute.xlu0 %4214
    %4216 = vrot.lane.b32.xlu0 %v4202, 17
    %v4217 = vpop.permute.xlu0 %4216
    %4218 = vrot.lane.b32.xlu0 %v4199, 17
    %v4219 = vpop.permute.xlu0 %4218
    %4220 = vrot.lane.b32.xlu0 %v4203, 17
    %v4221 = vpop.permute.xlu0 %4220
    %4222 = vrot.lane.b32.xlu0 %v4200, 17
    %v4223 = vpop.permute.xlu0 %4222
    %4224 = vrot.lane.b32.xlu0 %v4204, 17
    %v4225 = vpop.permute.xlu0 %4224
    %4226 = vrot.lane.b32.xlu0 %v4201, 17
    %v4227 = vpop.permute.xlu0 %4226
    %4228 = vrot.lane.b32.xlu0 %v4205, 17
    %v4229 = vpop.permute.xlu0 %4228
    %v4230 = vsel %vm245, %v4223, %v4227
    %v4231 = vsel %vm245, %v4225, %v4229
    %v4232 = vsel %vm245, %v4219, %v4223
    %v4233 = vsel %vm245, %v4221, %v4225
    %v4234 = vsel %vm245, %v4215, %v4219
    %v4235 = vsel %vm245, %v4217, %v4221
    %v4236 = vsel %vm245, %v4227, %v4215
    %v4237 = vsel %vm245, %v4229, %v4217
    %v4238 = vmul.f32 %v4236, %v253
    %v4239 = vmul.f32 %v4234, %v254
    %v4240 = vmul.f32 %v4232, %v255
    %v4241 = vmul.f32 %v4230, %v256
    %v4242 = vmul.f32 %v4237, %v253
    %v4243 = vmul.f32 %v4235, %v254
    %v4244 = vmul.f32 %v4233, %v255
    %v4245 = vmul.f32 %v4231, %v256
    %4247 = vset.pattern.permute.xlu0 0
    %4248 = vperm.xlu0 %4247, %v4206
    %v4249 = vpop.permute.xlu0 %4248
    %4252 = vset.pattern.permute.xlu0 0
    %4253 = vperm.xlu0 %4252, %v4207
    %v4254 = vpop.permute.xlu0 %4253
    %v4256 = vmul.f32 %v4249, %v4238
    %v4257 = vmul.f32 %v4249, %v4239
    %v4258 = vmul.f32 %v4249, %v4240
    %v4259 = vmul.f32 %v4249, %v4241
    %v4260 = vmul.f32 %v4254, %v4242
    %v4261 = vmul.f32 %v4254, %v4243
    %v4262 = vmul.f32 %v4254, %v4244
    %v4263 = vmul.f32 %v4254, %v4245
    %4264 = vrot.lane.b32.xlu0 %v4198, 16
    %v4265 = vpop.permute.xlu0 %4264
    %4266 = vrot.lane.b32.xlu0 %v4202, 16
    %v4267 = vpop.permute.xlu0 %4266
    %4268 = vrot.lane.b32.xlu0 %v4199, 16
    %v4269 = vpop.permute.xlu0 %4268
    %4270 = vrot.lane.b32.xlu0 %v4203, 16
    %v4271 = vpop.permute.xlu0 %4270
    %4272 = vrot.lane.b32.xlu0 %v4200, 16
    %v4273 = vpop.permute.xlu0 %4272
    %4274 = vrot.lane.b32.xlu0 %v4204, 16
    %v4275 = vpop.permute.xlu0 %4274
    %4276 = vrot.lane.b32.xlu0 %v4201, 16
    %v4277 = vpop.permute.xlu0 %4276
    %4278 = vrot.lane.b32.xlu0 %v4205, 16
    %v4279 = vpop.permute.xlu0 %4278
    %v4280 = vsel %vm273, %v4273, %v4277
    %v4281 = vsel %vm273, %v4275, %v4279
    %v4282 = vsel %vm273, %v4269, %v4273
    %v4283 = vsel %vm273, %v4271, %v4275
    %v4284 = vsel %vm273, %v4265, %v4269
    %v4285 = vsel %vm273, %v4267, %v4271
    %v4286 = vsel %vm273, %v4277, %v4265
    %v4287 = vsel %vm273, %v4279, %v4267
    %v4288 = vmul.f32 %v4286, %v281
    %v4289 = vmul.f32 %v4284, %v282
    %v4290 = vmul.f32 %v4282, %v283
    %v4291 = vmul.f32 %v4280, %v284
    %v4292 = vmul.f32 %v4287, %v281
    %v4293 = vmul.f32 %v4285, %v282
    %v4294 = vmul.f32 %v4283, %v283
    %v4295 = vmul.f32 %v4281, %v284
    %4296 = vset.pattern.permute.xlu0 1
    %4297 = vperm.xlu0 %4296, %v4206
    %v4298 = vpop.permute.xlu0 %4297
    %4300 = vset.pattern.permute.xlu0 1
    %4301 = vperm.xlu0 %4300, %v4207
    %v4302 = vpop.permute.xlu0 %4301
    %v4304 = vmul.f32 %v4298, %v4288
    %v4305 = vmul.f32 %v4298, %v4289
    %v4306 = vmul.f32 %v4298, %v4290
    %v4307 = vmul.f32 %v4298, %v4291
    %v4308 = vmul.f32 %v4302, %v4292
    %v4309 = vmul.f32 %v4302, %v4293
    %v4310 = vmul.f32 %v4302, %v4294
    %v4311 = vmul.f32 %v4302, %v4295
    %v4312 = vadd.f32 %v4256, %v4304
    %v4313 = vadd.f32 %v4257, %v4305
    %v4314 = vadd.f32 %v4258, %v4306
    %v4315 = vadd.f32 %v4259, %v4307
    %v4316 = vadd.f32 %v4260, %v4308
    %v4317 = vadd.f32 %v4261, %v4309
    %v4318 = vadd.f32 %v4262, %v4310
    %v4319 = vadd.f32 %v4263, %v4311
    %4320 = vrot.lane.b32.xlu0 %v4198, 15
    %v4321 = vpop.permute.xlu0 %4320
    %4322 = vrot.lane.b32.xlu0 %v4202, 15
    %v4323 = vpop.permute.xlu0 %4322
    %4324 = vrot.lane.b32.xlu0 %v4199, 15
    %v4325 = vpop.permute.xlu0 %4324
    %4326 = vrot.lane.b32.xlu0 %v4203, 15
    %v4327 = vpop.permute.xlu0 %4326
    %4328 = vrot.lane.b32.xlu0 %v4200, 15
    %v4329 = vpop.permute.xlu0 %4328
    %4330 = vrot.lane.b32.xlu0 %v4204, 15
    %v4331 = vpop.permute.xlu0 %4330
    %4332 = vrot.lane.b32.xlu0 %v4201, 15
    %v4333 = vpop.permute.xlu0 %4332
    %4334 = vrot.lane.b32.xlu0 %v4205, 15
    %v4335 = vpop.permute.xlu0 %4334
    %v4336 = vsel %vm301, %v4329, %v4333
    %v4337 = vsel %vm301, %v4331, %v4335
    %v4338 = vsel %vm301, %v4325, %v4329
    %v4339 = vsel %vm301, %v4327, %v4331
    %v4340 = vsel %vm301, %v4321, %v4325
    %v4341 = vsel %vm301, %v4323, %v4327
    %v4342 = vsel %vm301, %v4333, %v4321
    %v4343 = vsel %vm301, %v4335, %v4323
    %v4344 = vmul.f32 %v4342, %v309
    %v4345 = vmul.f32 %v4340, %v310
    %v4346 = vmul.f32 %v4338, %v311
    %v4347 = vmul.f32 %v4336, %v312
    %v4348 = vmul.f32 %v4343, %v309
    %v4349 = vmul.f32 %v4341, %v310
    %v4350 = vmul.f32 %v4339, %v311
    %v4351 = vmul.f32 %v4337, %v312
    %4352 = vset.pattern.permute.xlu0 2
    %4353 = vperm.xlu0 %4352, %v4206
    %v4354 = vpop.permute.xlu0 %4353
    %4356 = vset.pattern.permute.xlu0 2
    %4357 = vperm.xlu0 %4356, %v4207
    %v4358 = vpop.permute.xlu0 %4357
    %v4360 = vmul.f32 %v4354, %v4344
    %v4361 = vmul.f32 %v4354, %v4345
    %v4362 = vmul.f32 %v4354, %v4346
    %v4363 = vmul.f32 %v4354, %v4347
    %v4364 = vmul.f32 %v4358, %v4348
    %v4365 = vmul.f32 %v4358, %v4349
    %v4366 = vmul.f32 %v4358, %v4350
    %v4367 = vmul.f32 %v4358, %v4351
    %v4368 = vadd.f32 %v4312, %v4360
    %v4369 = vadd.f32 %v4313, %v4361
    %v4370 = vadd.f32 %v4314, %v4362
    %v4371 = vadd.f32 %v4315, %v4363
    %v4372 = vadd.f32 %v4316, %v4364
    %v4373 = vadd.f32 %v4317, %v4365
    %v4374 = vadd.f32 %v4318, %v4366
    %v4375 = vadd.f32 %v4319, %v4367
    %4376 = vrot.lane.b32.xlu0 %v4198, 1
    %v4377 = vpop.permute.xlu0 %4376
    %4378 = vrot.lane.b32.xlu0 %v4202, 1
    %v4379 = vpop.permute.xlu0 %4378
    %4380 = vrot.lane.b32.xlu0 %v4199, 1
    %v4381 = vpop.permute.xlu0 %4380
    %4382 = vrot.lane.b32.xlu0 %v4203, 1
    %v4383 = vpop.permute.xlu0 %4382
    %4384 = vrot.lane.b32.xlu0 %v4200, 1
    %v4385 = vpop.permute.xlu0 %4384
    %4386 = vrot.lane.b32.xlu0 %v4204, 1
    %v4387 = vpop.permute.xlu0 %4386
    %4388 = vrot.lane.b32.xlu0 %v4201, 1
    %v4389 = vpop.permute.xlu0 %4388
    %4390 = vrot.lane.b32.xlu0 %v4205, 1
    %v4391 = vpop.permute.xlu0 %4390
    %v4392 = vsel %vm329, %v4385, %v4389
    %v4393 = vsel %vm329, %v4387, %v4391
    %v4394 = vsel %vm329, %v4381, %v4385
    %v4395 = vsel %vm329, %v4383, %v4387
    %v4396 = vsel %vm329, %v4377, %v4381
    %v4397 = vsel %vm329, %v4379, %v4383
    %v4398 = vsel %vm329, %v4389, %v4377
    %v4399 = vsel %vm329, %v4391, %v4379
    %v4400 = vmul.f32 %v4398, %v337
    %v4401 = vmul.f32 %v4396, %v338
    %v4402 = vmul.f32 %v4394, %v339
    %v4403 = vmul.f32 %v4392, %v340
    %v4404 = vmul.f32 %v4399, %v337
    %v4405 = vmul.f32 %v4397, %v338
    %v4406 = vmul.f32 %v4395, %v339
    %v4407 = vmul.f32 %v4393, %v340
    %4408 = vset.pattern.permute.xlu0 3
    %4409 = vperm.xlu0 %4408, %v4206
    %v4410 = vpop.permute.xlu0 %4409
    %4412 = vset.pattern.permute.xlu0 3
    %4413 = vperm.xlu0 %4412, %v4207
    %v4414 = vpop.permute.xlu0 %4413
    %v4416 = vmul.f32 %v4410, %v4400
    %v4417 = vmul.f32 %v4410, %v4401
    %v4418 = vmul.f32 %v4410, %v4402
    %v4419 = vmul.f32 %v4410, %v4403
    %v4420 = vmul.f32 %v4414, %v4404
    %v4421 = vmul.f32 %v4414, %v4405
    %v4422 = vmul.f32 %v4414, %v4406
    %v4423 = vmul.f32 %v4414, %v4407
    %v4424 = vadd.f32 %v4368, %v4416
    %v4425 = vadd.f32 %v4369, %v4417
    %v4426 = vadd.f32 %v4370, %v4418
    %v4427 = vadd.f32 %v4371, %v4419
    %v4428 = vadd.f32 %v4372, %v4420
    %v4429 = vadd.f32 %v4373, %v4421
    %v4430 = vadd.f32 %v4374, %v4422
    %v4431 = vadd.f32 %v4375, %v4423
    %4432 = vset.pattern.permute.xlu0 4
    %4433 = vperm.xlu0 %4432, %v4206
    %v4434 = vpop.permute.xlu0 %4433
    %4436 = vset.pattern.permute.xlu0 4
    %4437 = vperm.xlu0 %4436, %v4207
    %v4438 = vpop.permute.xlu0 %4437
    %v4440 = vmul.f32 %v4434, %v4198
    %v4441 = vmul.f32 %v4434, %v4199
    %v4442 = vmul.f32 %v4434, %v4200
    %v4443 = vmul.f32 %v4434, %v4201
    %v4444 = vmul.f32 %v4438, %v4202
    %v4445 = vmul.f32 %v4438, %v4203
    %v4446 = vmul.f32 %v4438, %v4204
    %v4447 = vmul.f32 %v4438, %v4205
    %v4448 = vadd.f32 %v4424, %v4440
    %v4449 = vadd.f32 %v4425, %v4441
    %v4450 = vadd.f32 %v4426, %v4442
    %v4451 = vadd.f32 %v4427, %v4443
    %v4452 = vadd.f32 %v4428, %v4444
    %v4453 = vadd.f32 %v4429, %v4445
    %v4454 = vadd.f32 %v4430, %v4446
    %v4455 = vadd.f32 %v4431, %v4447
    %4456 = vrot.lane.b32.xlu0 %v4198, 127
    %v4457 = vpop.permute.xlu0 %4456
    %4458 = vrot.lane.b32.xlu0 %v4202, 127
    %v4459 = vpop.permute.xlu0 %4458
    %4460 = vrot.lane.b32.xlu0 %v4199, 127
    %v4461 = vpop.permute.xlu0 %4460
    %4462 = vrot.lane.b32.xlu0 %v4203, 127
    %v4463 = vpop.permute.xlu0 %4462
    %4464 = vrot.lane.b32.xlu0 %v4200, 127
    %v4465 = vpop.permute.xlu0 %4464
    %4466 = vrot.lane.b32.xlu0 %v4204, 127
    %v4467 = vpop.permute.xlu0 %4466
    %4468 = vrot.lane.b32.xlu0 %v4201, 127
    %v4469 = vpop.permute.xlu0 %4468
    %4470 = vrot.lane.b32.xlu0 %v4205, 127
    %v4471 = vpop.permute.xlu0 %4470
    %v4472 = vsel %vm357, %v4465, %v4469
    %v4473 = vsel %vm357, %v4467, %v4471
    %v4474 = vsel %vm357, %v4461, %v4465
    %v4475 = vsel %vm357, %v4463, %v4467
    %v4476 = vsel %vm357, %v4457, %v4461
    %v4477 = vsel %vm357, %v4459, %v4463
    %v4478 = vsel %vm357, %v4469, %v4457
    %v4479 = vsel %vm357, %v4471, %v4459
    %v4480 = vmul.f32 %v4476, %v365
    %v4481 = vmul.f32 %v4474, %v366
    %v4482 = vmul.f32 %v4472, %v367
    %v4483 = vmul.f32 %v4478, %v368
    %v4484 = vmul.f32 %v4477, %v365
    %v4485 = vmul.f32 %v4475, %v366
    %v4486 = vmul.f32 %v4473, %v367
    %v4487 = vmul.f32 %v4479, %v368
    %4488 = vset.pattern.permute.xlu0 5
    %4489 = vperm.xlu0 %4488, %v4206
    %v4490 = vpop.permute.xlu0 %4489
    %4492 = vset.pattern.permute.xlu0 5
    %4493 = vperm.xlu0 %4492, %v4207
    %v4494 = vpop.permute.xlu0 %4493
    %v4496 = vmul.f32 %v4490, %v4480
    %v4497 = vmul.f32 %v4490, %v4481
    %v4498 = vmul.f32 %v4490, %v4482
    %v4499 = vmul.f32 %v4490, %v4483
    %v4500 = vmul.f32 %v4494, %v4484
    %v4501 = vmul.f32 %v4494, %v4485
    %v4502 = vmul.f32 %v4494, %v4486
    %v4503 = vmul.f32 %v4494, %v4487
    %v4504 = vadd.f32 %v4448, %v4496
    %v4505 = vadd.f32 %v4449, %v4497
    %v4506 = vadd.f32 %v4450, %v4498
    %v4507 = vadd.f32 %v4451, %v4499
    %v4508 = vadd.f32 %v4452, %v4500
    %v4509 = vadd.f32 %v4453, %v4501
    %v4510 = vadd.f32 %v4454, %v4502
    %v4511 = vadd.f32 %v4455, %v4503
    %4512 = vrot.lane.b32.xlu0 %v4198, 113
    %v4513 = vpop.permute.xlu0 %4512
    %4514 = vrot.lane.b32.xlu0 %v4202, 113
    %v4515 = vpop.permute.xlu0 %4514
    %4516 = vrot.lane.b32.xlu0 %v4199, 113
    %v4517 = vpop.permute.xlu0 %4516
    %4518 = vrot.lane.b32.xlu0 %v4203, 113
    %v4519 = vpop.permute.xlu0 %4518
    %4520 = vrot.lane.b32.xlu0 %v4200, 113
    %v4521 = vpop.permute.xlu0 %4520
    %4522 = vrot.lane.b32.xlu0 %v4204, 113
    %v4523 = vpop.permute.xlu0 %4522
    %4524 = vrot.lane.b32.xlu0 %v4201, 113
    %v4525 = vpop.permute.xlu0 %4524
    %4526 = vrot.lane.b32.xlu0 %v4205, 113
    %v4527 = vpop.permute.xlu0 %4526
    %v4528 = vsel %vm385, %v4521, %v4525
    %v4529 = vsel %vm385, %v4523, %v4527
    %v4530 = vsel %vm385, %v4517, %v4521
    %v4531 = vsel %vm385, %v4519, %v4523
    %v4532 = vsel %vm385, %v4513, %v4517
    %v4533 = vsel %vm385, %v4515, %v4519
    %v4534 = vsel %vm385, %v4525, %v4513
    %v4535 = vsel %vm385, %v4527, %v4515
    %v4536 = vmul.f32 %v4532, %v393
    %v4537 = vmul.f32 %v4530, %v394
    %v4538 = vmul.f32 %v4528, %v395
    %v4539 = vmul.f32 %v4534, %v396
    %v4540 = vmul.f32 %v4533, %v393
    %v4541 = vmul.f32 %v4531, %v394
    %v4542 = vmul.f32 %v4529, %v395
    %v4543 = vmul.f32 %v4535, %v396
    %4544 = vset.pattern.permute.xlu0 6
    %4545 = vperm.xlu0 %4544, %v4206
    %v4546 = vpop.permute.xlu0 %4545
    %4548 = vset.pattern.permute.xlu0 6
    %4549 = vperm.xlu0 %4548, %v4207
    %v4550 = vpop.permute.xlu0 %4549
    %v4552 = vmul.f32 %v4546, %v4536
    %v4553 = vmul.f32 %v4546, %v4537
    %v4554 = vmul.f32 %v4546, %v4538
    %v4555 = vmul.f32 %v4546, %v4539
    %v4556 = vmul.f32 %v4550, %v4540
    %v4557 = vmul.f32 %v4550, %v4541
    %v4558 = vmul.f32 %v4550, %v4542
    %v4559 = vmul.f32 %v4550, %v4543
    %v4560 = vadd.f32 %v4504, %v4552
    %v4561 = vadd.f32 %v4505, %v4553
    %v4562 = vadd.f32 %v4506, %v4554
    %v4563 = vadd.f32 %v4507, %v4555
    %v4564 = vadd.f32 %v4508, %v4556
    %v4565 = vadd.f32 %v4509, %v4557
    %v4566 = vadd.f32 %v4510, %v4558
    %v4567 = vadd.f32 %v4511, %v4559
    %4568 = vrot.lane.b32.xlu0 %v4198, 112
    %v4569 = vpop.permute.xlu0 %4568
    %4570 = vrot.lane.b32.xlu0 %v4202, 112
    %v4571 = vpop.permute.xlu0 %4570
    %4572 = vrot.lane.b32.xlu0 %v4199, 112
    %v4573 = vpop.permute.xlu0 %4572
    %4574 = vrot.lane.b32.xlu0 %v4203, 112
    %v4575 = vpop.permute.xlu0 %4574
    %4576 = vrot.lane.b32.xlu0 %v4200, 112
    %v4577 = vpop.permute.xlu0 %4576
    %4578 = vrot.lane.b32.xlu0 %v4204, 112
    %v4579 = vpop.permute.xlu0 %4578
    %4580 = vrot.lane.b32.xlu0 %v4201, 112
    %v4581 = vpop.permute.xlu0 %4580
    %4582 = vrot.lane.b32.xlu0 %v4205, 112
    %v4583 = vpop.permute.xlu0 %4582
    %v4584 = vsel %vm413, %v4577, %v4581
    %v4585 = vsel %vm413, %v4579, %v4583
    %v4586 = vsel %vm413, %v4573, %v4577
    %v4587 = vsel %vm413, %v4575, %v4579
    %v4588 = vsel %vm413, %v4569, %v4573
    %v4589 = vsel %vm413, %v4571, %v4575
    %v4590 = vsel %vm413, %v4581, %v4569
    %v4591 = vsel %vm413, %v4583, %v4571
    %v4592 = vmul.f32 %v4588, %v421
    %v4593 = vmul.f32 %v4586, %v422
    %v4594 = vmul.f32 %v4584, %v423
    %v4595 = vmul.f32 %v4590, %v424
    %v4596 = vmul.f32 %v4589, %v421
    %v4597 = vmul.f32 %v4587, %v422
    %v4598 = vmul.f32 %v4585, %v423
    %v4599 = vmul.f32 %v4591, %v424
    %4600 = vset.pattern.permute.xlu0 7
    %4601 = vperm.xlu0 %4600, %v4206
    %v4602 = vpop.permute.xlu0 %4601
    %4604 = vset.pattern.permute.xlu0 7
    %4605 = vperm.xlu0 %4604, %v4207
    %v4606 = vpop.permute.xlu0 %4605
    %v4608 = vmul.f32 %v4602, %v4592
    %v4609 = vmul.f32 %v4602, %v4593
    %v4610 = vmul.f32 %v4602, %v4594
    %v4611 = vmul.f32 %v4602, %v4595
    %v4612 = vmul.f32 %v4606, %v4596
    %v4613 = vmul.f32 %v4606, %v4597
    %v4614 = vmul.f32 %v4606, %v4598
    %v4615 = vmul.f32 %v4606, %v4599
    %v4616 = vadd.f32 %v4560, %v4608
    %v4617 = vadd.f32 %v4561, %v4609
    %v4618 = vadd.f32 %v4562, %v4610
    %v4619 = vadd.f32 %v4563, %v4611
    %v4620 = vadd.f32 %v4564, %v4612
    %v4621 = vadd.f32 %v4565, %v4613
    %v4622 = vadd.f32 %v4566, %v4614
    %v4623 = vadd.f32 %v4567, %v4615
    %4624 = vrot.lane.b32.xlu0 %v4198, 111
    %v4625 = vpop.permute.xlu0 %4624
    %4626 = vrot.lane.b32.xlu0 %v4202, 111
    %v4627 = vpop.permute.xlu0 %4626
    %4628 = vrot.lane.b32.xlu0 %v4199, 111
    %v4629 = vpop.permute.xlu0 %4628
    %4630 = vrot.lane.b32.xlu0 %v4203, 111
    %v4631 = vpop.permute.xlu0 %4630
    %4632 = vrot.lane.b32.xlu0 %v4200, 111
    %v4633 = vpop.permute.xlu0 %4632
    %4634 = vrot.lane.b32.xlu0 %v4204, 111
    %v4635 = vpop.permute.xlu0 %4634
    %4636 = vrot.lane.b32.xlu0 %v4201, 111
    %v4637 = vpop.permute.xlu0 %4636
    %4638 = vrot.lane.b32.xlu0 %v4205, 111
    %v4639 = vpop.permute.xlu0 %4638
    %v4640 = vsel %vm441, %v4633, %v4637
    %v4641 = vsel %vm441, %v4635, %v4639
    %v4642 = vsel %vm441, %v4629, %v4633
    %v4643 = vsel %vm441, %v4631, %v4635
    %v4644 = vsel %vm441, %v4625, %v4629
    %v4645 = vsel %vm441, %v4627, %v4631
    %v4646 = vsel %vm441, %v4637, %v4625
    %v4647 = vsel %vm441, %v4639, %v4627
    %v4648 = vmul.f32 %v4644, %v449
    %v4649 = vmul.f32 %v4642, %v450
    %v4650 = vmul.f32 %v4640, %v451
    %v4651 = vmul.f32 %v4646, %v452
    %v4652 = vmul.f32 %v4645, %v449
    %v4653 = vmul.f32 %v4643, %v450
    %v4654 = vmul.f32 %v4641, %v451
    %v4655 = vmul.f32 %v4647, %v452
    %4656 = vset.pattern.permute.xlu0 8
    %4657 = vperm.xlu0 %4656, %v4206
    %v4658 = vpop.permute.xlu0 %4657
    %4660 = vset.pattern.permute.xlu0 8
    %4661 = vperm.xlu0 %4660, %v4207
    %v4662 = vpop.permute.xlu0 %4661
    %v4664 = vmul.f32 %v4658, %v4648
    %v4665 = vmul.f32 %v4658, %v4649
    %v4666 = vmul.f32 %v4658, %v4650
    %v4667 = vmul.f32 %v4658, %v4651
    %v4668 = vmul.f32 %v4662, %v4652
    %v4669 = vmul.f32 %v4662, %v4653
    %v4670 = vmul.f32 %v4662, %v4654
    %v4671 = vmul.f32 %v4662, %v4655
    %v4672 = vadd.f32 %v4616, %v4664
    %v4673 = vadd.f32 %v4617, %v4665
    %v4674 = vadd.f32 %v4618, %v4666
    %v4675 = vadd.f32 %v4619, %v4667
    %v4676 = vadd.f32 %v4620, %v4668
    %v4677 = vadd.f32 %v4621, %v4669
    %v4678 = vadd.f32 %v4622, %v4670
    %v4679 = vadd.f32 %v4623, %v4671
    %4681 = vset.pattern.permute.xlu0 0
    %4682 = vperm.xlu0 %4681, %v4208
    %v4683 = vpop.permute.xlu0 %4682
    %4686 = vset.pattern.permute.xlu0 0
    %4687 = vperm.xlu0 %4686, %v4209
    %v4688 = vpop.permute.xlu0 %4687
    %v4690 = vadd.f32 %v4672, %v4683
    %v4691 = vadd.f32 %v4673, %v4683
    %v4692 = vadd.f32 %v4674, %v4683
    %v4693 = vadd.f32 %v4675, %v4683
    %v4694 = vadd.f32 %v4676, %v4688
    %v4695 = vadd.f32 %v4677, %v4688
    %v4696 = vadd.f32 %v4678, %v4688
    %v4697 = vadd.f32 %v4679, %v4688
    %v4698 = vmax.f32 %v4690, 0.0
    %v4699 = vmax.f32 %v4691, 0.0
    %v4700 = vmax.f32 %v4692, 0.0
    %v4701 = vmax.f32 %v4693, 0.0
    %v4702 = vmax.f32 %v4694, 0.0
    %v4703 = vmax.f32 %v4695, 0.0
    %v4704 = vmax.f32 %v4696, 0.0
    %v4705 = vmax.f32 %v4697, 0.0
    %v4706 = vpack.c.bf16 %v4702, %v4698
    %v4707 = vpack.c.bf16 %v4703, %v4699
    %v4708 = vpack.c.bf16 %v4704, %v4700
    %v4709 = vpack.c.bf16 %v4705, %v4701
    %4711 = vset.pattern.permute.xlu0 0
    %4712 = vperm.xlu0 %4711, %v4212
    %v4713 = vpop.permute.xlu0 %4712
    %4716 = vset.pattern.permute.xlu0 0
    %4717 = vperm.xlu0 %4716, %v4213
    %v4718 = vpop.permute.xlu0 %4717
    %v4722 = vunpack.c.l.b16 %v4210
    %v4723 = vunpack.c.l.b16 %v4211
    %v4724 = vpack.c.b16 %v4723, %v4722
    %v4726 = vsel %vm576, %v4724, 0
    %4728 = vmatpush.bf16.msra.mxu0 0
    %4729 = vmatpush.bf16.msra.mxu0 0
    %4730 = vmatpush.bf16.msra.mxu0 0
    %4731 = vmatpush.bf16.msra.mxu0 0
    %4732 = vmatpush.bf16.msra.mxu0 0
    %4733 = vmatpush.bf16.msra.mxu0 0
    %4734 = vmatpush.bf16.msra.mxu0 0
    %4735 = vmatpush.bf16.msra.mxu0 %v4706
    %4736 = vmatmul.bf16.gmra.mxu0 %v4726
    %v4737 = vpop.f32.mrf.mxu0
    %v4738 = vadd.f32 %v4713, %v4737
    %v4739 = vpop.f32.mrf.mxu0
    %v4740 = vadd.f32 %v4718, %v4739
    %4741 = vdwg.mxu0
    %4742 = vmatpush.bf16.msra.mxu0 0
    %4743 = vmatpush.bf16.msra.mxu0 0
    %4744 = vmatpush.bf16.msra.mxu0 0
    %4745 = vmatpush.bf16.msra.mxu0 0
    %4746 = vmatpush.bf16.msra.mxu0 0
    %4747 = vmatpush.bf16.msra.mxu0 0
    %4748 = vmatpush.bf16.msra.mxu0 0
    %4749 = vmatpush.bf16.msra.mxu0 %v4707
    %4750 = vmatmul.bf16.gmra.mxu0 %v4726
    %v4751 = vpop.f32.mrf.mxu0
    %v4752 = vadd.f32 %v4713, %v4751
    %v4753 = vpop.f32.mrf.mxu0
    %v4754 = vadd.f32 %v4718, %v4753
    %4755 = vdwg.mxu0
    %4756 = vmatpush.bf16.msra.mxu0 0
    %4757 = vmatpush.bf16.msra.mxu0 0
    %4758 = vmatpush.bf16.msra.mxu0 0
    %4759 = vmatpush.bf16.msra.mxu0 0
    %4760 = vmatpush.bf16.msra.mxu0 0
    %4761 = vmatpush.bf16.msra.mxu0 0
    %4762 = vmatpush.bf16.msra.mxu0 0
    %4763 = vmatpush.bf16.msra.mxu0 %v4708
    %4764 = vmatmul.bf16.gmra.mxu0 %v4726
    %v4765 = vpop.f32.mrf.mxu0
    %v4766 = vadd.f32 %v4713, %v4765
    %v4767 = vpop.f32.mrf.mxu0
    %v4768 = vadd.f32 %v4718, %v4767
    %4769 = vdwg.mxu0
    %4770 = vmatpush.bf16.msra.mxu0 0
    %4771 = vmatpush.bf16.msra.mxu0 0
    %4772 = vmatpush.bf16.msra.mxu0 0
    %4773 = vmatpush.bf16.msra.mxu0 0
    %4774 = vmatpush.bf16.msra.mxu0 0
    %4775 = vmatpush.bf16.msra.mxu0 0
    %4776 = vmatpush.bf16.msra.mxu0 0
    %4777 = vmatpush.bf16.msra.mxu0 %v4709
    %4778 = vmatmul.bf16.gmra.mxu0 %v4726
    %v4779 = vpop.f32.mrf.mxu0
    %v4780 = vadd.f32 %v4713, %v4779
    %v4781 = vpop.f32.mrf.mxu0
    %v4782 = vadd.f32 %v4718, %v4781
    %4783 = vdwg.mxu0
    %s4784 = scalar_lea.vmem %s12, 16
    %v4785 = vld [vmem:[%s4784] sm:$0xff]
    %v4786 = vld [vmem:[%s4784 + $0x8] sm:$0xff]
    %s4787 = scalar_lea.vmem %s13, 16
    %v4788 = vld [vmem:[%s4787] sm:$0xff]
    %v4789 = vld [vmem:[%s4787 + $0x8] sm:$0xff]
    %s4790 = scalar_lea.vmem [#allocation11], 8
    %v4791 = vld [vmem:[%s4790] sm:$0xf]
    %v4792 = vld [vmem:[%s4790 + $0x4] sm:$0xf]
    %s4793 = scalar_lea.vmem %s15, 16
    %v4794 = vld [vmem:[%s4793] sm:$0xff]
    %v4795 = vld [vmem:[%s4793 + $0x8] sm:$0xff]
    %4796 = vrot.lane.b32.xlu0 %v4738, 17
    %v4797 = vpop.permute.xlu0 %4796
    %4798 = vrot.lane.b32.xlu0 %v4740, 17
    %v4799 = vpop.permute.xlu0 %4798
    %4800 = vrot.lane.b32.xlu0 %v4752, 17
    %v4801 = vpop.permute.xlu0 %4800
    %4802 = vrot.lane.b32.xlu0 %v4754, 17
    %v4803 = vpop.permute.xlu0 %4802
    %4804 = vrot.lane.b32.xlu0 %v4766, 17
    %v4805 = vpop.permute.xlu0 %4804
    %4806 = vrot.lane.b32.xlu0 %v4768, 17
    %v4807 = vpop.permute.xlu0 %4806
    %4808 = vrot.lane.b32.xlu0 %v4780, 17
    %v4809 = vpop.permute.xlu0 %4808
    %4810 = vrot.lane.b32.xlu0 %v4782, 17
    %v4811 = vpop.permute.xlu0 %4810
    %v4812 = vsel %vm245, %v4805, %v4809
    %v4813 = vsel %vm245, %v4807, %v4811
    %v4814 = vsel %vm245, %v4801, %v4805
    %v4815 = vsel %vm245, %v4803, %v4807
    %v4816 = vsel %vm245, %v4797, %v4801
    %v4817 = vsel %vm245, %v4799, %v4803
    %v4818 = vsel %vm245, %v4809, %v4797
    %v4819 = vsel %vm245, %v4811, %v4799
    %v4820 = vmul.f32 %v4818, %v253
    %v4821 = vmul.f32 %v4816, %v254
    %v4822 = vmul.f32 %v4814, %v255
    %v4823 = vmul.f32 %v4812, %v256
    %v4824 = vmul.f32 %v4819, %v253
    %v4825 = vmul.f32 %v4817, %v254
    %v4826 = vmul.f32 %v4815, %v255
    %v4827 = vmul.f32 %v4813, %v256
    %4829 = vset.pattern.permute.xlu0 0
    %4830 = vperm.xlu0 %4829, %v4785
    %v4831 = vpop.permute.xlu0 %4830
    %4834 = vset.pattern.permute.xlu0 0
    %4835 = vperm.xlu0 %4834, %v4786
    %v4836 = vpop.permute.xlu0 %4835
    %v4838 = vmul.f32 %v4831, %v4820
    %v4839 = vmul.f32 %v4831, %v4821
    %v4840 = vmul.f32 %v4831, %v4822
    %v4841 = vmul.f32 %v4831, %v4823
    %v4842 = vmul.f32 %v4836, %v4824
    %v4843 = vmul.f32 %v4836, %v4825
    %v4844 = vmul.f32 %v4836, %v4826
    %v4845 = vmul.f32 %v4836, %v4827
    %4846 = vrot.lane.b32.xlu0 %v4738, 16
    %v4847 = vpop.permute.xlu0 %4846
    %4848 = vrot.lane.b32.xlu0 %v4740, 16
    %v4849 = vpop.permute.xlu0 %4848
    %4850 = vrot.lane.b32.xlu0 %v4752, 16
    %v4851 = vpop.permute.xlu0 %4850
    %4852 = vrot.lane.b32.xlu0 %v4754, 16
    %v4853 = vpop.permute.xlu0 %4852
    %4854 = vrot.lane.b32.xlu0 %v4766, 16
    %v4855 = vpop.permute.xlu0 %4854
    %4856 = vrot.lane.b32.xlu0 %v4768, 16
    %v4857 = vpop.permute.xlu0 %4856
    %4858 = vrot.lane.b32.xlu0 %v4780, 16
    %v4859 = vpop.permute.xlu0 %4858
    %4860 = vrot.lane.b32.xlu0 %v4782, 16
    %v4861 = vpop.permute.xlu0 %4860
    %v4862 = vsel %vm273, %v4855, %v4859
    %v4863 = vsel %vm273, %v4857, %v4861
    %v4864 = vsel %vm273, %v4851, %v4855
    %v4865 = vsel %vm273, %v4853, %v4857
    %v4866 = vsel %vm273, %v4847, %v4851
    %v4867 = vsel %vm273, %v4849, %v4853
    %v4868 = vsel %vm273, %v4859, %v4847
    %v4869 = vsel %vm273, %v4861, %v4849
    %v4870 = vmul.f32 %v4868, %v281
    %v4871 = vmul.f32 %v4866, %v282
    %v4872 = vmul.f32 %v4864, %v283
    %v4873 = vmul.f32 %v4862, %v284
    %v4874 = vmul.f32 %v4869, %v281
    %v4875 = vmul.f32 %v4867, %v282
    %v4876 = vmul.f32 %v4865, %v283
    %v4877 = vmul.f32 %v4863, %v284
    %4878 = vset.pattern.permute.xlu0 1
    %4879 = vperm.xlu0 %4878, %v4785
    %v4880 = vpop.permute.xlu0 %4879
    %4882 = vset.pattern.permute.xlu0 1
    %4883 = vperm.xlu0 %4882, %v4786
    %v4884 = vpop.permute.xlu0 %4883
    %v4886 = vmul.f32 %v4880, %v4870
    %v4887 = vmul.f32 %v4880, %v4871
    %v4888 = vmul.f32 %v4880, %v4872
    %v4889 = vmul.f32 %v4880, %v4873
    %v4890 = vmul.f32 %v4884, %v4874
    %v4891 = vmul.f32 %v4884, %v4875
    %v4892 = vmul.f32 %v4884, %v4876
    %v4893 = vmul.f32 %v4884, %v4877
    %v4894 = vadd.f32 %v4838, %v4886
    %v4895 = vadd.f32 %v4839, %v4887
    %v4896 = vadd.f32 %v4840, %v4888
    %v4897 = vadd.f32 %v4841, %v4889
    %v4898 = vadd.f32 %v4842, %v4890
    %v4899 = vadd.f32 %v4843, %v4891
    %v4900 = vadd.f32 %v4844, %v4892
    %v4901 = vadd.f32 %v4845, %v4893
    %4902 = vrot.lane.b32.xlu0 %v4738, 15
    %v4903 = vpop.permute.xlu0 %4902
    %4904 = vrot.lane.b32.xlu0 %v4740, 15
    %v4905 = vpop.permute.xlu0 %4904
    %4906 = vrot.lane.b32.xlu0 %v4752, 15
    %v4907 = vpop.permute.xlu0 %4906
    %4908 = vrot.lane.b32.xlu0 %v4754, 15
    %v4909 = vpop.permute.xlu0 %4908
    %4910 = vrot.lane.b32.xlu0 %v4766, 15
    %v4911 = vpop.permute.xlu0 %4910
    %4912 = vrot.lane.b32.xlu0 %v4768, 15
    %v4913 = vpop.permute.xlu0 %4912
    %4914 = vrot.lane.b32.xlu0 %v4780, 15
    %v4915 = vpop.permute.xlu0 %4914
    %4916 = vrot.lane.b32.xlu0 %v4782, 15
    %v4917 = vpop.permute.xlu0 %4916
    %v4918 = vsel %vm301, %v4911, %v4915
    %v4919 = vsel %vm301, %v4913, %v4917
    %v4920 = vsel %vm301, %v4907, %v4911
    %v4921 = vsel %vm301, %v4909, %v4913
    %v4922 = vsel %vm301, %v4903, %v4907
    %v4923 = vsel %vm301, %v4905, %v4909
    %v4924 = vsel %vm301, %v4915, %v4903
    %v4925 = vsel %vm301, %v4917, %v4905
    %v4926 = vmul.f32 %v4924, %v309
    %v4927 = vmul.f32 %v4922, %v310
    %v4928 = vmul.f32 %v4920, %v311
    %v4929 = vmul.f32 %v4918, %v312
    %v4930 = vmul.f32 %v4925, %v309
    %v4931 = vmul.f32 %v4923, %v310
    %v4932 = vmul.f32 %v4921, %v311
    %v4933 = vmul.f32 %v4919, %v312
    %4934 = vset.pattern.permute.xlu0 2
    %4935 = vperm.xlu0 %4934, %v4785
    %v4936 = vpop.permute.xlu0 %4935
    %4938 = vset.pattern.permute.xlu0 2
    %4939 = vperm.xlu0 %4938, %v4786
    %v4940 = vpop.permute.xlu0 %4939
    %v4942 = vmul.f32 %v4936, %v4926
    %v4943 = vmul.f32 %v4936, %v4927
    %v4944 = vmul.f32 %v4936, %v4928
    %v4945 = vmul.f32 %v4936, %v4929
    %v4946 = vmul.f32 %v4940, %v4930
    %v4947 = vmul.f32 %v4940, %v4931
    %v4948 = vmul.f32 %v4940, %v4932
    %v4949 = vmul.f32 %v4940, %v4933
    %v4950 = vadd.f32 %v4894, %v4942
    %v4951 = vadd.f32 %v4895, %v4943
    %v4952 = vadd.f32 %v4896, %v4944
    %v4953 = vadd.f32 %v4897, %v4945
    %v4954 = vadd.f32 %v4898, %v4946
    %v4955 = vadd.f32 %v4899, %v4947
    %v4956 = vadd.f32 %v4900, %v4948
    %v4957 = vadd.f32 %v4901, %v4949
    %4958 = vrot.lane.b32.xlu0 %v4738, 1
    %v4959 = vpop.permute.xlu0 %4958
    %4960 = vrot.lane.b32.xlu0 %v4740, 1
    %v4961 = vpop.permute.xlu0 %4960
    %4962 = vrot.lane.b32.xlu0 %v4752, 1
    %v4963 = vpop.permute.xlu0 %4962
    %4964 = vrot.lane.b32.xlu0 %v4754, 1
    %v4965 = vpop.permute.xlu0 %4964
    %4966 = vrot.lane.b32.xlu0 %v4766, 1
    %v4967 = vpop.permute.xlu0 %4966
    %4968 = vrot.lane.b32.xlu0 %v4768, 1
    %v4969 = vpop.permute.xlu0 %4968
    %4970 = vrot.lane.b32.xlu0 %v4780, 1
    %v4971 = vpop.permute.xlu0 %4970
    %4972 = vrot.lane.b32.xlu0 %v4782, 1
    %v4973 = vpop.permute.xlu0 %4972
    %v4974 = vsel %vm329, %v4967, %v4971
    %v4975 = vsel %vm329, %v4969, %v4973
    %v4976 = vsel %vm329, %v4963, %v4967
    %v4977 = vsel %vm329, %v4965, %v4969
    %v4978 = vsel %vm329, %v4959, %v4963
    %v4979 = vsel %vm329, %v4961, %v4965
    %v4980 = vsel %vm329, %v4971, %v4959
    %v4981 = vsel %vm329, %v4973, %v4961
    %v4982 = vmul.f32 %v4980, %v337
    %v4983 = vmul.f32 %v4978, %v338
    %v4984 = vmul.f32 %v4976, %v339
    %v4985 = vmul.f32 %v4974, %v340
    %v4986 = vmul.f32 %v4981, %v337
    %v4987 = vmul.f32 %v4979, %v338
    %v4988 = vmul.f32 %v4977, %v339
    %v4989 = vmul.f32 %v4975, %v340
    %4990 = vset.pattern.permute.xlu0 3
    %4991 = vperm.xlu0 %4990, %v4785
    %v4992 = vpop.permute.xlu0 %4991
    %4994 = vset.pattern.permute.xlu0 3
    %4995 = vperm.xlu0 %4994, %v4786
    %v4996 = vpop.permute.xlu0 %4995
    %v4998 = vmul.f32 %v4992, %v4982
    %v4999 = vmul.f32 %v4992, %v4983
    %v5000 = vmul.f32 %v4992, %v4984
    %v5001 = vmul.f32 %v4992, %v4985
    %v5002 = vmul.f32 %v4996, %v4986
    %v5003 = vmul.f32 %v4996, %v4987
    %v5004 = vmul.f32 %v4996, %v4988
    %v5005 = vmul.f32 %v4996, %v4989
    %v5006 = vadd.f32 %v4950, %v4998
    %v5007 = vadd.f32 %v4951, %v4999
    %v5008 = vadd.f32 %v4952, %v5000
    %v5009 = vadd.f32 %v4953, %v5001
    %v5010 = vadd.f32 %v4954, %v5002
    %v5011 = vadd.f32 %v4955, %v5003
    %v5012 = vadd.f32 %v4956, %v5004
    %v5013 = vadd.f32 %v4957, %v5005
    %5014 = vset.pattern.permute.xlu0 4
    %5015 = vperm.xlu0 %5014, %v4785
    %v5016 = vpop.permute.xlu0 %5015
    %5018 = vset.pattern.permute.xlu0 4
    %5019 = vperm.xlu0 %5018, %v4786
    %v5020 = vpop.permute.xlu0 %5019
    %v5022 = vmul.f32 %v5016, %v4738
    %v5023 = vmul.f32 %v5016, %v4752
    %v5024 = vmul.f32 %v5016, %v4766
    %v5025 = vmul.f32 %v5016, %v4780
    %v5026 = vmul.f32 %v5020, %v4740
    %v5027 = vmul.f32 %v5020, %v4754
    %v5028 = vmul.f32 %v5020, %v4768
    %v5029 = vmul.f32 %v5020, %v4782
    %v5030 = vadd.f32 %v5006, %v5022
    %v5031 = vadd.f32 %v5007, %v5023
    %v5032 = vadd.f32 %v5008, %v5024
    %v5033 = vadd.f32 %v5009, %v5025
    %v5034 = vadd.f32 %v5010, %v5026
    %v5035 = vadd.f32 %v5011, %v5027
    %v5036 = vadd.f32 %v5012, %v5028
    %v5037 = vadd.f32 %v5013, %v5029
    %5038 = vrot.lane.b32.xlu0 %v4738, 127
    %v5039 = vpop.permute.xlu0 %5038
    %5040 = vrot.lane.b32.xlu0 %v4740, 127
    %v5041 = vpop.permute.xlu0 %5040
    %5042 = vrot.lane.b32.xlu0 %v4752, 127
    %v5043 = vpop.permute.xlu0 %5042
    %5044 = vrot.lane.b32.xlu0 %v4754, 127
    %v5045 = vpop.permute.xlu0 %5044
    %5046 = vrot.lane.b32.xlu0 %v4766, 127
    %v5047 = vpop.permute.xlu0 %5046
    %5048 = vrot.lane.b32.xlu0 %v4768, 127
    %v5049 = vpop.permute.xlu0 %5048
    %5050 = vrot.lane.b32.xlu0 %v4780, 127
    %v5051 = vpop.permute.xlu0 %5050
    %5052 = vrot.lane.b32.xlu0 %v4782, 127
    %v5053 = vpop.permute.xlu0 %5052
    %v5054 = vsel %vm357, %v5047, %v5051
    %v5055 = vsel %vm357, %v5049, %v5053
    %v5056 = vsel %vm357, %v5043, %v5047
    %v5057 = vsel %vm357, %v5045, %v5049
    %v5058 = vsel %vm357, %v5039, %v5043
    %v5059 = vsel %vm357, %v5041, %v5045
    %v5060 = vsel %vm357, %v5051, %v5039
    %v5061 = vsel %vm357, %v5053, %v5041
    %v5062 = vmul.f32 %v5058, %v365
    %v5063 = vmul.f32 %v5056, %v366
    %v5064 = vmul.f32 %v5054, %v367
    %v5065 = vmul.f32 %v5060, %v368
    %v5066 = vmul.f32 %v5059, %v365
    %v5067 = vmul.f32 %v5057, %v366
    %v5068 = vmul.f32 %v5055, %v367
    %v5069 = vmul.f32 %v5061, %v368
    %5070 = vset.pattern.permute.xlu0 5
    %5071 = vperm.xlu0 %5070, %v4785
    %v5072 = vpop.permute.xlu0 %5071
    %5074 = vset.pattern.permute.xlu0 5
    %5075 = vperm.xlu0 %5074, %v4786
    %v5076 = vpop.permute.xlu0 %5075
    %v5078 = vmul.f32 %v5072, %v5062
    %v5079 = vmul.f32 %v5072, %v5063
    %v5080 = vmul.f32 %v5072, %v5064
    %v5081 = vmul.f32 %v5072, %v5065
    %v5082 = vmul.f32 %v5076, %v5066
    %v5083 = vmul.f32 %v5076, %v5067
    %v5084 = vmul.f32 %v5076, %v5068
    %v5085 = vmul.f32 %v5076, %v5069
    %v5086 = vadd.f32 %v5030, %v5078
    %v5087 = vadd.f32 %v5031, %v5079
    %v5088 = vadd.f32 %v5032, %v5080
    %v5089 = vadd.f32 %v5033, %v5081
    %v5090 = vadd.f32 %v5034, %v5082
    %v5091 = vadd.f32 %v5035, %v5083
    %v5092 = vadd.f32 %v5036, %v5084
    %v5093 = vadd.f32 %v5037, %v5085
    %5094 = vrot.lane.b32.xlu0 %v4738, 113
    %v5095 = vpop.permute.xlu0 %5094
    %5096 = vrot.lane.b32.xlu0 %v4740, 113
    %v5097 = vpop.permute.xlu0 %5096
    %5098 = vrot.lane.b32.xlu0 %v4752, 113
    %v5099 = vpop.permute.xlu0 %5098
    %5100 = vrot.lane.b32.xlu0 %v4754, 113
    %v5101 = vpop.permute.xlu0 %5100
    %5102 = vrot.lane.b32.xlu0 %v4766, 113
    %v5103 = vpop.permute.xlu0 %5102
    %5104 = vrot.lane.b32.xlu0 %v4768, 113
    %v5105 = vpop.permute.xlu0 %5104
    %5106 = vrot.lane.b32.xlu0 %v4780, 113
    %v5107 = vpop.permute.xlu0 %5106
    %5108 = vrot.lane.b32.xlu0 %v4782, 113
    %v5109 = vpop.permute.xlu0 %5108
    %v5110 = vsel %vm385, %v5103, %v5107
    %v5111 = vsel %vm385, %v5105, %v5109
    %v5112 = vsel %vm385, %v5099, %v5103
    %v5113 = vsel %vm385, %v5101, %v5105
    %v5114 = vsel %vm385, %v5095, %v5099
    %v5115 = vsel %vm385, %v5097, %v5101
    %v5116 = vsel %vm385, %v5107, %v5095
    %v5117 = vsel %vm385, %v5109, %v5097
    %v5118 = vmul.f32 %v5114, %v393
    %v5119 = vmul.f32 %v5112, %v394
    %v5120 = vmul.f32 %v5110, %v395
    %v5121 = vmul.f32 %v5116, %v396
    %v5122 = vmul.f32 %v5115, %v393
    %v5123 = vmul.f32 %v5113, %v394
    %v5124 = vmul.f32 %v5111, %v395
    %v5125 = vmul.f32 %v5117, %v396
    %5126 = vset.pattern.permute.xlu0 6
    %5127 = vperm.xlu0 %5126, %v4785
    %v5128 = vpop.permute.xlu0 %5127
    %5130 = vset.pattern.permute.xlu0 6
    %5131 = vperm.xlu0 %5130, %v4786
    %v5132 = vpop.permute.xlu0 %5131
    %v5134 = vmul.f32 %v5128, %v5118
    %v5135 = vmul.f32 %v5128, %v5119
    %v5136 = vmul.f32 %v5128, %v5120
    %v5137 = vmul.f32 %v5128, %v5121
    %v5138 = vmul.f32 %v5132, %v5122
    %v5139 = vmul.f32 %v5132, %v5123
    %v5140 = vmul.f32 %v5132, %v5124
    %v5141 = vmul.f32 %v5132, %v5125
    %v5142 = vadd.f32 %v5086, %v5134
    %v5143 = vadd.f32 %v5087, %v5135
    %v5144 = vadd.f32 %v5088, %v5136
    %v5145 = vadd.f32 %v5089, %v5137
    %v5146 = vadd.f32 %v5090, %v5138
    %v5147 = vadd.f32 %v5091, %v5139
    %v5148 = vadd.f32 %v5092, %v5140
    %v5149 = vadd.f32 %v5093, %v5141
    %5150 = vrot.lane.b32.xlu0 %v4738, 112
    %v5151 = vpop.permute.xlu0 %5150
    %5152 = vrot.lane.b32.xlu0 %v4740, 112
    %v5153 = vpop.permute.xlu0 %5152
    %5154 = vrot.lane.b32.xlu0 %v4752, 112
    %v5155 = vpop.permute.xlu0 %5154
    %5156 = vrot.lane.b32.xlu0 %v4754, 112
    %v5157 = vpop.permute.xlu0 %5156
    %5158 = vrot.lane.b32.xlu0 %v4766, 112
    %v5159 = vpop.permute.xlu0 %5158
    %5160 = vrot.lane.b32.xlu0 %v4768, 112
    %v5161 = vpop.permute.xlu0 %5160
    %5162 = vrot.lane.b32.xlu0 %v4780, 112
    %v5163 = vpop.permute.xlu0 %5162
    %5164 = vrot.lane.b32.xlu0 %v4782, 112
    %v5165 = vpop.permute.xlu0 %5164
    %v5166 = vsel %vm413, %v5159, %v5163
    %v5167 = vsel %vm413, %v5161, %v5165
    %v5168 = vsel %vm413, %v5155, %v5159
    %v5169 = vsel %vm413, %v5157, %v5161
    %v5170 = vsel %vm413, %v5151, %v5155
    %v5171 = vsel %vm413, %v5153, %v5157
    %v5172 = vsel %vm413, %v5163, %v5151
    %v5173 = vsel %vm413, %v5165, %v5153
    %v5174 = vmul.f32 %v5170, %v421
    %v5175 = vmul.f32 %v5168, %v422
    %v5176 = vmul.f32 %v5166, %v423
    %v5177 = vmul.f32 %v5172, %v424
    %v5178 = vmul.f32 %v5171, %v421
    %v5179 = vmul.f32 %v5169, %v422
    %v5180 = vmul.f32 %v5167, %v423
    %v5181 = vmul.f32 %v5173, %v424
    %5182 = vset.pattern.permute.xlu0 7
    %5183 = vperm.xlu0 %5182, %v4785
    %v5184 = vpop.permute.xlu0 %5183
    %5186 = vset.pattern.permute.xlu0 7
    %5187 = vperm.xlu0 %5186, %v4786
    %v5188 = vpop.permute.xlu0 %5187
    %v5190 = vmul.f32 %v5184, %v5174
    %v5191 = vmul.f32 %v5184, %v5175
    %v5192 = vmul.f32 %v5184, %v5176
    %v5193 = vmul.f32 %v5184, %v5177
    %v5194 = vmul.f32 %v5188, %v5178
    %v5195 = vmul.f32 %v5188, %v5179
    %v5196 = vmul.f32 %v5188, %v5180
    %v5197 = vmul.f32 %v5188, %v5181
    %v5198 = vadd.f32 %v5142, %v5190
    %v5199 = vadd.f32 %v5143, %v5191
    %v5200 = vadd.f32 %v5144, %v5192
    %v5201 = vadd.f32 %v5145, %v5193
    %v5202 = vadd.f32 %v5146, %v5194
    %v5203 = vadd.f32 %v5147, %v5195
    %v5204 = vadd.f32 %v5148, %v5196
    %v5205 = vadd.f32 %v5149, %v5197
    %5206 = vrot.lane.b32.xlu0 %v4738, 111
    %v5207 = vpop.permute.xlu0 %5206
    %5208 = vrot.lane.b32.xlu0 %v4740, 111
    %v5209 = vpop.permute.xlu0 %5208
    %5210 = vrot.lane.b32.xlu0 %v4752, 111
    %v5211 = vpop.permute.xlu0 %5210
    %5212 = vrot.lane.b32.xlu0 %v4754, 111
    %v5213 = vpop.permute.xlu0 %5212
    %5214 = vrot.lane.b32.xlu0 %v4766, 111
    %v5215 = vpop.permute.xlu0 %5214
    %5216 = vrot.lane.b32.xlu0 %v4768, 111
    %v5217 = vpop.permute.xlu0 %5216
    %5218 = vrot.lane.b32.xlu0 %v4780, 111
    %v5219 = vpop.permute.xlu0 %5218
    %5220 = vrot.lane.b32.xlu0 %v4782, 111
    %v5221 = vpop.permute.xlu0 %5220
    %v5222 = vsel %vm441, %v5215, %v5219
    %v5223 = vsel %vm441, %v5217, %v5221
    %v5224 = vsel %vm441, %v5211, %v5215
    %v5225 = vsel %vm441, %v5213, %v5217
    %v5226 = vsel %vm441, %v5207, %v5211
    %v5227 = vsel %vm441, %v5209, %v5213
    %v5228 = vsel %vm441, %v5219, %v5207
    %v5229 = vsel %vm441, %v5221, %v5209
    %v5230 = vmul.f32 %v5226, %v449
    %v5231 = vmul.f32 %v5224, %v450
    %v5232 = vmul.f32 %v5222, %v451
    %v5233 = vmul.f32 %v5228, %v452
    %v5234 = vmul.f32 %v5227, %v449
    %v5235 = vmul.f32 %v5225, %v450
    %v5236 = vmul.f32 %v5223, %v451
    %v5237 = vmul.f32 %v5229, %v452
    %5238 = vset.pattern.permute.xlu0 8
    %5239 = vperm.xlu0 %5238, %v4785
    %v5240 = vpop.permute.xlu0 %5239
    %5242 = vset.pattern.permute.xlu0 8
    %5243 = vperm.xlu0 %5242, %v4786
    %v5244 = vpop.permute.xlu0 %5243
    %v5246 = vmul.f32 %v5240, %v5230
    %v5247 = vmul.f32 %v5240, %v5231
    %v5248 = vmul.f32 %v5240, %v5232
    %v5249 = vmul.f32 %v5240, %v5233
    %v5250 = vmul.f32 %v5244, %v5234
    %v5251 = vmul.f32 %v5244, %v5235
    %v5252 = vmul.f32 %v5244, %v5236
    %v5253 = vmul.f32 %v5244, %v5237
    %v5254 = vadd.f32 %v5198, %v5246
    %v5255 = vadd.f32 %v5199, %v5247
    %v5256 = vadd.f32 %v5200, %v5248
    %v5257 = vadd.f32 %v5201, %v5249
    %v5258 = vadd.f32 %v5202, %v5250
    %v5259 = vadd.f32 %v5203, %v5251
    %v5260 = vadd.f32 %v5204, %v5252
    %v5261 = vadd.f32 %v5205, %v5253
    %5263 = vset.pattern.permute.xlu0 0
    %5264 = vperm.xlu0 %5263, %v4788
    %v5265 = vpop.permute.xlu0 %5264
    %5268 = vset.pattern.permute.xlu0 0
    %5269 = vperm.xlu0 %5268, %v4789
    %v5270 = vpop.permute.xlu0 %5269
    %v5272 = vadd.f32 %v5254, %v5265
    %v5273 = vadd.f32 %v5255, %v5265
    %v5274 = vadd.f32 %v5256, %v5265
    %v5275 = vadd.f32 %v5257, %v5265
    %v5276 = vadd.f32 %v5258, %v5270
    %v5277 = vadd.f32 %v5259, %v5270
    %v5278 = vadd.f32 %v5260, %v5270
    %v5279 = vadd.f32 %v5261, %v5270
    %v5280 = vmax.f32 %v5272, 0.0
    %v5281 = vmax.f32 %v5273, 0.0
    %v5282 = vmax.f32 %v5274, 0.0
    %v5283 = vmax.f32 %v5275, 0.0
    %v5284 = vmax.f32 %v5276, 0.0
    %v5285 = vmax.f32 %v5277, 0.0
    %v5286 = vmax.f32 %v5278, 0.0
    %v5287 = vmax.f32 %v5279, 0.0
    %v5288 = vpack.c.bf16 %v5284, %v5280
    %v5289 = vpack.c.bf16 %v5285, %v5281
    %v5290 = vpack.c.bf16 %v5286, %v5282
    %v5291 = vpack.c.bf16 %v5287, %v5283
    %5293 = vset.pattern.permute.xlu0 0
    %5294 = vperm.xlu0 %5293, %v4794
    %v5295 = vpop.permute.xlu0 %5294
    %5298 = vset.pattern.permute.xlu0 0
    %5299 = vperm.xlu0 %5298, %v4795
    %v5300 = vpop.permute.xlu0 %5299
    %v5304 = vunpack.c.l.b16 %v4791
    %v5305 = vunpack.c.l.b16 %v4792
    %v5306 = vpack.c.b16 %v5305, %v5304
    %v5308 = vsel %vm576, %v5306, 0
    %5310 = vmatpush.bf16.msra.mxu0 0
    %5311 = vmatpush.bf16.msra.mxu0 0
    %5312 = vmatpush.bf16.msra.mxu0 0
    %5313 = vmatpush.bf16.msra.mxu0 0
    %5314 = vmatpush.bf16.msra.mxu0 0
    %5315 = vmatpush.bf16.msra.mxu0 0
    %5316 = vmatpush.bf16.msra.mxu0 0
    %5317 = vmatpush.bf16.msra.mxu0 %v5288
    %5318 = vmatmul.bf16.gmra.mxu0 %v5308
    %v5319 = vpop.f32.mrf.mxu0
    %v5320 = vadd.f32 %v5295, %v5319
    %v5321 = vpop.f32.mrf.mxu0
    %v5322 = vadd.f32 %v5300, %v5321
    %5323 = vdwg.mxu0
    %5324 = vmatpush.bf16.msra.mxu0 0
    %5325 = vmatpush.bf16.msra.mxu0 0
    %5326 = vmatpush.bf16.msra.mxu0 0
    %5327 = vmatpush.bf16.msra.mxu0 0
    %5328 = vmatpush.bf16.msra.mxu0 0
    %5329 = vmatpush.bf16.msra.mxu0 0
    %5330 = vmatpush.bf16.msra.mxu0 0
    %5331 = vmatpush.bf16.msra.mxu0 %v5289
    %5332 = vmatmul.bf16.gmra.mxu0 %v5308
    %v5333 = vpop.f32.mrf.mxu0
    %v5334 = vadd.f32 %v5295, %v5333
    %v5335 = vpop.f32.mrf.mxu0
    %v5336 = vadd.f32 %v5300, %v5335
    %5337 = vdwg.mxu0
    %5338 = vmatpush.bf16.msra.mxu0 0
    %5339 = vmatpush.bf16.msra.mxu0 0
    %5340 = vmatpush.bf16.msra.mxu0 0
    %5341 = vmatpush.bf16.msra.mxu0 0
    %5342 = vmatpush.bf16.msra.mxu0 0
    %5343 = vmatpush.bf16.msra.mxu0 0
    %5344 = vmatpush.bf16.msra.mxu0 0
    %5345 = vmatpush.bf16.msra.mxu0 %v5290
    %5346 = vmatmul.bf16.gmra.mxu0 %v5308
    %v5347 = vpop.f32.mrf.mxu0
    %v5348 = vadd.f32 %v5295, %v5347
    %v5349 = vpop.f32.mrf.mxu0
    %v5350 = vadd.f32 %v5300, %v5349
    %5351 = vdwg.mxu0
    %5352 = vmatpush.bf16.msra.mxu0 0
    %5353 = vmatpush.bf16.msra.mxu0 0
    %5354 = vmatpush.bf16.msra.mxu0 0
    %5355 = vmatpush.bf16.msra.mxu0 0
    %5356 = vmatpush.bf16.msra.mxu0 0
    %5357 = vmatpush.bf16.msra.mxu0 0
    %5358 = vmatpush.bf16.msra.mxu0 0
    %5359 = vmatpush.bf16.msra.mxu0 %v5291
    %5360 = vmatmul.bf16.gmra.mxu0 %v5308
    %v5361 = vpop.f32.mrf.mxu0
    %v5362 = vadd.f32 %v5295, %v5361
    %v5363 = vpop.f32.mrf.mxu0
    %v5364 = vadd.f32 %v5300, %v5363
    %5365 = vdwg.mxu0
    %v5366 = vld [vmem:[#allocation13] sm:$0xff]
    %v5367 = vld [vmem:[#allocation13 + $0x8] sm:$0xff]
    %v5368 = vld [vmem:[#allocation13 + $0x10] sm:$0xff]
    %v5369 = vld [vmem:[#allocation13 + $0x18] sm:$0xff]
    %v5370 = vld [vmem:[#allocation13 + $0x20] sm:$0xff]
    %v5371 = vld [vmem:[#allocation13 + $0x28] sm:$0xff]
    %v5372 = vld [vmem:[#allocation13 + $0x30] sm:$0xff]
    %v5373 = vld [vmem:[#allocation13 + $0x38] sm:$0xff]
    %v5374 = vld [vmem:[#allocation13 + $0x40] sm:$0xff]
    %v5375 = vld [vmem:[#allocation13 + $0x48] sm:$0xff]
    %v5376 = vld [vmem:[#allocation13 + $0x50] sm:$0xff]
    %v5377 = vld [vmem:[#allocation13 + $0x58] sm:$0xff]
    %v5378 = vld [vmem:[#allocation13 + $0x60] sm:$0xff]
    %v5379 = vld [vmem:[#allocation13 + $0x68] sm:$0xff]
    %v5380 = vld [vmem:[#allocation13 + $0x70] sm:$0xff]
    %v5381 = vld [vmem:[#allocation13 + $0x78] sm:$0xff]
    %v5382 = vld [vmem:[#allocation13 + $0x80] sm:$0xff]
    %v5383 = vld [vmem:[#allocation13 + $0x88] sm:$0xff]
    %v5384 = vld [vmem:[#allocation13 + $0x90] sm:$0xff]
    %v5385 = vld [vmem:[#allocation13 + $0x98] sm:$0xff]
    %v5386 = vld [vmem:[#allocation13 + $0xa0] sm:$0xff]
    %v5387 = vld [vmem:[#allocation13 + $0xa8] sm:$0xff]
    %v5388 = vld [vmem:[#allocation13 + $0xb0] sm:$0xff]
    %v5389 = vld [vmem:[#allocation13 + $0xb8] sm:$0xff]
    %v5390 = vld [vmem:[#allocation13 + $0xc0] sm:$0xff]
    %v5391 = vld [vmem:[#allocation13 + $0xc8] sm:$0xff]
    %v5392 = vld [vmem:[#allocation13 + $0xd0] sm:$0xff]
    %v5393 = vld [vmem:[#allocation13 + $0xd8] sm:$0xff]
    %v5394 = vld [vmem:[#allocation13 + $0xe0] sm:$0xff]
    %v5395 = vld [vmem:[#allocation13 + $0xe8] sm:$0xff]
    %v5396 = vld [vmem:[#allocation13 + $0xf0] sm:$0xff]
    %v5397 = vld [vmem:[#allocation13 + $0xf8] sm:$0xff]
    %v5398 = vpack.c.bf16 %v5322, %v5320
    %v5399 = vpack.c.bf16 %v5336, %v5334
    %v5432 = vunpack.c.l.b16 %v5366
    %v5433 = vunpack.c.h.b16 %v5366
    %v5434 = vunpack.c.l.b16 %v5367
    %v5435 = vunpack.c.h.b16 %v5367
    %v5436 = vunpack.c.l.b16 %v5368
    %v5437 = vunpack.c.h.b16 %v5368
    %v5438 = vunpack.c.l.b16 %v5369
    %v5439 = vunpack.c.h.b16 %v5369
    %v5440 = vunpack.c.l.b16 %v5370
    %v5441 = vunpack.c.h.b16 %v5370
    %v5442 = vunpack.c.l.b16 %v5371
    %v5443 = vunpack.c.h.b16 %v5371
    %v5444 = vunpack.c.l.b16 %v5372
    %v5445 = vunpack.c.h.b16 %v5372
    %v5446 = vunpack.c.l.b16 %v5373
    %v5447 = vunpack.c.h.b16 %v5373
    %v5448 = vunpack.c.l.b16 %v5374
    %v5449 = vunpack.c.h.b16 %v5374
    %v5450 = vunpack.c.l.b16 %v5375
    %v5451 = vunpack.c.h.b16 %v5375
    %v5452 = vunpack.c.l.b16 %v5376
    %v5453 = vunpack.c.h.b16 %v5376
    %v5454 = vunpack.c.l.b16 %v5377
    %v5455 = vunpack.c.h.b16 %v5377
    %v5456 = vunpack.c.l.b16 %v5378
    %v5457 = vunpack.c.h.b16 %v5378
    %v5458 = vunpack.c.l.b16 %v5379
    %v5459 = vunpack.c.h.b16 %v5379
    %v5460 = vunpack.c.l.b16 %v5380
    %v5461 = vunpack.c.h.b16 %v5380
    %v5462 = vunpack.c.l.b16 %v5381
    %v5463 = vunpack.c.h.b16 %v5381
    %v5464 = vunpack.c.l.b16 %v5382
    %v5465 = vunpack.c.h.b16 %v5382
    %v5466 = vunpack.c.l.b16 %v5383
    %v5467 = vunpack.c.h.b16 %v5383
    %v5468 = vunpack.c.l.b16 %v5384
    %v5469 = vunpack.c.h.b16 %v5384
    %v5470 = vunpack.c.l.b16 %v5385
    %v5471 = vunpack.c.h.b16 %v5385
    %v5472 = vunpack.c.l.b16 %v5386
    %v5473 = vunpack.c.h.b16 %v5386
    %v5474 = vunpack.c.l.b16 %v5387
    %v5475 = vunpack.c.h.b16 %v5387
    %v5476 = vunpack.c.l.b16 %v5388
    %v5477 = vunpack.c.h.b16 %v5388
    %v5478 = vunpack.c.l.b16 %v5389
    %v5479 = vunpack.c.h.b16 %v5389
    %v5480 = vunpack.c.l.b16 %v5390
    %v5481 = vunpack.c.h.b16 %v5390
    %v5482 = vunpack.c.l.b16 %v5391
    %v5483 = vunpack.c.h.b16 %v5391
    %v5484 = vunpack.c.l.b16 %v5392
    %v5485 = vunpack.c.h.b16 %v5392
    %v5486 = vunpack.c.l.b16 %v5393
    %v5487 = vunpack.c.h.b16 %v5393
    %v5488 = vunpack.c.l.b16 %v5394
    %v5489 = vunpack.c.h.b16 %v5394
    %v5490 = vunpack.c.l.b16 %v5395
    %v5491 = vunpack.c.h.b16 %v5395
    %v5492 = vunpack.c.l.b16 %v5396
    %v5493 = vunpack.c.h.b16 %v5396
    %v5494 = vunpack.c.l.b16 %v5397
    %v5495 = vunpack.c.h.b16 %v5397
    %v5496 = vpack.c.b16 %v5434, %v5432
    %v5497 = vpack.c.b16 %v5435, %v5433
    %v5498 = vpack.c.b16 %v5438, %v5436
    %v5499 = vpack.c.b16 %v5439, %v5437
    %v5500 = vpack.c.b16 %v5442, %v5440
    %v5501 = vpack.c.b16 %v5443, %v5441
    %v5502 = vpack.c.b16 %v5446, %v5444
    %v5503 = vpack.c.b16 %v5447, %v5445
    %v5504 = vpack.c.b16 %v5450, %v5448
    %v5505 = vpack.c.b16 %v5451, %v5449
    %v5506 = vpack.c.b16 %v5454, %v5452
    %v5507 = vpack.c.b16 %v5455, %v5453
    %v5508 = vpack.c.b16 %v5458, %v5456
    %v5509 = vpack.c.b16 %v5459, %v5457
    %v5510 = vpack.c.b16 %v5462, %v5460
    %v5511 = vpack.c.b16 %v5463, %v5461
    %v5512 = vpack.c.b16 %v5466, %v5464
    %v5513 = vpack.c.b16 %v5467, %v5465
    %v5514 = vpack.c.b16 %v5470, %v5468
    %v5515 = vpack.c.b16 %v5471, %v5469
    %v5516 = vpack.c.b16 %v5474, %v5472
    %v5517 = vpack.c.b16 %v5475, %v5473
    %v5518 = vpack.c.b16 %v5478, %v5476
    %v5519 = vpack.c.b16 %v5479, %v5477
    %v5520 = vpack.c.b16 %v5482, %v5480
    %v5521 = vpack.c.b16 %v5483, %v5481
    %v5522 = vpack.c.b16 %v5486, %v5484
    %v5523 = vpack.c.b16 %v5487, %v5485
    %v5524 = vpack.c.b16 %v5490, %v5488
    %v5525 = vpack.c.b16 %v5491, %v5489
    %v5526 = vpack.c.b16 %v5494, %v5492
    %v5527 = vpack.c.b16 %v5495, %v5493
    %5560 = vmatpush.bf16.msra.mxu0 %v5510
    %5561 = vmatpush.bf16.msra.mxu0 %v5508
    %5562 = vmatpush.bf16.msra.mxu0 %v5506
    %5563 = vmatpush.bf16.msra.mxu0 %v5504
    %5564 = vmatpush.bf16.msra.mxu0 %v5502
    %5565 = vmatpush.bf16.msra.mxu0 %v5500
    %5566 = vmatpush.bf16.msra.mxu0 %v5498
    %5567 = vmatpush.bf16.msra.mxu0 %v5496
    %5568 = vmatmul.bf16.gmra.mxu0 %v5398
    %v5569 = vpop.f32.mrf.mxu0
    %v5570 = vadd.f32 0.0, %v5569
    %v5571 = vpop.f32.mrf.mxu0
    %v5572 = vadd.f32 0.0, %v5571
    %5573 = vdwg.mxu0
    %5574 = vmatpush.bf16.msra.mxu0 %v5526
    %5575 = vmatpush.bf16.msra.mxu0 %v5524
    %5576 = vmatpush.bf16.msra.mxu0 %v5522
    %5577 = vmatpush.bf16.msra.mxu0 %v5520
    %5578 = vmatpush.bf16.msra.mxu0 %v5518
    %5579 = vmatpush.bf16.msra.mxu0 %v5516
    %5580 = vmatpush.bf16.msra.mxu0 %v5514
    %5581 = vmatpush.bf16.msra.mxu0 %v5512
    %5582 = vmatmul.bf16.gmra.mxu0 %v5399
    %v5583 = vpop.f32.mrf.mxu0
    %v5584 = vadd.f32 %v5570, %v5583
    %v5585 = vpop.f32.mrf.mxu0
    %v5586 = vadd.f32 %v5572, %v5585
    %5587 = vdwg.mxu0
    %5588 = vmatpush.bf16.msra.mxu0 %v5511
    %5589 = vmatpush.bf16.msra.mxu0 %v5509
    %5590 = vmatpush.bf16.msra.mxu0 %v5507
    %5591 = vmatpush.bf16.msra.mxu0 %v5505
    %5592 = vmatpush.bf16.msra.mxu0 %v5503
    %5593 = vmatpush.bf16.msra.mxu0 %v5501
    %5594 = vmatpush.bf16.msra.mxu0 %v5499
    %5595 = vmatpush.bf16.msra.mxu0 %v5497
    %5596 = vmatmul.bf16.gmra.mxu0 %v5398
    %v5597 = vpop.f32.mrf.mxu0
    %v5598 = vadd.f32 0.0, %v5597
    %v5599 = vpop.f32.mrf.mxu0
    %v5600 = vadd.f32 0.0, %v5599
    %5601 = vdwg.mxu0
    %5602 = vmatpush.bf16.msra.mxu0 %v5527
    %5603 = vmatpush.bf16.msra.mxu0 %v5525
    %5604 = vmatpush.bf16.msra.mxu0 %v5523
    %5605 = vmatpush.bf16.msra.mxu0 %v5521
    %5606 = vmatpush.bf16.msra.mxu0 %v5519
    %5607 = vmatpush.bf16.msra.mxu0 %v5517
    %5608 = vmatpush.bf16.msra.mxu0 %v5515
    %5609 = vmatpush.bf16.msra.mxu0 %v5513
    %5610 = vmatmul.bf16.gmra.mxu0 %v5399
    %v5611 = vpop.f32.mrf.mxu0
    %v5612 = vadd.f32 %v5598, %v5611
    %v5613 = vpop.f32.mrf.mxu0
    %v5614 = vadd.f32 %v5600, %v5613
    %5615 = vdwg.mxu0
    %v5616 = vpack.c.bf16 %v5350, %v5348
    %v5617 = vpack.c.bf16 %v5364, %v5362
    %5618 = vmatpush.bf16.msra.mxu0 %v5510
    %5619 = vmatpush.bf16.msra.mxu0 %v5508
    %5620 = vmatpush.bf16.msra.mxu0 %v5506
    %5621 = vmatpush.bf16.msra.mxu0 %v5504
    %5622 = vmatpush.bf16.msra.mxu0 %v5502
    %5623 = vmatpush.bf16.msra.mxu0 %v5500
    %5624 = vmatpush.bf16.msra.mxu0 %v5498
    %5625 = vmatpush.bf16.msra.mxu0 %v5496
    %5626 = vmatmul.bf16.gmra.mxu0 %v5616
    %v5627 = vpop.f32.mrf.mxu0
    %v5628 = vadd.f32 0.0, %v5627
    %v5629 = vpop.f32.mrf.mxu0
    %v5630 = vadd.f32 0.0, %v5629
    %5631 = vdwg.mxu0
    %5632 = vmatpush.bf16.msra.mxu0 %v5526
    %5633 = vmatpush.bf16.msra.mxu0 %v5524
    %5634 = vmatpush.bf16.msra.mxu0 %v5522
    %5635 = vmatpush.bf16.msra.mxu0 %v5520
    %5636 = vmatpush.bf16.msra.mxu0 %v5518
    %5637 = vmatpush.bf16.msra.mxu0 %v5516
    %5638 = vmatpush.bf16.msra.mxu0 %v5514
    %5639 = vmatpush.bf16.msra.mxu0 %v5512
    %5640 = vmatmul.bf16.gmra.mxu0 %v5617
    %v5641 = vpop.f32.mrf.mxu0
    %v5642 = vadd.f32 %v5628, %v5641
    %v5643 = vpop.f32.mrf.mxu0
    %v5644 = vadd.f32 %v5630, %v5643
    %5645 = vdwg.mxu0
    %5646 = vmatpush.bf16.msra.mxu0 %v5511
    %5647 = vmatpush.bf16.msra.mxu0 %v5509
    %5648 = vmatpush.bf16.msra.mxu0 %v5507
    %5649 = vmatpush.bf16.msra.mxu0 %v5505
    %5650 = vmatpush.bf16.msra.mxu0 %v5503
    %5651 = vmatpush.bf16.msra.mxu0 %v5501
    %5652 = vmatpush.bf16.msra.mxu0 %v5499
    %5653 = vmatpush.bf16.msra.mxu0 %v5497
    %5654 = vmatmul.bf16.gmra.mxu0 %v5616
    %v5655 = vpop.f32.mrf.mxu0
    %v5656 = vadd.f32 0.0, %v5655
    %v5657 = vpop.f32.mrf.mxu0
    %v5658 = vadd.f32 0.0, %v5657
    %5659 = vdwg.mxu0
    %5660 = vmatpush.bf16.msra.mxu0 %v5527
    %5661 = vmatpush.bf16.msra.mxu0 %v5525
    %5662 = vmatpush.bf16.msra.mxu0 %v5523
    %5663 = vmatpush.bf16.msra.mxu0 %v5521
    %5664 = vmatpush.bf16.msra.mxu0 %v5519
    %5665 = vmatpush.bf16.msra.mxu0 %v5517
    %5666 = vmatpush.bf16.msra.mxu0 %v5515
    %5667 = vmatpush.bf16.msra.mxu0 %v5513
    %5668 = vmatmul.bf16.gmra.mxu0 %v5617
    %v5669 = vpop.f32.mrf.mxu0
    %v5670 = vadd.f32 %v5656, %v5669
    %v5671 = vpop.f32.mrf.mxu0
    %v5672 = vadd.f32 %v5658, %v5671
    %5673 = vdwg.mxu0
    %v5674 = vld [vmem:[#allocation14] sm:$0xf]
    %v5675 = vld [vmem:[#allocation14 + $0x4] sm:$0xf]
    %v5676 = vpack.c.bf16 %v5586, %v5584
    %v5677 = vpack.c.bf16 %v5614, %v5612
    %v5678 = vpack.c.bf16 %v5644, %v5642
    %v5679 = vpack.c.bf16 %v5672, %v5670
    %v5680 = vld [vmem:[%s18] sm:$0xff]
    %v5681 = vld [vmem:[%s18 + $0x8] sm:$0xff]
    %5683 = vset.pattern.permute.xlu0 0
    %5684 = vperm.xlu0 %5683, %v5680
    %v5685 = vpop.permute.xlu0 %5684
    %5688 = vset.pattern.permute.xlu0 0
    %5689 = vperm.xlu0 %5688, %v5681
    %v5690 = vpop.permute.xlu0 %5689
    %v5694 = vunpack.c.l.b16 %v5674
    %v5695 = vunpack.c.l.b16 %v5675
    %v5696 = vpack.c.b16 %v5695, %v5694
    %v5698 = vsel %vm576, %v5696, 0
    %5700 = vmatpush.bf16.msra.mxu0 0
    %5701 = vmatpush.bf16.msra.mxu0 0
    %5702 = vmatpush.bf16.msra.mxu0 0
    %5703 = vmatpush.bf16.msra.mxu0 0
    %5704 = vmatpush.bf16.msra.mxu0 0
    %5705 = vmatpush.bf16.msra.mxu0 0
    %5706 = vmatpush.bf16.msra.mxu0 0
    %5707 = vmatpush.bf16.msra.mxu0 %v5676
    %5708 = vmatmul.bf16.gmra.mxu0 %v5698
    %v5709 = vpop.f32.mrf.mxu0
    %v5710 = vadd.f32 %v5685, %v5709
    %v5711 = vpop.f32.mrf.mxu0
    %v5712 = vadd.f32 %v5690, %v5711
    %5713 = vdwg.mxu0
    %5714 = vmatpush.bf16.msra.mxu0 0
    %5715 = vmatpush.bf16.msra.mxu0 0
    %5716 = vmatpush.bf16.msra.mxu0 0
    %5717 = vmatpush.bf16.msra.mxu0 0
    %5718 = vmatpush.bf16.msra.mxu0 0
    %5719 = vmatpush.bf16.msra.mxu0 0
    %5720 = vmatpush.bf16.msra.mxu0 0
    %5721 = vmatpush.bf16.msra.mxu0 %v5677
    %5722 = vmatmul.bf16.gmra.mxu0 %v5698
    %v5723 = vpop.f32.mrf.mxu0
    %v5724 = vadd.f32 %v5685, %v5723
    %v5725 = vpop.f32.mrf.mxu0
    %v5726 = vadd.f32 %v5690, %v5725
    %5727 = vdwg.mxu0
    %5728 = vmatpush.bf16.msra.mxu0 0
    %5729 = vmatpush.bf16.msra.mxu0 0
    %5730 = vmatpush.bf16.msra.mxu0 0
    %5731 = vmatpush.bf16.msra.mxu0 0
    %5732 = vmatpush.bf16.msra.mxu0 0
    %5733 = vmatpush.bf16.msra.mxu0 0
    %5734 = vmatpush.bf16.msra.mxu0 0
    %5735 = vmatpush.bf16.msra.mxu0 %v5678
    %5736 = vmatmul.bf16.gmra.mxu0 %v5698
    %v5737 = vpop.f32.mrf.mxu0
    %v5738 = vadd.f32 %v5685, %v5737
    %v5739 = vpop.f32.mrf.mxu0
    %v5740 = vadd.f32 %v5690, %v5739
    %5741 = vdwg.mxu0
    %5742 = vmatpush.bf16.msra.mxu0 0
    %5743 = vmatpush.bf16.msra.mxu0 0
    %5744 = vmatpush.bf16.msra.mxu0 0
    %5745 = vmatpush.bf16.msra.mxu0 0
    %5746 = vmatpush.bf16.msra.mxu0 0
    %5747 = vmatpush.bf16.msra.mxu0 0
    %5748 = vmatpush.bf16.msra.mxu0 0
    %5749 = vmatpush.bf16.msra.mxu0 %v5679
    %5750 = vmatmul.bf16.gmra.mxu0 %v5698
    %v5751 = vpop.f32.mrf.mxu0
    %v5752 = vadd.f32 %v5685, %v5751
    %v5753 = vpop.f32.mrf.mxu0
    %v5754 = vadd.f32 %v5690, %v5753
    %5755 = vdwg.mxu0
    %v5756 = vmax.f32 %v5710, 0.0
    %v5757 = vmax.f32 %v5724, 0.0
    %v5758 = vmax.f32 %v5738, 0.0
    %v5759 = vmax.f32 %v5752, 0.0
    %v5760 = vmax.f32 %v5712, 0.0
    %v5761 = vmax.f32 %v5726, 0.0
    %v5762 = vmax.f32 %v5740, 0.0
    %v5763 = vmax.f32 %v5754, 0.0
    %s5764 = scalar_lea.vmem [#allocation14], 8
    %v5765 = vld [vmem:[%s5764] sm:$0xf]
    %v5766 = vld [vmem:[%s5764 + $0x4] sm:$0xf]
    %v5767 = vpack.c.bf16 %v5760, %v5756
    %v5768 = vpack.c.bf16 %v5761, %v5757
    %v5769 = vpack.c.bf16 %v5762, %v5758
    %v5770 = vpack.c.bf16 %v5763, %v5759
    %s5771 = scalar_lea.vmem %s18, 16
    %v5772 = vld [vmem:[%s5771] sm:$0xff]
    %v5773 = vld [vmem:[%s5771 + $0x8] sm:$0xff]
    %5775 = vset.pattern.permute.xlu0 0
    %5776 = vperm.xlu0 %5775, %v5772
    %v5777 = vpop.permute.xlu0 %5776
    %5780 = vset.pattern.permute.xlu0 0
    %5781 = vperm.xlu0 %5780, %v5773
    %v5782 = vpop.permute.xlu0 %5781
    %v5786 = vunpack.c.l.b16 %v5765
    %v5787 = vunpack.c.l.b16 %v5766
    %v5788 = vpack.c.b16 %v5787, %v5786
    %v5790 = vsel %vm576, %v5788, 0
    %5792 = vmatpush.bf16.msra.mxu0 0
    %5793 = vmatpush.bf16.msra.mxu0 0
    %5794 = vmatpush.bf16.msra.mxu0 0
    %5795 = vmatpush.bf16.msra.mxu0 0
    %5796 = vmatpush.bf16.msra.mxu0 0
    %5797 = vmatpush.bf16.msra.mxu0 0
    %5798 = vmatpush.bf16.msra.mxu0 0
    %5799 = vmatpush.bf16.msra.mxu0 %v5767
    %5800 = vmatmul.bf16.gmra.mxu0 %v5790
    %v5801 = vpop.f32.mrf.mxu0
    %v5802 = vadd.f32 %v5777, %v5801
    %v5803 = vpop.f32.mrf.mxu0
    %v5804 = vadd.f32 %v5782, %v5803
    %5805 = vdwg.mxu0
    %5806 = vmatpush.bf16.msra.mxu0 0
    %5807 = vmatpush.bf16.msra.mxu0 0
    %5808 = vmatpush.bf16.msra.mxu0 0
    %5809 = vmatpush.bf16.msra.mxu0 0
    %5810 = vmatpush.bf16.msra.mxu0 0
    %5811 = vmatpush.bf16.msra.mxu0 0
    %5812 = vmatpush.bf16.msra.mxu0 0
    %5813 = vmatpush.bf16.msra.mxu0 %v5768
    %5814 = vmatmul.bf16.gmra.mxu0 %v5790
    %v5815 = vpop.f32.mrf.mxu0
    %v5816 = vadd.f32 %v5777, %v5815
    %v5817 = vpop.f32.mrf.mxu0
    %v5818 = vadd.f32 %v5782, %v5817
    %5819 = vdwg.mxu0
    %5820 = vmatpush.bf16.msra.mxu0 0
    %5821 = vmatpush.bf16.msra.mxu0 0
    %5822 = vmatpush.bf16.msra.mxu0 0
    %5823 = vmatpush.bf16.msra.mxu0 0
    %5824 = vmatpush.bf16.msra.mxu0 0
    %5825 = vmatpush.bf16.msra.mxu0 0
    %5826 = vmatpush.bf16.msra.mxu0 0
    %5827 = vmatpush.bf16.msra.mxu0 %v5769
    %5828 = vmatmul.bf16.gmra.mxu0 %v5790
    %v5829 = vpop.f32.mrf.mxu0
    %v5830 = vadd.f32 %v5777, %v5829
    %v5831 = vpop.f32.mrf.mxu0
    %v5832 = vadd.f32 %v5782, %v5831
    %5833 = vdwg.mxu0
    %5834 = vmatpush.bf16.msra.mxu0 0
    %5835 = vmatpush.bf16.msra.mxu0 0
    %5836 = vmatpush.bf16.msra.mxu0 0
    %5837 = vmatpush.bf16.msra.mxu0 0
    %5838 = vmatpush.bf16.msra.mxu0 0
    %5839 = vmatpush.bf16.msra.mxu0 0
    %5840 = vmatpush.bf16.msra.mxu0 0
    %5841 = vmatpush.bf16.msra.mxu0 %v5770
    %5842 = vmatmul.bf16.gmra.mxu0 %v5790
    %v5843 = vpop.f32.mrf.mxu0
    %v5844 = vadd.f32 %v5777, %v5843
    %v5845 = vpop.f32.mrf.mxu0
    %v5846 = vadd.f32 %v5782, %v5845
    %5847 = vdwg.mxu0
    %v5848 = vmax.f32 %v5802, 0.0
    %v5849 = vmax.f32 %v5816, 0.0
    %v5850 = vmax.f32 %v5830, 0.0
    %v5851 = vmax.f32 %v5844, 0.0
    %v5852 = vmax.f32 %v5804, 0.0
    %v5853 = vmax.f32 %v5818, 0.0
    %v5854 = vmax.f32 %v5832, 0.0
    %v5855 = vmax.f32 %v5846, 0.0
    %v5856 = vpack.c.bf16 %v5852, %v5848
    %v5857 = vpack.c.bf16 %v5853, %v5849
    %5858 = vmatpush.bf16.msra.mxu0 %v5510
    %5859 = vmatpush.bf16.msra.mxu0 %v5508
    %5860 = vmatpush.bf16.msra.mxu0 %v5506
    %5861 = vmatpush.bf16.msra.mxu0 %v5504
    %5862 = vmatpush.bf16.msra.mxu0 %v5502
    %5863 = vmatpush.bf16.msra.mxu0 %v5500
    %5864 = vmatpush.bf16.msra.mxu0 %v5498
    %5865 = vmatpush.bf16.msra.mxu0 %v5496
    %5866 = vmatmul.bf16.gmra.mxu0 %v5856
    %v5867 = vpop.f32.mrf.mxu0
    %v5868 = vadd.f32 0.0, %v5867
    %v5869 = vpop.f32.mrf.mxu0
    %v5870 = vadd.f32 0.0, %v5869
    %5871 = vdwg.mxu0
    %5872 = vmatpush.bf16.msra.mxu0 %v5526
    %5873 = vmatpush.bf16.msra.mxu0 %v5524
    %5874 = vmatpush.bf16.msra.mxu0 %v5522
    %5875 = vmatpush.bf16.msra.mxu0 %v5520
    %5876 = vmatpush.bf16.msra.mxu0 %v5518
    %5877 = vmatpush.bf16.msra.mxu0 %v5516
    %5878 = vmatpush.bf16.msra.mxu0 %v5514
    %5879 = vmatpush.bf16.msra.mxu0 %v5512
    %5880 = vmatmul.bf16.gmra.mxu0 %v5857
    %v5881 = vpop.f32.mrf.mxu0
    %v5882 = vadd.f32 %v5868, %v5881
    %v5883 = vpop.f32.mrf.mxu0
    %v5884 = vadd.f32 %v5870, %v5883
    %5885 = vdwg.mxu0
    %5886 = vmatpush.bf16.msra.mxu0 %v5511
    %5887 = vmatpush.bf16.msra.mxu0 %v5509
    %5888 = vmatpush.bf16.msra.mxu0 %v5507
    %5889 = vmatpush.bf16.msra.mxu0 %v5505
    %5890 = vmatpush.bf16.msra.mxu0 %v5503
    %5891 = vmatpush.bf16.msra.mxu0 %v5501
    %5892 = vmatpush.bf16.msra.mxu0 %v5499
    %5893 = vmatpush.bf16.msra.mxu0 %v5497
    %5894 = vmatmul.bf16.gmra.mxu0 %v5856
    %v5895 = vpop.f32.mrf.mxu0
    %v5896 = vadd.f32 0.0, %v5895
    %v5897 = vpop.f32.mrf.mxu0
    %v5898 = vadd.f32 0.0, %v5897
    %5899 = vdwg.mxu0
    %5900 = vmatpush.bf16.msra.mxu0 %v5527
    %5901 = vmatpush.bf16.msra.mxu0 %v5525
    %5902 = vmatpush.bf16.msra.mxu0 %v5523
    %5903 = vmatpush.bf16.msra.mxu0 %v5521
    %5904 = vmatpush.bf16.msra.mxu0 %v5519
    %5905 = vmatpush.bf16.msra.mxu0 %v5517
    %5906 = vmatpush.bf16.msra.mxu0 %v5515
    %5907 = vmatpush.bf16.msra.mxu0 %v5513
    %5908 = vmatmul.bf16.gmra.mxu0 %v5857
    %v5909 = vpop.f32.mrf.mxu0
    %v5910 = vadd.f32 %v5896, %v5909
    %v5911 = vpop.f32.mrf.mxu0
    %v5912 = vadd.f32 %v5898, %v5911
    %5913 = vdwg.mxu0
    %v5914 = vpack.c.bf16 %v5854, %v5850
    %v5915 = vpack.c.bf16 %v5855, %v5851
    %5916 = vmatpush.bf16.msra.mxu0 %v5510
    %5917 = vmatpush.bf16.msra.mxu0 %v5508
    %5918 = vmatpush.bf16.msra.mxu0 %v5506
    %5919 = vmatpush.bf16.msra.mxu0 %v5504
    %5920 = vmatpush.bf16.msra.mxu0 %v5502
    %5921 = vmatpush.bf16.msra.mxu0 %v5500
    %5922 = vmatpush.bf16.msra.mxu0 %v5498
    %5923 = vmatpush.bf16.msra.mxu0 %v5496
    %5924 = vmatmul.bf16.gmra.mxu0 %v5914
    %v5925 = vpop.f32.mrf.mxu0
    %v5926 = vadd.f32 0.0, %v5925
    %v5927 = vpop.f32.mrf.mxu0
    %v5928 = vadd.f32 0.0, %v5927
    %5929 = vdwg.mxu0
    %5930 = vmatpush.bf16.msra.mxu0 %v5526
    %5931 = vmatpush.bf16.msra.mxu0 %v5524
    %5932 = vmatpush.bf16.msra.mxu0 %v5522
    %5933 = vmatpush.bf16.msra.mxu0 %v5520
    %5934 = vmatpush.bf16.msra.mxu0 %v5518
    %5935 = vmatpush.bf16.msra.mxu0 %v5516
    %5936 = vmatpush.bf16.msra.mxu0 %v5514
    %5937 = vmatpush.bf16.msra.mxu0 %v5512
    %5938 = vmatmul.bf16.gmra.mxu0 %v5915
    %v5939 = vpop.f32.mrf.mxu0
    %v5940 = vadd.f32 %v5926, %v5939
    %v5941 = vpop.f32.mrf.mxu0
    %v5942 = vadd.f32 %v5928, %v5941
    %5943 = vdwg.mxu0
    %5944 = vmatpush.bf16.msra.mxu0 %v5511
    %5945 = vmatpush.bf16.msra.mxu0 %v5509
    %5946 = vmatpush.bf16.msra.mxu0 %v5507
    %5947 = vmatpush.bf16.msra.mxu0 %v5505
    %5948 = vmatpush.bf16.msra.mxu0 %v5503
    %5949 = vmatpush.bf16.msra.mxu0 %v5501
    %5950 = vmatpush.bf16.msra.mxu0 %v5499
    %5951 = vmatpush.bf16.msra.mxu0 %v5497
    %5952 = vmatmul.bf16.gmra.mxu0 %v5914
    %v5953 = vpop.f32.mrf.mxu0
    %v5954 = vadd.f32 0.0, %v5953
    %v5955 = vpop.f32.mrf.mxu0
    %v5956 = vadd.f32 0.0, %v5955
    %5957 = vdwg.mxu0
    %5958 = vmatpush.bf16.msra.mxu0 %v5527
    %5959 = vmatpush.bf16.msra.mxu0 %v5525
    %5960 = vmatpush.bf16.msra.mxu0 %v5523
    %5961 = vmatpush.bf16.msra.mxu0 %v5521
    %5962 = vmatpush.bf16.msra.mxu0 %v5519
    %5963 = vmatpush.bf16.msra.mxu0 %v5517
    %5964 = vmatpush.bf16.msra.mxu0 %v5515
    %5965 = vmatpush.bf16.msra.mxu0 %v5513
    %5966 = vmatmul.bf16.gmra.mxu0 %v5915
    %v5967 = vpop.f32.mrf.mxu0
    %v5968 = vadd.f32 %v5954, %v5967
    %v5969 = vpop.f32.mrf.mxu0
    %v5970 = vadd.f32 %v5956, %v5969
    %5971 = vdwg.mxu0
    %v5972 = vmul.f32 %v5882, 0.00390625
    %v5973 = vmul.f32 %v5910, 0.00390625
    %v5974 = vmul.f32 %v5940, 0.00390625
    %v5975 = vmul.f32 %v5968, 0.00390625
    %v5976 = vmul.f32 %v5884, 0.00390625
    %v5977 = vmul.f32 %v5912, 0.00390625
    %v5978 = vmul.f32 %v5942, 0.00390625
    %v5979 = vmul.f32 %v5970, 0.00390625
    %v5980 = vld [vmem:[#allocation16] sm:$0xf]
    %v5981 = vld [vmem:[#allocation16 + $0x4] sm:$0xf]
    %v5982 = vpack.c.bf16 %v5976, %v5972
    %v5983 = vpack.c.bf16 %v5977, %v5973
    %v5984 = vpack.c.bf16 %v5978, %v5974
    %v5985 = vpack.c.bf16 %v5979, %v5975
    %v5986 = vld [vmem:[%s20] sm:$0xff]
    %v5987 = vld [vmem:[%s20 + $0x8] sm:$0xff]
    %5989 = vset.pattern.permute.xlu0 0
    %5990 = vperm.xlu0 %5989, %v5986
    %v5991 = vpop.permute.xlu0 %5990
    %5994 = vset.pattern.permute.xlu0 0
    %5995 = vperm.xlu0 %5994, %v5987
    %v5996 = vpop.permute.xlu0 %5995
    %v6000 = vunpack.c.l.b16 %v5980
    %v6001 = vunpack.c.l.b16 %v5981
    %v6002 = vpack.c.b16 %v6001, %v6000
    %vm6003 = vcmask 261120
    %v6005 = vsel %vm6003, %v6002, 0
    %6007 = vmatpush.bf16.msra.mxu0 0
    %6008 = vmatpush.bf16.msra.mxu0 0
    %6009 = vmatpush.bf16.msra.mxu0 0
    %6010 = vmatpush.bf16.msra.mxu0 0
    %6011 = vmatpush.bf16.msra.mxu0 0
    %6012 = vmatpush.bf16.msra.mxu0 0
    %6013 = vmatpush.bf16.msra.mxu0 %v5982
    %6014 = vmatpush.bf16.msra.mxu0 %v5398
    %6015 = vmatmul.bf16.gmra.mxu0 %v6005
    %v6016 = vpop.f32.mrf.mxu0
    %v6017 = vadd.f32 %v5991, %v6016
    %v6018 = vpop.f32.mrf.mxu0
    %v6019 = vadd.f32 %v5996, %v6018
    %6020 = vdwg.mxu0
    %6021 = vmatpush.bf16.msra.mxu0 0
    %6022 = vmatpush.bf16.msra.mxu0 0
    %6023 = vmatpush.bf16.msra.mxu0 0
    %6024 = vmatpush.bf16.msra.mxu0 0
    %6025 = vmatpush.bf16.msra.mxu0 0
    %6026 = vmatpush.bf16.msra.mxu0 0
    %6027 = vmatpush.bf16.msra.mxu0 %v5983
    %6028 = vmatpush.bf16.msra.mxu0 %v5399
    %6029 = vmatmul.bf16.gmra.mxu0 %v6005
    %v6030 = vpop.f32.mrf.mxu0
    %v6031 = vadd.f32 %v5991, %v6030
    %v6032 = vpop.f32.mrf.mxu0
    %v6033 = vadd.f32 %v5996, %v6032
    %6034 = vdwg.mxu0
    %6035 = vmatpush.bf16.msra.mxu0 0
    %6036 = vmatpush.bf16.msra.mxu0 0
    %6037 = vmatpush.bf16.msra.mxu0 0
    %6038 = vmatpush.bf16.msra.mxu0 0
    %6039 = vmatpush.bf16.msra.mxu0 0
    %6040 = vmatpush.bf16.msra.mxu0 0
    %6041 = vmatpush.bf16.msra.mxu0 %v5984
    %6042 = vmatpush.bf16.msra.mxu0 %v5616
    %6043 = vmatmul.bf16.gmra.mxu0 %v6005
    %v6044 = vpop.f32.mrf.mxu0
    %v6045 = vadd.f32 %v5991, %v6044
    %v6046 = vpop.f32.mrf.mxu0
    %v6047 = vadd.f32 %v5996, %v6046
    %6048 = vdwg.mxu0
    %6049 = vmatpush.bf16.msra.mxu0 0
    %6050 = vmatpush.bf16.msra.mxu0 0
    %6051 = vmatpush.bf16.msra.mxu0 0
    %6052 = vmatpush.bf16.msra.mxu0 0
    %6053 = vmatpush.bf16.msra.mxu0 0
    %6054 = vmatpush.bf16.msra.mxu0 0
    %6055 = vmatpush.bf16.msra.mxu0 %v5985
    %6056 = vmatpush.bf16.msra.mxu0 %v5617
    %6057 = vmatmul.bf16.gmra.mxu0 %v6005
    %v6058 = vpop.f32.mrf.mxu0
    %v6059 = vadd.f32 %v5991, %v6058
    %v6060 = vpop.f32.mrf.mxu0
    %v6061 = vadd.f32 %v5996, %v6060
    %6062 = vdwg.mxu0
    %s6063 = scalar_lea.vmem %s12, 32
    %v6064 = vld [vmem:[%s6063] sm:$0xff]
    %v6065 = vld [vmem:[%s6063 + $0x8] sm:$0xff]
    %s6066 = scalar_lea.vmem %s13, 32
    %v6067 = vld [vmem:[%s6066] sm:$0xff]
    %v6068 = vld [vmem:[%s6066 + $0x8] sm:$0xff]
    %s6069 = scalar_lea.vmem [#allocation11], 16
    %v6070 = vld [vmem:[%s6069] sm:$0xf]
    %v6071 = vld [vmem:[%s6069 + $0x4] sm:$0xf]
    %s6072 = scalar_lea.vmem %s15, 32
    %v6073 = vld [vmem:[%s6072] sm:$0xff]
    %v6074 = vld [vmem:[%s6072 + $0x8] sm:$0xff]
    %6075 = vrot.lane.b32.xlu0 %v6017, 17
    %v6076 = vpop.permute.xlu0 %6075
    %6077 = vrot.lane.b32.xlu0 %v6019, 17
    %v6078 = vpop.permute.xlu0 %6077
    %6079 = vrot.lane.b32.xlu0 %v6031, 17
    %v6080 = vpop.permute.xlu0 %6079
    %6081 = vrot.lane.b32.xlu0 %v6033, 17
    %v6082 = vpop.permute.xlu0 %6081
    %6083 = vrot.lane.b32.xlu0 %v6045, 17
    %v6084 = vpop.permute.xlu0 %6083
    %6085 = vrot.lane.b32.xlu0 %v6047, 17
    %v6086 = vpop.permute.xlu0 %6085
    %6087 = vrot.lane.b32.xlu0 %v6059, 17
    %v6088 = vpop.permute.xlu0 %6087
    %6089 = vrot.lane.b32.xlu0 %v6061, 17
    %v6090 = vpop.permute.xlu0 %6089
    %v6091 = vsel %vm245, %v6084, %v6088
    %v6092 = vsel %vm245, %v6086, %v6090
    %v6093 = vsel %vm245, %v6080, %v6084
    %v6094 = vsel %vm245, %v6082, %v6086
    %v6095 = vsel %vm245, %v6076, %v6080
    %v6096 = vsel %vm245, %v6078, %v6082
    %v6097 = vsel %vm245, %v6088, %v6076
    %v6098 = vsel %vm245, %v6090, %v6078
    %v6099 = vmul.f32 %v6097, %v253
    %v6100 = vmul.f32 %v6095, %v254
    %v6101 = vmul.f32 %v6093, %v255
    %v6102 = vmul.f32 %v6091, %v256
    %v6103 = vmul.f32 %v6098, %v253
    %v6104 = vmul.f32 %v6096, %v254
    %v6105 = vmul.f32 %v6094, %v255
    %v6106 = vmul.f32 %v6092, %v256
    %6108 = vset.pattern.permute.xlu0 0
    %6109 = vperm.xlu0 %6108, %v6064
    %v6110 = vpop.permute.xlu0 %6109
    %6113 = vset.pattern.permute.xlu0 0
    %6114 = vperm.xlu0 %6113, %v6065
    %v6115 = vpop.permute.xlu0 %6114
    %v6117 = vmul.f32 %v6110, %v6099
    %v6118 = vmul.f32 %v6110, %v6100
    %v6119 = vmul.f32 %v6110, %v6101
    %v6120 = vmul.f32 %v6110, %v6102
    %v6121 = vmul.f32 %v6115, %v6103
    %v6122 = vmul.f32 %v6115, %v6104
    %v6123 = vmul.f32 %v6115, %v6105
    %v6124 = vmul.f32 %v6115, %v6106
    %6125 = vrot.lane.b32.xlu0 %v6017, 16
    %v6126 = vpop.permute.xlu0 %6125
    %6127 = vrot.lane.b32.xlu0 %v6019, 16
    %v6128 = vpop.permute.xlu0 %6127
    %6129 = vrot.lane.b32.xlu0 %v6031, 16
    %v6130 = vpop.permute.xlu0 %6129
    %6131 = vrot.lane.b32.xlu0 %v6033, 16
    %v6132 = vpop.permute.xlu0 %6131
    %6133 = vrot.lane.b32.xlu0 %v6045, 16
    %v6134 = vpop.permute.xlu0 %6133
    %6135 = vrot.lane.b32.xlu0 %v6047, 16
    %v6136 = vpop.permute.xlu0 %6135
    %6137 = vrot.lane.b32.xlu0 %v6059, 16
    %v6138 = vpop.permute.xlu0 %6137
    %6139 = vrot.lane.b32.xlu0 %v6061, 16
    %v6140 = vpop.permute.xlu0 %6139
    %v6141 = vsel %vm273, %v6134, %v6138
    %v6142 = vsel %vm273, %v6136, %v6140
    %v6143 = vsel %vm273, %v6130, %v6134
    %v6144 = vsel %vm273, %v6132, %v6136
    %v6145 = vsel %vm273, %v6126, %v6130
    %v6146 = vsel %vm273, %v6128, %v6132
    %v6147 = vsel %vm273, %v6138, %v6126
    %v6148 = vsel %vm273, %v6140, %v6128
    %v6149 = vmul.f32 %v6147, %v281
    %v6150 = vmul.f32 %v6145, %v282
    %v6151 = vmul.f32 %v6143, %v283
    %v6152 = vmul.f32 %v6141, %v284
    %v6153 = vmul.f32 %v6148, %v281
    %v6154 = vmul.f32 %v6146, %v282
    %v6155 = vmul.f32 %v6144, %v283
    %v6156 = vmul.f32 %v6142, %v284
    %6157 = vset.pattern.permute.xlu0 1
    %6158 = vperm.xlu0 %6157, %v6064
    %v6159 = vpop.permute.xlu0 %6158
    %6161 = vset.pattern.permute.xlu0 1
    %6162 = vperm.xlu0 %6161, %v6065
    %v6163 = vpop.permute.xlu0 %6162
    %v6165 = vmul.f32 %v6159, %v6149
    %v6166 = vmul.f32 %v6159, %v6150
    %v6167 = vmul.f32 %v6159, %v6151
    %v6168 = vmul.f32 %v6159, %v6152
    %v6169 = vmul.f32 %v6163, %v6153
    %v6170 = vmul.f32 %v6163, %v6154
    %v6171 = vmul.f32 %v6163, %v6155
    %v6172 = vmul.f32 %v6163, %v6156
    %v6173 = vadd.f32 %v6117, %v6165
    %v6174 = vadd.f32 %v6118, %v6166
    %v6175 = vadd.f32 %v6119, %v6167
    %v6176 = vadd.f32 %v6120, %v6168
    %v6177 = vadd.f32 %v6121, %v6169
    %v6178 = vadd.f32 %v6122, %v6170
    %v6179 = vadd.f32 %v6123, %v6171
    %v6180 = vadd.f32 %v6124, %v6172
    %6181 = vrot.lane.b32.xlu0 %v6017, 15
    %v6182 = vpop.permute.xlu0 %6181
    %6183 = vrot.lane.b32.xlu0 %v6019, 15
    %v6184 = vpop.permute.xlu0 %6183
    %6185 = vrot.lane.b32.xlu0 %v6031, 15
    %v6186 = vpop.permute.xlu0 %6185
    %6187 = vrot.lane.b32.xlu0 %v6033, 15
    %v6188 = vpop.permute.xlu0 %6187
    %6189 = vrot.lane.b32.xlu0 %v6045, 15
    %v6190 = vpop.permute.xlu0 %6189
    %6191 = vrot.lane.b32.xlu0 %v6047, 15
    %v6192 = vpop.permute.xlu0 %6191
    %6193 = vrot.lane.b32.xlu0 %v6059, 15
    %v6194 = vpop.permute.xlu0 %6193
    %6195 = vrot.lane.b32.xlu0 %v6061, 15
    %v6196 = vpop.permute.xlu0 %6195
    %v6197 = vsel %vm301, %v6190, %v6194
    %v6198 = vsel %vm301, %v6192, %v6196
    %v6199 = vsel %vm301, %v6186, %v6190
    %v6200 = vsel %vm301, %v6188, %v6192
    %v6201 = vsel %vm301, %v6182, %v6186
    %v6202 = vsel %vm301, %v6184, %v6188
    %v6203 = vsel %vm301, %v6194, %v6182
    %v6204 = vsel %vm301, %v6196, %v6184
    %v6205 = vmul.f32 %v6203, %v309
    %v6206 = vmul.f32 %v6201, %v310
    %v6207 = vmul.f32 %v6199, %v311
    %v6208 = vmul.f32 %v6197, %v312
    %v6209 = vmul.f32 %v6204, %v309
    %v6210 = vmul.f32 %v6202, %v310
    %v6211 = vmul.f32 %v6200, %v311
    %v6212 = vmul.f32 %v6198, %v312
    %6213 = vset.pattern.permute.xlu0 2
    %6214 = vperm.xlu0 %6213, %v6064
    %v6215 = vpop.permute.xlu0 %6214
    %6217 = vset.pattern.permute.xlu0 2
    %6218 = vperm.xlu0 %6217, %v6065
    %v6219 = vpop.permute.xlu0 %6218
    %v6221 = vmul.f32 %v6215, %v6205
    %v6222 = vmul.f32 %v6215, %v6206
    %v6223 = vmul.f32 %v6215, %v6207
    %v6224 = vmul.f32 %v6215, %v6208
    %v6225 = vmul.f32 %v6219, %v6209
    %v6226 = vmul.f32 %v6219, %v6210
    %v6227 = vmul.f32 %v6219, %v6211
    %v6228 = vmul.f32 %v6219, %v6212
    %v6229 = vadd.f32 %v6173, %v6221
    %v6230 = vadd.f32 %v6174, %v6222
    %v6231 = vadd.f32 %v6175, %v6223
    %v6232 = vadd.f32 %v6176, %v6224
    %v6233 = vadd.f32 %v6177, %v6225
    %v6234 = vadd.f32 %v6178, %v6226
    %v6235 = vadd.f32 %v6179, %v6227
    %v6236 = vadd.f32 %v6180, %v6228
    %6237 = vrot.lane.b32.xlu0 %v6017, 1
    %v6238 = vpop.permute.xlu0 %6237
    %6239 = vrot.lane.b32.xlu0 %v6019, 1
    %v6240 = vpop.permute.xlu0 %6239
    %6241 = vrot.lane.b32.xlu0 %v6031, 1
    %v6242 = vpop.permute.xlu0 %6241
    %6243 = vrot.lane.b32.xlu0 %v6033, 1
    %v6244 = vpop.permute.xlu0 %6243
    %6245 = vrot.lane.b32.xlu0 %v6045, 1
    %v6246 = vpop.permute.xlu0 %6245
    %6247 = vrot.lane.b32.xlu0 %v6047, 1
    %v6248 = vpop.permute.xlu0 %6247
    %6249 = vrot.lane.b32.xlu0 %v6059, 1
    %v6250 = vpop.permute.xlu0 %6249
    %6251 = vrot.lane.b32.xlu0 %v6061, 1
    %v6252 = vpop.permute.xlu0 %6251
    %v6253 = vsel %vm329, %v6246, %v6250
    %v6254 = vsel %vm329, %v6248, %v6252
    %v6255 = vsel %vm329, %v6242, %v6246
    %v6256 = vsel %vm329, %v6244, %v6248
    %v6257 = vsel %vm329, %v6238, %v6242
    %v6258 = vsel %vm329, %v6240, %v6244
    %v6259 = vsel %vm329, %v6250, %v6238
    %v6260 = vsel %vm329, %v6252, %v6240
    %v6261 = vmul.f32 %v6259, %v337
    %v6262 = vmul.f32 %v6257, %v338
    %v6263 = vmul.f32 %v6255, %v339
    %v6264 = vmul.f32 %v6253, %v340
    %v6265 = vmul.f32 %v6260, %v337
    %v6266 = vmul.f32 %v6258, %v338
    %v6267 = vmul.f32 %v6256, %v339
    %v6268 = vmul.f32 %v6254, %v340
    %6269 = vset.pattern.permute.xlu0 3
    %6270 = vperm.xlu0 %6269, %v6064
    %v6271 = vpop.permute.xlu0 %6270
    %6273 = vset.pattern.permute.xlu0 3
    %6274 = vperm.xlu0 %6273, %v6065
    %v6275 = vpop.permute.xlu0 %6274
    %v6277 = vmul.f32 %v6271, %v6261
    %v6278 = vmul.f32 %v6271, %v6262
    %v6279 = vmul.f32 %v6271, %v6263
    %v6280 = vmul.f32 %v6271, %v6264
    %v6281 = vmul.f32 %v6275, %v6265
    %v6282 = vmul.f32 %v6275, %v6266
    %v6283 = vmul.f32 %v6275, %v6267
    %v6284 = vmul.f32 %v6275, %v6268
    %v6285 = vadd.f32 %v6229, %v6277
    %v6286 = vadd.f32 %v6230, %v6278
    %v6287 = vadd.f32 %v6231, %v6279
    %v6288 = vadd.f32 %v6232, %v6280
    %v6289 = vadd.f32 %v6233, %v6281
    %v6290 = vadd.f32 %v6234, %v6282
    %v6291 = vadd.f32 %v6235, %v6283
    %v6292 = vadd.f32 %v6236, %v6284
    %6293 = vset.pattern.permute.xlu0 4
    %6294 = vperm.xlu0 %6293, %v6064
    %v6295 = vpop.permute.xlu0 %6294
    %6297 = vset.pattern.permute.xlu0 4
    %6298 = vperm.xlu0 %6297, %v6065
    %v6299 = vpop.permute.xlu0 %6298
    %v6301 = vmul.f32 %v6295, %v6017
    %v6302 = vmul.f32 %v6295, %v6031
    %v6303 = vmul.f32 %v6295, %v6045
    %v6304 = vmul.f32 %v6295, %v6059
    %v6305 = vmul.f32 %v6299, %v6019
    %v6306 = vmul.f32 %v6299, %v6033
    %v6307 = vmul.f32 %v6299, %v6047
    %v6308 = vmul.f32 %v6299, %v6061
    %v6309 = vadd.f32 %v6285, %v6301
    %v6310 = vadd.f32 %v6286, %v6302
    %v6311 = vadd.f32 %v6287, %v6303
    %v6312 = vadd.f32 %v6288, %v6304
    %v6313 = vadd.f32 %v6289, %v6305
    %v6314 = vadd.f32 %v6290, %v6306
    %v6315 = vadd.f32 %v6291, %v6307
    %v6316 = vadd.f32 %v6292, %v6308
    %6317 = vrot.lane.b32.xlu0 %v6017, 127
    %v6318 = vpop.permute.xlu0 %6317
    %6319 = vrot.lane.b32.xlu0 %v6019, 127
    %v6320 = vpop.permute.xlu0 %6319
    %6321 = vrot.lane.b32.xlu0 %v6031, 127
    %v6322 = vpop.permute.xlu0 %6321
    %6323 = vrot.lane.b32.xlu0 %v6033, 127
    %v6324 = vpop.permute.xlu0 %6323
    %6325 = vrot.lane.b32.xlu0 %v6045, 127
    %v6326 = vpop.permute.xlu0 %6325
    %6327 = vrot.lane.b32.xlu0 %v6047, 127
    %v6328 = vpop.permute.xlu0 %6327
    %6329 = vrot.lane.b32.xlu0 %v6059, 127
    %v6330 = vpop.permute.xlu0 %6329
    %6331 = vrot.lane.b32.xlu0 %v6061, 127
    %v6332 = vpop.permute.xlu0 %6331
    %v6333 = vsel %vm357, %v6326, %v6330
    %v6334 = vsel %vm357, %v6328, %v6332
    %v6335 = vsel %vm357, %v6322, %v6326
    %v6336 = vsel %vm357, %v6324, %v6328
    %v6337 = vsel %vm357, %v6318, %v6322
    %v6338 = vsel %vm357, %v6320, %v6324
    %v6339 = vsel %vm357, %v6330, %v6318
    %v6340 = vsel %vm357, %v6332, %v6320
    %v6341 = vmul.f32 %v6337, %v365
    %v6342 = vmul.f32 %v6335, %v366
    %v6343 = vmul.f32 %v6333, %v367
    %v6344 = vmul.f32 %v6339, %v368
    %v6345 = vmul.f32 %v6338, %v365
    %v6346 = vmul.f32 %v6336, %v366
    %v6347 = vmul.f32 %v6334, %v367
    %v6348 = vmul.f32 %v6340, %v368
    %6349 = vset.pattern.permute.xlu0 5
    %6350 = vperm.xlu0 %6349, %v6064
    %v6351 = vpop.permute.xlu0 %6350
    %6353 = vset.pattern.permute.xlu0 5
    %6354 = vperm.xlu0 %6353, %v6065
    %v6355 = vpop.permute.xlu0 %6354
    %v6357 = vmul.f32 %v6351, %v6341
    %v6358 = vmul.f32 %v6351, %v6342
    %v6359 = vmul.f32 %v6351, %v6343
    %v6360 = vmul.f32 %v6351, %v6344
    %v6361 = vmul.f32 %v6355, %v6345
    %v6362 = vmul.f32 %v6355, %v6346
    %v6363 = vmul.f32 %v6355, %v6347
    %v6364 = vmul.f32 %v6355, %v6348
    %v6365 = vadd.f32 %v6309, %v6357
    %v6366 = vadd.f32 %v6310, %v6358
    %v6367 = vadd.f32 %v6311, %v6359
    %v6368 = vadd.f32 %v6312, %v6360
    %v6369 = vadd.f32 %v6313, %v6361
    %v6370 = vadd.f32 %v6314, %v6362
    %v6371 = vadd.f32 %v6315, %v6363
    %v6372 = vadd.f32 %v6316, %v6364
    %6373 = vrot.lane.b32.xlu0 %v6017, 113
    %v6374 = vpop.permute.xlu0 %6373
    %6375 = vrot.lane.b32.xlu0 %v6019, 113
    %v6376 = vpop.permute.xlu0 %6375
    %6377 = vrot.lane.b32.xlu0 %v6031, 113
    %v6378 = vpop.permute.xlu0 %6377
    %6379 = vrot.lane.b32.xlu0 %v6033, 113
    %v6380 = vpop.permute.xlu0 %6379
    %6381 = vrot.lane.b32.xlu0 %v6045, 113
    %v6382 = vpop.permute.xlu0 %6381
    %6383 = vrot.lane.b32.xlu0 %v6047, 113
    %v6384 = vpop.permute.xlu0 %6383
    %6385 = vrot.lane.b32.xlu0 %v6059, 113
    %v6386 = vpop.permute.xlu0 %6385
    %6387 = vrot.lane.b32.xlu0 %v6061, 113
    %v6388 = vpop.permute.xlu0 %6387
    %v6389 = vsel %vm385, %v6382, %v6386
    %v6390 = vsel %vm385, %v6384, %v6388
    %v6391 = vsel %vm385, %v6378, %v6382
    %v6392 = vsel %vm385, %v6380, %v6384
    %v6393 = vsel %vm385, %v6374, %v6378
    %v6394 = vsel %vm385, %v6376, %v6380
    %v6395 = vsel %vm385, %v6386, %v6374
    %v6396 = vsel %vm385, %v6388, %v6376
    %v6397 = vmul.f32 %v6393, %v393
    %v6398 = vmul.f32 %v6391, %v394
    %v6399 = vmul.f32 %v6389, %v395
    %v6400 = vmul.f32 %v6395, %v396
    %v6401 = vmul.f32 %v6394, %v393
    %v6402 = vmul.f32 %v6392, %v394
    %v6403 = vmul.f32 %v6390, %v395
    %v6404 = vmul.f32 %v6396, %v396
    %6405 = vset.pattern.permute.xlu0 6
    %6406 = vperm.xlu0 %6405, %v6064
    %v6407 = vpop.permute.xlu0 %6406
    %6409 = vset.pattern.permute.xlu0 6
    %6410 = vperm.xlu0 %6409, %v6065
    %v6411 = vpop.permute.xlu0 %6410
    %v6413 = vmul.f32 %v6407, %v6397
    %v6414 = vmul.f32 %v6407, %v6398
    %v6415 = vmul.f32 %v6407, %v6399
    %v6416 = vmul.f32 %v6407, %v6400
    %v6417 = vmul.f32 %v6411, %v6401
    %v6418 = vmul.f32 %v6411, %v6402
    %v6419 = vmul.f32 %v6411, %v6403
    %v6420 = vmul.f32 %v6411, %v6404
    %v6421 = vadd.f32 %v6365, %v6413
    %v6422 = vadd.f32 %v6366, %v6414
    %v6423 = vadd.f32 %v6367, %v6415
    %v6424 = vadd.f32 %v6368, %v6416
    %v6425 = vadd.f32 %v6369, %v6417
    %v6426 = vadd.f32 %v6370, %v6418
    %v6427 = vadd.f32 %v6371, %v6419
    %v6428 = vadd.f32 %v6372, %v6420
    %6429 = vrot.lane.b32.xlu0 %v6017, 112
    %v6430 = vpop.permute.xlu0 %6429
    %6431 = vrot.lane.b32.xlu0 %v6019, 112
    %v6432 = vpop.permute.xlu0 %6431
    %6433 = vrot.lane.b32.xlu0 %v6031, 112
    %v6434 = vpop.permute.xlu0 %6433
    %6435 = vrot.lane.b32.xlu0 %v6033, 112
    %v6436 = vpop.permute.xlu0 %6435
    %6437 = vrot.lane.b32.xlu0 %v6045, 112
    %v6438 = vpop.permute.xlu0 %6437
    %6439 = vrot.lane.b32.xlu0 %v6047, 112
    %v6440 = vpop.permute.xlu0 %6439
    %6441 = vrot.lane.b32.xlu0 %v6059, 112
    %v6442 = vpop.permute.xlu0 %6441
    %6443 = vrot.lane.b32.xlu0 %v6061, 112
    %v6444 = vpop.permute.xlu0 %6443
    %v6445 = vsel %vm413, %v6438, %v6442
    %v6446 = vsel %vm413, %v6440, %v6444
    %v6447 = vsel %vm413, %v6434, %v6438
    %v6448 = vsel %vm413, %v6436, %v6440
    %v6449 = vsel %vm413, %v6430, %v6434
    %v6450 = vsel %vm413, %v6432, %v6436
    %v6451 = vsel %vm413, %v6442, %v6430
    %v6452 = vsel %vm413, %v6444, %v6432
    %v6453 = vmul.f32 %v6449, %v421
    %v6454 = vmul.f32 %v6447, %v422
    %v6455 = vmul.f32 %v6445, %v423
    %v6456 = vmul.f32 %v6451, %v424
    %v6457 = vmul.f32 %v6450, %v421
    %v6458 = vmul.f32 %v6448, %v422
    %v6459 = vmul.f32 %v6446, %v423
    %v6460 = vmul.f32 %v6452, %v424
    %6461 = vset.pattern.permute.xlu0 7
    %6462 = vperm.xlu0 %6461, %v6064
    %v6463 = vpop.permute.xlu0 %6462
    %6465 = vset.pattern.permute.xlu0 7
    %6466 = vperm.xlu0 %6465, %v6065
    %v6467 = vpop.permute.xlu0 %6466
    %v6469 = vmul.f32 %v6463, %v6453
    %v6470 = vmul.f32 %v6463, %v6454
    %v6471 = vmul.f32 %v6463, %v6455
    %v6472 = vmul.f32 %v6463, %v6456
    %v6473 = vmul.f32 %v6467, %v6457
    %v6474 = vmul.f32 %v6467, %v6458
    %v6475 = vmul.f32 %v6467, %v6459
    %v6476 = vmul.f32 %v6467, %v6460
    %v6477 = vadd.f32 %v6421, %v6469
    %v6478 = vadd.f32 %v6422, %v6470
    %v6479 = vadd.f32 %v6423, %v6471
    %v6480 = vadd.f32 %v6424, %v6472
    %v6481 = vadd.f32 %v6425, %v6473
    %v6482 = vadd.f32 %v6426, %v6474
    %v6483 = vadd.f32 %v6427, %v6475
    %v6484 = vadd.f32 %v6428, %v6476
    %6485 = vrot.lane.b32.xlu0 %v6017, 111
    %v6486 = vpop.permute.xlu0 %6485
    %6487 = vrot.lane.b32.xlu0 %v6019, 111
    %v6488 = vpop.permute.xlu0 %6487
    %6489 = vrot.lane.b32.xlu0 %v6031, 111
    %v6490 = vpop.permute.xlu0 %6489
    %6491 = vrot.lane.b32.xlu0 %v6033, 111
    %v6492 = vpop.permute.xlu0 %6491
    %6493 = vrot.lane.b32.xlu0 %v6045, 111
    %v6494 = vpop.permute.xlu0 %6493
    %6495 = vrot.lane.b32.xlu0 %v6047, 111
    %v6496 = vpop.permute.xlu0 %6495
    %6497 = vrot.lane.b32.xlu0 %v6059, 111
    %v6498 = vpop.permute.xlu0 %6497
    %6499 = vrot.lane.b32.xlu0 %v6061, 111
    %v6500 = vpop.permute.xlu0 %6499
    %v6501 = vsel %vm441, %v6494, %v6498
    %v6502 = vsel %vm441, %v6496, %v6500
    %v6503 = vsel %vm441, %v6490, %v6494
    %v6504 = vsel %vm441, %v6492, %v6496
    %v6505 = vsel %vm441, %v6486, %v6490
    %v6506 = vsel %vm441, %v6488, %v6492
    %v6507 = vsel %vm441, %v6498, %v6486
    %v6508 = vsel %vm441, %v6500, %v6488
    %v6509 = vmul.f32 %v6505, %v449
    %v6510 = vmul.f32 %v6503, %v450
    %v6511 = vmul.f32 %v6501, %v451
    %v6512 = vmul.f32 %v6507, %v452
    %v6513 = vmul.f32 %v6506, %v449
    %v6514 = vmul.f32 %v6504, %v450
    %v6515 = vmul.f32 %v6502, %v451
    %v6516 = vmul.f32 %v6508, %v452
    %6517 = vset.pattern.permute.xlu0 8
    %6518 = vperm.xlu0 %6517, %v6064
    %v6519 = vpop.permute.xlu0 %6518
    %6521 = vset.pattern.permute.xlu0 8
    %6522 = vperm.xlu0 %6521, %v6065
    %v6523 = vpop.permute.xlu0 %6522
    %v6525 = vmul.f32 %v6519, %v6509
    %v6526 = vmul.f32 %v6519, %v6510
    %v6527 = vmul.f32 %v6519, %v6511
    %v6528 = vmul.f32 %v6519, %v6512
    %v6529 = vmul.f32 %v6523, %v6513
    %v6530 = vmul.f32 %v6523, %v6514
    %v6531 = vmul.f32 %v6523, %v6515
    %v6532 = vmul.f32 %v6523, %v6516
    %v6533 = vadd.f32 %v6477, %v6525
    %v6534 = vadd.f32 %v6478, %v6526
    %v6535 = vadd.f32 %v6479, %v6527
    %v6536 = vadd.f32 %v6480, %v6528
    %v6537 = vadd.f32 %v6481, %v6529
    %v6538 = vadd.f32 %v6482, %v6530
    %v6539 = vadd.f32 %v6483, %v6531
    %v6540 = vadd.f32 %v6484, %v6532
    %6542 = vset.pattern.permute.xlu0 0
    %6543 = vperm.xlu0 %6542, %v6067
    %v6544 = vpop.permute.xlu0 %6543
    %6547 = vset.pattern.permute.xlu0 0
    %6548 = vperm.xlu0 %6547, %v6068
    %v6549 = vpop.permute.xlu0 %6548
    %v6551 = vadd.f32 %v6533, %v6544
    %v6552 = vadd.f32 %v6534, %v6544
    %v6553 = vadd.f32 %v6535, %v6544
    %v6554 = vadd.f32 %v6536, %v6544
    %v6555 = vadd.f32 %v6537, %v6549
    %v6556 = vadd.f32 %v6538, %v6549
    %v6557 = vadd.f32 %v6539, %v6549
    %v6558 = vadd.f32 %v6540, %v6549
    %v6559 = vmax.f32 %v6551, 0.0
    %v6560 = vmax.f32 %v6552, 0.0
    %v6561 = vmax.f32 %v6553, 0.0
    %v6562 = vmax.f32 %v6554, 0.0
    %v6563 = vmax.f32 %v6555, 0.0
    %v6564 = vmax.f32 %v6556, 0.0
    %v6565 = vmax.f32 %v6557, 0.0
    %v6566 = vmax.f32 %v6558, 0.0
    %v6567 = vpack.c.bf16 %v6563, %v6559
    %v6568 = vpack.c.bf16 %v6564, %v6560
    %v6569 = vpack.c.bf16 %v6565, %v6561
    %v6570 = vpack.c.bf16 %v6566, %v6562
    %6572 = vset.pattern.permute.xlu0 0
    %6573 = vperm.xlu0 %6572, %v6073
    %v6574 = vpop.permute.xlu0 %6573
    %6577 = vset.pattern.permute.xlu0 0
    %6578 = vperm.xlu0 %6577, %v6074
    %v6579 = vpop.permute.xlu0 %6578
    %v6583 = vunpack.c.l.b16 %v6070
    %v6584 = vunpack.c.l.b16 %v6071
    %v6585 = vpack.c.b16 %v6584, %v6583
    %v6587 = vsel %vm576, %v6585, 0
    %6589 = vmatpush.bf16.msra.mxu0 0
    %6590 = vmatpush.bf16.msra.mxu0 0
    %6591 = vmatpush.bf16.msra.mxu0 0
    %6592 = vmatpush.bf16.msra.mxu0 0
    %6593 = vmatpush.bf16.msra.mxu0 0
    %6594 = vmatpush.bf16.msra.mxu0 0
    %6595 = vmatpush.bf16.msra.mxu0 0
    %6596 = vmatpush.bf16.msra.mxu0 %v6567
    %6597 = vmatmul.bf16.gmra.mxu0 %v6587
    %v6598 = vpop.f32.mrf.mxu0
    %v6599 = vadd.f32 %v6574, %v6598
    %v6600 = vpop.f32.mrf.mxu0
    %v6601 = vadd.f32 %v6579, %v6600
    %6602 = vdwg.mxu0
    %6603 = vmatpush.bf16.msra.mxu0 0
    %6604 = vmatpush.bf16.msra.mxu0 0
    %6605 = vmatpush.bf16.msra.mxu0 0
    %6606 = vmatpush.bf16.msra.mxu0 0
    %6607 = vmatpush.bf16.msra.mxu0 0
    %6608 = vmatpush.bf16.msra.mxu0 0
    %6609 = vmatpush.bf16.msra.mxu0 0
    %6610 = vmatpush.bf16.msra.mxu0 %v6568
    %6611 = vmatmul.bf16.gmra.mxu0 %v6587
    %v6612 = vpop.f32.mrf.mxu0
    %v6613 = vadd.f32 %v6574, %v6612
    %v6614 = vpop.f32.mrf.mxu0
    %v6615 = vadd.f32 %v6579, %v6614
    %6616 = vdwg.mxu0
    %6617 = vmatpush.bf16.msra.mxu0 0
    %6618 = vmatpush.bf16.msra.mxu0 0
    %6619 = vmatpush.bf16.msra.mxu0 0
    %6620 = vmatpush.bf16.msra.mxu0 0
    %6621 = vmatpush.bf16.msra.mxu0 0
    %6622 = vmatpush.bf16.msra.mxu0 0
    %6623 = vmatpush.bf16.msra.mxu0 0
    %6624 = vmatpush.bf16.msra.mxu0 %v6569
    %6625 = vmatmul.bf16.gmra.mxu0 %v6587
    %v6626 = vpop.f32.mrf.mxu0
    %v6627 = vadd.f32 %v6574, %v6626
    %v6628 = vpop.f32.mrf.mxu0
    %v6629 = vadd.f32 %v6579, %v6628
    %6630 = vdwg.mxu0
    %6631 = vmatpush.bf16.msra.mxu0 0
    %6632 = vmatpush.bf16.msra.mxu0 0
    %6633 = vmatpush.bf16.msra.mxu0 0
    %6634 = vmatpush.bf16.msra.mxu0 0
    %6635 = vmatpush.bf16.msra.mxu0 0
    %6636 = vmatpush.bf16.msra.mxu0 0
    %6637 = vmatpush.bf16.msra.mxu0 0
    %6638 = vmatpush.bf16.msra.mxu0 %v6570
    %6639 = vmatmul.bf16.gmra.mxu0 %v6587
    %v6640 = vpop.f32.mrf.mxu0
    %v6641 = vadd.f32 %v6574, %v6640
    %v6642 = vpop.f32.mrf.mxu0
    %v6643 = vadd.f32 %v6579, %v6642
    %6644 = vdwg.mxu0
    %v6645 = vmax.f32 %v6599, 0.0
    %v6646 = vmax.f32 %v6613, 0.0
    %v6647 = vmax.f32 %v6627, 0.0
    %v6648 = vmax.f32 %v6641, 0.0
    %v6649 = vmax.f32 %v6601, 0.0
    %v6650 = vmax.f32 %v6615, 0.0
    %v6651 = vmax.f32 %v6629, 0.0
    %v6652 = vmax.f32 %v6643, 0.0
    %s6653 = scalar_lea.vmem %s12, 48
    %v6654 = vld [vmem:[%s6653] sm:$0xff]
    %v6655 = vld [vmem:[%s6653 + $0x8] sm:$0xff]
    %s6656 = scalar_lea.vmem %s13, 48
    %v6657 = vld [vmem:[%s6656] sm:$0xff]
    %v6658 = vld [vmem:[%s6656 + $0x8] sm:$0xff]
    %s6659 = scalar_lea.vmem [#allocation11], 24
    %v6660 = vld [vmem:[%s6659] sm:$0xf]
    %v6661 = vld [vmem:[%s6659 + $0x4] sm:$0xf]
    %s6662 = scalar_lea.vmem %s15, 48
    %v6663 = vld [vmem:[%s6662] sm:$0xff]
    %v6664 = vld [vmem:[%s6662 + $0x8] sm:$0xff]
    %6665 = vrot.lane.b32.xlu0 %v6645, 17
    %v6666 = vpop.permute.xlu0 %6665
    %6667 = vrot.lane.b32.xlu0 %v6649, 17
    %v6668 = vpop.permute.xlu0 %6667
    %6669 = vrot.lane.b32.xlu0 %v6646, 17
    %v6670 = vpop.permute.xlu0 %6669
    %6671 = vrot.lane.b32.xlu0 %v6650, 17
    %v6672 = vpop.permute.xlu0 %6671
    %6673 = vrot.lane.b32.xlu0 %v6647, 17
    %v6674 = vpop.permute.xlu0 %6673
    %6675 = vrot.lane.b32.xlu0 %v6651, 17
    %v6676 = vpop.permute.xlu0 %6675
    %6677 = vrot.lane.b32.xlu0 %v6648, 17
    %v6678 = vpop.permute.xlu0 %6677
    %6679 = vrot.lane.b32.xlu0 %v6652, 17
    %v6680 = vpop.permute.xlu0 %6679
    %v6681 = vsel %vm245, %v6674, %v6678
    %v6682 = vsel %vm245, %v6676, %v6680
    %v6683 = vsel %vm245, %v6670, %v6674
    %v6684 = vsel %vm245, %v6672, %v6676
    %v6685 = vsel %vm245, %v6666, %v6670
    %v6686 = vsel %vm245, %v6668, %v6672
    %v6687 = vsel %vm245, %v6678, %v6666
    %v6688 = vsel %vm245, %v6680, %v6668
    %v6689 = vmul.f32 %v6687, %v253
    %v6690 = vmul.f32 %v6685, %v254
    %v6691 = vmul.f32 %v6683, %v255
    %v6692 = vmul.f32 %v6681, %v256
    %v6693 = vmul.f32 %v6688, %v253
    %v6694 = vmul.f32 %v6686, %v254
    %v6695 = vmul.f32 %v6684, %v255
    %v6696 = vmul.f32 %v6682, %v256
    %6698 = vset.pattern.permute.xlu0 0
    %6699 = vperm.xlu0 %6698, %v6654
    %v6700 = vpop.permute.xlu0 %6699
    %6703 = vset.pattern.permute.xlu0 0
    %6704 = vperm.xlu0 %6703, %v6655
    %v6705 = vpop.permute.xlu0 %6704
    %v6707 = vmul.f32 %v6700, %v6689
    %v6708 = vmul.f32 %v6700, %v6690
    %v6709 = vmul.f32 %v6700, %v6691
    %v6710 = vmul.f32 %v6700, %v6692
    %v6711 = vmul.f32 %v6705, %v6693
    %v6712 = vmul.f32 %v6705, %v6694
    %v6713 = vmul.f32 %v6705, %v6695
    %v6714 = vmul.f32 %v6705, %v6696
    %6715 = vrot.lane.b32.xlu0 %v6645, 16
    %v6716 = vpop.permute.xlu0 %6715
    %6717 = vrot.lane.b32.xlu0 %v6649, 16
    %v6718 = vpop.permute.xlu0 %6717
    %6719 = vrot.lane.b32.xlu0 %v6646, 16
    %v6720 = vpop.permute.xlu0 %6719
    %6721 = vrot.lane.b32.xlu0 %v6650, 16
    %v6722 = vpop.permute.xlu0 %6721
    %6723 = vrot.lane.b32.xlu0 %v6647, 16
    %v6724 = vpop.permute.xlu0 %6723
    %6725 = vrot.lane.b32.xlu0 %v6651, 16
    %v6726 = vpop.permute.xlu0 %6725
    %6727 = vrot.lane.b32.xlu0 %v6648, 16
    %v6728 = vpop.permute.xlu0 %6727
    %6729 = vrot.lane.b32.xlu0 %v6652, 16
    %v6730 = vpop.permute.xlu0 %6729
    %v6731 = vsel %vm273, %v6724, %v6728
    %v6732 = vsel %vm273, %v6726, %v6730
    %v6733 = vsel %vm273, %v6720, %v6724
    %v6734 = vsel %vm273, %v6722, %v6726
    %v6735 = vsel %vm273, %v6716, %v6720
    %v6736 = vsel %vm273, %v6718, %v6722
    %v6737 = vsel %vm273, %v6728, %v6716
    %v6738 = vsel %vm273, %v6730, %v6718
    %v6739 = vmul.f32 %v6737, %v281
    %v6740 = vmul.f32 %v6735, %v282
    %v6741 = vmul.f32 %v6733, %v283
    %v6742 = vmul.f32 %v6731, %v284
    %v6743 = vmul.f32 %v6738, %v281
    %v6744 = vmul.f32 %v6736, %v282
    %v6745 = vmul.f32 %v6734, %v283
    %v6746 = vmul.f32 %v6732, %v284
    %6747 = vset.pattern.permute.xlu0 1
    %6748 = vperm.xlu0 %6747, %v6654
    %v6749 = vpop.permute.xlu0 %6748
    %6751 = vset.pattern.permute.xlu0 1
    %6752 = vperm.xlu0 %6751, %v6655
    %v6753 = vpop.permute.xlu0 %6752
    %v6755 = vmul.f32 %v6749, %v6739
    %v6756 = vmul.f32 %v6749, %v6740
    %v6757 = vmul.f32 %v6749, %v6741
    %v6758 = vmul.f32 %v6749, %v6742
    %v6759 = vmul.f32 %v6753, %v6743
    %v6760 = vmul.f32 %v6753, %v6744
    %v6761 = vmul.f32 %v6753, %v6745
    %v6762 = vmul.f32 %v6753, %v6746
    %v6763 = vadd.f32 %v6707, %v6755
    %v6764 = vadd.f32 %v6708, %v6756
    %v6765 = vadd.f32 %v6709, %v6757
    %v6766 = vadd.f32 %v6710, %v6758
    %v6767 = vadd.f32 %v6711, %v6759
    %v6768 = vadd.f32 %v6712, %v6760
    %v6769 = vadd.f32 %v6713, %v6761
    %v6770 = vadd.f32 %v6714, %v6762
    %6771 = vrot.lane.b32.xlu0 %v6645, 15
    %v6772 = vpop.permute.xlu0 %6771
    %6773 = vrot.lane.b32.xlu0 %v6649, 15
    %v6774 = vpop.permute.xlu0 %6773
    %6775 = vrot.lane.b32.xlu0 %v6646, 15
    %v6776 = vpop.permute.xlu0 %6775
    %6777 = vrot.lane.b32.xlu0 %v6650, 15
    %v6778 = vpop.permute.xlu0 %6777
    %6779 = vrot.lane.b32.xlu0 %v6647, 15
    %v6780 = vpop.permute.xlu0 %6779
    %6781 = vrot.lane.b32.xlu0 %v6651, 15
    %v6782 = vpop.permute.xlu0 %6781
    %6783 = vrot.lane.b32.xlu0 %v6648, 15
    %v6784 = vpop.permute.xlu0 %6783
    %6785 = vrot.lane.b32.xlu0 %v6652, 15
    %v6786 = vpop.permute.xlu0 %6785
    %v6787 = vsel %vm301, %v6780, %v6784
    %v6788 = vsel %vm301, %v6782, %v6786
    %v6789 = vsel %vm301, %v6776, %v6780
    %v6790 = vsel %vm301, %v6778, %v6782
    %v6791 = vsel %vm301, %v6772, %v6776
    %v6792 = vsel %vm301, %v6774, %v6778
    %v6793 = vsel %vm301, %v6784, %v6772
    %v6794 = vsel %vm301, %v6786, %v6774
    %v6795 = vmul.f32 %v6793, %v309
    %v6796 = vmul.f32 %v6791, %v310
    %v6797 = vmul.f32 %v6789, %v311
    %v6798 = vmul.f32 %v6787, %v312
    %v6799 = vmul.f32 %v6794, %v309
    %v6800 = vmul.f32 %v6792, %v310
    %v6801 = vmul.f32 %v6790, %v311
    %v6802 = vmul.f32 %v6788, %v312
    %6803 = vset.pattern.permute.xlu0 2
    %6804 = vperm.xlu0 %6803, %v6654
    %v6805 = vpop.permute.xlu0 %6804
    %6807 = vset.pattern.permute.xlu0 2
    %6808 = vperm.xlu0 %6807, %v6655
    %v6809 = vpop.permute.xlu0 %6808
    %v6811 = vmul.f32 %v6805, %v6795
    %v6812 = vmul.f32 %v6805, %v6796
    %v6813 = vmul.f32 %v6805, %v6797
    %v6814 = vmul.f32 %v6805, %v6798
    %v6815 = vmul.f32 %v6809, %v6799
    %v6816 = vmul.f32 %v6809, %v6800
    %v6817 = vmul.f32 %v6809, %v6801
    %v6818 = vmul.f32 %v6809, %v6802
    %v6819 = vadd.f32 %v6763, %v6811
    %v6820 = vadd.f32 %v6764, %v6812
    %v6821 = vadd.f32 %v6765, %v6813
    %v6822 = vadd.f32 %v6766, %v6814
    %v6823 = vadd.f32 %v6767, %v6815
    %v6824 = vadd.f32 %v6768, %v6816
    %v6825 = vadd.f32 %v6769, %v6817
    %v6826 = vadd.f32 %v6770, %v6818
    %6827 = vrot.lane.b32.xlu0 %v6645, 1
    %v6828 = vpop.permute.xlu0 %6827
    %6829 = vrot.lane.b32.xlu0 %v6649, 1
    %v6830 = vpop.permute.xlu0 %6829
    %6831 = vrot.lane.b32.xlu0 %v6646, 1
    %v6832 = vpop.permute.xlu0 %6831
    %6833 = vrot.lane.b32.xlu0 %v6650, 1
    %v6834 = vpop.permute.xlu0 %6833
    %6835 = vrot.lane.b32.xlu0 %v6647, 1
    %v6836 = vpop.permute.xlu0 %6835
    %6837 = vrot.lane.b32.xlu0 %v6651, 1
    %v6838 = vpop.permute.xlu0 %6837
    %6839 = vrot.lane.b32.xlu0 %v6648, 1
    %v6840 = vpop.permute.xlu0 %6839
    %6841 = vrot.lane.b32.xlu0 %v6652, 1
    %v6842 = vpop.permute.xlu0 %6841
    %v6843 = vsel %vm329, %v6836, %v6840
    %v6844 = vsel %vm329, %v6838, %v6842
    %v6845 = vsel %vm329, %v6832, %v6836
    %v6846 = vsel %vm329, %v6834, %v6838
    %v6847 = vsel %vm329, %v6828, %v6832
    %v6848 = vsel %vm329, %v6830, %v6834
    %v6849 = vsel %vm329, %v6840, %v6828
    %v6850 = vsel %vm329, %v6842, %v6830
    %v6851 = vmul.f32 %v6849, %v337
    %v6852 = vmul.f32 %v6847, %v338
    %v6853 = vmul.f32 %v6845, %v339
    %v6854 = vmul.f32 %v6843, %v340
    %v6855 = vmul.f32 %v6850, %v337
    %v6856 = vmul.f32 %v6848, %v338
    %v6857 = vmul.f32 %v6846, %v339
    %v6858 = vmul.f32 %v6844, %v340
    %6859 = vset.pattern.permute.xlu0 3
    %6860 = vperm.xlu0 %6859, %v6654
    %v6861 = vpop.permute.xlu0 %6860
    %6863 = vset.pattern.permute.xlu0 3
    %6864 = vperm.xlu0 %6863, %v6655
    %v6865 = vpop.permute.xlu0 %6864
    %v6867 = vmul.f32 %v6861, %v6851
    %v6868 = vmul.f32 %v6861, %v6852
    %v6869 = vmul.f32 %v6861, %v6853
    %v6870 = vmul.f32 %v6861, %v6854
    %v6871 = vmul.f32 %v6865, %v6855
    %v6872 = vmul.f32 %v6865, %v6856
    %v6873 = vmul.f32 %v6865, %v6857
    %v6874 = vmul.f32 %v6865, %v6858
    %v6875 = vadd.f32 %v6819, %v6867
    %v6876 = vadd.f32 %v6820, %v6868
    %v6877 = vadd.f32 %v6821, %v6869
    %v6878 = vadd.f32 %v6822, %v6870
    %v6879 = vadd.f32 %v6823, %v6871
    %v6880 = vadd.f32 %v6824, %v6872
    %v6881 = vadd.f32 %v6825, %v6873
    %v6882 = vadd.f32 %v6826, %v6874
    %6883 = vset.pattern.permute.xlu0 4
    %6884 = vperm.xlu0 %6883, %v6654
    %v6885 = vpop.permute.xlu0 %6884
    %6887 = vset.pattern.permute.xlu0 4
    %6888 = vperm.xlu0 %6887, %v6655
    %v6889 = vpop.permute.xlu0 %6888
    %v6891 = vmul.f32 %v6885, %v6645
    %v6892 = vmul.f32 %v6885, %v6646
    %v6893 = vmul.f32 %v6885, %v6647
    %v6894 = vmul.f32 %v6885, %v6648
    %v6895 = vmul.f32 %v6889, %v6649
    %v6896 = vmul.f32 %v6889, %v6650
    %v6897 = vmul.f32 %v6889, %v6651
    %v6898 = vmul.f32 %v6889, %v6652
    %v6899 = vadd.f32 %v6875, %v6891
    %v6900 = vadd.f32 %v6876, %v6892
    %v6901 = vadd.f32 %v6877, %v6893
    %v6902 = vadd.f32 %v6878, %v6894
    %v6903 = vadd.f32 %v6879, %v6895
    %v6904 = vadd.f32 %v6880, %v6896
    %v6905 = vadd.f32 %v6881, %v6897
    %v6906 = vadd.f32 %v6882, %v6898
    %6907 = vrot.lane.b32.xlu0 %v6645, 127
    %v6908 = vpop.permute.xlu0 %6907
    %6909 = vrot.lane.b32.xlu0 %v6649, 127
    %v6910 = vpop.permute.xlu0 %6909
    %6911 = vrot.lane.b32.xlu0 %v6646, 127
    %v6912 = vpop.permute.xlu0 %6911
    %6913 = vrot.lane.b32.xlu0 %v6650, 127
    %v6914 = vpop.permute.xlu0 %6913
    %6915 = vrot.lane.b32.xlu0 %v6647, 127
    %v6916 = vpop.permute.xlu0 %6915
    %6917 = vrot.lane.b32.xlu0 %v6651, 127
    %v6918 = vpop.permute.xlu0 %6917
    %6919 = vrot.lane.b32.xlu0 %v6648, 127
    %v6920 = vpop.permute.xlu0 %6919
    %6921 = vrot.lane.b32.xlu0 %v6652, 127
    %v6922 = vpop.permute.xlu0 %6921
    %v6923 = vsel %vm357, %v6916, %v6920
    %v6924 = vsel %vm357, %v6918, %v6922
    %v6925 = vsel %vm357, %v6912, %v6916
    %v6926 = vsel %vm357, %v6914, %v6918
    %v6927 = vsel %vm357, %v6908, %v6912
    %v6928 = vsel %vm357, %v6910, %v6914
    %v6929 = vsel %vm357, %v6920, %v6908
    %v6930 = vsel %vm357, %v6922, %v6910
    %v6931 = vmul.f32 %v6927, %v365
    %v6932 = vmul.f32 %v6925, %v366
    %v6933 = vmul.f32 %v6923, %v367
    %v6934 = vmul.f32 %v6929, %v368
    %v6935 = vmul.f32 %v6928, %v365
    %v6936 = vmul.f32 %v6926, %v366
    %v6937 = vmul.f32 %v6924, %v367
    %v6938 = vmul.f32 %v6930, %v368
    %6939 = vset.pattern.permute.xlu0 5
    %6940 = vperm.xlu0 %6939, %v6654
    %v6941 = vpop.permute.xlu0 %6940
    %6943 = vset.pattern.permute.xlu0 5
    %6944 = vperm.xlu0 %6943, %v6655
    %v6945 = vpop.permute.xlu0 %6944
    %v6947 = vmul.f32 %v6941, %v6931
    %v6948 = vmul.f32 %v6941, %v6932
    %v6949 = vmul.f32 %v6941, %v6933
    %v6950 = vmul.f32 %v6941, %v6934
    %v6951 = vmul.f32 %v6945, %v6935
    %v6952 = vmul.f32 %v6945, %v6936
    %v6953 = vmul.f32 %v6945, %v6937
    %v6954 = vmul.f32 %v6945, %v6938
    %v6955 = vadd.f32 %v6899, %v6947
    %v6956 = vadd.f32 %v6900, %v6948
    %v6957 = vadd.f32 %v6901, %v6949
    %v6958 = vadd.f32 %v6902, %v6950
    %v6959 = vadd.f32 %v6903, %v6951
    %v6960 = vadd.f32 %v6904, %v6952
    %v6961 = vadd.f32 %v6905, %v6953
    %v6962 = vadd.f32 %v6906, %v6954
    %6963 = vrot.lane.b32.xlu0 %v6645, 113
    %v6964 = vpop.permute.xlu0 %6963
    %6965 = vrot.lane.b32.xlu0 %v6649, 113
    %v6966 = vpop.permute.xlu0 %6965
    %6967 = vrot.lane.b32.xlu0 %v6646, 113
    %v6968 = vpop.permute.xlu0 %6967
    %6969 = vrot.lane.b32.xlu0 %v6650, 113
    %v6970 = vpop.permute.xlu0 %6969
    %6971 = vrot.lane.b32.xlu0 %v6647, 113
    %v6972 = vpop.permute.xlu0 %6971
    %6973 = vrot.lane.b32.xlu0 %v6651, 113
    %v6974 = vpop.permute.xlu0 %6973
    %6975 = vrot.lane.b32.xlu0 %v6648, 113
    %v6976 = vpop.permute.xlu0 %6975
    %6977 = vrot.lane.b32.xlu0 %v6652, 113
    %v6978 = vpop.permute.xlu0 %6977
    %v6979 = vsel %vm385, %v6972, %v6976
    %v6980 = vsel %vm385, %v6974, %v6978
    %v6981 = vsel %vm385, %v6968, %v6972
    %v6982 = vsel %vm385, %v6970, %v6974
    %v6983 = vsel %vm385, %v6964, %v6968
    %v6984 = vsel %vm385, %v6966, %v6970
    %v6985 = vsel %vm385, %v6976, %v6964
    %v6986 = vsel %vm385, %v6978, %v6966
    %v6987 = vmul.f32 %v6983, %v393
    %v6988 = vmul.f32 %v6981, %v394
    %v6989 = vmul.f32 %v6979, %v395
    %v6990 = vmul.f32 %v6985, %v396
    %v6991 = vmul.f32 %v6984, %v393
    %v6992 = vmul.f32 %v6982, %v394
    %v6993 = vmul.f32 %v6980, %v395
    %v6994 = vmul.f32 %v6986, %v396
    %6995 = vset.pattern.permute.xlu0 6
    %6996 = vperm.xlu0 %6995, %v6654
    %v6997 = vpop.permute.xlu0 %6996
    %6999 = vset.pattern.permute.xlu0 6
    %7000 = vperm.xlu0 %6999, %v6655
    %v7001 = vpop.permute.xlu0 %7000
    %v7003 = vmul.f32 %v6997, %v6987
    %v7004 = vmul.f32 %v6997, %v6988
    %v7005 = vmul.f32 %v6997, %v6989
    %v7006 = vmul.f32 %v6997, %v6990
    %v7007 = vmul.f32 %v7001, %v6991
    %v7008 = vmul.f32 %v7001, %v6992
    %v7009 = vmul.f32 %v7001, %v6993
    %v7010 = vmul.f32 %v7001, %v6994
    %v7011 = vadd.f32 %v6955, %v7003
    %v7012 = vadd.f32 %v6956, %v7004
    %v7013 = vadd.f32 %v6957, %v7005
    %v7014 = vadd.f32 %v6958, %v7006
    %v7015 = vadd.f32 %v6959, %v7007
    %v7016 = vadd.f32 %v6960, %v7008
    %v7017 = vadd.f32 %v6961, %v7009
    %v7018 = vadd.f32 %v6962, %v7010
    %7019 = vrot.lane.b32.xlu0 %v6645, 112
    %v7020 = vpop.permute.xlu0 %7019
    %7021 = vrot.lane.b32.xlu0 %v6649, 112
    %v7022 = vpop.permute.xlu0 %7021
    %7023 = vrot.lane.b32.xlu0 %v6646, 112
    %v7024 = vpop.permute.xlu0 %7023
    %7025 = vrot.lane.b32.xlu0 %v6650, 112
    %v7026 = vpop.permute.xlu0 %7025
    %7027 = vrot.lane.b32.xlu0 %v6647, 112
    %v7028 = vpop.permute.xlu0 %7027
    %7029 = vrot.lane.b32.xlu0 %v6651, 112
    %v7030 = vpop.permute.xlu0 %7029
    %7031 = vrot.lane.b32.xlu0 %v6648, 112
    %v7032 = vpop.permute.xlu0 %7031
    %7033 = vrot.lane.b32.xlu0 %v6652, 112
    %v7034 = vpop.permute.xlu0 %7033
    %v7035 = vsel %vm413, %v7028, %v7032
    %v7036 = vsel %vm413, %v7030, %v7034
    %v7037 = vsel %vm413, %v7024, %v7028
    %v7038 = vsel %vm413, %v7026, %v7030
    %v7039 = vsel %vm413, %v7020, %v7024
    %v7040 = vsel %vm413, %v7022, %v7026
    %v7041 = vsel %vm413, %v7032, %v7020
    %v7042 = vsel %vm413, %v7034, %v7022
    %v7043 = vmul.f32 %v7039, %v421
    %v7044 = vmul.f32 %v7037, %v422
    %v7045 = vmul.f32 %v7035, %v423
    %v7046 = vmul.f32 %v7041, %v424
    %v7047 = vmul.f32 %v7040, %v421
    %v7048 = vmul.f32 %v7038, %v422
    %v7049 = vmul.f32 %v7036, %v423
    %v7050 = vmul.f32 %v7042, %v424
    %7051 = vset.pattern.permute.xlu0 7
    %7052 = vperm.xlu0 %7051, %v6654
    %v7053 = vpop.permute.xlu0 %7052
    %7055 = vset.pattern.permute.xlu0 7
    %7056 = vperm.xlu0 %7055, %v6655
    %v7057 = vpop.permute.xlu0 %7056
    %v7059 = vmul.f32 %v7053, %v7043
    %v7060 = vmul.f32 %v7053, %v7044
    %v7061 = vmul.f32 %v7053, %v7045
    %v7062 = vmul.f32 %v7053, %v7046
    %v7063 = vmul.f32 %v7057, %v7047
    %v7064 = vmul.f32 %v7057, %v7048
    %v7065 = vmul.f32 %v7057, %v7049
    %v7066 = vmul.f32 %v7057, %v7050
    %v7067 = vadd.f32 %v7011, %v7059
    %v7068 = vadd.f32 %v7012, %v7060
    %v7069 = vadd.f32 %v7013, %v7061
    %v7070 = vadd.f32 %v7014, %v7062
    %v7071 = vadd.f32 %v7015, %v7063
    %v7072 = vadd.f32 %v7016, %v7064
    %v7073 = vadd.f32 %v7017, %v7065
    %v7074 = vadd.f32 %v7018, %v7066
    %7075 = vrot.lane.b32.xlu0 %v6645, 111
    %v7076 = vpop.permute.xlu0 %7075
    %7077 = vrot.lane.b32.xlu0 %v6649, 111
    %v7078 = vpop.permute.xlu0 %7077
    %7079 = vrot.lane.b32.xlu0 %v6646, 111
    %v7080 = vpop.permute.xlu0 %7079
    %7081 = vrot.lane.b32.xlu0 %v6650, 111
    %v7082 = vpop.permute.xlu0 %7081
    %7083 = vrot.lane.b32.xlu0 %v6647, 111
    %v7084 = vpop.permute.xlu0 %7083
    %7085 = vrot.lane.b32.xlu0 %v6651, 111
    %v7086 = vpop.permute.xlu0 %7085
    %7087 = vrot.lane.b32.xlu0 %v6648, 111
    %v7088 = vpop.permute.xlu0 %7087
    %7089 = vrot.lane.b32.xlu0 %v6652, 111
    %v7090 = vpop.permute.xlu0 %7089
    %v7091 = vsel %vm441, %v7084, %v7088
    %v7092 = vsel %vm441, %v7086, %v7090
    %v7093 = vsel %vm441, %v7080, %v7084
    %v7094 = vsel %vm441, %v7082, %v7086
    %v7095 = vsel %vm441, %v7076, %v7080
    %v7096 = vsel %vm441, %v7078, %v7082
    %v7097 = vsel %vm441, %v7088, %v7076
    %v7098 = vsel %vm441, %v7090, %v7078
    %v7099 = vmul.f32 %v7095, %v449
    %v7100 = vmul.f32 %v7093, %v450
    %v7101 = vmul.f32 %v7091, %v451
    %v7102 = vmul.f32 %v7097, %v452
    %v7103 = vmul.f32 %v7096, %v449
    %v7104 = vmul.f32 %v7094, %v450
    %v7105 = vmul.f32 %v7092, %v451
    %v7106 = vmul.f32 %v7098, %v452
    %7107 = vset.pattern.permute.xlu0 8
    %7108 = vperm.xlu0 %7107, %v6654
    %v7109 = vpop.permute.xlu0 %7108
    %7111 = vset.pattern.permute.xlu0 8
    %7112 = vperm.xlu0 %7111, %v6655
    %v7113 = vpop.permute.xlu0 %7112
    %v7115 = vmul.f32 %v7109, %v7099
    %v7116 = vmul.f32 %v7109, %v7100
    %v7117 = vmul.f32 %v7109, %v7101
    %v7118 = vmul.f32 %v7109, %v7102
    %v7119 = vmul.f32 %v7113, %v7103
    %v7120 = vmul.f32 %v7113, %v7104
    %v7121 = vmul.f32 %v7113, %v7105
    %v7122 = vmul.f32 %v7113, %v7106
    %v7123 = vadd.f32 %v7067, %v7115
    %v7124 = vadd.f32 %v7068, %v7116
    %v7125 = vadd.f32 %v7069, %v7117
    %v7126 = vadd.f32 %v7070, %v7118
    %v7127 = vadd.f32 %v7071, %v7119
    %v7128 = vadd.f32 %v7072, %v7120
    %v7129 = vadd.f32 %v7073, %v7121
    %v7130 = vadd.f32 %v7074, %v7122
    %7132 = vset.pattern.permute.xlu0 0
    %7133 = vperm.xlu0 %7132, %v6657
    %v7134 = vpop.permute.xlu0 %7133
    %7137 = vset.pattern.permute.xlu0 0
    %7138 = vperm.xlu0 %7137, %v6658
    %v7139 = vpop.permute.xlu0 %7138
    %v7141 = vadd.f32 %v7123, %v7134
    %v7142 = vadd.f32 %v7124, %v7134
    %v7143 = vadd.f32 %v7125, %v7134
    %v7144 = vadd.f32 %v7126, %v7134
    %v7145 = vadd.f32 %v7127, %v7139
    %v7146 = vadd.f32 %v7128, %v7139
    %v7147 = vadd.f32 %v7129, %v7139
    %v7148 = vadd.f32 %v7130, %v7139
    %v7149 = vmax.f32 %v7141, 0.0
    %v7150 = vmax.f32 %v7142, 0.0
    %v7151 = vmax.f32 %v7143, 0.0
    %v7152 = vmax.f32 %v7144, 0.0
    %v7153 = vmax.f32 %v7145, 0.0
    %v7154 = vmax.f32 %v7146, 0.0
    %v7155 = vmax.f32 %v7147, 0.0
    %v7156 = vmax.f32 %v7148, 0.0
    %v7157 = vpack.c.bf16 %v7153, %v7149
    %v7158 = vpack.c.bf16 %v7154, %v7150
    %v7159 = vpack.c.bf16 %v7155, %v7151
    %v7160 = vpack.c.bf16 %v7156, %v7152
    %7162 = vset.pattern.permute.xlu0 0
    %7163 = vperm.xlu0 %7162, %v6663
    %v7164 = vpop.permute.xlu0 %7163
    %7167 = vset.pattern.permute.xlu0 0
    %7168 = vperm.xlu0 %7167, %v6664
    %v7169 = vpop.permute.xlu0 %7168
    %v7173 = vunpack.c.l.b16 %v6660
    %v7174 = vunpack.c.l.b16 %v6661
    %v7175 = vpack.c.b16 %v7174, %v7173
    %v7177 = vsel %vm576, %v7175, 0
    %7179 = vmatpush.bf16.msra.mxu0 0
    %7180 = vmatpush.bf16.msra.mxu0 0
    %7181 = vmatpush.bf16.msra.mxu0 0
    %7182 = vmatpush.bf16.msra.mxu0 0
    %7183 = vmatpush.bf16.msra.mxu0 0
    %7184 = vmatpush.bf16.msra.mxu0 0
    %7185 = vmatpush.bf16.msra.mxu0 0
    %7186 = vmatpush.bf16.msra.mxu0 %v7157
    %7187 = vmatmul.bf16.gmra.mxu0 %v7177
    %v7188 = vpop.f32.mrf.mxu0
    %v7189 = vadd.f32 %v7164, %v7188
    %v7190 = vpop.f32.mrf.mxu0
    %v7191 = vadd.f32 %v7169, %v7190
    %7192 = vdwg.mxu0
    %7193 = vmatpush.bf16.msra.mxu0 0
    %7194 = vmatpush.bf16.msra.mxu0 0
    %7195 = vmatpush.bf16.msra.mxu0 0
    %7196 = vmatpush.bf16.msra.mxu0 0
    %7197 = vmatpush.bf16.msra.mxu0 0
    %7198 = vmatpush.bf16.msra.mxu0 0
    %7199 = vmatpush.bf16.msra.mxu0 0
    %7200 = vmatpush.bf16.msra.mxu0 %v7158
    %7201 = vmatmul.bf16.gmra.mxu0 %v7177
    %v7202 = vpop.f32.mrf.mxu0
    %v7203 = vadd.f32 %v7164, %v7202
    %v7204 = vpop.f32.mrf.mxu0
    %v7205 = vadd.f32 %v7169, %v7204
    %7206 = vdwg.mxu0
    %7207 = vmatpush.bf16.msra.mxu0 0
    %7208 = vmatpush.bf16.msra.mxu0 0
    %7209 = vmatpush.bf16.msra.mxu0 0
    %7210 = vmatpush.bf16.msra.mxu0 0
    %7211 = vmatpush.bf16.msra.mxu0 0
    %7212 = vmatpush.bf16.msra.mxu0 0
    %7213 = vmatpush.bf16.msra.mxu0 0
    %7214 = vmatpush.bf16.msra.mxu0 %v7159
    %7215 = vmatmul.bf16.gmra.mxu0 %v7177
    %v7216 = vpop.f32.mrf.mxu0
    %v7217 = vadd.f32 %v7164, %v7216
    %v7218 = vpop.f32.mrf.mxu0
    %v7219 = vadd.f32 %v7169, %v7218
    %7220 = vdwg.mxu0
    %7221 = vmatpush.bf16.msra.mxu0 0
    %7222 = vmatpush.bf16.msra.mxu0 0
    %7223 = vmatpush.bf16.msra.mxu0 0
    %7224 = vmatpush.bf16.msra.mxu0 0
    %7225 = vmatpush.bf16.msra.mxu0 0
    %7226 = vmatpush.bf16.msra.mxu0 0
    %7227 = vmatpush.bf16.msra.mxu0 0
    %7228 = vmatpush.bf16.msra.mxu0 %v7160
    %7229 = vmatmul.bf16.gmra.mxu0 %v7177
    %v7230 = vpop.f32.mrf.mxu0
    %v7231 = vadd.f32 %v7164, %v7230
    %v7232 = vpop.f32.mrf.mxu0
    %v7233 = vadd.f32 %v7169, %v7232
    %7234 = vdwg.mxu0
    %v7235 = vadd.f32 %v6017, %v7189
    %v7236 = vadd.f32 %v6031, %v7203
    %v7237 = vadd.f32 %v6045, %v7217
    %v7238 = vadd.f32 %v6059, %v7231
    %v7239 = vadd.f32 %v6019, %v7191
    %v7240 = vadd.f32 %v6033, %v7205
    %v7241 = vadd.f32 %v6047, %v7219
    %v7242 = vadd.f32 %v6061, %v7233
    %v7243 = vld [vmem:[#allocation17] sm:$0xff]
    %v7244 = vld [vmem:[#allocation17 + $0x8] sm:$0xff]
    %v7245 = vld [vmem:[%s22] sm:$0xff]
    %v7246 = vld [vmem:[%s22 + $0x8] sm:$0xff]
    %7247 = vrot.lane.b32.xlu0 %v7235, 17
    %v7248 = vpop.permute.xlu0 %7247
    %7249 = vrot.lane.b32.xlu0 %v7239, 17
    %v7250 = vpop.permute.xlu0 %7249
    %7251 = vrot.lane.b32.xlu0 %v7236, 17
    %v7252 = vpop.permute.xlu0 %7251
    %7253 = vrot.lane.b32.xlu0 %v7240, 17
    %v7254 = vpop.permute.xlu0 %7253
    %7255 = vrot.lane.b32.xlu0 %v7237, 17
    %v7256 = vpop.permute.xlu0 %7255
    %7257 = vrot.lane.b32.xlu0 %v7241, 17
    %v7258 = vpop.permute.xlu0 %7257
    %7259 = vrot.lane.b32.xlu0 %v7238, 17
    %v7260 = vpop.permute.xlu0 %7259
    %7261 = vrot.lane.b32.xlu0 %v7242, 17
    %v7262 = vpop.permute.xlu0 %7261
    %v7263 = vsel %vm245, %v7256, %v7260
    %v7264 = vsel %vm245, %v7258, %v7262
    %v7265 = vsel %vm245, %v7252, %v7256
    %v7266 = vsel %vm245, %v7254, %v7258
    %v7267 = vsel %vm245, %v7248, %v7252
    %v7268 = vsel %vm245, %v7250, %v7254
    %v7269 = vsel %vm245, %v7260, %v7248
    %v7270 = vsel %vm245, %v7262, %v7250
    %v7271 = vmul.f32 %v7269, %v253
    %v7272 = vmul.f32 %v7267, %v254
    %v7273 = vmul.f32 %v7265, %v255
    %v7274 = vmul.f32 %v7263, %v256
    %v7275 = vmul.f32 %v7270, %v253
    %v7276 = vmul.f32 %v7268, %v254
    %v7277 = vmul.f32 %v7266, %v255
    %v7278 = vmul.f32 %v7264, %v256
    %7279 = vrot.lane.b32.xlu0 %v7235, 16
    %v7280 = vpop.permute.xlu0 %7279
    %7281 = vrot.lane.b32.xlu0 %v7239, 16
    %v7282 = vpop.permute.xlu0 %7281
    %7283 = vrot.lane.b32.xlu0 %v7236, 16
    %v7284 = vpop.permute.xlu0 %7283
    %7285 = vrot.lane.b32.xlu0 %v7240, 16
    %v7286 = vpop.permute.xlu0 %7285
    %7287 = vrot.lane.b32.xlu0 %v7237, 16
    %v7288 = vpop.permute.xlu0 %7287
    %7289 = vrot.lane.b32.xlu0 %v7241, 16
    %v7290 = vpop.permute.xlu0 %7289
    %7291 = vrot.lane.b32.xlu0 %v7238, 16
    %v7292 = vpop.permute.xlu0 %7291
    %7293 = vrot.lane.b32.xlu0 %v7242, 16
    %v7294 = vpop.permute.xlu0 %7293
    %v7295 = vsel %vm273, %v7288, %v7292
    %v7296 = vsel %vm273, %v7290, %v7294
    %v7297 = vsel %vm273, %v7284, %v7288
    %v7298 = vsel %vm273, %v7286, %v7290
    %v7299 = vsel %vm273, %v7280, %v7284
    %v7300 = vsel %vm273, %v7282, %v7286
    %v7301 = vsel %vm273, %v7292, %v7280
    %v7302 = vsel %vm273, %v7294, %v7282
    %v7303 = vmul.f32 %v7301, %v281
    %v7304 = vmul.f32 %v7299, %v282
    %v7305 = vmul.f32 %v7297, %v283
    %v7306 = vmul.f32 %v7295, %v284
    %v7307 = vmul.f32 %v7302, %v281
    %v7308 = vmul.f32 %v7300, %v282
    %v7309 = vmul.f32 %v7298, %v283
    %v7310 = vmul.f32 %v7296, %v284
    %7311 = vrot.lane.b32.xlu0 %v7235, 15
    %v7312 = vpop.permute.xlu0 %7311
    %7313 = vrot.lane.b32.xlu0 %v7239, 15
    %v7314 = vpop.permute.xlu0 %7313
    %7315 = vrot.lane.b32.xlu0 %v7236, 15
    %v7316 = vpop.permute.xlu0 %7315
    %7317 = vrot.lane.b32.xlu0 %v7240, 15
    %v7318 = vpop.permute.xlu0 %7317
    %7319 = vrot.lane.b32.xlu0 %v7237, 15
    %v7320 = vpop.permute.xlu0 %7319
    %7321 = vrot.lane.b32.xlu0 %v7241, 15
    %v7322 = vpop.permute.xlu0 %7321
    %7323 = vrot.lane.b32.xlu0 %v7238, 15
    %v7324 = vpop.permute.xlu0 %7323
    %7325 = vrot.lane.b32.xlu0 %v7242, 15
    %v7326 = vpop.permute.xlu0 %7325
    %v7327 = vsel %vm301, %v7320, %v7324
    %v7328 = vsel %vm301, %v7322, %v7326
    %v7329 = vsel %vm301, %v7316, %v7320
    %v7330 = vsel %vm301, %v7318, %v7322
    %v7331 = vsel %vm301, %v7312, %v7316
    %v7332 = vsel %vm301, %v7314, %v7318
    %v7333 = vsel %vm301, %v7324, %v7312
    %v7334 = vsel %vm301, %v7326, %v7314
    %v7335 = vmul.f32 %v7333, %v309
    %v7336 = vmul.f32 %v7331, %v310
    %v7337 = vmul.f32 %v7329, %v311
    %v7338 = vmul.f32 %v7327, %v312
    %v7339 = vmul.f32 %v7334, %v309
    %v7340 = vmul.f32 %v7332, %v310
    %v7341 = vmul.f32 %v7330, %v311
    %v7342 = vmul.f32 %v7328, %v312
    %7343 = vrot.lane.b32.xlu0 %v7235, 1
    %v7344 = vpop.permute.xlu0 %7343
    %7345 = vrot.lane.b32.xlu0 %v7239, 1
    %v7346 = vpop.permute.xlu0 %7345
    %7347 = vrot.lane.b32.xlu0 %v7236, 1
    %v7348 = vpop.permute.xlu0 %7347
    %7349 = vrot.lane.b32.xlu0 %v7240, 1
    %v7350 = vpop.permute.xlu0 %7349
    %7351 = vrot.lane.b32.xlu0 %v7237, 1
    %v7352 = vpop.permute.xlu0 %7351
    %7353 = vrot.lane.b32.xlu0 %v7241, 1
    %v7354 = vpop.permute.xlu0 %7353
    %7355 = vrot.lane.b32.xlu0 %v7238, 1
    %v7356 = vpop.permute.xlu0 %7355
    %7357 = vrot.lane.b32.xlu0 %v7242, 1
    %v7358 = vpop.permute.xlu0 %7357
    %v7359 = vsel %vm329, %v7352, %v7356
    %v7360 = vsel %vm329, %v7354, %v7358
    %v7361 = vsel %vm329, %v7348, %v7352
    %v7362 = vsel %vm329, %v7350, %v7354
    %v7363 = vsel %vm329, %v7344, %v7348
    %v7364 = vsel %vm329, %v7346, %v7350
    %v7365 = vsel %vm329, %v7356, %v7344
    %v7366 = vsel %vm329, %v7358, %v7346
    %v7367 = vmul.f32 %v7365, %v337
    %v7368 = vmul.f32 %v7363, %v338
    %v7369 = vmul.f32 %v7361, %v339
    %v7370 = vmul.f32 %v7359, %v340
    %v7371 = vmul.f32 %v7366, %v337
    %v7372 = vmul.f32 %v7364, %v338
    %v7373 = vmul.f32 %v7362, %v339
    %v7374 = vmul.f32 %v7360, %v340
    %7375 = vrot.lane.b32.xlu0 %v7235, 127
    %v7376 = vpop.permute.xlu0 %7375
    %7377 = vrot.lane.b32.xlu0 %v7239, 127
    %v7378 = vpop.permute.xlu0 %7377
    %7379 = vrot.lane.b32.xlu0 %v7236, 127
    %v7380 = vpop.permute.xlu0 %7379
    %7381 = vrot.lane.b32.xlu0 %v7240, 127
    %v7382 = vpop.permute.xlu0 %7381
    %7383 = vrot.lane.b32.xlu0 %v7237, 127
    %v7384 = vpop.permute.xlu0 %7383
    %7385 = vrot.lane.b32.xlu0 %v7241, 127
    %v7386 = vpop.permute.xlu0 %7385
    %7387 = vrot.lane.b32.xlu0 %v7238, 127
    %v7388 = vpop.permute.xlu0 %7387
    %7389 = vrot.lane.b32.xlu0 %v7242, 127
    %v7390 = vpop.permute.xlu0 %7389
    %v7391 = vsel %vm357, %v7384, %v7388
    %v7392 = vsel %vm357, %v7386, %v7390
    %v7393 = vsel %vm357, %v7380, %v7384
    %v7394 = vsel %vm357, %v7382, %v7386
    %v7395 = vsel %vm357, %v7376, %v7380
    %v7396 = vsel %vm357, %v7378, %v7382
    %v7397 = vsel %vm357, %v7388, %v7376
    %v7398 = vsel %vm357, %v7390, %v7378
    %v7399 = vmul.f32 %v7395, %v365
    %v7400 = vmul.f32 %v7393, %v366
    %v7401 = vmul.f32 %v7391, %v367
    %v7402 = vmul.f32 %v7397, %v368
    %v7403 = vmul.f32 %v7396, %v365
    %v7404 = vmul.f32 %v7394, %v366
    %v7405 = vmul.f32 %v7392, %v367
    %v7406 = vmul.f32 %v7398, %v368
    %7407 = vrot.lane.b32.xlu0 %v7235, 113
    %v7408 = vpop.permute.xlu0 %7407
    %7409 = vrot.lane.b32.xlu0 %v7239, 113
    %v7410 = vpop.permute.xlu0 %7409
    %7411 = vrot.lane.b32.xlu0 %v7236, 113
    %v7412 = vpop.permute.xlu0 %7411
    %7413 = vrot.lane.b32.xlu0 %v7240, 113
    %v7414 = vpop.permute.xlu0 %7413
    %7415 = vrot.lane.b32.xlu0 %v7237, 113
    %v7416 = vpop.permute.xlu0 %7415
    %7417 = vrot.lane.b32.xlu0 %v7241, 113
    %v7418 = vpop.permute.xlu0 %7417
    %7419 = vrot.lane.b32.xlu0 %v7238, 113
    %v7420 = vpop.permute.xlu0 %7419
    %7421 = vrot.lane.b32.xlu0 %v7242, 113
    %v7422 = vpop.permute.xlu0 %7421
    %v7423 = vsel %vm385, %v7416, %v7420
    %v7424 = vsel %vm385, %v7418, %v7422
    %v7425 = vsel %vm385, %v7412, %v7416
    %v7426 = vsel %vm385, %v7414, %v7418
    %v7427 = vsel %vm385, %v7408, %v7412
    %v7428 = vsel %vm385, %v7410, %v7414
    %v7429 = vsel %vm385, %v7420, %v7408
    %v7430 = vsel %vm385, %v7422, %v7410
    %v7431 = vmul.f32 %v7427, %v393
    %v7432 = vmul.f32 %v7425, %v394
    %v7433 = vmul.f32 %v7423, %v395
    %v7434 = vmul.f32 %v7429, %v396
    %v7435 = vmul.f32 %v7428, %v393
    %v7436 = vmul.f32 %v7426, %v394
    %v7437 = vmul.f32 %v7424, %v395
    %v7438 = vmul.f32 %v7430, %v396
    %7439 = vrot.lane.b32.xlu0 %v7235, 112
    %v7440 = vpop.permute.xlu0 %7439
    %7441 = vrot.lane.b32.xlu0 %v7239, 112
    %v7442 = vpop.permute.xlu0 %7441
    %7443 = vrot.lane.b32.xlu0 %v7236, 112
    %v7444 = vpop.permute.xlu0 %7443
    %7445 = vrot.lane.b32.xlu0 %v7240, 112
    %v7446 = vpop.permute.xlu0 %7445
    %7447 = vrot.lane.b32.xlu0 %v7237, 112
    %v7448 = vpop.permute.xlu0 %7447
    %7449 = vrot.lane.b32.xlu0 %v7241, 112
    %v7450 = vpop.permute.xlu0 %7449
    %7451 = vrot.lane.b32.xlu0 %v7238, 112
    %v7452 = vpop.permute.xlu0 %7451
    %7453 = vrot.lane.b32.xlu0 %v7242, 112
    %v7454 = vpop.permute.xlu0 %7453
    %v7455 = vsel %vm413, %v7448, %v7452
    %v7456 = vsel %vm413, %v7450, %v7454
    %v7457 = vsel %vm413, %v7444, %v7448
    %v7458 = vsel %vm413, %v7446, %v7450
    %v7459 = vsel %vm413, %v7440, %v7444
    %v7460 = vsel %vm413, %v7442, %v7446
    %v7461 = vsel %vm413, %v7452, %v7440
    %v7462 = vsel %vm413, %v7454, %v7442
    %v7463 = vmul.f32 %v7459, %v421
    %v7464 = vmul.f32 %v7457, %v422
    %v7465 = vmul.f32 %v7455, %v423
    %v7466 = vmul.f32 %v7461, %v424
    %v7467 = vmul.f32 %v7460, %v421
    %v7468 = vmul.f32 %v7458, %v422
    %v7469 = vmul.f32 %v7456, %v423
    %v7470 = vmul.f32 %v7462, %v424
    %7471 = vrot.lane.b32.xlu0 %v7235, 111
    %v7472 = vpop.permute.xlu0 %7471
    %7473 = vrot.lane.b32.xlu0 %v7239, 111
    %v7474 = vpop.permute.xlu0 %7473
    %7475 = vrot.lane.b32.xlu0 %v7236, 111
    %v7476 = vpop.permute.xlu0 %7475
    %7477 = vrot.lane.b32.xlu0 %v7240, 111
    %v7478 = vpop.permute.xlu0 %7477
    %7479 = vrot.lane.b32.xlu0 %v7237, 111
    %v7480 = vpop.permute.xlu0 %7479
    %7481 = vrot.lane.b32.xlu0 %v7241, 111
    %v7482 = vpop.permute.xlu0 %7481
    %7483 = vrot.lane.b32.xlu0 %v7238, 111
    %v7484 = vpop.permute.xlu0 %7483
    %7485 = vrot.lane.b32.xlu0 %v7242, 111
    %v7486 = vpop.permute.xlu0 %7485
    %v7487 = vsel %vm441, %v7480, %v7484
    %v7488 = vsel %vm441, %v7482, %v7486
    %v7489 = vsel %vm441, %v7476, %v7480
    %v7490 = vsel %vm441, %v7478, %v7482
    %v7491 = vsel %vm441, %v7472, %v7476
    %v7492 = vsel %vm441, %v7474, %v7478
    %v7493 = vsel %vm441, %v7484, %v7472
    %v7494 = vsel %vm441, %v7486, %v7474
    %v7495 = vmul.f32 %v7491, %v449
    %v7496 = vmul.f32 %v7489, %v450
    %v7497 = vmul.f32 %v7487, %v451
    %v7498 = vmul.f32 %v7493, %v452
    %v7499 = vmul.f32 %v7492, %v449
    %v7500 = vmul.f32 %v7490, %v450
    %v7501 = vmul.f32 %v7488, %v451
    %v7502 = vmul.f32 %v7494, %v452
    %v7503 = vpack.c.bf16 %v7275, %v7271
    %v7504 = vpack.c.bf16 %v7276, %v7272
    %v7505 = vpack.c.bf16 %v7277, %v7273
    %v7506 = vpack.c.bf16 %v7278, %v7274
    %v7507 = vpack.c.bf16 %v7307, %v7303
    %v7508 = vpack.c.bf16 %v7308, %v7304
    %v7509 = vpack.c.bf16 %v7309, %v7305
    %v7510 = vpack.c.bf16 %v7310, %v7306
    %v7511 = vpack.c.bf16 %v7339, %v7335
    %v7512 = vpack.c.bf16 %v7340, %v7336
    %v7513 = vpack.c.bf16 %v7341, %v7337
    %v7514 = vpack.c.bf16 %v7342, %v7338
    %v7515 = vpack.c.bf16 %v7371, %v7367
    %v7516 = vpack.c.bf16 %v7372, %v7368
    %v7517 = vpack.c.bf16 %v7373, %v7369
    %v7518 = vpack.c.bf16 %v7374, %v7370
    %v7519 = vpack.c.bf16 %v7239, %v7235
    %v7520 = vpack.c.bf16 %v7240, %v7236
    %v7521 = vpack.c.bf16 %v7241, %v7237
    %v7522 = vpack.c.bf16 %v7242, %v7238
    %v7523 = vpack.c.bf16 %v7403, %v7399
    %v7524 = vpack.c.bf16 %v7404, %v7400
    %v7525 = vpack.c.bf16 %v7405, %v7401
    %v7526 = vpack.c.bf16 %v7406, %v7402
    %v7527 = vpack.c.bf16 %v7435, %v7431
    %v7528 = vpack.c.bf16 %v7436, %v7432
    %v7529 = vpack.c.bf16 %v7437, %v7433
    %v7530 = vpack.c.bf16 %v7438, %v7434
    %v7531 = vpack.c.bf16 %v7467, %v7463
    %v7532 = vpack.c.bf16 %v7468, %v7464
    %v7533 = vpack.c.bf16 %v7469, %v7465
    %v7534 = vpack.c.bf16 %v7470, %v7466
    %v7535 = vpack.c.bf16 %v7499, %v7495
    %v7536 = vpack.c.bf16 %v7500, %v7496
    %v7537 = vpack.c.bf16 %v7501, %v7497
    %v7538 = vpack.c.bf16 %v7502, %v7498
    %7540 = vset.pattern.permute.xlu0 0
    %7541 = vperm.xlu0 %7540, %v7245
    %v7542 = vpop.permute.xlu0 %7541
    %7545 = vset.pattern.permute.xlu0 0
    %7546 = vperm.xlu0 %7545, %v7246
    %v7547 = vpop.permute.xlu0 %7546
    %v7551 = vunpack.c.l.b16 %v7243
    %v7552 = vunpack.c.h.b16 %v7243
    %v7553 = vunpack.c.l.b16 %v7244
    %v7554 = vunpack.c.h.b16 %v7244
    %v7555 = vpack.c.b16 %v7553, %v7551
    %v7556 = vpack.c.b16 %v7554, %v7552
    %v7559 = vsel %vm576, %v7556, 0
    %7561 = vmatpush.bf16.msra.mxu0 %v7531
    %7562 = vmatpush.bf16.msra.mxu0 %v7527
    %7563 = vmatpush.bf16.msra.mxu0 %v7523
    %7564 = vmatpush.bf16.msra.mxu0 %v7519
    %7565 = vmatpush.bf16.msra.mxu0 %v7515
    %7566 = vmatpush.bf16.msra.mxu0 %v7511
    %7567 = vmatpush.bf16.msra.mxu0 %v7507
    %7568 = vmatpush.bf16.msra.mxu0 %v7503
    %7569 = vmatmul.bf16.gmra.mxu0 %v7555
    %v7570 = vpop.f32.mrf.mxu0
    %v7571 = vadd.f32 %v7542, %v7570
    %v7572 = vpop.f32.mrf.mxu0
    %v7573 = vadd.f32 %v7547, %v7572
    %7574 = vdwg.mxu0
    %7575 = vmatpush.bf16.msra.mxu0 0
    %7576 = vmatpush.bf16.msra.mxu0 0
    %7577 = vmatpush.bf16.msra.mxu0 0
    %7578 = vmatpush.bf16.msra.mxu0 0
    %7579 = vmatpush.bf16.msra.mxu0 0
    %7580 = vmatpush.bf16.msra.mxu0 0
    %7581 = vmatpush.bf16.msra.mxu0 0
    %7582 = vmatpush.bf16.msra.mxu0 %v7535
    %7583 = vmatmul.bf16.gmra.mxu0 %v7559
    %v7584 = vpop.f32.mrf.mxu0
    %v7585 = vadd.f32 %v7571, %v7584
    %v7586 = vpop.f32.mrf.mxu0
    %v7587 = vadd.f32 %v7573, %v7586
    %7588 = vdwg.mxu0
    %7589 = vmatpush.bf16.msra.mxu0 %v7532
    %7590 = vmatpush.bf16.msra.mxu0 %v7528
    %7591 = vmatpush.bf16.msra.mxu0 %v7524
    %7592 = vmatpush.bf16.msra.mxu0 %v7520
    %7593 = vmatpush.bf16.msra.mxu0 %v7516
    %7594 = vmatpush.bf16.msra.mxu0 %v7512
    %7595 = vmatpush.bf16.msra.mxu0 %v7508
    %7596 = vmatpush.bf16.msra.mxu0 %v7504
    %7597 = vmatmul.bf16.gmra.mxu0 %v7555
    %v7598 = vpop.f32.mrf.mxu0
    %v7599 = vadd.f32 %v7542, %v7598
    %v7600 = vpop.f32.mrf.mxu0
    %v7601 = vadd.f32 %v7547, %v7600
    %7602 = vdwg.mxu0
    %7603 = vmatpush.bf16.msra.mxu0 0
    %7604 = vmatpush.bf16.msra.mxu0 0
    %7605 = vmatpush.bf16.msra.mxu0 0
    %7606 = vmatpush.bf16.msra.mxu0 0
    %7607 = vmatpush.bf16.msra.mxu0 0
    %7608 = vmatpush.bf16.msra.mxu0 0
    %7609 = vmatpush.bf16.msra.mxu0 0
    %7610 = vmatpush.bf16.msra.mxu0 %v7536
    %7611 = vmatmul.bf16.gmra.mxu0 %v7559
    %v7612 = vpop.f32.mrf.mxu0
    %v7613 = vadd.f32 %v7599, %v7612
    %v7614 = vpop.f32.mrf.mxu0
    %v7615 = vadd.f32 %v7601, %v7614
    %7616 = vdwg.mxu0
    %7617 = vmatpush.bf16.msra.mxu0 %v7533
    %7618 = vmatpush.bf16.msra.mxu0 %v7529
    %7619 = vmatpush.bf16.msra.mxu0 %v7525
    %7620 = vmatpush.bf16.msra.mxu0 %v7521
    %7621 = vmatpush.bf16.msra.mxu0 %v7517
    %7622 = vmatpush.bf16.msra.mxu0 %v7513
    %7623 = vmatpush.bf16.msra.mxu0 %v7509
    %7624 = vmatpush.bf16.msra.mxu0 %v7505
    %7625 = vmatmul.bf16.gmra.mxu0 %v7555
    %v7626 = vpop.f32.mrf.mxu0
    %v7627 = vadd.f32 %v7542, %v7626
    %v7628 = vpop.f32.mrf.mxu0
    %v7629 = vadd.f32 %v7547, %v7628
    %7630 = vdwg.mxu0
    %7631 = vmatpush.bf16.msra.mxu0 0
    %7632 = vmatpush.bf16.msra.mxu0 0
    %7633 = vmatpush.bf16.msra.mxu0 0
    %7634 = vmatpush.bf16.msra.mxu0 0
    %7635 = vmatpush.bf16.msra.mxu0 0
    %7636 = vmatpush.bf16.msra.mxu0 0
    %7637 = vmatpush.bf16.msra.mxu0 0
    %7638 = vmatpush.bf16.msra.mxu0 %v7537
    %7639 = vmatmul.bf16.gmra.mxu0 %v7559
    %v7640 = vpop.f32.mrf.mxu0
    %v7641 = vadd.f32 %v7627, %v7640
    %v7642 = vpop.f32.mrf.mxu0
    %v7643 = vadd.f32 %v7629, %v7642
    %7644 = vdwg.mxu0
    %7645 = vmatpush.bf16.msra.mxu0 %v7534
    %7646 = vmatpush.bf16.msra.mxu0 %v7530
    %7647 = vmatpush.bf16.msra.mxu0 %v7526
    %7648 = vmatpush.bf16.msra.mxu0 %v7522
    %7649 = vmatpush.bf16.msra.mxu0 %v7518
    %7650 = vmatpush.bf16.msra.mxu0 %v7514
    %7651 = vmatpush.bf16.msra.mxu0 %v7510
    %7652 = vmatpush.bf16.msra.mxu0 %v7506
    %7653 = vmatmul.bf16.gmra.mxu0 %v7555
    %v7654 = vpop.f32.mrf.mxu0
    %v7655 = vadd.f32 %v7542, %v7654
    %v7656 = vpop.f32.mrf.mxu0
    %v7657 = vadd.f32 %v7547, %v7656
    %7658 = vdwg.mxu0
    %7659 = vmatpush.bf16.msra.mxu0 0
    %7660 = vmatpush.bf16.msra.mxu0 0
    %7661 = vmatpush.bf16.msra.mxu0 0
    %7662 = vmatpush.bf16.msra.mxu0 0
    %7663 = vmatpush.bf16.msra.mxu0 0
    %7664 = vmatpush.bf16.msra.mxu0 0
    %7665 = vmatpush.bf16.msra.mxu0 0
    %7666 = vmatpush.bf16.msra.mxu0 %v7538
    %7667 = vmatmul.bf16.gmra.mxu0 %v7559
    %v7668 = vpop.f32.mrf.mxu0
    %v7669 = vadd.f32 %v7655, %v7668
    %v7670 = vpop.f32.mrf.mxu0
    %v7671 = vadd.f32 %v7657, %v7670
    %7672 = vdwg.mxu0
    %v7673 = vtanh.pop %v7585
    %v7674 = vtanh.pop %v7613
    %v7675 = vtanh.pop %v7641
    %v7676 = vtanh.pop %v7669
    %v7677 = vtanh.pop %v7587
    %v7678 = vtanh.pop %v7615
    %v7679 = vtanh.pop %v7643
    %v7680 = vtanh.pop %v7671
    %7681 = vst [vmem:[%s23] sm:$0xff] %v7673
    %7682 = vst [vmem:[%s23 + $0x8] sm:$0xff] %v7674
    %7683 = vst [vmem:[%s23 + $0x10] sm:$0xff] %v7675
    %7684 = vst [vmem:[%s23 + $0x18] sm:$0xff] %v7676
    %7685 = vst [vmem:[%s23 + $0x20] sm:$0xff] %v7677
    %7686 = vst [vmem:[%s23 + $0x28] sm:$0xff] %v7678
    %7687 = vst [vmem:[%s23 + $0x30] sm:$0xff] %v7679
    %7688 = vst [vmem:[%s23 + $0x38] sm:$0xff] %v7680
    // Predicated region
    $region134: #{_lambda_.1} parent=1 // pred_check
      _
    $region135: #{_lambda_.1} parent=1 // pred_check_branch
      %7690 = sbr.rel (0) target = $region137
    $region136: #{_lambda_.1} parent=1 // pred_region
      _
    $region137: #{_lambda_.1} parent=1 // pred_fallthru
      _
    // Predicated region
    $region138: #{_lambda_.1} parent=1 // pred_check
      _
    $region139: #{_lambda_.1} parent=1 // pred_check_branch
      %7692 = sbr.rel (0) target = $region141
    $region140: #{_lambda_.1} parent=1 // pred_region
      _
    $region141: #{_lambda_.1} parent=1 // pred_fallthru
      _
    %7693 = vsyncpa [#allocation4], 1
    %7694 = vsyncpa [#allocation6], 1
    %7695 = vsyncpa [#allocation9], 1
    %7696 = vsyncpa [#allocation12], 1
    %7697 = vsyncpa [#allocation15], 1
    %7698 = vsyncpa [#allocation18], 1

</llo_original>
